<compile_context>
chip_gen: v7x
topology: tpu7x:2x2x1
jax: 0.10.0
libtpu: 0.0.40
codegen_flags: <defaults>
</compile_context>

<pallas_src>
import functools

import jax
import jax.numpy as jnp
from jax.experimental import pallas as pl
from jax.experimental.pallas import tpu as pltpu


def _round_up(x, m):
    return ((x + m - 1) // m) * m


def _tpu_generation():
    """Best-effort TPU generation from device_kind (5 = v5e, 6 = v6e, 7 = v7x)."""
    kind = jax.devices()[0].device_kind.lower()
    if 'v7' in kind:
        return 7
    if 'v6' in kind:
        return 6
    if 'v5' in kind:
        return 5
    return 6  # unknown -> v6e-like defaults


def _project_plan(C, D):
    """Pick (slab, lane_chunk, unroll) so the project VALU chain has ILP without vreg spills."""
    vals = 7 * C + 4                                  # C x-slabs + 6C acc2 + ~4 temps live
    lchunk = 128 if (D > 128 and D % 128 == 0) else D  # chunk lanes for wide D
    lvr = max(1, (lchunk + 127) // 128)               # f32 vregs per (8, lchunk) value
    slab = 16 if vals * 2 * lvr <= 56 else 8           # 16-row slabs -> 2 vregs/value (ILP)
    per_iter = vals * (slab // 8) * lvr
    unroll = 2 if per_iter * 2 <= 56 else 1            # partial unroll only if it still fits
    return slab, lchunk, unroll


def _modal_conbin_kernel(C, slab, lchunk, unroll, project_bf16, *refs):
    xs_refs = refs[:C]
    (w1_ref, b1_ref, w2_ref, b2_ref, w3_ref, b3_ref,
     wf1_ref, bf1_ref, wf2_ref, bf2_ref, g_ref, be_ref,
     out_ref, o_scratch) = refs[C:]

    H = 6 * C
    tile, D = out_ref.shape
    nslab = tile // slab
    nlc = D // lchunk
    cdt = jnp.bfloat16 if project_bf16 else jnp.float32

    # ---- hoist all SMEM scalar reads out of the slab loops (read once per grid step) ----
    w1 = [[w1_ref[c, j].astype(cdt) for j in range(H)] for c in range(C)]
    b1 = [b1_ref[0, j].astype(cdt) for j in range(H)]
    w2 = [[w2_ref[k, j].astype(cdt) for j in range(H)] for k in range(H)]
    b2 = [b2_ref[0, j].astype(cdt) for j in range(H)]
    w3 = [w3_ref[0, j].astype(cdt) for j in range(H)]
    b3 = b3_ref[0, 0].astype(cdt)

    # ---- _project: Linear(C,6C)+ReLU -> Linear(6C,6C)+ReLU -> Linear(6C,1)+ReLU ---------
    # Elementwise VPU math over (slab, lchunk) blocks.  Each h1_k is streamed directly into
    # the H running h2 accumulators, and each finished h2_j into the output accumulator, so
    # only ~C + 6C values are live at any time.
    def make_project_body(col):
        def project_slab(s, carry):
            row = pl.multiple_of(s * slab, slab)
            x = [r[pl.ds(row, slab), pl.ds(col, lchunk)].astype(cdt) for r in xs_refs]

            acc2 = [None] * H
            for k in range(H):
                h1k = x[0] * w1[0][k]
                for c in range(1, C):
                    h1k = h1k + x[c] * w1[c][k]
                h1k = jnp.maximum(h1k + b1[k], 0)
                for j in range(H):
                    contrib = h1k * w2[k][j]
                    acc2[j] = contrib if acc2[j] is None else acc2[j] + contrib

            o_acc = None
            for j in range(H):
                h2j = jnp.maximum(acc2[j] + b2[j], 0)
                term = h2j * w3[j]
                o_acc = term if o_acc is None else o_acc + term
            o_slab = jnp.maximum(o_acc + b3, 0)

            o_scratch[pl.ds(row, slab), pl.ds(col, lchunk)] = o_slab.astype(jnp.float32)
            return carry
        return project_slab

    for lc in range(nlc):
        jax.lax.fori_loop(0, nslab, make_project_body(lc * lchunk), 0,
                          unroll=unroll if unroll > 1 else False)

    # ---- _ffn: Conv1d(D,4D,1) -> ELU -> Conv1d(4D,D,1) on the full token tile (MXU) ------
    o = o_scratch[...]                                           # (tile, D) f32
    wdt = wf1_ref.dtype                                          # f32, or bf16 if use_bf16_mxu
    hf = jnp.dot(o.astype(wdt), wf1_ref[...],
                 preferred_element_type=jnp.float32) + bf1_ref[...]
    hf = jnp.where(hf > 0, hf, jnp.exp(jnp.minimum(hf, 0.0)) - 1.0)   # ELU(alpha=1)
    y = jnp.dot(hf.astype(wdt), wf2_ref[...],
                preferred_element_type=jnp.float32) + bf2_ref[...]

    # ---- residual + LayerNorm(d_model) (eps = 1e-5, biased variance, one-pass stats) -----
    z = o + y
    mu = jnp.mean(z, axis=-1, keepdims=True)
    var = jnp.maximum(jnp.mean(z * z, axis=-1, keepdims=True) - mu * mu, 0.0)
    zn = (z - mu) * jax.lax.rsqrt(var + 1e-5)
    out_ref[...] = (zn * g_ref[...] + be_ref[...]).astype(out_ref.dtype)


def modal_conbin(combs, params, *, token_tile=None, use_bf16_mxu=False,
                 use_bf16_project=False, single_buffer_weights=True):
    """Pallas TPU implementation of ModalConbin.forward (eval mode)."""
    B, L, D = combs[0].shape
    C = len(combs)
    H = 6 * C
    T = B * L
    gen = _tpu_generation()

    slab, lchunk, unroll = _project_plan(C, D)

    # Per-generation token-tile defaults (v5e/v6e: big tiles amortize per-step overhead and
    # the SMEM scalar hoist; v7x: smaller tiles so both TensorCores get grid steps).
    if token_tile is None:
        token_tile = 256 if gen == 7 else (1024 if D <= 256 else 512)
    token_tile = max(_round_up(token_tile, slab), slab)

    tile = min(token_tile, _round_up(T, slab))
    T_pad = _round_up(T, tile)
    if gen == 7:
        # Guarantee >= 2 parallel grid steps on v7x (2 TCs); keep tile >= 128 for MXU M.
        while T_pad // tile < 2 and tile >= 256 and (tile // 2) % slab == 0:
            tile //= 2
            T_pad = _round_up(T, tile)
    assert tile % slab == 0 and D % lchunk == 0

    # Pass each comb separately (no stacked HBM copy); zero-pad the token axis to T_pad.
    xs = []
    for c in combs:
        x = c.reshape(T, D).astype(jnp.float32)
        if T_pad != T:
            x = jnp.pad(x, ((0, T_pad - T), (0, 0)))
        xs.append(x)

    p = dict(params)
    if use_bf16_mxu:
        # bf16 matmul inputs for v6e/v7x (halves wf1/wf2 VMEM, ~2x MXU throughput).
        # Validate against the accuracy tolerance per shape before enabling.
        p['wf1'] = p['wf1'].astype(jnp.bfloat16)
        p['wf2'] = p['wf2'].astype(jnp.bfloat16)
    if use_bf16_project and gen == 5:
        use_bf16_project = False   # v5e VALU has no packed bf16; keep f32 VPU math.

    weight_keys = ('wf1', 'bf1', 'wf2', 'bf2', 'gamma', 'beta')
    weight_bytes = sum(int(p[k].size) * p[k].dtype.itemsize for k in weight_keys)

    # Advisory cost estimate for the XLA scheduler.
    flops = int(T_pad) * (16 * D * D + 2 * D * (C * H + H * H + H))
    transcendentals = int(T_pad) * 4 * D                      # ELU exp
    bytes_accessed = int(C * T_pad * D * 4 + T_pad * D * 4 + weight_bytes
                         + (C * H + H * H + H + 3 * H + 1) * 4)
    cost = pl.CostEstimate(flops=flops, transcendentals=transcendentals,
                           bytes_accessed=bytes_accessed)

    # Rough per-step VMEM estimate (double-buffered streaming blocks + FFN intermediates).
    wbuf = 1 if single_buffer_weights else 2
    vmem_est = (2 * C * tile * D * 4      # input blocks (x2 buffers)
                + 2 * tile * D * 4        # output block (x2 buffers)
                + tile * D * 4            # o scratch
                + 2 * tile * 4 * D * 4    # hf / ffn intermediates (headroom)
                + wbuf * weight_bytes)

    # Default scoped-VMEM is ~16 MiB on v5e and ~32 MiB on v6e/v7x; physical VMEM is
    # 128 MiB (v5e/v6e) but only 64 MiB per TensorCore on v7x, so cap at 48 MiB there.
    if gen == 5:
        threshold, cap = 14 << 20, 100 << 20
    elif gen == 7:
        threshold, cap = 28 << 20, 48 << 20
    else:
        threshold, cap = 28 << 20, 100 << 20
    vmem_limit = None
    if vmem_est > threshold:
        vmem_limit = min(vmem_est + (8 << 20), cap)

    smem_spec = pl.BlockSpec(memory_space=pltpu.MemorySpace.SMEM)

    def _call(single_buffer):
        def _wspec(arr):
            if single_buffer:
                # Constant-index blocks: no need for double buffering.
                return pl.BlockSpec(arr.shape, lambda i: (0, 0),
                                    pipeline_mode=pl.Buffered(1))
            return pl.BlockSpec(arr.shape, lambda i: (0, 0))

        in_specs = ([pl.BlockSpec((tile, D), lambda i: (i, 0)) for _ in range(C)]
                    + [smem_spec] * 6
                    + [_wspec(p[k]) for k in weight_keys])

        return pl.pallas_call(
            functools.partial(_modal_conbin_kernel, C, slab, lchunk, unroll,
                              bool(use_bf16_project)),
            out_shape=jax.ShapeDtypeStruct((T_pad, D), jnp.float32),
            grid=(T_pad // tile,),
            in_specs=in_specs,
            out_specs=pl.BlockSpec((tile, D), lambda i: (i, 0)),
            scratch_shapes=[pltpu.VMEM((tile, D), jnp.float32)],
            compiler_params=pltpu.CompilerParams(
                dimension_semantics=("parallel",),
                vmem_limit_bytes=vmem_limit),
            cost_estimate=cost,
        )(*xs,
          p['w1'], p['b1'], p['w2'], p['b2'], p['w3'], p['b3'],
          p['wf1'], p['bf1'], p['wf2'], p['bf2'], p['gamma'], p['beta'])

    if single_buffer_weights:
        try:
            out = _call(True)
        except (TypeError, NotImplementedError, pltpu.LoweringException):
            # Narrow fallback: only Buffered(1)-style rejections retry with default
            # double-buffered weight blocks.  Any unrelated error (VMEM OOM, real
            # lowering bug) reproduces on the fallback call and is raised there.
            out = _call(False)
    else:
        out = _call(False)

    return out[:T].reshape(B, L, D)


def init_params(key, numcomb, d_model):
    C, H, D = numcomb, 6 * numcomb, d_model
    ks = jax.random.split(key, 8)

    def g(k, shape, scale):
        return jax.random.normal(k, shape, jnp.float32) * scale

    return dict(
        # _project (Linear weights stored as (in, out); last one as (1, 6C))
        w1=g(ks[0], (C, H), 0.5),
        b1=jnp.full((1, H), 0.01, jnp.float32),
        w2=g(ks[1], (H, H), 0.3),
        b2=jnp.full((1, H), 0.01, jnp.float32),
        w3=g(ks[2], (1, H), 0.3),
        b3=jnp.full((1, 1), 0.01, jnp.float32),
        # _ffn (Conv1d k=1 weights stored transposed as (in, out) matmuls)
        wf1=g(ks[3], (D, 4 * D), 0.1),
        bf1=g(ks[4], (1, 4 * D), 0.05),
        wf2=g(ks[5], (4 * D, D), 0.1),
        bf2=g(ks[6], (1, D), 0.05),
        # LayerNorm
        gamma=jnp.ones((1, D), jnp.float32),
        beta=jnp.zeros((1, D), jnp.float32),
    )


def reference(combs, p):
    """Pure-JAX reference matching the PyTorch forward (eval mode)."""
    B, L, D = combs[0].shape
    x = jnp.stack([c.reshape(B, -1) for c in combs], axis=-1)        # (B, L*D, C)
    h = jax.nn.relu(x @ p['w1'] + p['b1'][0])
    h = jax.nn.relu(h @ p['w2'] + p['b2'][0])
    o = jax.nn.relu(h @ p['w3'].T + p['b3'][0, 0]).reshape(B, L, D)
    hf = o @ p['wf1'] + p['bf1'][0]
    hf = jnp.where(hf > 0, hf, jnp.exp(jnp.minimum(hf, 0.0)) - 1.0)
    y = hf @ p['wf2'] + p['bf2'][0]
    z = o + y
    mu = z.mean(-1, keepdims=True)
    var = ((z - mu) ** 2).mean(-1, keepdims=True)
    return (z - mu) / jnp.sqrt(var + 1e-5) * p['gamma'][0] + p['beta'][0]


if __name__ == "__main__":
    # Main test: lane-dense d_model (128) and T = 512 tokens.
    numcomb = 3
    d_model = 128
    B, L = 2, 256

    key = jax.random.PRNGKey(0)
    kp, kx = jax.random.split(key)
    params = init_params(kp, numcomb, d_model)
    xkeys = jax.random.split(kx, numcomb)
    combs = [jax.random.normal(xkeys[i], (B, L, d_model), jnp.float32)
             for i in range(numcomb)]

    out = jax.block_until_ready(modal_conbin(combs, params))
    ref = jax.block_until_ready(reference(combs, params))
    assert out.shape == (B, L, d_model)
    err = float(jnp.max(jnp.abs(out - ref)))
    assert jnp.allclose(out, ref, rtol=5e-4, atol=5e-4), f"max abs err {err}"

    # Secondary test: small d_model and a token count that needs padding (T = 20).
    d2, B2, L2 = 32, 2, 10
    params2 = init_params(kp, numcomb, d2)
    combs2 = [jax.random.normal(xkeys[i], (B2, L2, d2), jnp.float32)
              for i in range(numcomb)]
    out2 = jax.block_until_ready(modal_conbin(combs2, params2))
    ref2 = jax.block_until_ready(reference(combs2, params2))
    assert out2.shape == (B2, L2, d2)
    err2 = float(jnp.max(jnp.abs(out2 - ref2)))
    assert jnp.allclose(out2, ref2, rtol=5e-4, atol=5e-4), f"max abs err {err2}"

    print("KERNEL_OK")
</pallas_src>

<mosaic_0001>
module attributes {stable_mosaic.version = 11 : i64} {
  func.func @_modal_conbin_kernel(%arg0: i32, %arg1: memref<512x128xf32, #tpu.memory_space<vmem>>, %arg2: memref<512x128xf32, #tpu.memory_space<vmem>>, %arg3: memref<512x128xf32, #tpu.memory_space<vmem>>, %arg4: memref<3x18xf32, #tpu.memory_space<smem>>, %arg5: memref<1x18xf32, #tpu.memory_space<smem>>, %arg6: memref<18x18xf32, #tpu.memory_space<smem>>, %arg7: memref<1x18xf32, #tpu.memory_space<smem>>, %arg8: memref<1x18xf32, #tpu.memory_space<smem>>, %arg9: memref<1x1xf32, #tpu.memory_space<smem>>, %arg10: memref<128x512xf32, #tpu.memory_space<vmem>>, %arg11: memref<1x512xf32, #tpu.memory_space<vmem>>, %arg12: memref<512x128xf32, #tpu.memory_space<vmem>>, %arg13: memref<1x128xf32, #tpu.memory_space<vmem>>, %arg14: memref<1x128xf32, #tpu.memory_space<vmem>>, %arg15: memref<1x128xf32, #tpu.memory_space<vmem>>, %arg16: memref<512x128xf32, #tpu.memory_space<vmem>>, %arg17: memref<512x128xf32, #tpu.memory_space<vmem>>) attributes {dimension_semantics = [#tpu.dimension_semantics<parallel>], iteration_bounds = array<i64: 1>, scalar_prefetch = 0 : i64, scratch_operands = 1 : i64, tpu.core_type = #tpu.core_type<tc>, window_params = [{transform_indices = @transform_0, window_bounds = array<i64: 512, 128>}, {transform_indices = @transform_1, window_bounds = array<i64: 512, 128>}, {transform_indices = @transform_2, window_bounds = array<i64: 512, 128>}, {transform_indices = @transform_3, window_bounds = array<i64: 3, 18>}, {transform_indices = @transform_4, window_bounds = array<i64: 1, 18>}, {transform_indices = @transform_5, window_bounds = array<i64: 18, 18>}, {transform_indices = @transform_6, window_bounds = array<i64: 1, 18>}, {transform_indices = @transform_7, window_bounds = array<i64: 1, 18>}, {transform_indices = @transform_8, window_bounds = array<i64: 1, 1>}, {pipeline_mode = #tpu.pipeline_mode<synchronous>, transform_indices = @transform_9, window_bounds = array<i64: 128, 512>}, {pipeline_mode = #tpu.pipeline_mode<synchronous>, transform_indices = @transform_10, window_bounds = array<i64: 1, 512>}, {pipeline_mode = #tpu.pipeline_mode<synchronous>, transform_indices = @transform_11, window_bounds = array<i64: 512, 128>}, {pipeline_mode = #tpu.pipeline_mode<synchronous>, transform_indices = @transform_12, window_bounds = array<i64: 1, 128>}, {pipeline_mode = #tpu.pipeline_mode<synchronous>, transform_indices = @transform_13, window_bounds = array<i64: 1, 128>}, {pipeline_mode = #tpu.pipeline_mode<synchronous>, transform_indices = @transform_14, window_bounds = array<i64: 1, 128>}, {transform_indices = @transform_15, window_bounds = array<i64: 512, 128>}]} {
    %c0 = arith.constant 0 : index
    %c0_0 = arith.constant 0 : index
    %0 = memref.load %arg4[%c0, %c0_0] : memref<3x18xf32, #tpu.memory_space<smem>>
    %c0_1 = arith.constant 0 : index
    %c1 = arith.constant 1 : index
    %1 = memref.load %arg4[%c0_1, %c1] : memref<3x18xf32, #tpu.memory_space<smem>>
    %c0_2 = arith.constant 0 : index
    %c2 = arith.constant 2 : index
    %2 = memref.load %arg4[%c0_2, %c2] : memref<3x18xf32, #tpu.memory_space<smem>>
    %c0_3 = arith.constant 0 : index
    %c3 = arith.constant 3 : index
    %3 = memref.load %arg4[%c0_3, %c3] : memref<3x18xf32, #tpu.memory_space<smem>>
    %c0_4 = arith.constant 0 : index
    %c4 = arith.constant 4 : index
    %4 = memref.load %arg4[%c0_4, %c4] : memref<3x18xf32, #tpu.memory_space<smem>>
    %c0_5 = arith.constant 0 : index
    %c5 = arith.constant 5 : index
    %5 = memref.load %arg4[%c0_5, %c5] : memref<3x18xf32, #tpu.memory_space<smem>>
    %c0_6 = arith.constant 0 : index
    %c6 = arith.constant 6 : index
    %6 = memref.load %arg4[%c0_6, %c6] : memref<3x18xf32, #tpu.memory_space<smem>>
    %c0_7 = arith.constant 0 : index
    %c7 = arith.constant 7 : index
    %7 = memref.load %arg4[%c0_7, %c7] : memref<3x18xf32, #tpu.memory_space<smem>>
    %c0_8 = arith.constant 0 : index
    %c8 = arith.constant 8 : index
    %8 = memref.load %arg4[%c0_8, %c8] : memref<3x18xf32, #tpu.memory_space<smem>>
    %c0_9 = arith.constant 0 : index
    %c9 = arith.constant 9 : index
    %9 = memref.load %arg4[%c0_9, %c9] : memref<3x18xf32, #tpu.memory_space<smem>>
    %c0_10 = arith.constant 0 : index
    %c10 = arith.constant 10 : index
    %10 = memref.load %arg4[%c0_10, %c10] : memref<3x18xf32, #tpu.memory_space<smem>>
    %c0_11 = arith.constant 0 : index
    %c11 = arith.constant 11 : index
    %11 = memref.load %arg4[%c0_11, %c11] : memref<3x18xf32, #tpu.memory_space<smem>>
    %c0_12 = arith.constant 0 : index
    %c12 = arith.constant 12 : index
    %12 = memref.load %arg4[%c0_12, %c12] : memref<3x18xf32, #tpu.memory_space<smem>>
    %c0_13 = arith.constant 0 : index
    %c13 = arith.constant 13 : index
    %13 = memref.load %arg4[%c0_13, %c13] : memref<3x18xf32, #tpu.memory_space<smem>>
    %c0_14 = arith.constant 0 : index
    %c14 = arith.constant 14 : index
    %14 = memref.load %arg4[%c0_14, %c14] : memref<3x18xf32, #tpu.memory_space<smem>>
    %c0_15 = arith.constant 0 : index
    %c15 = arith.constant 15 : index
    %15 = memref.load %arg4[%c0_15, %c15] : memref<3x18xf32, #tpu.memory_space<smem>>
    %c0_16 = arith.constant 0 : index
    %c16 = arith.constant 16 : index
    %16 = memref.load %arg4[%c0_16, %c16] : memref<3x18xf32, #tpu.memory_space<smem>>
    %c0_17 = arith.constant 0 : index
    %c17 = arith.constant 17 : index
    %17 = memref.load %arg4[%c0_17, %c17] : memref<3x18xf32, #tpu.memory_space<smem>>
    %c1_18 = arith.constant 1 : index
    %c0_19 = arith.constant 0 : index
    %18 = memref.load %arg4[%c1_18, %c0_19] : memref<3x18xf32, #tpu.memory_space<smem>>
    %c1_20 = arith.constant 1 : index
    %c1_21 = arith.constant 1 : index
    %19 = memref.load %arg4[%c1_20, %c1_21] : memref<3x18xf32, #tpu.memory_space<smem>>
    %c1_22 = arith.constant 1 : index
    %c2_23 = arith.constant 2 : index
    %20 = memref.load %arg4[%c1_22, %c2_23] : memref<3x18xf32, #tpu.memory_space<smem>>
    %c1_24 = arith.constant 1 : index
    %c3_25 = arith.constant 3 : index
    %21 = memref.load %arg4[%c1_24, %c3_25] : memref<3x18xf32, #tpu.memory_space<smem>>
    %c1_26 = arith.constant 1 : index
    %c4_27 = arith.constant 4 : index
    %22 = memref.load %arg4[%c1_26, %c4_27] : memref<3x18xf32, #tpu.memory_space<smem>>
    %c1_28 = arith.constant 1 : index
    %c5_29 = arith.constant 5 : index
    %23 = memref.load %arg4[%c1_28, %c5_29] : memref<3x18xf32, #tpu.memory_space<smem>>
    %c1_30 = arith.constant 1 : index
    %c6_31 = arith.constant 6 : index
    %24 = memref.load %arg4[%c1_30, %c6_31] : memref<3x18xf32, #tpu.memory_space<smem>>
    %c1_32 = arith.constant 1 : index
    %c7_33 = arith.constant 7 : index
    %25 = memref.load %arg4[%c1_32, %c7_33] : memref<3x18xf32, #tpu.memory_space<smem>>
    %c1_34 = arith.constant 1 : index
    %c8_35 = arith.constant 8 : index
    %26 = memref.load %arg4[%c1_34, %c8_35] : memref<3x18xf32, #tpu.memory_space<smem>>
    %c1_36 = arith.constant 1 : index
    %c9_37 = arith.constant 9 : index
    %27 = memref.load %arg4[%c1_36, %c9_37] : memref<3x18xf32, #tpu.memory_space<smem>>
    %c1_38 = arith.constant 1 : index
    %c10_39 = arith.constant 10 : index
    %28 = memref.load %arg4[%c1_38, %c10_39] : memref<3x18xf32, #tpu.memory_space<smem>>
    %c1_40 = arith.constant 1 : index
    %c11_41 = arith.constant 11 : index
    %29 = memref.load %arg4[%c1_40, %c11_41] : memref<3x18xf32, #tpu.memory_space<smem>>
    %c1_42 = arith.constant 1 : index
    %c12_43 = arith.constant 12 : index
    %30 = memref.load %arg4[%c1_42, %c12_43] : memref<3x18xf32, #tpu.memory_space<smem>>
    %c1_44 = arith.constant 1 : index
    %c13_45 = arith.constant 13 : index
    %31 = memref.load %arg4[%c1_44, %c13_45] : memref<3x18xf32, #tpu.memory_space<smem>>
    %c1_46 = arith.constant 1 : index
    %c14_47 = arith.constant 14 : index
    %32 = memref.load %arg4[%c1_46, %c14_47] : memref<3x18xf32, #tpu.memory_space<smem>>
    %c1_48 = arith.constant 1 : index
    %c15_49 = arith.constant 15 : index
    %33 = memref.load %arg4[%c1_48, %c15_49] : memref<3x18xf32, #tpu.memory_space<smem>>
    %c1_50 = arith.constant 1 : index
    %c16_51 = arith.constant 16 : index
    %34 = memref.load %arg4[%c1_50, %c16_51] : memref<3x18xf32, #tpu.memory_space<smem>>
    %c1_52 = arith.constant 1 : index
    %c17_53 = arith.constant 17 : index
    %35 = memref.load %arg4[%c1_52, %c17_53] : memref<3x18xf32, #tpu.memory_space<smem>>
    %c2_54 = arith.constant 2 : index
    %c0_55 = arith.constant 0 : index
    %36 = memref.load %arg4[%c2_54, %c0_55] : memref<3x18xf32, #tpu.memory_space<smem>>
    %c2_56 = arith.constant 2 : index
    %c1_57 = arith.constant 1 : index
    %37 = memref.load %arg4[%c2_56, %c1_57] : memref<3x18xf32, #tpu.memory_space<smem>>
    %c2_58 = arith.constant 2 : index
    %c2_59 = arith.constant 2 : index
    %38 = memref.load %arg4[%c2_58, %c2_59] : memref<3x18xf32, #tpu.memory_space<smem>>
    %c2_60 = arith.constant 2 : index
    %c3_61 = arith.constant 3 : index
    %39 = memref.load %arg4[%c2_60, %c3_61] : memref<3x18xf32, #tpu.memory_space<smem>>
    %c2_62 = arith.constant 2 : index
    %c4_63 = arith.constant 4 : index
    %40 = memref.load %arg4[%c2_62, %c4_63] : memref<3x18xf32, #tpu.memory_space<smem>>
    %c2_64 = arith.constant 2 : index
    %c5_65 = arith.constant 5 : index
    %41 = memref.load %arg4[%c2_64, %c5_65] : memref<3x18xf32, #tpu.memory_space<smem>>
    %c2_66 = arith.constant 2 : index
    %c6_67 = arith.constant 6 : index
    %42 = memref.load %arg4[%c2_66, %c6_67] : memref<3x18xf32, #tpu.memory_space<smem>>
    %c2_68 = arith.constant 2 : index
    %c7_69 = arith.constant 7 : index
    %43 = memref.load %arg4[%c2_68, %c7_69] : memref<3x18xf32, #tpu.memory_space<smem>>
    %c2_70 = arith.constant 2 : index
    %c8_71 = arith.constant 8 : index
    %44 = memref.load %arg4[%c2_70, %c8_71] : memref<3x18xf32, #tpu.memory_space<smem>>
    %c2_72 = arith.constant 2 : index
    %c9_73 = arith.constant 9 : index
    %45 = memref.load %arg4[%c2_72, %c9_73] : memref<3x18xf32, #tpu.memory_space<smem>>
    %c2_74 = arith.constant 2 : index
    %c10_75 = arith.constant 10 : index
    %46 = memref.load %arg4[%c2_74, %c10_75] : memref<3x18xf32, #tpu.memory_space<smem>>
    %c2_76 = arith.constant 2 : index
    %c11_77 = arith.constant 11 : index
    %47 = memref.load %arg4[%c2_76, %c11_77] : memref<3x18xf32, #tpu.memory_space<smem>>
    %c2_78 = arith.constant 2 : index
    %c12_79 = arith.constant 12 : index
    %48 = memref.load %arg4[%c2_78, %c12_79] : memref<3x18xf32, #tpu.memory_space<smem>>
    %c2_80 = arith.constant 2 : index
    %c13_81 = arith.constant 13 : index
    %49 = memref.load %arg4[%c2_80, %c13_81] : memref<3x18xf32, #tpu.memory_space<smem>>
    %c2_82 = arith.constant 2 : index
    %c14_83 = arith.constant 14 : index
    %50 = memref.load %arg4[%c2_82, %c14_83] : memref<3x18xf32, #tpu.memory_space<smem>>
    %c2_84 = arith.constant 2 : index
    %c15_85 = arith.constant 15 : index
    %51 = memref.load %arg4[%c2_84, %c15_85] : memref<3x18xf32, #tpu.memory_space<smem>>
    %c2_86 = arith.constant 2 : index
    %c16_87 = arith.constant 16 : index
    %52 = memref.load %arg4[%c2_86, %c16_87] : memref<3x18xf32, #tpu.memory_space<smem>>
    %c2_88 = arith.constant 2 : index
    %c17_89 = arith.constant 17 : index
    %53 = memref.load %arg4[%c2_88, %c17_89] : memref<3x18xf32, #tpu.memory_space<smem>>
    %c0_90 = arith.constant 0 : index
    %c0_91 = arith.constant 0 : index
    %54 = memref.load %arg5[%c0_90, %c0_91] : memref<1x18xf32, #tpu.memory_space<smem>>
    %c0_92 = arith.constant 0 : index
    %c1_93 = arith.constant 1 : index
    %55 = memref.load %arg5[%c0_92, %c1_93] : memref<1x18xf32, #tpu.memory_space<smem>>
    %c0_94 = arith.constant 0 : index
    %c2_95 = arith.constant 2 : index
    %56 = memref.load %arg5[%c0_94, %c2_95] : memref<1x18xf32, #tpu.memory_space<smem>>
    %c0_96 = arith.constant 0 : index
    %c3_97 = arith.constant 3 : index
    %57 = memref.load %arg5[%c0_96, %c3_97] : memref<1x18xf32, #tpu.memory_space<smem>>
    %c0_98 = arith.constant 0 : index
    %c4_99 = arith.constant 4 : index
    %58 = memref.load %arg5[%c0_98, %c4_99] : memref<1x18xf32, #tpu.memory_space<smem>>
    %c0_100 = arith.constant 0 : index
    %c5_101 = arith.constant 5 : index
    %59 = memref.load %arg5[%c0_100, %c5_101] : memref<1x18xf32, #tpu.memory_space<smem>>
    %c0_102 = arith.constant 0 : index
    %c6_103 = arith.constant 6 : index
    %60 = memref.load %arg5[%c0_102, %c6_103] : memref<1x18xf32, #tpu.memory_space<smem>>
    %c0_104 = arith.constant 0 : index
    %c7_105 = arith.constant 7 : index
    %61 = memref.load %arg5[%c0_104, %c7_105] : memref<1x18xf32, #tpu.memory_space<smem>>
    %c0_106 = arith.constant 0 : index
    %c8_107 = arith.constant 8 : index
    %62 = memref.load %arg5[%c0_106, %c8_107] : memref<1x18xf32, #tpu.memory_space<smem>>
    %c0_108 = arith.constant 0 : index
    %c9_109 = arith.constant 9 : index
    %63 = memref.load %arg5[%c0_108, %c9_109] : memref<1x18xf32, #tpu.memory_space<smem>>
    %c0_110 = arith.constant 0 : index
    %c10_111 = arith.constant 10 : index
    %64 = memref.load %arg5[%c0_110, %c10_111] : memref<1x18xf32, #tpu.memory_space<smem>>
    %c0_112 = arith.constant 0 : index
    %c11_113 = arith.constant 11 : index
    %65 = memref.load %arg5[%c0_112, %c11_113] : memref<1x18xf32, #tpu.memory_space<smem>>
    %c0_114 = arith.constant 0 : index
    %c12_115 = arith.constant 12 : index
    %66 = memref.load %arg5[%c0_114, %c12_115] : memref<1x18xf32, #tpu.memory_space<smem>>
    %c0_116 = arith.constant 0 : index
    %c13_117 = arith.constant 13 : index
    %67 = memref.load %arg5[%c0_116, %c13_117] : memref<1x18xf32, #tpu.memory_space<smem>>
    %c0_118 = arith.constant 0 : index
    %c14_119 = arith.constant 14 : index
    %68 = memref.load %arg5[%c0_118, %c14_119] : memref<1x18xf32, #tpu.memory_space<smem>>
    %c0_120 = arith.constant 0 : index
    %c15_121 = arith.constant 15 : index
    %69 = memref.load %arg5[%c0_120, %c15_121] : memref<1x18xf32, #tpu.memory_space<smem>>
    %c0_122 = arith.constant 0 : index
    %c16_123 = arith.constant 16 : index
    %70 = memref.load %arg5[%c0_122, %c16_123] : memref<1x18xf32, #tpu.memory_space<smem>>
    %c0_124 = arith.constant 0 : index
    %c17_125 = arith.constant 17 : index
    %71 = memref.load %arg5[%c0_124, %c17_125] : memref<1x18xf32, #tpu.memory_space<smem>>
    %c0_126 = arith.constant 0 : index
    %c0_127 = arith.constant 0 : index
    %72 = memref.load %arg6[%c0_126, %c0_127] : memref<18x18xf32, #tpu.memory_space<smem>>
    %c0_128 = arith.constant 0 : index
    %c1_129 = arith.constant 1 : index
    %73 = memref.load %arg6[%c0_128, %c1_129] : memref<18x18xf32, #tpu.memory_space<smem>>
    %c0_130 = arith.constant 0 : index
    %c2_131 = arith.constant 2 : index
    %74 = memref.load %arg6[%c0_130, %c2_131] : memref<18x18xf32, #tpu.memory_space<smem>>
    %c0_132 = arith.constant 0 : index
    %c3_133 = arith.constant 3 : index
    %75 = memref.load %arg6[%c0_132, %c3_133] : memref<18x18xf32, #tpu.memory_space<smem>>
    %c0_134 = arith.constant 0 : index
    %c4_135 = arith.constant 4 : index
    %76 = memref.load %arg6[%c0_134, %c4_135] : memref<18x18xf32, #tpu.memory_space<smem>>
    %c0_136 = arith.constant 0 : index
    %c5_137 = arith.constant 5 : index
    %77 = memref.load %arg6[%c0_136, %c5_137] : memref<18x18xf32, #tpu.memory_space<smem>>
    %c0_138 = arith.constant 0 : index
    %c6_139 = arith.constant 6 : index
    %78 = memref.load %arg6[%c0_138, %c6_139] : memref<18x18xf32, #tpu.memory_space<smem>>
    %c0_140 = arith.constant 0 : index
    %c7_141 = arith.constant 7 : index
    %79 = memref.load %arg6[%c0_140, %c7_141] : memref<18x18xf32, #tpu.memory_space<smem>>
    %c0_142 = arith.constant 0 : index
    %c8_143 = arith.constant 8 : index
    %80 = memref.load %arg6[%c0_142, %c8_143] : memref<18x18xf32, #tpu.memory_space<smem>>
    %c0_144 = arith.constant 0 : index
    %c9_145 = arith.constant 9 : index
    %81 = memref.load %arg6[%c0_144, %c9_145] : memref<18x18xf32, #tpu.memory_space<smem>>
    %c0_146 = arith.constant 0 : index
    %c10_147 = arith.constant 10 : index
    %82 = memref.load %arg6[%c0_146, %c10_147] : memref<18x18xf32, #tpu.memory_space<smem>>
    %c0_148 = arith.constant 0 : index
    %c11_149 = arith.constant 11 : index
    %83 = memref.load %arg6[%c0_148, %c11_149] : memref<18x18xf32, #tpu.memory_space<smem>>
    %c0_150 = arith.constant 0 : index
    %c12_151 = arith.constant 12 : index
    %84 = memref.load %arg6[%c0_150, %c12_151] : memref<18x18xf32, #tpu.memory_space<smem>>
    %c0_152 = arith.constant 0 : index
    %c13_153 = arith.constant 13 : index
    %85 = memref.load %arg6[%c0_152, %c13_153] : memref<18x18xf32, #tpu.memory_space<smem>>
    %c0_154 = arith.constant 0 : index
    %c14_155 = arith.constant 14 : index
    %86 = memref.load %arg6[%c0_154, %c14_155] : memref<18x18xf32, #tpu.memory_space<smem>>
    %c0_156 = arith.constant 0 : index
    %c15_157 = arith.constant 15 : index
    %87 = memref.load %arg6[%c0_156, %c15_157] : memref<18x18xf32, #tpu.memory_space<smem>>
    %c0_158 = arith.constant 0 : index
    %c16_159 = arith.constant 16 : index
    %88 = memref.load %arg6[%c0_158, %c16_159] : memref<18x18xf32, #tpu.memory_space<smem>>
    %c0_160 = arith.constant 0 : index
    %c17_161 = arith.constant 17 : index
    %89 = memref.load %arg6[%c0_160, %c17_161] : memref<18x18xf32, #tpu.memory_space<smem>>
    %c1_162 = arith.constant 1 : index
    %c0_163 = arith.constant 0 : index
    %90 = memref.load %arg6[%c1_162, %c0_163] : memref<18x18xf32, #tpu.memory_space<smem>>
    %c1_164 = arith.constant 1 : index
    %c1_165 = arith.constant 1 : index
    %91 = memref.load %arg6[%c1_164, %c1_165] : memref<18x18xf32, #tpu.memory_space<smem>>
    %c1_166 = arith.constant 1 : index
    %c2_167 = arith.constant 2 : index
    %92 = memref.load %arg6[%c1_166, %c2_167] : memref<18x18xf32, #tpu.memory_space<smem>>
    %c1_168 = arith.constant 1 : index
    %c3_169 = arith.constant 3 : index
    %93 = memref.load %arg6[%c1_168, %c3_169] : memref<18x18xf32, #tpu.memory_space<smem>>
    %c1_170 = arith.constant 1 : index
    %c4_171 = arith.constant 4 : index
    %94 = memref.load %arg6[%c1_170, %c4_171] : memref<18x18xf32, #tpu.memory_space<smem>>
    %c1_172 = arith.constant 1 : index
    %c5_173 = arith.constant 5 : index
    %95 = memref.load %arg6[%c1_172, %c5_173] : memref<18x18xf32, #tpu.memory_space<smem>>
    %c1_174 = arith.constant 1 : index
    %c6_175 = arith.constant 6 : index
    %96 = memref.load %arg6[%c1_174, %c6_175] : memref<18x18xf32, #tpu.memory_space<smem>>
    %c1_176 = arith.constant 1 : index
    %c7_177 = arith.constant 7 : index
    %97 = memref.load %arg6[%c1_176, %c7_177] : memref<18x18xf32, #tpu.memory_space<smem>>
    %c1_178 = arith.constant 1 : index
    %c8_179 = arith.constant 8 : index
    %98 = memref.load %arg6[%c1_178, %c8_179] : memref<18x18xf32, #tpu.memory_space<smem>>
    %c1_180 = arith.constant 1 : index
    %c9_181 = arith.constant 9 : index
    %99 = memref.load %arg6[%c1_180, %c9_181] : memref<18x18xf32, #tpu.memory_space<smem>>
    %c1_182 = arith.constant 1 : index
    %c10_183 = arith.constant 10 : index
    %100 = memref.load %arg6[%c1_182, %c10_183] : memref<18x18xf32, #tpu.memory_space<smem>>
    %c1_184 = arith.constant 1 : index
    %c11_185 = arith.constant 11 : index
    %101 = memref.load %arg6[%c1_184, %c11_185] : memref<18x18xf32, #tpu.memory_space<smem>>
    %c1_186 = arith.constant 1 : index
    %c12_187 = arith.constant 12 : index
    %102 = memref.load %arg6[%c1_186, %c12_187] : memref<18x18xf32, #tpu.memory_space<smem>>
    %c1_188 = arith.constant 1 : index
    %c13_189 = arith.constant 13 : index
    %103 = memref.load %arg6[%c1_188, %c13_189] : memref<18x18xf32, #tpu.memory_space<smem>>
    %c1_190 = arith.constant 1 : index
    %c14_191 = arith.constant 14 : index
    %104 = memref.load %arg6[%c1_190, %c14_191] : memref<18x18xf32, #tpu.memory_space<smem>>
    %c1_192 = arith.constant 1 : index
    %c15_193 = arith.constant 15 : index
    %105 = memref.load %arg6[%c1_192, %c15_193] : memref<18x18xf32, #tpu.memory_space<smem>>
    %c1_194 = arith.constant 1 : index
    %c16_195 = arith.constant 16 : index
    %106 = memref.load %arg6[%c1_194, %c16_195] : memref<18x18xf32, #tpu.memory_space<smem>>
    %c1_196 = arith.constant 1 : index
    %c17_197 = arith.constant 17 : index
    %107 = memref.load %arg6[%c1_196, %c17_197] : memref<18x18xf32, #tpu.memory_space<smem>>
    %c2_198 = arith.constant 2 : index
    %c0_199 = arith.constant 0 : index
    %108 = memref.load %arg6[%c2_198, %c0_199] : memref<18x18xf32, #tpu.memory_space<smem>>
    %c2_200 = arith.constant 2 : index
    %c1_201 = arith.constant 1 : index
    %109 = memref.load %arg6[%c2_200, %c1_201] : memref<18x18xf32, #tpu.memory_space<smem>>
    %c2_202 = arith.constant 2 : index
    %c2_203 = arith.constant 2 : index
    %110 = memref.load %arg6[%c2_202, %c2_203] : memref<18x18xf32, #tpu.memory_space<smem>>
    %c2_204 = arith.constant 2 : index
    %c3_205 = arith.constant 3 : index
    %111 = memref.load %arg6[%c2_204, %c3_205] : memref<18x18xf32, #tpu.memory_space<smem>>
    %c2_206 = arith.constant 2 : index
    %c4_207 = arith.constant 4 : index
    %112 = memref.load %arg6[%c2_206, %c4_207] : memref<18x18xf32, #tpu.memory_space<smem>>
    %c2_208 = arith.constant 2 : index
    %c5_209 = arith.constant 5 : index
    %113 = memref.load %arg6[%c2_208, %c5_209] : memref<18x18xf32, #tpu.memory_space<smem>>
    %c2_210 = arith.constant 2 : index
    %c6_211 = arith.constant 6 : index
    %114 = memref.load %arg6[%c2_210, %c6_211] : memref<18x18xf32, #tpu.memory_space<smem>>
    %c2_212 = arith.constant 2 : index
    %c7_213 = arith.constant 7 : index
    %115 = memref.load %arg6[%c2_212, %c7_213] : memref<18x18xf32, #tpu.memory_space<smem>>
    %c2_214 = arith.constant 2 : index
    %c8_215 = arith.constant 8 : index
    %116 = memref.load %arg6[%c2_214, %c8_215] : memref<18x18xf32, #tpu.memory_space<smem>>
    %c2_216 = arith.constant 2 : index
    %c9_217 = arith.constant 9 : index
    %117 = memref.load %arg6[%c2_216, %c9_217] : memref<18x18xf32, #tpu.memory_space<smem>>
    %c2_218 = arith.constant 2 : index
    %c10_219 = arith.constant 10 : index
    %118 = memref.load %arg6[%c2_218, %c10_219] : memref<18x18xf32, #tpu.memory_space<smem>>
    %c2_220 = arith.constant 2 : index
    %c11_221 = arith.constant 11 : index
    %119 = memref.load %arg6[%c2_220, %c11_221] : memref<18x18xf32, #tpu.memory_space<smem>>
    %c2_222 = arith.constant 2 : index
    %c12_223 = arith.constant 12 : index
    %120 = memref.load %arg6[%c2_222, %c12_223] : memref<18x18xf32, #tpu.memory_space<smem>>
    %c2_224 = arith.constant 2 : index
    %c13_225 = arith.constant 13 : index
    %121 = memref.load %arg6[%c2_224, %c13_225] : memref<18x18xf32, #tpu.memory_space<smem>>
    %c2_226 = arith.constant 2 : index
    %c14_227 = arith.constant 14 : index
    %122 = memref.load %arg6[%c2_226, %c14_227] : memref<18x18xf32, #tpu.memory_space<smem>>
    %c2_228 = arith.constant 2 : index
    %c15_229 = arith.constant 15 : index
    %123 = memref.load %arg6[%c2_228, %c15_229] : memref<18x18xf32, #tpu.memory_space<smem>>
    %c2_230 = arith.constant 2 : index
    %c16_231 = arith.constant 16 : index
    %124 = memref.load %arg6[%c2_230, %c16_231] : memref<18x18xf32, #tpu.memory_space<smem>>
    %c2_232 = arith.constant 2 : index
    %c17_233 = arith.constant 17 : index
    %125 = memref.load %arg6[%c2_232, %c17_233] : memref<18x18xf32, #tpu.memory_space<smem>>
    %c3_234 = arith.constant 3 : index
    %c0_235 = arith.constant 0 : index
    %126 = memref.load %arg6[%c3_234, %c0_235] : memref<18x18xf32, #tpu.memory_space<smem>>
    %c3_236 = arith.constant 3 : index
    %c1_237 = arith.constant 1 : index
    %127 = memref.load %arg6[%c3_236, %c1_237] : memref<18x18xf32, #tpu.memory_space<smem>>
    %c3_238 = arith.constant 3 : index
    %c2_239 = arith.constant 2 : index
    %128 = memref.load %arg6[%c3_238, %c2_239] : memref<18x18xf32, #tpu.memory_space<smem>>
    %c3_240 = arith.constant 3 : index
    %c3_241 = arith.constant 3 : index
    %129 = memref.load %arg6[%c3_240, %c3_241] : memref<18x18xf32, #tpu.memory_space<smem>>
    %c3_242 = arith.constant 3 : index
    %c4_243 = arith.constant 4 : index
    %130 = memref.load %arg6[%c3_242, %c4_243] : memref<18x18xf32, #tpu.memory_space<smem>>
    %c3_244 = arith.constant 3 : index
    %c5_245 = arith.constant 5 : index
    %131 = memref.load %arg6[%c3_244, %c5_245] : memref<18x18xf32, #tpu.memory_space<smem>>
    %c3_246 = arith.constant 3 : index
    %c6_247 = arith.constant 6 : index
    %132 = memref.load %arg6[%c3_246, %c6_247] : memref<18x18xf32, #tpu.memory_space<smem>>
    %c3_248 = arith.constant 3 : index
    %c7_249 = arith.constant 7 : index
    %133 = memref.load %arg6[%c3_248, %c7_249] : memref<18x18xf32, #tpu.memory_space<smem>>
    %c3_250 = arith.constant 3 : index
    %c8_251 = arith.constant 8 : index
    %134 = memref.load %arg6[%c3_250, %c8_251] : memref<18x18xf32, #tpu.memory_space<smem>>
    %c3_252 = arith.constant 3 : index
    %c9_253 = arith.constant 9 : index
    %135 = memref.load %arg6[%c3_252, %c9_253] : memref<18x18xf32, #tpu.memory_space<smem>>
    %c3_254 = arith.constant 3 : index
    %c10_255 = arith.constant 10 : index
    %136 = memref.load %arg6[%c3_254, %c10_255] : memref<18x18xf32, #tpu.memory_space<smem>>
    %c3_256 = arith.constant 3 : index
    %c11_257 = arith.constant 11 : index
    %137 = memref.load %arg6[%c3_256, %c11_257] : memref<18x18xf32, #tpu.memory_space<smem>>
    %c3_258 = arith.constant 3 : index
    %c12_259 = arith.constant 12 : index
    %138 = memref.load %arg6[%c3_258, %c12_259] : memref<18x18xf32, #tpu.memory_space<smem>>
    %c3_260 = arith.constant 3 : index
    %c13_261 = arith.constant 13 : index
    %139 = memref.load %arg6[%c3_260, %c13_261] : memref<18x18xf32, #tpu.memory_space<smem>>
    %c3_262 = arith.constant 3 : index
    %c14_263 = arith.constant 14 : index
    %140 = memref.load %arg6[%c3_262, %c14_263] : memref<18x18xf32, #tpu.memory_space<smem>>
    %c3_264 = arith.constant 3 : index
    %c15_265 = arith.constant 15 : index
    %141 = memref.load %arg6[%c3_264, %c15_265] : memref<18x18xf32, #tpu.memory_space<smem>>
    %c3_266 = arith.constant 3 : index
    %c16_267 = arith.constant 16 : index
    %142 = memref.load %arg6[%c3_266, %c16_267] : memref<18x18xf32, #tpu.memory_space<smem>>
    %c3_268 = arith.constant 3 : index
    %c17_269 = arith.constant 17 : index
    %143 = memref.load %arg6[%c3_268, %c17_269] : memref<18x18xf32, #tpu.memory_space<smem>>
    %c4_270 = arith.constant 4 : index
    %c0_271 = arith.constant 0 : index
    %144 = memref.load %arg6[%c4_270, %c0_271] : memref<18x18xf32, #tpu.memory_space<smem>>
    %c4_272 = arith.constant 4 : index
    %c1_273 = arith.constant 1 : index
    %145 = memref.load %arg6[%c4_272, %c1_273] : memref<18x18xf32, #tpu.memory_space<smem>>
    %c4_274 = arith.constant 4 : index
    %c2_275 = arith.constant 2 : index
    %146 = memref.load %arg6[%c4_274, %c2_275] : memref<18x18xf32, #tpu.memory_space<smem>>
    %c4_276 = arith.constant 4 : index
    %c3_277 = arith.constant 3 : index
    %147 = memref.load %arg6[%c4_276, %c3_277] : memref<18x18xf32, #tpu.memory_space<smem>>
    %c4_278 = arith.constant 4 : index
    %c4_279 = arith.constant 4 : index
    %148 = memref.load %arg6[%c4_278, %c4_279] : memref<18x18xf32, #tpu.memory_space<smem>>
    %c4_280 = arith.constant 4 : index
    %c5_281 = arith.constant 5 : index
    %149 = memref.load %arg6[%c4_280, %c5_281] : memref<18x18xf32, #tpu.memory_space<smem>>
    %c4_282 = arith.constant 4 : index
    %c6_283 = arith.constant 6 : index
    %150 = memref.load %arg6[%c4_282, %c6_283] : memref<18x18xf32, #tpu.memory_space<smem>>
    %c4_284 = arith.constant 4 : index
    %c7_285 = arith.constant 7 : index
    %151 = memref.load %arg6[%c4_284, %c7_285] : memref<18x18xf32, #tpu.memory_space<smem>>
    %c4_286 = arith.constant 4 : index
    %c8_287 = arith.constant 8 : index
    %152 = memref.load %arg6[%c4_286, %c8_287] : memref<18x18xf32, #tpu.memory_space<smem>>
    %c4_288 = arith.constant 4 : index
    %c9_289 = arith.constant 9 : index
    %153 = memref.load %arg6[%c4_288, %c9_289] : memref<18x18xf32, #tpu.memory_space<smem>>
    %c4_290 = arith.constant 4 : index
    %c10_291 = arith.constant 10 : index
    %154 = memref.load %arg6[%c4_290, %c10_291] : memref<18x18xf32, #tpu.memory_space<smem>>
    %c4_292 = arith.constant 4 : index
    %c11_293 = arith.constant 11 : index
    %155 = memref.load %arg6[%c4_292, %c11_293] : memref<18x18xf32, #tpu.memory_space<smem>>
    %c4_294 = arith.constant 4 : index
    %c12_295 = arith.constant 12 : index
    %156 = memref.load %arg6[%c4_294, %c12_295] : memref<18x18xf32, #tpu.memory_space<smem>>
    %c4_296 = arith.constant 4 : index
    %c13_297 = arith.constant 13 : index
    %157 = memref.load %arg6[%c4_296, %c13_297] : memref<18x18xf32, #tpu.memory_space<smem>>
    %c4_298 = arith.constant 4 : index
    %c14_299 = arith.constant 14 : index
    %158 = memref.load %arg6[%c4_298, %c14_299] : memref<18x18xf32, #tpu.memory_space<smem>>
    %c4_300 = arith.constant 4 : index
    %c15_301 = arith.constant 15 : index
    %159 = memref.load %arg6[%c4_300, %c15_301] : memref<18x18xf32, #tpu.memory_space<smem>>
    %c4_302 = arith.constant 4 : index
    %c16_303 = arith.constant 16 : index
    %160 = memref.load %arg6[%c4_302, %c16_303] : memref<18x18xf32, #tpu.memory_space<smem>>
    %c4_304 = arith.constant 4 : index
    %c17_305 = arith.constant 17 : index
    %161 = memref.load %arg6[%c4_304, %c17_305] : memref<18x18xf32, #tpu.memory_space<smem>>
    %c5_306 = arith.constant 5 : index
    %c0_307 = arith.constant 0 : index
    %162 = memref.load %arg6[%c5_306, %c0_307] : memref<18x18xf32, #tpu.memory_space<smem>>
    %c5_308 = arith.constant 5 : index
    %c1_309 = arith.constant 1 : index
    %163 = memref.load %arg6[%c5_308, %c1_309] : memref<18x18xf32, #tpu.memory_space<smem>>
    %c5_310 = arith.constant 5 : index
    %c2_311 = arith.constant 2 : index
    %164 = memref.load %arg6[%c5_310, %c2_311] : memref<18x18xf32, #tpu.memory_space<smem>>
    %c5_312 = arith.constant 5 : index
    %c3_313 = arith.constant 3 : index
    %165 = memref.load %arg6[%c5_312, %c3_313] : memref<18x18xf32, #tpu.memory_space<smem>>
    %c5_314 = arith.constant 5 : index
    %c4_315 = arith.constant 4 : index
    %166 = memref.load %arg6[%c5_314, %c4_315] : memref<18x18xf32, #tpu.memory_space<smem>>
    %c5_316 = arith.constant 5 : index
    %c5_317 = arith.constant 5 : index
    %167 = memref.load %arg6[%c5_316, %c5_317] : memref<18x18xf32, #tpu.memory_space<smem>>
    %c5_318 = arith.constant 5 : index
    %c6_319 = arith.constant 6 : index
    %168 = memref.load %arg6[%c5_318, %c6_319] : memref<18x18xf32, #tpu.memory_space<smem>>
    %c5_320 = arith.constant 5 : index
    %c7_321 = arith.constant 7 : index
    %169 = memref.load %arg6[%c5_320, %c7_321] : memref<18x18xf32, #tpu.memory_space<smem>>
    %c5_322 = arith.constant 5 : index
    %c8_323 = arith.constant 8 : index
    %170 = memref.load %arg6[%c5_322, %c8_323] : memref<18x18xf32, #tpu.memory_space<smem>>
    %c5_324 = arith.constant 5 : index
    %c9_325 = arith.constant 9 : index
    %171 = memref.load %arg6[%c5_324, %c9_325] : memref<18x18xf32, #tpu.memory_space<smem>>
    %c5_326 = arith.constant 5 : index
    %c10_327 = arith.constant 10 : index
    %172 = memref.load %arg6[%c5_326, %c10_327] : memref<18x18xf32, #tpu.memory_space<smem>>
    %c5_328 = arith.constant 5 : index
    %c11_329 = arith.constant 11 : index
    %173 = memref.load %arg6[%c5_328, %c11_329] : memref<18x18xf32, #tpu.memory_space<smem>>
    %c5_330 = arith.constant 5 : index
    %c12_331 = arith.constant 12 : index
    %174 = memref.load %arg6[%c5_330, %c12_331] : memref<18x18xf32, #tpu.memory_space<smem>>
    %c5_332 = arith.constant 5 : index
    %c13_333 = arith.constant 13 : index
    %175 = memref.load %arg6[%c5_332, %c13_333] : memref<18x18xf32, #tpu.memory_space<smem>>
    %c5_334 = arith.constant 5 : index
    %c14_335 = arith.constant 14 : index
    %176 = memref.load %arg6[%c5_334, %c14_335] : memref<18x18xf32, #tpu.memory_space<smem>>
    %c5_336 = arith.constant 5 : index
    %c15_337 = arith.constant 15 : index
    %177 = memref.load %arg6[%c5_336, %c15_337] : memref<18x18xf32, #tpu.memory_space<smem>>
    %c5_338 = arith.constant 5 : index
    %c16_339 = arith.constant 16 : index
    %178 = memref.load %arg6[%c5_338, %c16_339] : memref<18x18xf32, #tpu.memory_space<smem>>
    %c5_340 = arith.constant 5 : index
    %c17_341 = arith.constant 17 : index
    %179 = memref.load %arg6[%c5_340, %c17_341] : memref<18x18xf32, #tpu.memory_space<smem>>
    %c6_342 = arith.constant 6 : index
    %c0_343 = arith.constant 0 : index
    %180 = memref.load %arg6[%c6_342, %c0_343] : memref<18x18xf32, #tpu.memory_space<smem>>
    %c6_344 = arith.constant 6 : index
    %c1_345 = arith.constant 1 : index
    %181 = memref.load %arg6[%c6_344, %c1_345] : memref<18x18xf32, #tpu.memory_space<smem>>
    %c6_346 = arith.constant 6 : index
    %c2_347 = arith.constant 2 : index
    %182 = memref.load %arg6[%c6_346, %c2_347] : memref<18x18xf32, #tpu.memory_space<smem>>
    %c6_348 = arith.constant 6 : index
    %c3_349 = arith.constant 3 : index
    %183 = memref.load %arg6[%c6_348, %c3_349] : memref<18x18xf32, #tpu.memory_space<smem>>
    %c6_350 = arith.constant 6 : index
    %c4_351 = arith.constant 4 : index
    %184 = memref.load %arg6[%c6_350, %c4_351] : memref<18x18xf32, #tpu.memory_space<smem>>
    %c6_352 = arith.constant 6 : index
    %c5_353 = arith.constant 5 : index
    %185 = memref.load %arg6[%c6_352, %c5_353] : memref<18x18xf32, #tpu.memory_space<smem>>
    %c6_354 = arith.constant 6 : index
    %c6_355 = arith.constant 6 : index
    %186 = memref.load %arg6[%c6_354, %c6_355] : memref<18x18xf32, #tpu.memory_space<smem>>
    %c6_356 = arith.constant 6 : index
    %c7_357 = arith.constant 7 : index
    %187 = memref.load %arg6[%c6_356, %c7_357] : memref<18x18xf32, #tpu.memory_space<smem>>
    %c6_358 = arith.constant 6 : index
    %c8_359 = arith.constant 8 : index
    %188 = memref.load %arg6[%c6_358, %c8_359] : memref<18x18xf32, #tpu.memory_space<smem>>
    %c6_360 = arith.constant 6 : index
    %c9_361 = arith.constant 9 : index
    %189 = memref.load %arg6[%c6_360, %c9_361] : memref<18x18xf32, #tpu.memory_space<smem>>
    %c6_362 = arith.constant 6 : index
    %c10_363 = arith.constant 10 : index
    %190 = memref.load %arg6[%c6_362, %c10_363] : memref<18x18xf32, #tpu.memory_space<smem>>
    %c6_364 = arith.constant 6 : index
    %c11_365 = arith.constant 11 : index
    %191 = memref.load %arg6[%c6_364, %c11_365] : memref<18x18xf32, #tpu.memory_space<smem>>
    %c6_366 = arith.constant 6 : index
    %c12_367 = arith.constant 12 : index
    %192 = memref.load %arg6[%c6_366, %c12_367] : memref<18x18xf32, #tpu.memory_space<smem>>
    %c6_368 = arith.constant 6 : index
    %c13_369 = arith.constant 13 : index
    %193 = memref.load %arg6[%c6_368, %c13_369] : memref<18x18xf32, #tpu.memory_space<smem>>
    %c6_370 = arith.constant 6 : index
    %c14_371 = arith.constant 14 : index
    %194 = memref.load %arg6[%c6_370, %c14_371] : memref<18x18xf32, #tpu.memory_space<smem>>
    %c6_372 = arith.constant 6 : index
    %c15_373 = arith.constant 15 : index
    %195 = memref.load %arg6[%c6_372, %c15_373] : memref<18x18xf32, #tpu.memory_space<smem>>
    %c6_374 = arith.constant 6 : index
    %c16_375 = arith.constant 16 : index
    %196 = memref.load %arg6[%c6_374, %c16_375] : memref<18x18xf32, #tpu.memory_space<smem>>
    %c6_376 = arith.constant 6 : index
    %c17_377 = arith.constant 17 : index
    %197 = memref.load %arg6[%c6_376, %c17_377] : memref<18x18xf32, #tpu.memory_space<smem>>
    %c7_378 = arith.constant 7 : index
    %c0_379 = arith.constant 0 : index
    %198 = memref.load %arg6[%c7_378, %c0_379] : memref<18x18xf32, #tpu.memory_space<smem>>
    %c7_380 = arith.constant 7 : index
    %c1_381 = arith.constant 1 : index
    %199 = memref.load %arg6[%c7_380, %c1_381] : memref<18x18xf32, #tpu.memory_space<smem>>
    %c7_382 = arith.constant 7 : index
    %c2_383 = arith.constant 2 : index
    %200 = memref.load %arg6[%c7_382, %c2_383] : memref<18x18xf32, #tpu.memory_space<smem>>
    %c7_384 = arith.constant 7 : index
    %c3_385 = arith.constant 3 : index
    %201 = memref.load %arg6[%c7_384, %c3_385] : memref<18x18xf32, #tpu.memory_space<smem>>
    %c7_386 = arith.constant 7 : index
    %c4_387 = arith.constant 4 : index
    %202 = memref.load %arg6[%c7_386, %c4_387] : memref<18x18xf32, #tpu.memory_space<smem>>
    %c7_388 = arith.constant 7 : index
    %c5_389 = arith.constant 5 : index
    %203 = memref.load %arg6[%c7_388, %c5_389] : memref<18x18xf32, #tpu.memory_space<smem>>
    %c7_390 = arith.constant 7 : index
    %c6_391 = arith.constant 6 : index
    %204 = memref.load %arg6[%c7_390, %c6_391] : memref<18x18xf32, #tpu.memory_space<smem>>
    %c7_392 = arith.constant 7 : index
    %c7_393 = arith.constant 7 : index
    %205 = memref.load %arg6[%c7_392, %c7_393] : memref<18x18xf32, #tpu.memory_space<smem>>
    %c7_394 = arith.constant 7 : index
    %c8_395 = arith.constant 8 : index
    %206 = memref.load %arg6[%c7_394, %c8_395] : memref<18x18xf32, #tpu.memory_space<smem>>
    %c7_396 = arith.constant 7 : index
    %c9_397 = arith.constant 9 : index
    %207 = memref.load %arg6[%c7_396, %c9_397] : memref<18x18xf32, #tpu.memory_space<smem>>
    %c7_398 = arith.constant 7 : index
    %c10_399 = arith.constant 10 : index
    %208 = memref.load %arg6[%c7_398, %c10_399] : memref<18x18xf32, #tpu.memory_space<smem>>
    %c7_400 = arith.constant 7 : index
    %c11_401 = arith.constant 11 : index
    %209 = memref.load %arg6[%c7_400, %c11_401] : memref<18x18xf32, #tpu.memory_space<smem>>
    %c7_402 = arith.constant 7 : index
    %c12_403 = arith.constant 12 : index
    %210 = memref.load %arg6[%c7_402, %c12_403] : memref<18x18xf32, #tpu.memory_space<smem>>
    %c7_404 = arith.constant 7 : index
    %c13_405 = arith.constant 13 : index
    %211 = memref.load %arg6[%c7_404, %c13_405] : memref<18x18xf32, #tpu.memory_space<smem>>
    %c7_406 = arith.constant 7 : index
    %c14_407 = arith.constant 14 : index
    %212 = memref.load %arg6[%c7_406, %c14_407] : memref<18x18xf32, #tpu.memory_space<smem>>
    %c7_408 = arith.constant 7 : index
    %c15_409 = arith.constant 15 : index
    %213 = memref.load %arg6[%c7_408, %c15_409] : memref<18x18xf32, #tpu.memory_space<smem>>
    %c7_410 = arith.constant 7 : index
    %c16_411 = arith.constant 16 : index
    %214 = memref.load %arg6[%c7_410, %c16_411] : memref<18x18xf32, #tpu.memory_space<smem>>
    %c7_412 = arith.constant 7 : index
    %c17_413 = arith.constant 17 : index
    %215 = memref.load %arg6[%c7_412, %c17_413] : memref<18x18xf32, #tpu.memory_space<smem>>
    %c8_414 = arith.constant 8 : index
    %c0_415 = arith.constant 0 : index
    %216 = memref.load %arg6[%c8_414, %c0_415] : memref<18x18xf32, #tpu.memory_space<smem>>
    %c8_416 = arith.constant 8 : index
    %c1_417 = arith.constant 1 : index
    %217 = memref.load %arg6[%c8_416, %c1_417] : memref<18x18xf32, #tpu.memory_space<smem>>
    %c8_418 = arith.constant 8 : index
    %c2_419 = arith.constant 2 : index
    %218 = memref.load %arg6[%c8_418, %c2_419] : memref<18x18xf32, #tpu.memory_space<smem>>
    %c8_420 = arith.constant 8 : index
    %c3_421 = arith.constant 3 : index
    %219 = memref.load %arg6[%c8_420, %c3_421] : memref<18x18xf32, #tpu.memory_space<smem>>
    %c8_422 = arith.constant 8 : index
    %c4_423 = arith.constant 4 : index
    %220 = memref.load %arg6[%c8_422, %c4_423] : memref<18x18xf32, #tpu.memory_space<smem>>
    %c8_424 = arith.constant 8 : index
    %c5_425 = arith.constant 5 : index
    %221 = memref.load %arg6[%c8_424, %c5_425] : memref<18x18xf32, #tpu.memory_space<smem>>
    %c8_426 = arith.constant 8 : index
    %c6_427 = arith.constant 6 : index
    %222 = memref.load %arg6[%c8_426, %c6_427] : memref<18x18xf32, #tpu.memory_space<smem>>
    %c8_428 = arith.constant 8 : index
    %c7_429 = arith.constant 7 : index
    %223 = memref.load %arg6[%c8_428, %c7_429] : memref<18x18xf32, #tpu.memory_space<smem>>
    %c8_430 = arith.constant 8 : index
    %c8_431 = arith.constant 8 : index
    %224 = memref.load %arg6[%c8_430, %c8_431] : memref<18x18xf32, #tpu.memory_space<smem>>
    %c8_432 = arith.constant 8 : index
    %c9_433 = arith.constant 9 : index
    %225 = memref.load %arg6[%c8_432, %c9_433] : memref<18x18xf32, #tpu.memory_space<smem>>
    %c8_434 = arith.constant 8 : index
    %c10_435 = arith.constant 10 : index
    %226 = memref.load %arg6[%c8_434, %c10_435] : memref<18x18xf32, #tpu.memory_space<smem>>
    %c8_436 = arith.constant 8 : index
    %c11_437 = arith.constant 11 : index
    %227 = memref.load %arg6[%c8_436, %c11_437] : memref<18x18xf32, #tpu.memory_space<smem>>
    %c8_438 = arith.constant 8 : index
    %c12_439 = arith.constant 12 : index
    %228 = memref.load %arg6[%c8_438, %c12_439] : memref<18x18xf32, #tpu.memory_space<smem>>
    %c8_440 = arith.constant 8 : index
    %c13_441 = arith.constant 13 : index
    %229 = memref.load %arg6[%c8_440, %c13_441] : memref<18x18xf32, #tpu.memory_space<smem>>
    %c8_442 = arith.constant 8 : index
    %c14_443 = arith.constant 14 : index
    %230 = memref.load %arg6[%c8_442, %c14_443] : memref<18x18xf32, #tpu.memory_space<smem>>
    %c8_444 = arith.constant 8 : index
    %c15_445 = arith.constant 15 : index
    %231 = memref.load %arg6[%c8_444, %c15_445] : memref<18x18xf32, #tpu.memory_space<smem>>
    %c8_446 = arith.constant 8 : index
    %c16_447 = arith.constant 16 : index
    %232 = memref.load %arg6[%c8_446, %c16_447] : memref<18x18xf32, #tpu.memory_space<smem>>
    %c8_448 = arith.constant 8 : index
    %c17_449 = arith.constant 17 : index
    %233 = memref.load %arg6[%c8_448, %c17_449] : memref<18x18xf32, #tpu.memory_space<smem>>
    %c9_450 = arith.constant 9 : index
    %c0_451 = arith.constant 0 : index
    %234 = memref.load %arg6[%c9_450, %c0_451] : memref<18x18xf32, #tpu.memory_space<smem>>
    %c9_452 = arith.constant 9 : index
    %c1_453 = arith.constant 1 : index
    %235 = memref.load %arg6[%c9_452, %c1_453] : memref<18x18xf32, #tpu.memory_space<smem>>
    %c9_454 = arith.constant 9 : index
    %c2_455 = arith.constant 2 : index
    %236 = memref.load %arg6[%c9_454, %c2_455] : memref<18x18xf32, #tpu.memory_space<smem>>
    %c9_456 = arith.constant 9 : index
    %c3_457 = arith.constant 3 : index
    %237 = memref.load %arg6[%c9_456, %c3_457] : memref<18x18xf32, #tpu.memory_space<smem>>
    %c9_458 = arith.constant 9 : index
    %c4_459 = arith.constant 4 : index
    %238 = memref.load %arg6[%c9_458, %c4_459] : memref<18x18xf32, #tpu.memory_space<smem>>
    %c9_460 = arith.constant 9 : index
    %c5_461 = arith.constant 5 : index
    %239 = memref.load %arg6[%c9_460, %c5_461] : memref<18x18xf32, #tpu.memory_space<smem>>
    %c9_462 = arith.constant 9 : index
    %c6_463 = arith.constant 6 : index
    %240 = memref.load %arg6[%c9_462, %c6_463] : memref<18x18xf32, #tpu.memory_space<smem>>
    %c9_464 = arith.constant 9 : index
    %c7_465 = arith.constant 7 : index
    %241 = memref.load %arg6[%c9_464, %c7_465] : memref<18x18xf32, #tpu.memory_space<smem>>
    %c9_466 = arith.constant 9 : index
    %c8_467 = arith.constant 8 : index
    %242 = memref.load %arg6[%c9_466, %c8_467] : memref<18x18xf32, #tpu.memory_space<smem>>
    %c9_468 = arith.constant 9 : index
    %c9_469 = arith.constant 9 : index
    %243 = memref.load %arg6[%c9_468, %c9_469] : memref<18x18xf32, #tpu.memory_space<smem>>
    %c9_470 = arith.constant 9 : index
    %c10_471 = arith.constant 10 : index
    %244 = memref.load %arg6[%c9_470, %c10_471] : memref<18x18xf32, #tpu.memory_space<smem>>
    %c9_472 = arith.constant 9 : index
    %c11_473 = arith.constant 11 : index
    %245 = memref.load %arg6[%c9_472, %c11_473] : memref<18x18xf32, #tpu.memory_space<smem>>
    %c9_474 = arith.constant 9 : index
    %c12_475 = arith.constant 12 : index
    %246 = memref.load %arg6[%c9_474, %c12_475] : memref<18x18xf32, #tpu.memory_space<smem>>
    %c9_476 = arith.constant 9 : index
    %c13_477 = arith.constant 13 : index
    %247 = memref.load %arg6[%c9_476, %c13_477] : memref<18x18xf32, #tpu.memory_space<smem>>
    %c9_478 = arith.constant 9 : index
    %c14_479 = arith.constant 14 : index
    %248 = memref.load %arg6[%c9_478, %c14_479] : memref<18x18xf32, #tpu.memory_space<smem>>
    %c9_480 = arith.constant 9 : index
    %c15_481 = arith.constant 15 : index
    %249 = memref.load %arg6[%c9_480, %c15_481] : memref<18x18xf32, #tpu.memory_space<smem>>
    %c9_482 = arith.constant 9 : index
    %c16_483 = arith.constant 16 : index
    %250 = memref.load %arg6[%c9_482, %c16_483] : memref<18x18xf32, #tpu.memory_space<smem>>
    %c9_484 = arith.constant 9 : index
    %c17_485 = arith.constant 17 : index
    %251 = memref.load %arg6[%c9_484, %c17_485] : memref<18x18xf32, #tpu.memory_space<smem>>
    %c10_486 = arith.constant 10 : index
    %c0_487 = arith.constant 0 : index
    %252 = memref.load %arg6[%c10_486, %c0_487] : memref<18x18xf32, #tpu.memory_space<smem>>
    %c10_488 = arith.constant 10 : index
    %c1_489 = arith.constant 1 : index
    %253 = memref.load %arg6[%c10_488, %c1_489] : memref<18x18xf32, #tpu.memory_space<smem>>
    %c10_490 = arith.constant 10 : index
    %c2_491 = arith.constant 2 : index
    %254 = memref.load %arg6[%c10_490, %c2_491] : memref<18x18xf32, #tpu.memory_space<smem>>
    %c10_492 = arith.constant 10 : index
    %c3_493 = arith.constant 3 : index
    %255 = memref.load %arg6[%c10_492, %c3_493] : memref<18x18xf32, #tpu.memory_space<smem>>
    %c10_494 = arith.constant 10 : index
    %c4_495 = arith.constant 4 : index
    %256 = memref.load %arg6[%c10_494, %c4_495] : memref<18x18xf32, #tpu.memory_space<smem>>
    %c10_496 = arith.constant 10 : index
    %c5_497 = arith.constant 5 : index
    %257 = memref.load %arg6[%c10_496, %c5_497] : memref<18x18xf32, #tpu.memory_space<smem>>
    %c10_498 = arith.constant 10 : index
    %c6_499 = arith.constant 6 : index
    %258 = memref.load %arg6[%c10_498, %c6_499] : memref<18x18xf32, #tpu.memory_space<smem>>
    %c10_500 = arith.constant 10 : index
    %c7_501 = arith.constant 7 : index
    %259 = memref.load %arg6[%c10_500, %c7_501] : memref<18x18xf32, #tpu.memory_space<smem>>
    %c10_502 = arith.constant 10 : index
    %c8_503 = arith.constant 8 : index
    %260 = memref.load %arg6[%c10_502, %c8_503] : memref<18x18xf32, #tpu.memory_space<smem>>
    %c10_504 = arith.constant 10 : index
    %c9_505 = arith.constant 9 : index
    %261 = memref.load %arg6[%c10_504, %c9_505] : memref<18x18xf32, #tpu.memory_space<smem>>
    %c10_506 = arith.constant 10 : index
    %c10_507 = arith.constant 10 : index
    %262 = memref.load %arg6[%c10_506, %c10_507] : memref<18x18xf32, #tpu.memory_space<smem>>
    %c10_508 = arith.constant 10 : index
    %c11_509 = arith.constant 11 : index
    %263 = memref.load %arg6[%c10_508, %c11_509] : memref<18x18xf32, #tpu.memory_space<smem>>
    %c10_510 = arith.constant 10 : index
    %c12_511 = arith.constant 12 : index
    %264 = memref.load %arg6[%c10_510, %c12_511] : memref<18x18xf32, #tpu.memory_space<smem>>
    %c10_512 = arith.constant 10 : index
    %c13_513 = arith.constant 13 : index
    %265 = memref.load %arg6[%c10_512, %c13_513] : memref<18x18xf32, #tpu.memory_space<smem>>
    %c10_514 = arith.constant 10 : index
    %c14_515 = arith.constant 14 : index
    %266 = memref.load %arg6[%c10_514, %c14_515] : memref<18x18xf32, #tpu.memory_space<smem>>
    %c10_516 = arith.constant 10 : index
    %c15_517 = arith.constant 15 : index
    %267 = memref.load %arg6[%c10_516, %c15_517] : memref<18x18xf32, #tpu.memory_space<smem>>
    %c10_518 = arith.constant 10 : index
    %c16_519 = arith.constant 16 : index
    %268 = memref.load %arg6[%c10_518, %c16_519] : memref<18x18xf32, #tpu.memory_space<smem>>
    %c10_520 = arith.constant 10 : index
    %c17_521 = arith.constant 17 : index
    %269 = memref.load %arg6[%c10_520, %c17_521] : memref<18x18xf32, #tpu.memory_space<smem>>
    %c11_522 = arith.constant 11 : index
    %c0_523 = arith.constant 0 : index
    %270 = memref.load %arg6[%c11_522, %c0_523] : memref<18x18xf32, #tpu.memory_space<smem>>
    %c11_524 = arith.constant 11 : index
    %c1_525 = arith.constant 1 : index
    %271 = memref.load %arg6[%c11_524, %c1_525] : memref<18x18xf32, #tpu.memory_space<smem>>
    %c11_526 = arith.constant 11 : index
    %c2_527 = arith.constant 2 : index
    %272 = memref.load %arg6[%c11_526, %c2_527] : memref<18x18xf32, #tpu.memory_space<smem>>
    %c11_528 = arith.constant 11 : index
    %c3_529 = arith.constant 3 : index
    %273 = memref.load %arg6[%c11_528, %c3_529] : memref<18x18xf32, #tpu.memory_space<smem>>
    %c11_530 = arith.constant 11 : index
    %c4_531 = arith.constant 4 : index
    %274 = memref.load %arg6[%c11_530, %c4_531] : memref<18x18xf32, #tpu.memory_space<smem>>
    %c11_532 = arith.constant 11 : index
    %c5_533 = arith.constant 5 : index
    %275 = memref.load %arg6[%c11_532, %c5_533] : memref<18x18xf32, #tpu.memory_space<smem>>
    %c11_534 = arith.constant 11 : index
    %c6_535 = arith.constant 6 : index
    %276 = memref.load %arg6[%c11_534, %c6_535] : memref<18x18xf32, #tpu.memory_space<smem>>
    %c11_536 = arith.constant 11 : index
    %c7_537 = arith.constant 7 : index
    %277 = memref.load %arg6[%c11_536, %c7_537] : memref<18x18xf32, #tpu.memory_space<smem>>
    %c11_538 = arith.constant 11 : index
    %c8_539 = arith.constant 8 : index
    %278 = memref.load %arg6[%c11_538, %c8_539] : memref<18x18xf32, #tpu.memory_space<smem>>
    %c11_540 = arith.constant 11 : index
    %c9_541 = arith.constant 9 : index
    %279 = memref.load %arg6[%c11_540, %c9_541] : memref<18x18xf32, #tpu.memory_space<smem>>
    %c11_542 = arith.constant 11 : index
    %c10_543 = arith.constant 10 : index
    %280 = memref.load %arg6[%c11_542, %c10_543] : memref<18x18xf32, #tpu.memory_space<smem>>
    %c11_544 = arith.constant 11 : index
    %c11_545 = arith.constant 11 : index
    %281 = memref.load %arg6[%c11_544, %c11_545] : memref<18x18xf32, #tpu.memory_space<smem>>
    %c11_546 = arith.constant 11 : index
    %c12_547 = arith.constant 12 : index
    %282 = memref.load %arg6[%c11_546, %c12_547] : memref<18x18xf32, #tpu.memory_space<smem>>
    %c11_548 = arith.constant 11 : index
    %c13_549 = arith.constant 13 : index
    %283 = memref.load %arg6[%c11_548, %c13_549] : memref<18x18xf32, #tpu.memory_space<smem>>
    %c11_550 = arith.constant 11 : index
    %c14_551 = arith.constant 14 : index
    %284 = memref.load %arg6[%c11_550, %c14_551] : memref<18x18xf32, #tpu.memory_space<smem>>
    %c11_552 = arith.constant 11 : index
    %c15_553 = arith.constant 15 : index
    %285 = memref.load %arg6[%c11_552, %c15_553] : memref<18x18xf32, #tpu.memory_space<smem>>
    %c11_554 = arith.constant 11 : index
    %c16_555 = arith.constant 16 : index
    %286 = memref.load %arg6[%c11_554, %c16_555] : memref<18x18xf32, #tpu.memory_space<smem>>
    %c11_556 = arith.constant 11 : index
    %c17_557 = arith.constant 17 : index
    %287 = memref.load %arg6[%c11_556, %c17_557] : memref<18x18xf32, #tpu.memory_space<smem>>
    %c12_558 = arith.constant 12 : index
    %c0_559 = arith.constant 0 : index
    %288 = memref.load %arg6[%c12_558, %c0_559] : memref<18x18xf32, #tpu.memory_space<smem>>
    %c12_560 = arith.constant 12 : index
    %c1_561 = arith.constant 1 : index
    %289 = memref.load %arg6[%c12_560, %c1_561] : memref<18x18xf32, #tpu.memory_space<smem>>
    %c12_562 = arith.constant 12 : index
    %c2_563 = arith.constant 2 : index
    %290 = memref.load %arg6[%c12_562, %c2_563] : memref<18x18xf32, #tpu.memory_space<smem>>
    %c12_564 = arith.constant 12 : index
    %c3_565 = arith.constant 3 : index
    %291 = memref.load %arg6[%c12_564, %c3_565] : memref<18x18xf32, #tpu.memory_space<smem>>
    %c12_566 = arith.constant 12 : index
    %c4_567 = arith.constant 4 : index
    %292 = memref.load %arg6[%c12_566, %c4_567] : memref<18x18xf32, #tpu.memory_space<smem>>
    %c12_568 = arith.constant 12 : index
    %c5_569 = arith.constant 5 : index
    %293 = memref.load %arg6[%c12_568, %c5_569] : memref<18x18xf32, #tpu.memory_space<smem>>
    %c12_570 = arith.constant 12 : index
    %c6_571 = arith.constant 6 : index
    %294 = memref.load %arg6[%c12_570, %c6_571] : memref<18x18xf32, #tpu.memory_space<smem>>
    %c12_572 = arith.constant 12 : index
    %c7_573 = arith.constant 7 : index
    %295 = memref.load %arg6[%c12_572, %c7_573] : memref<18x18xf32, #tpu.memory_space<smem>>
    %c12_574 = arith.constant 12 : index
    %c8_575 = arith.constant 8 : index
    %296 = memref.load %arg6[%c12_574, %c8_575] : memref<18x18xf32, #tpu.memory_space<smem>>
    %c12_576 = arith.constant 12 : index
    %c9_577 = arith.constant 9 : index
    %297 = memref.load %arg6[%c12_576, %c9_577] : memref<18x18xf32, #tpu.memory_space<smem>>
    %c12_578 = arith.constant 12 : index
    %c10_579 = arith.constant 10 : index
    %298 = memref.load %arg6[%c12_578, %c10_579] : memref<18x18xf32, #tpu.memory_space<smem>>
    %c12_580 = arith.constant 12 : index
    %c11_581 = arith.constant 11 : index
    %299 = memref.load %arg6[%c12_580, %c11_581] : memref<18x18xf32, #tpu.memory_space<smem>>
    %c12_582 = arith.constant 12 : index
    %c12_583 = arith.constant 12 : index
    %300 = memref.load %arg6[%c12_582, %c12_583] : memref<18x18xf32, #tpu.memory_space<smem>>
    %c12_584 = arith.constant 12 : index
    %c13_585 = arith.constant 13 : index
    %301 = memref.load %arg6[%c12_584, %c13_585] : memref<18x18xf32, #tpu.memory_space<smem>>
    %c12_586 = arith.constant 12 : index
    %c14_587 = arith.constant 14 : index
    %302 = memref.load %arg6[%c12_586, %c14_587] : memref<18x18xf32, #tpu.memory_space<smem>>
    %c12_588 = arith.constant 12 : index
    %c15_589 = arith.constant 15 : index
    %303 = memref.load %arg6[%c12_588, %c15_589] : memref<18x18xf32, #tpu.memory_space<smem>>
    %c12_590 = arith.constant 12 : index
    %c16_591 = arith.constant 16 : index
    %304 = memref.load %arg6[%c12_590, %c16_591] : memref<18x18xf32, #tpu.memory_space<smem>>
    %c12_592 = arith.constant 12 : index
    %c17_593 = arith.constant 17 : index
    %305 = memref.load %arg6[%c12_592, %c17_593] : memref<18x18xf32, #tpu.memory_space<smem>>
    %c13_594 = arith.constant 13 : index
    %c0_595 = arith.constant 0 : index
    %306 = memref.load %arg6[%c13_594, %c0_595] : memref<18x18xf32, #tpu.memory_space<smem>>
    %c13_596 = arith.constant 13 : index
    %c1_597 = arith.constant 1 : index
    %307 = memref.load %arg6[%c13_596, %c1_597] : memref<18x18xf32, #tpu.memory_space<smem>>
    %c13_598 = arith.constant 13 : index
    %c2_599 = arith.constant 2 : index
    %308 = memref.load %arg6[%c13_598, %c2_599] : memref<18x18xf32, #tpu.memory_space<smem>>
    %c13_600 = arith.constant 13 : index
    %c3_601 = arith.constant 3 : index
    %309 = memref.load %arg6[%c13_600, %c3_601] : memref<18x18xf32, #tpu.memory_space<smem>>
    %c13_602 = arith.constant 13 : index
    %c4_603 = arith.constant 4 : index
    %310 = memref.load %arg6[%c13_602, %c4_603] : memref<18x18xf32, #tpu.memory_space<smem>>
    %c13_604 = arith.constant 13 : index
    %c5_605 = arith.constant 5 : index
    %311 = memref.load %arg6[%c13_604, %c5_605] : memref<18x18xf32, #tpu.memory_space<smem>>
    %c13_606 = arith.constant 13 : index
    %c6_607 = arith.constant 6 : index
    %312 = memref.load %arg6[%c13_606, %c6_607] : memref<18x18xf32, #tpu.memory_space<smem>>
    %c13_608 = arith.constant 13 : index
    %c7_609 = arith.constant 7 : index
    %313 = memref.load %arg6[%c13_608, %c7_609] : memref<18x18xf32, #tpu.memory_space<smem>>
    %c13_610 = arith.constant 13 : index
    %c8_611 = arith.constant 8 : index
    %314 = memref.load %arg6[%c13_610, %c8_611] : memref<18x18xf32, #tpu.memory_space<smem>>
    %c13_612 = arith.constant 13 : index
    %c9_613 = arith.constant 9 : index
    %315 = memref.load %arg6[%c13_612, %c9_613] : memref<18x18xf32, #tpu.memory_space<smem>>
    %c13_614 = arith.constant 13 : index
    %c10_615 = arith.constant 10 : index
    %316 = memref.load %arg6[%c13_614, %c10_615] : memref<18x18xf32, #tpu.memory_space<smem>>
    %c13_616 = arith.constant 13 : index
    %c11_617 = arith.constant 11 : index
    %317 = memref.load %arg6[%c13_616, %c11_617] : memref<18x18xf32, #tpu.memory_space<smem>>
    %c13_618 = arith.constant 13 : index
    %c12_619 = arith.constant 12 : index
    %318 = memref.load %arg6[%c13_618, %c12_619] : memref<18x18xf32, #tpu.memory_space<smem>>
    %c13_620 = arith.constant 13 : index
    %c13_621 = arith.constant 13 : index
    %319 = memref.load %arg6[%c13_620, %c13_621] : memref<18x18xf32, #tpu.memory_space<smem>>
    %c13_622 = arith.constant 13 : index
    %c14_623 = arith.constant 14 : index
    %320 = memref.load %arg6[%c13_622, %c14_623] : memref<18x18xf32, #tpu.memory_space<smem>>
    %c13_624 = arith.constant 13 : index
    %c15_625 = arith.constant 15 : index
    %321 = memref.load %arg6[%c13_624, %c15_625] : memref<18x18xf32, #tpu.memory_space<smem>>
    %c13_626 = arith.constant 13 : index
    %c16_627 = arith.constant 16 : index
    %322 = memref.load %arg6[%c13_626, %c16_627] : memref<18x18xf32, #tpu.memory_space<smem>>
    %c13_628 = arith.constant 13 : index
    %c17_629 = arith.constant 17 : index
    %323 = memref.load %arg6[%c13_628, %c17_629] : memref<18x18xf32, #tpu.memory_space<smem>>
    %c14_630 = arith.constant 14 : index
    %c0_631 = arith.constant 0 : index
    %324 = memref.load %arg6[%c14_630, %c0_631] : memref<18x18xf32, #tpu.memory_space<smem>>
    %c14_632 = arith.constant 14 : index
    %c1_633 = arith.constant 1 : index
    %325 = memref.load %arg6[%c14_632, %c1_633] : memref<18x18xf32, #tpu.memory_space<smem>>
    %c14_634 = arith.constant 14 : index
    %c2_635 = arith.constant 2 : index
    %326 = memref.load %arg6[%c14_634, %c2_635] : memref<18x18xf32, #tpu.memory_space<smem>>
    %c14_636 = arith.constant 14 : index
    %c3_637 = arith.constant 3 : index
    %327 = memref.load %arg6[%c14_636, %c3_637] : memref<18x18xf32, #tpu.memory_space<smem>>
    %c14_638 = arith.constant 14 : index
    %c4_639 = arith.constant 4 : index
    %328 = memref.load %arg6[%c14_638, %c4_639] : memref<18x18xf32, #tpu.memory_space<smem>>
    %c14_640 = arith.constant 14 : index
    %c5_641 = arith.constant 5 : index
    %329 = memref.load %arg6[%c14_640, %c5_641] : memref<18x18xf32, #tpu.memory_space<smem>>
    %c14_642 = arith.constant 14 : index
    %c6_643 = arith.constant 6 : index
    %330 = memref.load %arg6[%c14_642, %c6_643] : memref<18x18xf32, #tpu.memory_space<smem>>
    %c14_644 = arith.constant 14 : index
    %c7_645 = arith.constant 7 : index
    %331 = memref.load %arg6[%c14_644, %c7_645] : memref<18x18xf32, #tpu.memory_space<smem>>
    %c14_646 = arith.constant 14 : index
    %c8_647 = arith.constant 8 : index
    %332 = memref.load %arg6[%c14_646, %c8_647] : memref<18x18xf32, #tpu.memory_space<smem>>
    %c14_648 = arith.constant 14 : index
    %c9_649 = arith.constant 9 : index
    %333 = memref.load %arg6[%c14_648, %c9_649] : memref<18x18xf32, #tpu.memory_space<smem>>
    %c14_650 = arith.constant 14 : index
    %c10_651 = arith.constant 10 : index
    %334 = memref.load %arg6[%c14_650, %c10_651] : memref<18x18xf32, #tpu.memory_space<smem>>
    %c14_652 = arith.constant 14 : index
    %c11_653 = arith.constant 11 : index
    %335 = memref.load %arg6[%c14_652, %c11_653] : memref<18x18xf32, #tpu.memory_space<smem>>
    %c14_654 = arith.constant 14 : index
    %c12_655 = arith.constant 12 : index
    %336 = memref.load %arg6[%c14_654, %c12_655] : memref<18x18xf32, #tpu.memory_space<smem>>
    %c14_656 = arith.constant 14 : index
    %c13_657 = arith.constant 13 : index
    %337 = memref.load %arg6[%c14_656, %c13_657] : memref<18x18xf32, #tpu.memory_space<smem>>
    %c14_658 = arith.constant 14 : index
    %c14_659 = arith.constant 14 : index
    %338 = memref.load %arg6[%c14_658, %c14_659] : memref<18x18xf32, #tpu.memory_space<smem>>
    %c14_660 = arith.constant 14 : index
    %c15_661 = arith.constant 15 : index
    %339 = memref.load %arg6[%c14_660, %c15_661] : memref<18x18xf32, #tpu.memory_space<smem>>
    %c14_662 = arith.constant 14 : index
    %c16_663 = arith.constant 16 : index
    %340 = memref.load %arg6[%c14_662, %c16_663] : memref<18x18xf32, #tpu.memory_space<smem>>
    %c14_664 = arith.constant 14 : index
    %c17_665 = arith.constant 17 : index
    %341 = memref.load %arg6[%c14_664, %c17_665] : memref<18x18xf32, #tpu.memory_space<smem>>
    %c15_666 = arith.constant 15 : index
    %c0_667 = arith.constant 0 : index
    %342 = memref.load %arg6[%c15_666, %c0_667] : memref<18x18xf32, #tpu.memory_space<smem>>
    %c15_668 = arith.constant 15 : index
    %c1_669 = arith.constant 1 : index
    %343 = memref.load %arg6[%c15_668, %c1_669] : memref<18x18xf32, #tpu.memory_space<smem>>
    %c15_670 = arith.constant 15 : index
    %c2_671 = arith.constant 2 : index
    %344 = memref.load %arg6[%c15_670, %c2_671] : memref<18x18xf32, #tpu.memory_space<smem>>
    %c15_672 = arith.constant 15 : index
    %c3_673 = arith.constant 3 : index
    %345 = memref.load %arg6[%c15_672, %c3_673] : memref<18x18xf32, #tpu.memory_space<smem>>
    %c15_674 = arith.constant 15 : index
    %c4_675 = arith.constant 4 : index
    %346 = memref.load %arg6[%c15_674, %c4_675] : memref<18x18xf32, #tpu.memory_space<smem>>
    %c15_676 = arith.constant 15 : index
    %c5_677 = arith.constant 5 : index
    %347 = memref.load %arg6[%c15_676, %c5_677] : memref<18x18xf32, #tpu.memory_space<smem>>
    %c15_678 = arith.constant 15 : index
    %c6_679 = arith.constant 6 : index
    %348 = memref.load %arg6[%c15_678, %c6_679] : memref<18x18xf32, #tpu.memory_space<smem>>
    %c15_680 = arith.constant 15 : index
    %c7_681 = arith.constant 7 : index
    %349 = memref.load %arg6[%c15_680, %c7_681] : memref<18x18xf32, #tpu.memory_space<smem>>
    %c15_682 = arith.constant 15 : index
    %c8_683 = arith.constant 8 : index
    %350 = memref.load %arg6[%c15_682, %c8_683] : memref<18x18xf32, #tpu.memory_space<smem>>
    %c15_684 = arith.constant 15 : index
    %c9_685 = arith.constant 9 : index
    %351 = memref.load %arg6[%c15_684, %c9_685] : memref<18x18xf32, #tpu.memory_space<smem>>
    %c15_686 = arith.constant 15 : index
    %c10_687 = arith.constant 10 : index
    %352 = memref.load %arg6[%c15_686, %c10_687] : memref<18x18xf32, #tpu.memory_space<smem>>
    %c15_688 = arith.constant 15 : index
    %c11_689 = arith.constant 11 : index
    %353 = memref.load %arg6[%c15_688, %c11_689] : memref<18x18xf32, #tpu.memory_space<smem>>
    %c15_690 = arith.constant 15 : index
    %c12_691 = arith.constant 12 : index
    %354 = memref.load %arg6[%c15_690, %c12_691] : memref<18x18xf32, #tpu.memory_space<smem>>
    %c15_692 = arith.constant 15 : index
    %c13_693 = arith.constant 13 : index
    %355 = memref.load %arg6[%c15_692, %c13_693] : memref<18x18xf32, #tpu.memory_space<smem>>
    %c15_694 = arith.constant 15 : index
    %c14_695 = arith.constant 14 : index
    %356 = memref.load %arg6[%c15_694, %c14_695] : memref<18x18xf32, #tpu.memory_space<smem>>
    %c15_696 = arith.constant 15 : index
    %c15_697 = arith.constant 15 : index
    %357 = memref.load %arg6[%c15_696, %c15_697] : memref<18x18xf32, #tpu.memory_space<smem>>
    %c15_698 = arith.constant 15 : index
    %c16_699 = arith.constant 16 : index
    %358 = memref.load %arg6[%c15_698, %c16_699] : memref<18x18xf32, #tpu.memory_space<smem>>
    %c15_700 = arith.constant 15 : index
    %c17_701 = arith.constant 17 : index
    %359 = memref.load %arg6[%c15_700, %c17_701] : memref<18x18xf32, #tpu.memory_space<smem>>
    %c16_702 = arith.constant 16 : index
    %c0_703 = arith.constant 0 : index
    %360 = memref.load %arg6[%c16_702, %c0_703] : memref<18x18xf32, #tpu.memory_space<smem>>
    %c16_704 = arith.constant 16 : index
    %c1_705 = arith.constant 1 : index
    %361 = memref.load %arg6[%c16_704, %c1_705] : memref<18x18xf32, #tpu.memory_space<smem>>
    %c16_706 = arith.constant 16 : index
    %c2_707 = arith.constant 2 : index
    %362 = memref.load %arg6[%c16_706, %c2_707] : memref<18x18xf32, #tpu.memory_space<smem>>
    %c16_708 = arith.constant 16 : index
    %c3_709 = arith.constant 3 : index
    %363 = memref.load %arg6[%c16_708, %c3_709] : memref<18x18xf32, #tpu.memory_space<smem>>
    %c16_710 = arith.constant 16 : index
    %c4_711 = arith.constant 4 : index
    %364 = memref.load %arg6[%c16_710, %c4_711] : memref<18x18xf32, #tpu.memory_space<smem>>
    %c16_712 = arith.constant 16 : index
    %c5_713 = arith.constant 5 : index
    %365 = memref.load %arg6[%c16_712, %c5_713] : memref<18x18xf32, #tpu.memory_space<smem>>
    %c16_714 = arith.constant 16 : index
    %c6_715 = arith.constant 6 : index
    %366 = memref.load %arg6[%c16_714, %c6_715] : memref<18x18xf32, #tpu.memory_space<smem>>
    %c16_716 = arith.constant 16 : index
    %c7_717 = arith.constant 7 : index
    %367 = memref.load %arg6[%c16_716, %c7_717] : memref<18x18xf32, #tpu.memory_space<smem>>
    %c16_718 = arith.constant 16 : index
    %c8_719 = arith.constant 8 : index
    %368 = memref.load %arg6[%c16_718, %c8_719] : memref<18x18xf32, #tpu.memory_space<smem>>
    %c16_720 = arith.constant 16 : index
    %c9_721 = arith.constant 9 : index
    %369 = memref.load %arg6[%c16_720, %c9_721] : memref<18x18xf32, #tpu.memory_space<smem>>
    %c16_722 = arith.constant 16 : index
    %c10_723 = arith.constant 10 : index
    %370 = memref.load %arg6[%c16_722, %c10_723] : memref<18x18xf32, #tpu.memory_space<smem>>
    %c16_724 = arith.constant 16 : index
    %c11_725 = arith.constant 11 : index
    %371 = memref.load %arg6[%c16_724, %c11_725] : memref<18x18xf32, #tpu.memory_space<smem>>
    %c16_726 = arith.constant 16 : index
    %c12_727 = arith.constant 12 : index
    %372 = memref.load %arg6[%c16_726, %c12_727] : memref<18x18xf32, #tpu.memory_space<smem>>
    %c16_728 = arith.constant 16 : index
    %c13_729 = arith.constant 13 : index
    %373 = memref.load %arg6[%c16_728, %c13_729] : memref<18x18xf32, #tpu.memory_space<smem>>
    %c16_730 = arith.constant 16 : index
    %c14_731 = arith.constant 14 : index
    %374 = memref.load %arg6[%c16_730, %c14_731] : memref<18x18xf32, #tpu.memory_space<smem>>
    %c16_732 = arith.constant 16 : index
    %c15_733 = arith.constant 15 : index
    %375 = memref.load %arg6[%c16_732, %c15_733] : memref<18x18xf32, #tpu.memory_space<smem>>
    %c16_734 = arith.constant 16 : index
    %c16_735 = arith.constant 16 : index
    %376 = memref.load %arg6[%c16_734, %c16_735] : memref<18x18xf32, #tpu.memory_space<smem>>
    %c16_736 = arith.constant 16 : index
    %c17_737 = arith.constant 17 : index
    %377 = memref.load %arg6[%c16_736, %c17_737] : memref<18x18xf32, #tpu.memory_space<smem>>
    %c17_738 = arith.constant 17 : index
    %c0_739 = arith.constant 0 : index
    %378 = memref.load %arg6[%c17_738, %c0_739] : memref<18x18xf32, #tpu.memory_space<smem>>
    %c17_740 = arith.constant 17 : index
    %c1_741 = arith.constant 1 : index
    %379 = memref.load %arg6[%c17_740, %c1_741] : memref<18x18xf32, #tpu.memory_space<smem>>
    %c17_742 = arith.constant 17 : index
    %c2_743 = arith.constant 2 : index
    %380 = memref.load %arg6[%c17_742, %c2_743] : memref<18x18xf32, #tpu.memory_space<smem>>
    %c17_744 = arith.constant 17 : index
    %c3_745 = arith.constant 3 : index
    %381 = memref.load %arg6[%c17_744, %c3_745] : memref<18x18xf32, #tpu.memory_space<smem>>
    %c17_746 = arith.constant 17 : index
    %c4_747 = arith.constant 4 : index
    %382 = memref.load %arg6[%c17_746, %c4_747] : memref<18x18xf32, #tpu.memory_space<smem>>
    %c17_748 = arith.constant 17 : index
    %c5_749 = arith.constant 5 : index
    %383 = memref.load %arg6[%c17_748, %c5_749] : memref<18x18xf32, #tpu.memory_space<smem>>
    %c17_750 = arith.constant 17 : index
    %c6_751 = arith.constant 6 : index
    %384 = memref.load %arg6[%c17_750, %c6_751] : memref<18x18xf32, #tpu.memory_space<smem>>
    %c17_752 = arith.constant 17 : index
    %c7_753 = arith.constant 7 : index
    %385 = memref.load %arg6[%c17_752, %c7_753] : memref<18x18xf32, #tpu.memory_space<smem>>
    %c17_754 = arith.constant 17 : index
    %c8_755 = arith.constant 8 : index
    %386 = memref.load %arg6[%c17_754, %c8_755] : memref<18x18xf32, #tpu.memory_space<smem>>
    %c17_756 = arith.constant 17 : index
    %c9_757 = arith.constant 9 : index
    %387 = memref.load %arg6[%c17_756, %c9_757] : memref<18x18xf32, #tpu.memory_space<smem>>
    %c17_758 = arith.constant 17 : index
    %c10_759 = arith.constant 10 : index
    %388 = memref.load %arg6[%c17_758, %c10_759] : memref<18x18xf32, #tpu.memory_space<smem>>
    %c17_760 = arith.constant 17 : index
    %c11_761 = arith.constant 11 : index
    %389 = memref.load %arg6[%c17_760, %c11_761] : memref<18x18xf32, #tpu.memory_space<smem>>
    %c17_762 = arith.constant 17 : index
    %c12_763 = arith.constant 12 : index
    %390 = memref.load %arg6[%c17_762, %c12_763] : memref<18x18xf32, #tpu.memory_space<smem>>
    %c17_764 = arith.constant 17 : index
    %c13_765 = arith.constant 13 : index
    %391 = memref.load %arg6[%c17_764, %c13_765] : memref<18x18xf32, #tpu.memory_space<smem>>
    %c17_766 = arith.constant 17 : index
    %c14_767 = arith.constant 14 : index
    %392 = memref.load %arg6[%c17_766, %c14_767] : memref<18x18xf32, #tpu.memory_space<smem>>
    %c17_768 = arith.constant 17 : index
    %c15_769 = arith.constant 15 : index
    %393 = memref.load %arg6[%c17_768, %c15_769] : memref<18x18xf32, #tpu.memory_space<smem>>
    %c17_770 = arith.constant 17 : index
    %c16_771 = arith.constant 16 : index
    %394 = memref.load %arg6[%c17_770, %c16_771] : memref<18x18xf32, #tpu.memory_space<smem>>
    %c17_772 = arith.constant 17 : index
    %c17_773 = arith.constant 17 : index
    %395 = memref.load %arg6[%c17_772, %c17_773] : memref<18x18xf32, #tpu.memory_space<smem>>
    %c0_774 = arith.constant 0 : index
    %c0_775 = arith.constant 0 : index
    %396 = memref.load %arg7[%c0_774, %c0_775] : memref<1x18xf32, #tpu.memory_space<smem>>
    %c0_776 = arith.constant 0 : index
    %c1_777 = arith.constant 1 : index
    %397 = memref.load %arg7[%c0_776, %c1_777] : memref<1x18xf32, #tpu.memory_space<smem>>
    %c0_778 = arith.constant 0 : index
    %c2_779 = arith.constant 2 : index
    %398 = memref.load %arg7[%c0_778, %c2_779] : memref<1x18xf32, #tpu.memory_space<smem>>
    %c0_780 = arith.constant 0 : index
    %c3_781 = arith.constant 3 : index
    %399 = memref.load %arg7[%c0_780, %c3_781] : memref<1x18xf32, #tpu.memory_space<smem>>
    %c0_782 = arith.constant 0 : index
    %c4_783 = arith.constant 4 : index
    %400 = memref.load %arg7[%c0_782, %c4_783] : memref<1x18xf32, #tpu.memory_space<smem>>
    %c0_784 = arith.constant 0 : index
    %c5_785 = arith.constant 5 : index
    %401 = memref.load %arg7[%c0_784, %c5_785] : memref<1x18xf32, #tpu.memory_space<smem>>
    %c0_786 = arith.constant 0 : index
    %c6_787 = arith.constant 6 : index
    %402 = memref.load %arg7[%c0_786, %c6_787] : memref<1x18xf32, #tpu.memory_space<smem>>
    %c0_788 = arith.constant 0 : index
    %c7_789 = arith.constant 7 : index
    %403 = memref.load %arg7[%c0_788, %c7_789] : memref<1x18xf32, #tpu.memory_space<smem>>
    %c0_790 = arith.constant 0 : index
    %c8_791 = arith.constant 8 : index
    %404 = memref.load %arg7[%c0_790, %c8_791] : memref<1x18xf32, #tpu.memory_space<smem>>
    %c0_792 = arith.constant 0 : index
    %c9_793 = arith.constant 9 : index
    %405 = memref.load %arg7[%c0_792, %c9_793] : memref<1x18xf32, #tpu.memory_space<smem>>
    %c0_794 = arith.constant 0 : index
    %c10_795 = arith.constant 10 : index
    %406 = memref.load %arg7[%c0_794, %c10_795] : memref<1x18xf32, #tpu.memory_space<smem>>
    %c0_796 = arith.constant 0 : index
    %c11_797 = arith.constant 11 : index
    %407 = memref.load %arg7[%c0_796, %c11_797] : memref<1x18xf32, #tpu.memory_space<smem>>
    %c0_798 = arith.constant 0 : index
    %c12_799 = arith.constant 12 : index
    %408 = memref.load %arg7[%c0_798, %c12_799] : memref<1x18xf32, #tpu.memory_space<smem>>
    %c0_800 = arith.constant 0 : index
    %c13_801 = arith.constant 13 : index
    %409 = memref.load %arg7[%c0_800, %c13_801] : memref<1x18xf32, #tpu.memory_space<smem>>
    %c0_802 = arith.constant 0 : index
    %c14_803 = arith.constant 14 : index
    %410 = memref.load %arg7[%c0_802, %c14_803] : memref<1x18xf32, #tpu.memory_space<smem>>
    %c0_804 = arith.constant 0 : index
    %c15_805 = arith.constant 15 : index
    %411 = memref.load %arg7[%c0_804, %c15_805] : memref<1x18xf32, #tpu.memory_space<smem>>
    %c0_806 = arith.constant 0 : index
    %c16_807 = arith.constant 16 : index
    %412 = memref.load %arg7[%c0_806, %c16_807] : memref<1x18xf32, #tpu.memory_space<smem>>
    %c0_808 = arith.constant 0 : index
    %c17_809 = arith.constant 17 : index
    %413 = memref.load %arg7[%c0_808, %c17_809] : memref<1x18xf32, #tpu.memory_space<smem>>
    %c0_810 = arith.constant 0 : index
    %c0_811 = arith.constant 0 : index
    %414 = memref.load %arg8[%c0_810, %c0_811] : memref<1x18xf32, #tpu.memory_space<smem>>
    %c0_812 = arith.constant 0 : index
    %c1_813 = arith.constant 1 : index
    %415 = memref.load %arg8[%c0_812, %c1_813] : memref<1x18xf32, #tpu.memory_space<smem>>
    %c0_814 = arith.constant 0 : index
    %c2_815 = arith.constant 2 : index
    %416 = memref.load %arg8[%c0_814, %c2_815] : memref<1x18xf32, #tpu.memory_space<smem>>
    %c0_816 = arith.constant 0 : index
    %c3_817 = arith.constant 3 : index
    %417 = memref.load %arg8[%c0_816, %c3_817] : memref<1x18xf32, #tpu.memory_space<smem>>
    %c0_818 = arith.constant 0 : index
    %c4_819 = arith.constant 4 : index
    %418 = memref.load %arg8[%c0_818, %c4_819] : memref<1x18xf32, #tpu.memory_space<smem>>
    %c0_820 = arith.constant 0 : index
    %c5_821 = arith.constant 5 : index
    %419 = memref.load %arg8[%c0_820, %c5_821] : memref<1x18xf32, #tpu.memory_space<smem>>
    %c0_822 = arith.constant 0 : index
    %c6_823 = arith.constant 6 : index
    %420 = memref.load %arg8[%c0_822, %c6_823] : memref<1x18xf32, #tpu.memory_space<smem>>
    %c0_824 = arith.constant 0 : index
    %c7_825 = arith.constant 7 : index
    %421 = memref.load %arg8[%c0_824, %c7_825] : memref<1x18xf32, #tpu.memory_space<smem>>
    %c0_826 = arith.constant 0 : index
    %c8_827 = arith.constant 8 : index
    %422 = memref.load %arg8[%c0_826, %c8_827] : memref<1x18xf32, #tpu.memory_space<smem>>
    %c0_828 = arith.constant 0 : index
    %c9_829 = arith.constant 9 : index
    %423 = memref.load %arg8[%c0_828, %c9_829] : memref<1x18xf32, #tpu.memory_space<smem>>
    %c0_830 = arith.constant 0 : index
    %c10_831 = arith.constant 10 : index
    %424 = memref.load %arg8[%c0_830, %c10_831] : memref<1x18xf32, #tpu.memory_space<smem>>
    %c0_832 = arith.constant 0 : index
    %c11_833 = arith.constant 11 : index
    %425 = memref.load %arg8[%c0_832, %c11_833] : memref<1x18xf32, #tpu.memory_space<smem>>
    %c0_834 = arith.constant 0 : index
    %c12_835 = arith.constant 12 : index
    %426 = memref.load %arg8[%c0_834, %c12_835] : memref<1x18xf32, #tpu.memory_space<smem>>
    %c0_836 = arith.constant 0 : index
    %c13_837 = arith.constant 13 : index
    %427 = memref.load %arg8[%c0_836, %c13_837] : memref<1x18xf32, #tpu.memory_space<smem>>
    %c0_838 = arith.constant 0 : index
    %c14_839 = arith.constant 14 : index
    %428 = memref.load %arg8[%c0_838, %c14_839] : memref<1x18xf32, #tpu.memory_space<smem>>
    %c0_840 = arith.constant 0 : index
    %c15_841 = arith.constant 15 : index
    %429 = memref.load %arg8[%c0_840, %c15_841] : memref<1x18xf32, #tpu.memory_space<smem>>
    %c0_842 = arith.constant 0 : index
    %c16_843 = arith.constant 16 : index
    %430 = memref.load %arg8[%c0_842, %c16_843] : memref<1x18xf32, #tpu.memory_space<smem>>
    %c0_844 = arith.constant 0 : index
    %c17_845 = arith.constant 17 : index
    %431 = memref.load %arg8[%c0_844, %c17_845] : memref<1x18xf32, #tpu.memory_space<smem>>
    %c0_846 = arith.constant 0 : index
    %c0_847 = arith.constant 0 : index
    %432 = memref.load %arg9[%c0_846, %c0_847] : memref<1x1xf32, #tpu.memory_space<smem>>
    %c0_i32 = arith.constant 0 : i32
    %c32_i32 = arith.constant 32 : i32
    %433 = arith.addi %c0_i32, %c32_i32 : i32
    %c1_i32 = arith.constant 1 : i32
    scf.for %arg18 = %c0_i32 to %433 step %c1_i32  : i32 {
      %c16_i32 = arith.constant 16 : i32
      %481 = arith.muli %arg18, %c16_i32 : i32
      %482 = tpu.assume_multiple %481, 16 : i32
      %483 = arith.index_cast %482 : i32 to index
      %c0_875 = arith.constant 0 : index
      %484 = vector.load %arg1[%483, %c0_875] : memref<512x128xf32, #tpu.memory_space<vmem>>, vector<16x128xf32>
      %485 = arith.index_cast %482 : i32 to index
      %c0_876 = arith.constant 0 : index
      %486 = vector.load %arg2[%485, %c0_876] : memref<512x128xf32, #tpu.memory_space<vmem>>, vector<16x128xf32>
      %487 = arith.index_cast %482 : i32 to index
      %c0_877 = arith.constant 0 : index
      %488 = vector.load %arg3[%487, %c0_877] : memref<512x128xf32, #tpu.memory_space<vmem>>, vector<16x128xf32>
      %489 = vector.broadcast %0 : f32 to vector<16x128xf32>
      %490 = arith.mulf %484, %489 : vector<16x128xf32>
      %491 = vector.broadcast %18 : f32 to vector<16x128xf32>
      %492 = arith.mulf %486, %491 : vector<16x128xf32>
      %493 = arith.addf %490, %492 : vector<16x128xf32>
      %494 = vector.broadcast %36 : f32 to vector<16x128xf32>
      %495 = arith.mulf %488, %494 : vector<16x128xf32>
      %496 = arith.addf %493, %495 : vector<16x128xf32>
      %497 = vector.broadcast %54 : f32 to vector<16x128xf32>
      %498 = arith.addf %496, %497 : vector<16x128xf32>
      %cst_878 = arith.constant 0.000000e+00 : f32
      %499 = vector.broadcast %cst_878 : f32 to vector<16x128xf32>
      %500 = arith.maximumf %498, %499 : vector<16x128xf32>
      %501 = vector.broadcast %72 : f32 to vector<16x128xf32>
      %502 = arith.mulf %500, %501 : vector<16x128xf32>
      %503 = vector.broadcast %73 : f32 to vector<16x128xf32>
      %504 = arith.mulf %500, %503 : vector<16x128xf32>
      %505 = vector.broadcast %74 : f32 to vector<16x128xf32>
      %506 = arith.mulf %500, %505 : vector<16x128xf32>
      %507 = vector.broadcast %75 : f32 to vector<16x128xf32>
      %508 = arith.mulf %500, %507 : vector<16x128xf32>
      %509 = vector.broadcast %76 : f32 to vector<16x128xf32>
      %510 = arith.mulf %500, %509 : vector<16x128xf32>
      %511 = vector.broadcast %77 : f32 to vector<16x128xf32>
      %512 = arith.mulf %500, %511 : vector<16x128xf32>
      %513 = vector.broadcast %78 : f32 to vector<16x128xf32>
      %514 = arith.mulf %500, %513 : vector<16x128xf32>
      %515 = vector.broadcast %79 : f32 to vector<16x128xf32>
      %516 = arith.mulf %500, %515 : vector<16x128xf32>
      %517 = vector.broadcast %80 : f32 to vector<16x128xf32>
      %518 = arith.mulf %500, %517 : vector<16x128xf32>
      %519 = vector.broadcast %81 : f32 to vector<16x128xf32>
      %520 = arith.mulf %500, %519 : vector<16x128xf32>
      %521 = vector.broadcast %82 : f32 to vector<16x128xf32>
      %522 = arith.mulf %500, %521 : vector<16x128xf32>
      %523 = vector.broadcast %83 : f32 to vector<16x128xf32>
      %524 = arith.mulf %500, %523 : vector<16x128xf32>
      %525 = vector.broadcast %84 : f32 to vector<16x128xf32>
      %526 = arith.mulf %500, %525 : vector<16x128xf32>
      %527 = vector.broadcast %85 : f32 to vector<16x128xf32>
      %528 = arith.mulf %500, %527 : vector<16x128xf32>
      %529 = vector.broadcast %86 : f32 to vector<16x128xf32>
      %530 = arith.mulf %500, %529 : vector<16x128xf32>
      %531 = vector.broadcast %87 : f32 to vector<16x128xf32>
      %532 = arith.mulf %500, %531 : vector<16x128xf32>
      %533 = vector.broadcast %88 : f32 to vector<16x128xf32>
      %534 = arith.mulf %500, %533 : vector<16x128xf32>
      %535 = vector.broadcast %89 : f32 to vector<16x128xf32>
      %536 = arith.mulf %500, %535 : vector<16x128xf32>
      %537 = vector.broadcast %1 : f32 to vector<16x128xf32>
      %538 = arith.mulf %484, %537 : vector<16x128xf32>
      %539 = vector.broadcast %19 : f32 to vector<16x128xf32>
      %540 = arith.mulf %486, %539 : vector<16x128xf32>
      %541 = arith.addf %538, %540 : vector<16x128xf32>
      %542 = vector.broadcast %37 : f32 to vector<16x128xf32>
      %543 = arith.mulf %488, %542 : vector<16x128xf32>
      %544 = arith.addf %541, %543 : vector<16x128xf32>
      %545 = vector.broadcast %55 : f32 to vector<16x128xf32>
      %546 = arith.addf %544, %545 : vector<16x128xf32>
      %cst_879 = arith.constant 0.000000e+00 : f32
      %547 = vector.broadcast %cst_879 : f32 to vector<16x128xf32>
      %548 = arith.maximumf %546, %547 : vector<16x128xf32>
      %549 = vector.broadcast %90 : f32 to vector<16x128xf32>
      %550 = arith.mulf %548, %549 : vector<16x128xf32>
      %551 = arith.addf %502, %550 : vector<16x128xf32>
      %552 = vector.broadcast %91 : f32 to vector<16x128xf32>
      %553 = arith.mulf %548, %552 : vector<16x128xf32>
      %554 = arith.addf %504, %553 : vector<16x128xf32>
      %555 = vector.broadcast %92 : f32 to vector<16x128xf32>
      %556 = arith.mulf %548, %555 : vector<16x128xf32>
      %557 = arith.addf %506, %556 : vector<16x128xf32>
      %558 = vector.broadcast %93 : f32 to vector<16x128xf32>
      %559 = arith.mulf %548, %558 : vector<16x128xf32>
      %560 = arith.addf %508, %559 : vector<16x128xf32>
      %561 = vector.broadcast %94 : f32 to vector<16x128xf32>
      %562 = arith.mulf %548, %561 : vector<16x128xf32>
      %563 = arith.addf %510, %562 : vector<16x128xf32>
      %564 = vector.broadcast %95 : f32 to vector<16x128xf32>
      %565 = arith.mulf %548, %564 : vector<16x128xf32>
      %566 = arith.addf %512, %565 : vector<16x128xf32>
      %567 = vector.broadcast %96 : f32 to vector<16x128xf32>
      %568 = arith.mulf %548, %567 : vector<16x128xf32>
      %569 = arith.addf %514, %568 : vector<16x128xf32>
      %570 = vector.broadcast %97 : f32 to vector<16x128xf32>
      %571 = arith.mulf %548, %570 : vector<16x128xf32>
      %572 = arith.addf %516, %571 : vector<16x128xf32>
      %573 = vector.broadcast %98 : f32 to vector<16x128xf32>
      %574 = arith.mulf %548, %573 : vector<16x128xf32>
      %575 = arith.addf %518, %574 : vector<16x128xf32>
      %576 = vector.broadcast %99 : f32 to vector<16x128xf32>
      %577 = arith.mulf %548, %576 : vector<16x128xf32>
      %578 = arith.addf %520, %577 : vector<16x128xf32>
      %579 = vector.broadcast %100 : f32 to vector<16x128xf32>
      %580 = arith.mulf %548, %579 : vector<16x128xf32>
      %581 = arith.addf %522, %580 : vector<16x128xf32>
      %582 = vector.broadcast %101 : f32 to vector<16x128xf32>
      %583 = arith.mulf %548, %582 : vector<16x128xf32>
      %584 = arith.addf %524, %583 : vector<16x128xf32>
      %585 = vector.broadcast %102 : f32 to vector<16x128xf32>
      %586 = arith.mulf %548, %585 : vector<16x128xf32>
      %587 = arith.addf %526, %586 : vector<16x128xf32>
      %588 = vector.broadcast %103 : f32 to vector<16x128xf32>
      %589 = arith.mulf %548, %588 : vector<16x128xf32>
      %590 = arith.addf %528, %589 : vector<16x128xf32>
      %591 = vector.broadcast %104 : f32 to vector<16x128xf32>
      %592 = arith.mulf %548, %591 : vector<16x128xf32>
      %593 = arith.addf %530, %592 : vector<16x128xf32>
      %594 = vector.broadcast %105 : f32 to vector<16x128xf32>
      %595 = arith.mulf %548, %594 : vector<16x128xf32>
      %596 = arith.addf %532, %595 : vector<16x128xf32>
      %597 = vector.broadcast %106 : f32 to vector<16x128xf32>
      %598 = arith.mulf %548, %597 : vector<16x128xf32>
      %599 = arith.addf %534, %598 : vector<16x128xf32>
      %600 = vector.broadcast %107 : f32 to vector<16x128xf32>
      %601 = arith.mulf %548, %600 : vector<16x128xf32>
      %602 = arith.addf %536, %601 : vector<16x128xf32>
      %603 = vector.broadcast %2 : f32 to vector<16x128xf32>
      %604 = arith.mulf %484, %603 : vector<16x128xf32>
      %605 = vector.broadcast %20 : f32 to vector<16x128xf32>
      %606 = arith.mulf %486, %605 : vector<16x128xf32>
      %607 = arith.addf %604, %606 : vector<16x128xf32>
      %608 = vector.broadcast %38 : f32 to vector<16x128xf32>
      %609 = arith.mulf %488, %608 : vector<16x128xf32>
      %610 = arith.addf %607, %609 : vector<16x128xf32>
      %611 = vector.broadcast %56 : f32 to vector<16x128xf32>
      %612 = arith.addf %610, %611 : vector<16x128xf32>
      %cst_880 = arith.constant 0.000000e+00 : f32
      %613 = vector.broadcast %cst_880 : f32 to vector<16x128xf32>
      %614 = arith.maximumf %612, %613 : vector<16x128xf32>
      %615 = vector.broadcast %108 : f32 to vector<16x128xf32>
      %616 = arith.mulf %614, %615 : vector<16x128xf32>
      %617 = arith.addf %551, %616 : vector<16x128xf32>
      %618 = vector.broadcast %109 : f32 to vector<16x128xf32>
      %619 = arith.mulf %614, %618 : vector<16x128xf32>
      %620 = arith.addf %554, %619 : vector<16x128xf32>
      %621 = vector.broadcast %110 : f32 to vector<16x128xf32>
      %622 = arith.mulf %614, %621 : vector<16x128xf32>
      %623 = arith.addf %557, %622 : vector<16x128xf32>
      %624 = vector.broadcast %111 : f32 to vector<16x128xf32>
      %625 = arith.mulf %614, %624 : vector<16x128xf32>
      %626 = arith.addf %560, %625 : vector<16x128xf32>
      %627 = vector.broadcast %112 : f32 to vector<16x128xf32>
      %628 = arith.mulf %614, %627 : vector<16x128xf32>
      %629 = arith.addf %563, %628 : vector<16x128xf32>
      %630 = vector.broadcast %113 : f32 to vector<16x128xf32>
      %631 = arith.mulf %614, %630 : vector<16x128xf32>
      %632 = arith.addf %566, %631 : vector<16x128xf32>
      %633 = vector.broadcast %114 : f32 to vector<16x128xf32>
      %634 = arith.mulf %614, %633 : vector<16x128xf32>
      %635 = arith.addf %569, %634 : vector<16x128xf32>
      %636 = vector.broadcast %115 : f32 to vector<16x128xf32>
      %637 = arith.mulf %614, %636 : vector<16x128xf32>
      %638 = arith.addf %572, %637 : vector<16x128xf32>
      %639 = vector.broadcast %116 : f32 to vector<16x128xf32>
      %640 = arith.mulf %614, %639 : vector<16x128xf32>
      %641 = arith.addf %575, %640 : vector<16x128xf32>
      %642 = vector.broadcast %117 : f32 to vector<16x128xf32>
      %643 = arith.mulf %614, %642 : vector<16x128xf32>
      %644 = arith.addf %578, %643 : vector<16x128xf32>
      %645 = vector.broadcast %118 : f32 to vector<16x128xf32>
      %646 = arith.mulf %614, %645 : vector<16x128xf32>
      %647 = arith.addf %581, %646 : vector<16x128xf32>
      %648 = vector.broadcast %119 : f32 to vector<16x128xf32>
      %649 = arith.mulf %614, %648 : vector<16x128xf32>
      %650 = arith.addf %584, %649 : vector<16x128xf32>
      %651 = vector.broadcast %120 : f32 to vector<16x128xf32>
      %652 = arith.mulf %614, %651 : vector<16x128xf32>
      %653 = arith.addf %587, %652 : vector<16x128xf32>
      %654 = vector.broadcast %121 : f32 to vector<16x128xf32>
      %655 = arith.mulf %614, %654 : vector<16x128xf32>
      %656 = arith.addf %590, %655 : vector<16x128xf32>
      %657 = vector.broadcast %122 : f32 to vector<16x128xf32>
      %658 = arith.mulf %614, %657 : vector<16x128xf32>
      %659 = arith.addf %593, %658 : vector<16x128xf32>
      %660 = vector.broadcast %123 : f32 to vector<16x128xf32>
      %661 = arith.mulf %614, %660 : vector<16x128xf32>
      %662 = arith.addf %596, %661 : vector<16x128xf32>
      %663 = vector.broadcast %124 : f32 to vector<16x128xf32>
      %664 = arith.mulf %614, %663 : vector<16x128xf32>
      %665 = arith.addf %599, %664 : vector<16x128xf32>
      %666 = vector.broadcast %125 : f32 to vector<16x128xf32>
      %667 = arith.mulf %614, %666 : vector<16x128xf32>
      %668 = arith.addf %602, %667 : vector<16x128xf32>
      %669 = vector.broadcast %3 : f32 to vector<16x128xf32>
      %670 = arith.mulf %484, %669 : vector<16x128xf32>
      %671 = vector.broadcast %21 : f32 to vector<16x128xf32>
      %672 = arith.mulf %486, %671 : vector<16x128xf32>
      %673 = arith.addf %670, %672 : vector<16x128xf32>
      %674 = vector.broadcast %39 : f32 to vector<16x128xf32>
      %675 = arith.mulf %488, %674 : vector<16x128xf32>
      %676 = arith.addf %673, %675 : vector<16x128xf32>
      %677 = vector.broadcast %57 : f32 to vector<16x128xf32>
      %678 = arith.addf %676, %677 : vector<16x128xf32>
      %cst_881 = arith.constant 0.000000e+00 : f32
      %679 = vector.broadcast %cst_881 : f32 to vector<16x128xf32>
      %680 = arith.maximumf %678, %679 : vector<16x128xf32>
      %681 = vector.broadcast %126 : f32 to vector<16x128xf32>
      %682 = arith.mulf %680, %681 : vector<16x128xf32>
      %683 = arith.addf %617, %682 : vector<16x128xf32>
      %684 = vector.broadcast %127 : f32 to vector<16x128xf32>
      %685 = arith.mulf %680, %684 : vector<16x128xf32>
      %686 = arith.addf %620, %685 : vector<16x128xf32>
      %687 = vector.broadcast %128 : f32 to vector<16x128xf32>
      %688 = arith.mulf %680, %687 : vector<16x128xf32>
      %689 = arith.addf %623, %688 : vector<16x128xf32>
      %690 = vector.broadcast %129 : f32 to vector<16x128xf32>
      %691 = arith.mulf %680, %690 : vector<16x128xf32>
      %692 = arith.addf %626, %691 : vector<16x128xf32>
      %693 = vector.broadcast %130 : f32 to vector<16x128xf32>
      %694 = arith.mulf %680, %693 : vector<16x128xf32>
      %695 = arith.addf %629, %694 : vector<16x128xf32>
      %696 = vector.broadcast %131 : f32 to vector<16x128xf32>
      %697 = arith.mulf %680, %696 : vector<16x128xf32>
      %698 = arith.addf %632, %697 : vector<16x128xf32>
      %699 = vector.broadcast %132 : f32 to vector<16x128xf32>
      %700 = arith.mulf %680, %699 : vector<16x128xf32>
      %701 = arith.addf %635, %700 : vector<16x128xf32>
      %702 = vector.broadcast %133 : f32 to vector<16x128xf32>
      %703 = arith.mulf %680, %702 : vector<16x128xf32>
      %704 = arith.addf %638, %703 : vector<16x128xf32>
      %705 = vector.broadcast %134 : f32 to vector<16x128xf32>
      %706 = arith.mulf %680, %705 : vector<16x128xf32>
      %707 = arith.addf %641, %706 : vector<16x128xf32>
      %708 = vector.broadcast %135 : f32 to vector<16x128xf32>
      %709 = arith.mulf %680, %708 : vector<16x128xf32>
      %710 = arith.addf %644, %709 : vector<16x128xf32>
      %711 = vector.broadcast %136 : f32 to vector<16x128xf32>
      %712 = arith.mulf %680, %711 : vector<16x128xf32>
      %713 = arith.addf %647, %712 : vector<16x128xf32>
      %714 = vector.broadcast %137 : f32 to vector<16x128xf32>
      %715 = arith.mulf %680, %714 : vector<16x128xf32>
      %716 = arith.addf %650, %715 : vector<16x128xf32>
      %717 = vector.broadcast %138 : f32 to vector<16x128xf32>
      %718 = arith.mulf %680, %717 : vector<16x128xf32>
      %719 = arith.addf %653, %718 : vector<16x128xf32>
      %720 = vector.broadcast %139 : f32 to vector<16x128xf32>
      %721 = arith.mulf %680, %720 : vector<16x128xf32>
      %722 = arith.addf %656, %721 : vector<16x128xf32>
      %723 = vector.broadcast %140 : f32 to vector<16x128xf32>
      %724 = arith.mulf %680, %723 : vector<16x128xf32>
      %725 = arith.addf %659, %724 : vector<16x128xf32>
      %726 = vector.broadcast %141 : f32 to vector<16x128xf32>
      %727 = arith.mulf %680, %726 : vector<16x128xf32>
      %728 = arith.addf %662, %727 : vector<16x128xf32>
      %729 = vector.broadcast %142 : f32 to vector<16x128xf32>
      %730 = arith.mulf %680, %729 : vector<16x128xf32>
      %731 = arith.addf %665, %730 : vector<16x128xf32>
      %732 = vector.broadcast %143 : f32 to vector<16x128xf32>
      %733 = arith.mulf %680, %732 : vector<16x128xf32>
      %734 = arith.addf %668, %733 : vector<16x128xf32>
      %735 = vector.broadcast %4 : f32 to vector<16x128xf32>
      %736 = arith.mulf %484, %735 : vector<16x128xf32>
      %737 = vector.broadcast %22 : f32 to vector<16x128xf32>
      %738 = arith.mulf %486, %737 : vector<16x128xf32>
      %739 = arith.addf %736, %738 : vector<16x128xf32>
      %740 = vector.broadcast %40 : f32 to vector<16x128xf32>
      %741 = arith.mulf %488, %740 : vector<16x128xf32>
      %742 = arith.addf %739, %741 : vector<16x128xf32>
      %743 = vector.broadcast %58 : f32 to vector<16x128xf32>
      %744 = arith.addf %742, %743 : vector<16x128xf32>
      %cst_882 = arith.constant 0.000000e+00 : f32
      %745 = vector.broadcast %cst_882 : f32 to vector<16x128xf32>
      %746 = arith.maximumf %744, %745 : vector<16x128xf32>
      %747 = vector.broadcast %144 : f32 to vector<16x128xf32>
      %748 = arith.mulf %746, %747 : vector<16x128xf32>
      %749 = arith.addf %683, %748 : vector<16x128xf32>
      %750 = vector.broadcast %145 : f32 to vector<16x128xf32>
      %751 = arith.mulf %746, %750 : vector<16x128xf32>
      %752 = arith.addf %686, %751 : vector<16x128xf32>
      %753 = vector.broadcast %146 : f32 to vector<16x128xf32>
      %754 = arith.mulf %746, %753 : vector<16x128xf32>
      %755 = arith.addf %689, %754 : vector<16x128xf32>
      %756 = vector.broadcast %147 : f32 to vector<16x128xf32>
      %757 = arith.mulf %746, %756 : vector<16x128xf32>
      %758 = arith.addf %692, %757 : vector<16x128xf32>
      %759 = vector.broadcast %148 : f32 to vector<16x128xf32>
      %760 = arith.mulf %746, %759 : vector<16x128xf32>
      %761 = arith.addf %695, %760 : vector<16x128xf32>
      %762 = vector.broadcast %149 : f32 to vector<16x128xf32>
      %763 = arith.mulf %746, %762 : vector<16x128xf32>
      %764 = arith.addf %698, %763 : vector<16x128xf32>
      %765 = vector.broadcast %150 : f32 to vector<16x128xf32>
      %766 = arith.mulf %746, %765 : vector<16x128xf32>
      %767 = arith.addf %701, %766 : vector<16x128xf32>
      %768 = vector.broadcast %151 : f32 to vector<16x128xf32>
      %769 = arith.mulf %746, %768 : vector<16x128xf32>
      %770 = arith.addf %704, %769 : vector<16x128xf32>
      %771 = vector.broadcast %152 : f32 to vector<16x128xf32>
      %772 = arith.mulf %746, %771 : vector<16x128xf32>
      %773 = arith.addf %707, %772 : vector<16x128xf32>
      %774 = vector.broadcast %153 : f32 to vector<16x128xf32>
      %775 = arith.mulf %746, %774 : vector<16x128xf32>
      %776 = arith.addf %710, %775 : vector<16x128xf32>
      %777 = vector.broadcast %154 : f32 to vector<16x128xf32>
      %778 = arith.mulf %746, %777 : vector<16x128xf32>
      %779 = arith.addf %713, %778 : vector<16x128xf32>
      %780 = vector.broadcast %155 : f32 to vector<16x128xf32>
      %781 = arith.mulf %746, %780 : vector<16x128xf32>
      %782 = arith.addf %716, %781 : vector<16x128xf32>
      %783 = vector.broadcast %156 : f32 to vector<16x128xf32>
      %784 = arith.mulf %746, %783 : vector<16x128xf32>
      %785 = arith.addf %719, %784 : vector<16x128xf32>
      %786 = vector.broadcast %157 : f32 to vector<16x128xf32>
      %787 = arith.mulf %746, %786 : vector<16x128xf32>
      %788 = arith.addf %722, %787 : vector<16x128xf32>
      %789 = vector.broadcast %158 : f32 to vector<16x128xf32>
      %790 = arith.mulf %746, %789 : vector<16x128xf32>
      %791 = arith.addf %725, %790 : vector<16x128xf32>
      %792 = vector.broadcast %159 : f32 to vector<16x128xf32>
      %793 = arith.mulf %746, %792 : vector<16x128xf32>
      %794 = arith.addf %728, %793 : vector<16x128xf32>
      %795 = vector.broadcast %160 : f32 to vector<16x128xf32>
      %796 = arith.mulf %746, %795 : vector<16x128xf32>
      %797 = arith.addf %731, %796 : vector<16x128xf32>
      %798 = vector.broadcast %161 : f32 to vector<16x128xf32>
      %799 = arith.mulf %746, %798 : vector<16x128xf32>
      %800 = arith.addf %734, %799 : vector<16x128xf32>
      %801 = vector.broadcast %5 : f32 to vector<16x128xf32>
      %802 = arith.mulf %484, %801 : vector<16x128xf32>
      %803 = vector.broadcast %23 : f32 to vector<16x128xf32>
      %804 = arith.mulf %486, %803 : vector<16x128xf32>
      %805 = arith.addf %802, %804 : vector<16x128xf32>
      %806 = vector.broadcast %41 : f32 to vector<16x128xf32>
      %807 = arith.mulf %488, %806 : vector<16x128xf32>
      %808 = arith.addf %805, %807 : vector<16x128xf32>
      %809 = vector.broadcast %59 : f32 to vector<16x128xf32>
      %810 = arith.addf %808, %809 : vector<16x128xf32>
      %cst_883 = arith.constant 0.000000e+00 : f32
      %811 = vector.broadcast %cst_883 : f32 to vector<16x128xf32>
      %812 = arith.maximumf %810, %811 : vector<16x128xf32>
      %813 = vector.broadcast %162 : f32 to vector<16x128xf32>
      %814 = arith.mulf %812, %813 : vector<16x128xf32>
      %815 = arith.addf %749, %814 : vector<16x128xf32>
      %816 = vector.broadcast %163 : f32 to vector<16x128xf32>
      %817 = arith.mulf %812, %816 : vector<16x128xf32>
      %818 = arith.addf %752, %817 : vector<16x128xf32>
      %819 = vector.broadcast %164 : f32 to vector<16x128xf32>
      %820 = arith.mulf %812, %819 : vector<16x128xf32>
      %821 = arith.addf %755, %820 : vector<16x128xf32>
      %822 = vector.broadcast %165 : f32 to vector<16x128xf32>
      %823 = arith.mulf %812, %822 : vector<16x128xf32>
      %824 = arith.addf %758, %823 : vector<16x128xf32>
      %825 = vector.broadcast %166 : f32 to vector<16x128xf32>
      %826 = arith.mulf %812, %825 : vector<16x128xf32>
      %827 = arith.addf %761, %826 : vector<16x128xf32>
      %828 = vector.broadcast %167 : f32 to vector<16x128xf32>
      %829 = arith.mulf %812, %828 : vector<16x128xf32>
      %830 = arith.addf %764, %829 : vector<16x128xf32>
      %831 = vector.broadcast %168 : f32 to vector<16x128xf32>
      %832 = arith.mulf %812, %831 : vector<16x128xf32>
      %833 = arith.addf %767, %832 : vector<16x128xf32>
      %834 = vector.broadcast %169 : f32 to vector<16x128xf32>
      %835 = arith.mulf %812, %834 : vector<16x128xf32>
      %836 = arith.addf %770, %835 : vector<16x128xf32>
      %837 = vector.broadcast %170 : f32 to vector<16x128xf32>
      %838 = arith.mulf %812, %837 : vector<16x128xf32>
      %839 = arith.addf %773, %838 : vector<16x128xf32>
      %840 = vector.broadcast %171 : f32 to vector<16x128xf32>
      %841 = arith.mulf %812, %840 : vector<16x128xf32>
      %842 = arith.addf %776, %841 : vector<16x128xf32>
      %843 = vector.broadcast %172 : f32 to vector<16x128xf32>
      %844 = arith.mulf %812, %843 : vector<16x128xf32>
      %845 = arith.addf %779, %844 : vector<16x128xf32>
      %846 = vector.broadcast %173 : f32 to vector<16x128xf32>
      %847 = arith.mulf %812, %846 : vector<16x128xf32>
      %848 = arith.addf %782, %847 : vector<16x128xf32>
      %849 = vector.broadcast %174 : f32 to vector<16x128xf32>
      %850 = arith.mulf %812, %849 : vector<16x128xf32>
      %851 = arith.addf %785, %850 : vector<16x128xf32>
      %852 = vector.broadcast %175 : f32 to vector<16x128xf32>
      %853 = arith.mulf %812, %852 : vector<16x128xf32>
      %854 = arith.addf %788, %853 : vector<16x128xf32>
      %855 = vector.broadcast %176 : f32 to vector<16x128xf32>
      %856 = arith.mulf %812, %855 : vector<16x128xf32>
      %857 = arith.addf %791, %856 : vector<16x128xf32>
      %858 = vector.broadcast %177 : f32 to vector<16x128xf32>
      %859 = arith.mulf %812, %858 : vector<16x128xf32>
      %860 = arith.addf %794, %859 : vector<16x128xf32>
      %861 = vector.broadcast %178 : f32 to vector<16x128xf32>
      %862 = arith.mulf %812, %861 : vector<16x128xf32>
      %863 = arith.addf %797, %862 : vector<16x128xf32>
      %864 = vector.broadcast %179 : f32 to vector<16x128xf32>
      %865 = arith.mulf %812, %864 : vector<16x128xf32>
      %866 = arith.addf %800, %865 : vector<16x128xf32>
      %867 = vector.broadcast %6 : f32 to vector<16x128xf32>
      %868 = arith.mulf %484, %867 : vector<16x128xf32>
      %869 = vector.broadcast %24 : f32 to vector<16x128xf32>
      %870 = arith.mulf %486, %869 : vector<16x128xf32>
      %871 = arith.addf %868, %870 : vector<16x128xf32>
      %872 = vector.broadcast %42 : f32 to vector<16x128xf32>
      %873 = arith.mulf %488, %872 : vector<16x128xf32>
      %874 = arith.addf %871, %873 : vector<16x128xf32>
      %875 = vector.broadcast %60 : f32 to vector<16x128xf32>
      %876 = arith.addf %874, %875 : vector<16x128xf32>
      %cst_884 = arith.constant 0.000000e+00 : f32
      %877 = vector.broadcast %cst_884 : f32 to vector<16x128xf32>
      %878 = arith.maximumf %876, %877 : vector<16x128xf32>
      %879 = vector.broadcast %180 : f32 to vector<16x128xf32>
      %880 = arith.mulf %878, %879 : vector<16x128xf32>
      %881 = arith.addf %815, %880 : vector<16x128xf32>
      %882 = vector.broadcast %181 : f32 to vector<16x128xf32>
      %883 = arith.mulf %878, %882 : vector<16x128xf32>
      %884 = arith.addf %818, %883 : vector<16x128xf32>
      %885 = vector.broadcast %182 : f32 to vector<16x128xf32>
      %886 = arith.mulf %878, %885 : vector<16x128xf32>
      %887 = arith.addf %821, %886 : vector<16x128xf32>
      %888 = vector.broadcast %183 : f32 to vector<16x128xf32>
      %889 = arith.mulf %878, %888 : vector<16x128xf32>
      %890 = arith.addf %824, %889 : vector<16x128xf32>
      %891 = vector.broadcast %184 : f32 to vector<16x128xf32>
      %892 = arith.mulf %878, %891 : vector<16x128xf32>
      %893 = arith.addf %827, %892 : vector<16x128xf32>
      %894 = vector.broadcast %185 : f32 to vector<16x128xf32>
      %895 = arith.mulf %878, %894 : vector<16x128xf32>
      %896 = arith.addf %830, %895 : vector<16x128xf32>
      %897 = vector.broadcast %186 : f32 to vector<16x128xf32>
      %898 = arith.mulf %878, %897 : vector<16x128xf32>
      %899 = arith.addf %833, %898 : vector<16x128xf32>
      %900 = vector.broadcast %187 : f32 to vector<16x128xf32>
      %901 = arith.mulf %878, %900 : vector<16x128xf32>
      %902 = arith.addf %836, %901 : vector<16x128xf32>
      %903 = vector.broadcast %188 : f32 to vector<16x128xf32>
      %904 = arith.mulf %878, %903 : vector<16x128xf32>
      %905 = arith.addf %839, %904 : vector<16x128xf32>
      %906 = vector.broadcast %189 : f32 to vector<16x128xf32>
      %907 = arith.mulf %878, %906 : vector<16x128xf32>
      %908 = arith.addf %842, %907 : vector<16x128xf32>
      %909 = vector.broadcast %190 : f32 to vector<16x128xf32>
      %910 = arith.mulf %878, %909 : vector<16x128xf32>
      %911 = arith.addf %845, %910 : vector<16x128xf32>
      %912 = vector.broadcast %191 : f32 to vector<16x128xf32>
      %913 = arith.mulf %878, %912 : vector<16x128xf32>
      %914 = arith.addf %848, %913 : vector<16x128xf32>
      %915 = vector.broadcast %192 : f32 to vector<16x128xf32>
      %916 = arith.mulf %878, %915 : vector<16x128xf32>
      %917 = arith.addf %851, %916 : vector<16x128xf32>
      %918 = vector.broadcast %193 : f32 to vector<16x128xf32>
      %919 = arith.mulf %878, %918 : vector<16x128xf32>
      %920 = arith.addf %854, %919 : vector<16x128xf32>
      %921 = vector.broadcast %194 : f32 to vector<16x128xf32>
      %922 = arith.mulf %878, %921 : vector<16x128xf32>
      %923 = arith.addf %857, %922 : vector<16x128xf32>
      %924 = vector.broadcast %195 : f32 to vector<16x128xf32>
      %925 = arith.mulf %878, %924 : vector<16x128xf32>
      %926 = arith.addf %860, %925 : vector<16x128xf32>
      %927 = vector.broadcast %196 : f32 to vector<16x128xf32>
      %928 = arith.mulf %878, %927 : vector<16x128xf32>
      %929 = arith.addf %863, %928 : vector<16x128xf32>
      %930 = vector.broadcast %197 : f32 to vector<16x128xf32>
      %931 = arith.mulf %878, %930 : vector<16x128xf32>
      %932 = arith.addf %866, %931 : vector<16x128xf32>
      %933 = vector.broadcast %7 : f32 to vector<16x128xf32>
      %934 = arith.mulf %484, %933 : vector<16x128xf32>
      %935 = vector.broadcast %25 : f32 to vector<16x128xf32>
      %936 = arith.mulf %486, %935 : vector<16x128xf32>
      %937 = arith.addf %934, %936 : vector<16x128xf32>
      %938 = vector.broadcast %43 : f32 to vector<16x128xf32>
      %939 = arith.mulf %488, %938 : vector<16x128xf32>
      %940 = arith.addf %937, %939 : vector<16x128xf32>
      %941 = vector.broadcast %61 : f32 to vector<16x128xf32>
      %942 = arith.addf %940, %941 : vector<16x128xf32>
      %cst_885 = arith.constant 0.000000e+00 : f32
      %943 = vector.broadcast %cst_885 : f32 to vector<16x128xf32>
      %944 = arith.maximumf %942, %943 : vector<16x128xf32>
      %945 = vector.broadcast %198 : f32 to vector<16x128xf32>
      %946 = arith.mulf %944, %945 : vector<16x128xf32>
      %947 = arith.addf %881, %946 : vector<16x128xf32>
      %948 = vector.broadcast %199 : f32 to vector<16x128xf32>
      %949 = arith.mulf %944, %948 : vector<16x128xf32>
      %950 = arith.addf %884, %949 : vector<16x128xf32>
      %951 = vector.broadcast %200 : f32 to vector<16x128xf32>
      %952 = arith.mulf %944, %951 : vector<16x128xf32>
      %953 = arith.addf %887, %952 : vector<16x128xf32>
      %954 = vector.broadcast %201 : f32 to vector<16x128xf32>
      %955 = arith.mulf %944, %954 : vector<16x128xf32>
      %956 = arith.addf %890, %955 : vector<16x128xf32>
      %957 = vector.broadcast %202 : f32 to vector<16x128xf32>
      %958 = arith.mulf %944, %957 : vector<16x128xf32>
      %959 = arith.addf %893, %958 : vector<16x128xf32>
      %960 = vector.broadcast %203 : f32 to vector<16x128xf32>
      %961 = arith.mulf %944, %960 : vector<16x128xf32>
      %962 = arith.addf %896, %961 : vector<16x128xf32>
      %963 = vector.broadcast %204 : f32 to vector<16x128xf32>
      %964 = arith.mulf %944, %963 : vector<16x128xf32>
      %965 = arith.addf %899, %964 : vector<16x128xf32>
      %966 = vector.broadcast %205 : f32 to vector<16x128xf32>
      %967 = arith.mulf %944, %966 : vector<16x128xf32>
      %968 = arith.addf %902, %967 : vector<16x128xf32>
      %969 = vector.broadcast %206 : f32 to vector<16x128xf32>
      %970 = arith.mulf %944, %969 : vector<16x128xf32>
      %971 = arith.addf %905, %970 : vector<16x128xf32>
      %972 = vector.broadcast %207 : f32 to vector<16x128xf32>
      %973 = arith.mulf %944, %972 : vector<16x128xf32>
      %974 = arith.addf %908, %973 : vector<16x128xf32>
      %975 = vector.broadcast %208 : f32 to vector<16x128xf32>
      %976 = arith.mulf %944, %975 : vector<16x128xf32>
      %977 = arith.addf %911, %976 : vector<16x128xf32>
      %978 = vector.broadcast %209 : f32 to vector<16x128xf32>
      %979 = arith.mulf %944, %978 : vector<16x128xf32>
      %980 = arith.addf %914, %979 : vector<16x128xf32>
      %981 = vector.broadcast %210 : f32 to vector<16x128xf32>
      %982 = arith.mulf %944, %981 : vector<16x128xf32>
      %983 = arith.addf %917, %982 : vector<16x128xf32>
      %984 = vector.broadcast %211 : f32 to vector<16x128xf32>
      %985 = arith.mulf %944, %984 : vector<16x128xf32>
      %986 = arith.addf %920, %985 : vector<16x128xf32>
      %987 = vector.broadcast %212 : f32 to vector<16x128xf32>
      %988 = arith.mulf %944, %987 : vector<16x128xf32>
      %989 = arith.addf %923, %988 : vector<16x128xf32>
      %990 = vector.broadcast %213 : f32 to vector<16x128xf32>
      %991 = arith.mulf %944, %990 : vector<16x128xf32>
      %992 = arith.addf %926, %991 : vector<16x128xf32>
      %993 = vector.broadcast %214 : f32 to vector<16x128xf32>
      %994 = arith.mulf %944, %993 : vector<16x128xf32>
      %995 = arith.addf %929, %994 : vector<16x128xf32>
      %996 = vector.broadcast %215 : f32 to vector<16x128xf32>
      %997 = arith.mulf %944, %996 : vector<16x128xf32>
      %998 = arith.addf %932, %997 : vector<16x128xf32>
      %999 = vector.broadcast %8 : f32 to vector<16x128xf32>
      %1000 = arith.mulf %484, %999 : vector<16x128xf32>
      %1001 = vector.broadcast %26 : f32 to vector<16x128xf32>
      %1002 = arith.mulf %486, %1001 : vector<16x128xf32>
      %1003 = arith.addf %1000, %1002 : vector<16x128xf32>
      %1004 = vector.broadcast %44 : f32 to vector<16x128xf32>
      %1005 = arith.mulf %488, %1004 : vector<16x128xf32>
      %1006 = arith.addf %1003, %1005 : vector<16x128xf32>
      %1007 = vector.broadcast %62 : f32 to vector<16x128xf32>
      %1008 = arith.addf %1006, %1007 : vector<16x128xf32>
      %cst_886 = arith.constant 0.000000e+00 : f32
      %1009 = vector.broadcast %cst_886 : f32 to vector<16x128xf32>
      %1010 = arith.maximumf %1008, %1009 : vector<16x128xf32>
      %1011 = vector.broadcast %216 : f32 to vector<16x128xf32>
      %1012 = arith.mulf %1010, %1011 : vector<16x128xf32>
      %1013 = arith.addf %947, %1012 : vector<16x128xf32>
      %1014 = vector.broadcast %217 : f32 to vector<16x128xf32>
      %1015 = arith.mulf %1010, %1014 : vector<16x128xf32>
      %1016 = arith.addf %950, %1015 : vector<16x128xf32>
      %1017 = vector.broadcast %218 : f32 to vector<16x128xf32>
      %1018 = arith.mulf %1010, %1017 : vector<16x128xf32>
      %1019 = arith.addf %953, %1018 : vector<16x128xf32>
      %1020 = vector.broadcast %219 : f32 to vector<16x128xf32>
      %1021 = arith.mulf %1010, %1020 : vector<16x128xf32>
      %1022 = arith.addf %956, %1021 : vector<16x128xf32>
      %1023 = vector.broadcast %220 : f32 to vector<16x128xf32>
      %1024 = arith.mulf %1010, %1023 : vector<16x128xf32>
      %1025 = arith.addf %959, %1024 : vector<16x128xf32>
      %1026 = vector.broadcast %221 : f32 to vector<16x128xf32>
      %1027 = arith.mulf %1010, %1026 : vector<16x128xf32>
      %1028 = arith.addf %962, %1027 : vector<16x128xf32>
      %1029 = vector.broadcast %222 : f32 to vector<16x128xf32>
      %1030 = arith.mulf %1010, %1029 : vector<16x128xf32>
      %1031 = arith.addf %965, %1030 : vector<16x128xf32>
      %1032 = vector.broadcast %223 : f32 to vector<16x128xf32>
      %1033 = arith.mulf %1010, %1032 : vector<16x128xf32>
      %1034 = arith.addf %968, %1033 : vector<16x128xf32>
      %1035 = vector.broadcast %224 : f32 to vector<16x128xf32>
      %1036 = arith.mulf %1010, %1035 : vector<16x128xf32>
      %1037 = arith.addf %971, %1036 : vector<16x128xf32>
      %1038 = vector.broadcast %225 : f32 to vector<16x128xf32>
      %1039 = arith.mulf %1010, %1038 : vector<16x128xf32>
      %1040 = arith.addf %974, %1039 : vector<16x128xf32>
      %1041 = vector.broadcast %226 : f32 to vector<16x128xf32>
      %1042 = arith.mulf %1010, %1041 : vector<16x128xf32>
      %1043 = arith.addf %977, %1042 : vector<16x128xf32>
      %1044 = vector.broadcast %227 : f32 to vector<16x128xf32>
      %1045 = arith.mulf %1010, %1044 : vector<16x128xf32>
      %1046 = arith.addf %980, %1045 : vector<16x128xf32>
      %1047 = vector.broadcast %228 : f32 to vector<16x128xf32>
      %1048 = arith.mulf %1010, %1047 : vector<16x128xf32>
      %1049 = arith.addf %983, %1048 : vector<16x128xf32>
      %1050 = vector.broadcast %229 : f32 to vector<16x128xf32>
      %1051 = arith.mulf %1010, %1050 : vector<16x128xf32>
      %1052 = arith.addf %986, %1051 : vector<16x128xf32>
      %1053 = vector.broadcast %230 : f32 to vector<16x128xf32>
      %1054 = arith.mulf %1010, %1053 : vector<16x128xf32>
      %1055 = arith.addf %989, %1054 : vector<16x128xf32>
      %1056 = vector.broadcast %231 : f32 to vector<16x128xf32>
      %1057 = arith.mulf %1010, %1056 : vector<16x128xf32>
      %1058 = arith.addf %992, %1057 : vector<16x128xf32>
      %1059 = vector.broadcast %232 : f32 to vector<16x128xf32>
      %1060 = arith.mulf %1010, %1059 : vector<16x128xf32>
      %1061 = arith.addf %995, %1060 : vector<16x128xf32>
      %1062 = vector.broadcast %233 : f32 to vector<16x128xf32>
      %1063 = arith.mulf %1010, %1062 : vector<16x128xf32>
      %1064 = arith.addf %998, %1063 : vector<16x128xf32>
      %1065 = vector.broadcast %9 : f32 to vector<16x128xf32>
      %1066 = arith.mulf %484, %1065 : vector<16x128xf32>
      %1067 = vector.broadcast %27 : f32 to vector<16x128xf32>
      %1068 = arith.mulf %486, %1067 : vector<16x128xf32>
      %1069 = arith.addf %1066, %1068 : vector<16x128xf32>
      %1070 = vector.broadcast %45 : f32 to vector<16x128xf32>
      %1071 = arith.mulf %488, %1070 : vector<16x128xf32>
      %1072 = arith.addf %1069, %1071 : vector<16x128xf32>
      %1073 = vector.broadcast %63 : f32 to vector<16x128xf32>
      %1074 = arith.addf %1072, %1073 : vector<16x128xf32>
      %cst_887 = arith.constant 0.000000e+00 : f32
      %1075 = vector.broadcast %cst_887 : f32 to vector<16x128xf32>
      %1076 = arith.maximumf %1074, %1075 : vector<16x128xf32>
      %1077 = vector.broadcast %234 : f32 to vector<16x128xf32>
      %1078 = arith.mulf %1076, %1077 : vector<16x128xf32>
      %1079 = arith.addf %1013, %1078 : vector<16x128xf32>
      %1080 = vector.broadcast %235 : f32 to vector<16x128xf32>
      %1081 = arith.mulf %1076, %1080 : vector<16x128xf32>
      %1082 = arith.addf %1016, %1081 : vector<16x128xf32>
      %1083 = vector.broadcast %236 : f32 to vector<16x128xf32>
      %1084 = arith.mulf %1076, %1083 : vector<16x128xf32>
      %1085 = arith.addf %1019, %1084 : vector<16x128xf32>
      %1086 = vector.broadcast %237 : f32 to vector<16x128xf32>
      %1087 = arith.mulf %1076, %1086 : vector<16x128xf32>
      %1088 = arith.addf %1022, %1087 : vector<16x128xf32>
      %1089 = vector.broadcast %238 : f32 to vector<16x128xf32>
      %1090 = arith.mulf %1076, %1089 : vector<16x128xf32>
      %1091 = arith.addf %1025, %1090 : vector<16x128xf32>
      %1092 = vector.broadcast %239 : f32 to vector<16x128xf32>
      %1093 = arith.mulf %1076, %1092 : vector<16x128xf32>
      %1094 = arith.addf %1028, %1093 : vector<16x128xf32>
      %1095 = vector.broadcast %240 : f32 to vector<16x128xf32>
      %1096 = arith.mulf %1076, %1095 : vector<16x128xf32>
      %1097 = arith.addf %1031, %1096 : vector<16x128xf32>
      %1098 = vector.broadcast %241 : f32 to vector<16x128xf32>
      %1099 = arith.mulf %1076, %1098 : vector<16x128xf32>
      %1100 = arith.addf %1034, %1099 : vector<16x128xf32>
      %1101 = vector.broadcast %242 : f32 to vector<16x128xf32>
      %1102 = arith.mulf %1076, %1101 : vector<16x128xf32>
      %1103 = arith.addf %1037, %1102 : vector<16x128xf32>
      %1104 = vector.broadcast %243 : f32 to vector<16x128xf32>
      %1105 = arith.mulf %1076, %1104 : vector<16x128xf32>
      %1106 = arith.addf %1040, %1105 : vector<16x128xf32>
      %1107 = vector.broadcast %244 : f32 to vector<16x128xf32>
      %1108 = arith.mulf %1076, %1107 : vector<16x128xf32>
      %1109 = arith.addf %1043, %1108 : vector<16x128xf32>
      %1110 = vector.broadcast %245 : f32 to vector<16x128xf32>
      %1111 = arith.mulf %1076, %1110 : vector<16x128xf32>
      %1112 = arith.addf %1046, %1111 : vector<16x128xf32>
      %1113 = vector.broadcast %246 : f32 to vector<16x128xf32>
      %1114 = arith.mulf %1076, %1113 : vector<16x128xf32>
      %1115 = arith.addf %1049, %1114 : vector<16x128xf32>
      %1116 = vector.broadcast %247 : f32 to vector<16x128xf32>
      %1117 = arith.mulf %1076, %1116 : vector<16x128xf32>
      %1118 = arith.addf %1052, %1117 : vector<16x128xf32>
      %1119 = vector.broadcast %248 : f32 to vector<16x128xf32>
      %1120 = arith.mulf %1076, %1119 : vector<16x128xf32>
      %1121 = arith.addf %1055, %1120 : vector<16x128xf32>
      %1122 = vector.broadcast %249 : f32 to vector<16x128xf32>
      %1123 = arith.mulf %1076, %1122 : vector<16x128xf32>
      %1124 = arith.addf %1058, %1123 : vector<16x128xf32>
      %1125 = vector.broadcast %250 : f32 to vector<16x128xf32>
      %1126 = arith.mulf %1076, %1125 : vector<16x128xf32>
      %1127 = arith.addf %1061, %1126 : vector<16x128xf32>
      %1128 = vector.broadcast %251 : f32 to vector<16x128xf32>
      %1129 = arith.mulf %1076, %1128 : vector<16x128xf32>
      %1130 = arith.addf %1064, %1129 : vector<16x128xf32>
      %1131 = vector.broadcast %10 : f32 to vector<16x128xf32>
      %1132 = arith.mulf %484, %1131 : vector<16x128xf32>
      %1133 = vector.broadcast %28 : f32 to vector<16x128xf32>
      %1134 = arith.mulf %486, %1133 : vector<16x128xf32>
      %1135 = arith.addf %1132, %1134 : vector<16x128xf32>
      %1136 = vector.broadcast %46 : f32 to vector<16x128xf32>
      %1137 = arith.mulf %488, %1136 : vector<16x128xf32>
      %1138 = arith.addf %1135, %1137 : vector<16x128xf32>
      %1139 = vector.broadcast %64 : f32 to vector<16x128xf32>
      %1140 = arith.addf %1138, %1139 : vector<16x128xf32>
      %cst_888 = arith.constant 0.000000e+00 : f32
      %1141 = vector.broadcast %cst_888 : f32 to vector<16x128xf32>
      %1142 = arith.maximumf %1140, %1141 : vector<16x128xf32>
      %1143 = vector.broadcast %252 : f32 to vector<16x128xf32>
      %1144 = arith.mulf %1142, %1143 : vector<16x128xf32>
      %1145 = arith.addf %1079, %1144 : vector<16x128xf32>
      %1146 = vector.broadcast %253 : f32 to vector<16x128xf32>
      %1147 = arith.mulf %1142, %1146 : vector<16x128xf32>
      %1148 = arith.addf %1082, %1147 : vector<16x128xf32>
      %1149 = vector.broadcast %254 : f32 to vector<16x128xf32>
      %1150 = arith.mulf %1142, %1149 : vector<16x128xf32>
      %1151 = arith.addf %1085, %1150 : vector<16x128xf32>
      %1152 = vector.broadcast %255 : f32 to vector<16x128xf32>
      %1153 = arith.mulf %1142, %1152 : vector<16x128xf32>
      %1154 = arith.addf %1088, %1153 : vector<16x128xf32>
      %1155 = vector.broadcast %256 : f32 to vector<16x128xf32>
      %1156 = arith.mulf %1142, %1155 : vector<16x128xf32>
      %1157 = arith.addf %1091, %1156 : vector<16x128xf32>
      %1158 = vector.broadcast %257 : f32 to vector<16x128xf32>
      %1159 = arith.mulf %1142, %1158 : vector<16x128xf32>
      %1160 = arith.addf %1094, %1159 : vector<16x128xf32>
      %1161 = vector.broadcast %258 : f32 to vector<16x128xf32>
      %1162 = arith.mulf %1142, %1161 : vector<16x128xf32>
      %1163 = arith.addf %1097, %1162 : vector<16x128xf32>
      %1164 = vector.broadcast %259 : f32 to vector<16x128xf32>
      %1165 = arith.mulf %1142, %1164 : vector<16x128xf32>
      %1166 = arith.addf %1100, %1165 : vector<16x128xf32>
      %1167 = vector.broadcast %260 : f32 to vector<16x128xf32>
      %1168 = arith.mulf %1142, %1167 : vector<16x128xf32>
      %1169 = arith.addf %1103, %1168 : vector<16x128xf32>
      %1170 = vector.broadcast %261 : f32 to vector<16x128xf32>
      %1171 = arith.mulf %1142, %1170 : vector<16x128xf32>
      %1172 = arith.addf %1106, %1171 : vector<16x128xf32>
      %1173 = vector.broadcast %262 : f32 to vector<16x128xf32>
      %1174 = arith.mulf %1142, %1173 : vector<16x128xf32>
      %1175 = arith.addf %1109, %1174 : vector<16x128xf32>
      %1176 = vector.broadcast %263 : f32 to vector<16x128xf32>
      %1177 = arith.mulf %1142, %1176 : vector<16x128xf32>
      %1178 = arith.addf %1112, %1177 : vector<16x128xf32>
      %1179 = vector.broadcast %264 : f32 to vector<16x128xf32>
      %1180 = arith.mulf %1142, %1179 : vector<16x128xf32>
      %1181 = arith.addf %1115, %1180 : vector<16x128xf32>
      %1182 = vector.broadcast %265 : f32 to vector<16x128xf32>
      %1183 = arith.mulf %1142, %1182 : vector<16x128xf32>
      %1184 = arith.addf %1118, %1183 : vector<16x128xf32>
      %1185 = vector.broadcast %266 : f32 to vector<16x128xf32>
      %1186 = arith.mulf %1142, %1185 : vector<16x128xf32>
      %1187 = arith.addf %1121, %1186 : vector<16x128xf32>
      %1188 = vector.broadcast %267 : f32 to vector<16x128xf32>
      %1189 = arith.mulf %1142, %1188 : vector<16x128xf32>
      %1190 = arith.addf %1124, %1189 : vector<16x128xf32>
      %1191 = vector.broadcast %268 : f32 to vector<16x128xf32>
      %1192 = arith.mulf %1142, %1191 : vector<16x128xf32>
      %1193 = arith.addf %1127, %1192 : vector<16x128xf32>
      %1194 = vector.broadcast %269 : f32 to vector<16x128xf32>
      %1195 = arith.mulf %1142, %1194 : vector<16x128xf32>
      %1196 = arith.addf %1130, %1195 : vector<16x128xf32>
      %1197 = vector.broadcast %11 : f32 to vector<16x128xf32>
      %1198 = arith.mulf %484, %1197 : vector<16x128xf32>
      %1199 = vector.broadcast %29 : f32 to vector<16x128xf32>
      %1200 = arith.mulf %486, %1199 : vector<16x128xf32>
      %1201 = arith.addf %1198, %1200 : vector<16x128xf32>
      %1202 = vector.broadcast %47 : f32 to vector<16x128xf32>
      %1203 = arith.mulf %488, %1202 : vector<16x128xf32>
      %1204 = arith.addf %1201, %1203 : vector<16x128xf32>
      %1205 = vector.broadcast %65 : f32 to vector<16x128xf32>
      %1206 = arith.addf %1204, %1205 : vector<16x128xf32>
      %cst_889 = arith.constant 0.000000e+00 : f32
      %1207 = vector.broadcast %cst_889 : f32 to vector<16x128xf32>
      %1208 = arith.maximumf %1206, %1207 : vector<16x128xf32>
      %1209 = vector.broadcast %270 : f32 to vector<16x128xf32>
      %1210 = arith.mulf %1208, %1209 : vector<16x128xf32>
      %1211 = arith.addf %1145, %1210 : vector<16x128xf32>
      %1212 = vector.broadcast %271 : f32 to vector<16x128xf32>
      %1213 = arith.mulf %1208, %1212 : vector<16x128xf32>
      %1214 = arith.addf %1148, %1213 : vector<16x128xf32>
      %1215 = vector.broadcast %272 : f32 to vector<16x128xf32>
      %1216 = arith.mulf %1208, %1215 : vector<16x128xf32>
      %1217 = arith.addf %1151, %1216 : vector<16x128xf32>
      %1218 = vector.broadcast %273 : f32 to vector<16x128xf32>
      %1219 = arith.mulf %1208, %1218 : vector<16x128xf32>
      %1220 = arith.addf %1154, %1219 : vector<16x128xf32>
      %1221 = vector.broadcast %274 : f32 to vector<16x128xf32>
      %1222 = arith.mulf %1208, %1221 : vector<16x128xf32>
      %1223 = arith.addf %1157, %1222 : vector<16x128xf32>
      %1224 = vector.broadcast %275 : f32 to vector<16x128xf32>
      %1225 = arith.mulf %1208, %1224 : vector<16x128xf32>
      %1226 = arith.addf %1160, %1225 : vector<16x128xf32>
      %1227 = vector.broadcast %276 : f32 to vector<16x128xf32>
      %1228 = arith.mulf %1208, %1227 : vector<16x128xf32>
      %1229 = arith.addf %1163, %1228 : vector<16x128xf32>
      %1230 = vector.broadcast %277 : f32 to vector<16x128xf32>
      %1231 = arith.mulf %1208, %1230 : vector<16x128xf32>
      %1232 = arith.addf %1166, %1231 : vector<16x128xf32>
      %1233 = vector.broadcast %278 : f32 to vector<16x128xf32>
      %1234 = arith.mulf %1208, %1233 : vector<16x128xf32>
      %1235 = arith.addf %1169, %1234 : vector<16x128xf32>
      %1236 = vector.broadcast %279 : f32 to vector<16x128xf32>
      %1237 = arith.mulf %1208, %1236 : vector<16x128xf32>
      %1238 = arith.addf %1172, %1237 : vector<16x128xf32>
      %1239 = vector.broadcast %280 : f32 to vector<16x128xf32>
      %1240 = arith.mulf %1208, %1239 : vector<16x128xf32>
      %1241 = arith.addf %1175, %1240 : vector<16x128xf32>
      %1242 = vector.broadcast %281 : f32 to vector<16x128xf32>
      %1243 = arith.mulf %1208, %1242 : vector<16x128xf32>
      %1244 = arith.addf %1178, %1243 : vector<16x128xf32>
      %1245 = vector.broadcast %282 : f32 to vector<16x128xf32>
      %1246 = arith.mulf %1208, %1245 : vector<16x128xf32>
      %1247 = arith.addf %1181, %1246 : vector<16x128xf32>
      %1248 = vector.broadcast %283 : f32 to vector<16x128xf32>
      %1249 = arith.mulf %1208, %1248 : vector<16x128xf32>
      %1250 = arith.addf %1184, %1249 : vector<16x128xf32>
      %1251 = vector.broadcast %284 : f32 to vector<16x128xf32>
      %1252 = arith.mulf %1208, %1251 : vector<16x128xf32>
      %1253 = arith.addf %1187, %1252 : vector<16x128xf32>
      %1254 = vector.broadcast %285 : f32 to vector<16x128xf32>
      %1255 = arith.mulf %1208, %1254 : vector<16x128xf32>
      %1256 = arith.addf %1190, %1255 : vector<16x128xf32>
      %1257 = vector.broadcast %286 : f32 to vector<16x128xf32>
      %1258 = arith.mulf %1208, %1257 : vector<16x128xf32>
      %1259 = arith.addf %1193, %1258 : vector<16x128xf32>
      %1260 = vector.broadcast %287 : f32 to vector<16x128xf32>
      %1261 = arith.mulf %1208, %1260 : vector<16x128xf32>
      %1262 = arith.addf %1196, %1261 : vector<16x128xf32>
      %1263 = vector.broadcast %12 : f32 to vector<16x128xf32>
      %1264 = arith.mulf %484, %1263 : vector<16x128xf32>
      %1265 = vector.broadcast %30 : f32 to vector<16x128xf32>
      %1266 = arith.mulf %486, %1265 : vector<16x128xf32>
      %1267 = arith.addf %1264, %1266 : vector<16x128xf32>
      %1268 = vector.broadcast %48 : f32 to vector<16x128xf32>
      %1269 = arith.mulf %488, %1268 : vector<16x128xf32>
      %1270 = arith.addf %1267, %1269 : vector<16x128xf32>
      %1271 = vector.broadcast %66 : f32 to vector<16x128xf32>
      %1272 = arith.addf %1270, %1271 : vector<16x128xf32>
      %cst_890 = arith.constant 0.000000e+00 : f32
      %1273 = vector.broadcast %cst_890 : f32 to vector<16x128xf32>
      %1274 = arith.maximumf %1272, %1273 : vector<16x128xf32>
      %1275 = vector.broadcast %288 : f32 to vector<16x128xf32>
      %1276 = arith.mulf %1274, %1275 : vector<16x128xf32>
      %1277 = arith.addf %1211, %1276 : vector<16x128xf32>
      %1278 = vector.broadcast %289 : f32 to vector<16x128xf32>
      %1279 = arith.mulf %1274, %1278 : vector<16x128xf32>
      %1280 = arith.addf %1214, %1279 : vector<16x128xf32>
      %1281 = vector.broadcast %290 : f32 to vector<16x128xf32>
      %1282 = arith.mulf %1274, %1281 : vector<16x128xf32>
      %1283 = arith.addf %1217, %1282 : vector<16x128xf32>
      %1284 = vector.broadcast %291 : f32 to vector<16x128xf32>
      %1285 = arith.mulf %1274, %1284 : vector<16x128xf32>
      %1286 = arith.addf %1220, %1285 : vector<16x128xf32>
      %1287 = vector.broadcast %292 : f32 to vector<16x128xf32>
      %1288 = arith.mulf %1274, %1287 : vector<16x128xf32>
      %1289 = arith.addf %1223, %1288 : vector<16x128xf32>
      %1290 = vector.broadcast %293 : f32 to vector<16x128xf32>
      %1291 = arith.mulf %1274, %1290 : vector<16x128xf32>
      %1292 = arith.addf %1226, %1291 : vector<16x128xf32>
      %1293 = vector.broadcast %294 : f32 to vector<16x128xf32>
      %1294 = arith.mulf %1274, %1293 : vector<16x128xf32>
      %1295 = arith.addf %1229, %1294 : vector<16x128xf32>
      %1296 = vector.broadcast %295 : f32 to vector<16x128xf32>
      %1297 = arith.mulf %1274, %1296 : vector<16x128xf32>
      %1298 = arith.addf %1232, %1297 : vector<16x128xf32>
      %1299 = vector.broadcast %296 : f32 to vector<16x128xf32>
      %1300 = arith.mulf %1274, %1299 : vector<16x128xf32>
      %1301 = arith.addf %1235, %1300 : vector<16x128xf32>
      %1302 = vector.broadcast %297 : f32 to vector<16x128xf32>
      %1303 = arith.mulf %1274, %1302 : vector<16x128xf32>
      %1304 = arith.addf %1238, %1303 : vector<16x128xf32>
      %1305 = vector.broadcast %298 : f32 to vector<16x128xf32>
      %1306 = arith.mulf %1274, %1305 : vector<16x128xf32>
      %1307 = arith.addf %1241, %1306 : vector<16x128xf32>
      %1308 = vector.broadcast %299 : f32 to vector<16x128xf32>
      %1309 = arith.mulf %1274, %1308 : vector<16x128xf32>
      %1310 = arith.addf %1244, %1309 : vector<16x128xf32>
      %1311 = vector.broadcast %300 : f32 to vector<16x128xf32>
      %1312 = arith.mulf %1274, %1311 : vector<16x128xf32>
      %1313 = arith.addf %1247, %1312 : vector<16x128xf32>
      %1314 = vector.broadcast %301 : f32 to vector<16x128xf32>
      %1315 = arith.mulf %1274, %1314 : vector<16x128xf32>
      %1316 = arith.addf %1250, %1315 : vector<16x128xf32>
      %1317 = vector.broadcast %302 : f32 to vector<16x128xf32>
      %1318 = arith.mulf %1274, %1317 : vector<16x128xf32>
      %1319 = arith.addf %1253, %1318 : vector<16x128xf32>
      %1320 = vector.broadcast %303 : f32 to vector<16x128xf32>
      %1321 = arith.mulf %1274, %1320 : vector<16x128xf32>
      %1322 = arith.addf %1256, %1321 : vector<16x128xf32>
      %1323 = vector.broadcast %304 : f32 to vector<16x128xf32>
      %1324 = arith.mulf %1274, %1323 : vector<16x128xf32>
      %1325 = arith.addf %1259, %1324 : vector<16x128xf32>
      %1326 = vector.broadcast %305 : f32 to vector<16x128xf32>
      %1327 = arith.mulf %1274, %1326 : vector<16x128xf32>
      %1328 = arith.addf %1262, %1327 : vector<16x128xf32>
      %1329 = vector.broadcast %13 : f32 to vector<16x128xf32>
      %1330 = arith.mulf %484, %1329 : vector<16x128xf32>
      %1331 = vector.broadcast %31 : f32 to vector<16x128xf32>
      %1332 = arith.mulf %486, %1331 : vector<16x128xf32>
      %1333 = arith.addf %1330, %1332 : vector<16x128xf32>
      %1334 = vector.broadcast %49 : f32 to vector<16x128xf32>
      %1335 = arith.mulf %488, %1334 : vector<16x128xf32>
      %1336 = arith.addf %1333, %1335 : vector<16x128xf32>
      %1337 = vector.broadcast %67 : f32 to vector<16x128xf32>
      %1338 = arith.addf %1336, %1337 : vector<16x128xf32>
      %cst_891 = arith.constant 0.000000e+00 : f32
      %1339 = vector.broadcast %cst_891 : f32 to vector<16x128xf32>
      %1340 = arith.maximumf %1338, %1339 : vector<16x128xf32>
      %1341 = vector.broadcast %306 : f32 to vector<16x128xf32>
      %1342 = arith.mulf %1340, %1341 : vector<16x128xf32>
      %1343 = arith.addf %1277, %1342 : vector<16x128xf32>
      %1344 = vector.broadcast %307 : f32 to vector<16x128xf32>
      %1345 = arith.mulf %1340, %1344 : vector<16x128xf32>
      %1346 = arith.addf %1280, %1345 : vector<16x128xf32>
      %1347 = vector.broadcast %308 : f32 to vector<16x128xf32>
      %1348 = arith.mulf %1340, %1347 : vector<16x128xf32>
      %1349 = arith.addf %1283, %1348 : vector<16x128xf32>
      %1350 = vector.broadcast %309 : f32 to vector<16x128xf32>
      %1351 = arith.mulf %1340, %1350 : vector<16x128xf32>
      %1352 = arith.addf %1286, %1351 : vector<16x128xf32>
      %1353 = vector.broadcast %310 : f32 to vector<16x128xf32>
      %1354 = arith.mulf %1340, %1353 : vector<16x128xf32>
      %1355 = arith.addf %1289, %1354 : vector<16x128xf32>
      %1356 = vector.broadcast %311 : f32 to vector<16x128xf32>
      %1357 = arith.mulf %1340, %1356 : vector<16x128xf32>
      %1358 = arith.addf %1292, %1357 : vector<16x128xf32>
      %1359 = vector.broadcast %312 : f32 to vector<16x128xf32>
      %1360 = arith.mulf %1340, %1359 : vector<16x128xf32>
      %1361 = arith.addf %1295, %1360 : vector<16x128xf32>
      %1362 = vector.broadcast %313 : f32 to vector<16x128xf32>
      %1363 = arith.mulf %1340, %1362 : vector<16x128xf32>
      %1364 = arith.addf %1298, %1363 : vector<16x128xf32>
      %1365 = vector.broadcast %314 : f32 to vector<16x128xf32>
      %1366 = arith.mulf %1340, %1365 : vector<16x128xf32>
      %1367 = arith.addf %1301, %1366 : vector<16x128xf32>
      %1368 = vector.broadcast %315 : f32 to vector<16x128xf32>
      %1369 = arith.mulf %1340, %1368 : vector<16x128xf32>
      %1370 = arith.addf %1304, %1369 : vector<16x128xf32>
      %1371 = vector.broadcast %316 : f32 to vector<16x128xf32>
      %1372 = arith.mulf %1340, %1371 : vector<16x128xf32>
      %1373 = arith.addf %1307, %1372 : vector<16x128xf32>
      %1374 = vector.broadcast %317 : f32 to vector<16x128xf32>
      %1375 = arith.mulf %1340, %1374 : vector<16x128xf32>
      %1376 = arith.addf %1310, %1375 : vector<16x128xf32>
      %1377 = vector.broadcast %318 : f32 to vector<16x128xf32>
      %1378 = arith.mulf %1340, %1377 : vector<16x128xf32>
      %1379 = arith.addf %1313, %1378 : vector<16x128xf32>
      %1380 = vector.broadcast %319 : f32 to vector<16x128xf32>
      %1381 = arith.mulf %1340, %1380 : vector<16x128xf32>
      %1382 = arith.addf %1316, %1381 : vector<16x128xf32>
      %1383 = vector.broadcast %320 : f32 to vector<16x128xf32>
      %1384 = arith.mulf %1340, %1383 : vector<16x128xf32>
      %1385 = arith.addf %1319, %1384 : vector<16x128xf32>
      %1386 = vector.broadcast %321 : f32 to vector<16x128xf32>
      %1387 = arith.mulf %1340, %1386 : vector<16x128xf32>
      %1388 = arith.addf %1322, %1387 : vector<16x128xf32>
      %1389 = vector.broadcast %322 : f32 to vector<16x128xf32>
      %1390 = arith.mulf %1340, %1389 : vector<16x128xf32>
      %1391 = arith.addf %1325, %1390 : vector<16x128xf32>
      %1392 = vector.broadcast %323 : f32 to vector<16x128xf32>
      %1393 = arith.mulf %1340, %1392 : vector<16x128xf32>
      %1394 = arith.addf %1328, %1393 : vector<16x128xf32>
      %1395 = vector.broadcast %14 : f32 to vector<16x128xf32>
      %1396 = arith.mulf %484, %1395 : vector<16x128xf32>
      %1397 = vector.broadcast %32 : f32 to vector<16x128xf32>
      %1398 = arith.mulf %486, %1397 : vector<16x128xf32>
      %1399 = arith.addf %1396, %1398 : vector<16x128xf32>
      %1400 = vector.broadcast %50 : f32 to vector<16x128xf32>
      %1401 = arith.mulf %488, %1400 : vector<16x128xf32>
      %1402 = arith.addf %1399, %1401 : vector<16x128xf32>
      %1403 = vector.broadcast %68 : f32 to vector<16x128xf32>
      %1404 = arith.addf %1402, %1403 : vector<16x128xf32>
      %cst_892 = arith.constant 0.000000e+00 : f32
      %1405 = vector.broadcast %cst_892 : f32 to vector<16x128xf32>
      %1406 = arith.maximumf %1404, %1405 : vector<16x128xf32>
      %1407 = vector.broadcast %324 : f32 to vector<16x128xf32>
      %1408 = arith.mulf %1406, %1407 : vector<16x128xf32>
      %1409 = arith.addf %1343, %1408 : vector<16x128xf32>
      %1410 = vector.broadcast %325 : f32 to vector<16x128xf32>
      %1411 = arith.mulf %1406, %1410 : vector<16x128xf32>
      %1412 = arith.addf %1346, %1411 : vector<16x128xf32>
      %1413 = vector.broadcast %326 : f32 to vector<16x128xf32>
      %1414 = arith.mulf %1406, %1413 : vector<16x128xf32>
      %1415 = arith.addf %1349, %1414 : vector<16x128xf32>
      %1416 = vector.broadcast %327 : f32 to vector<16x128xf32>
      %1417 = arith.mulf %1406, %1416 : vector<16x128xf32>
      %1418 = arith.addf %1352, %1417 : vector<16x128xf32>
      %1419 = vector.broadcast %328 : f32 to vector<16x128xf32>
      %1420 = arith.mulf %1406, %1419 : vector<16x128xf32>
      %1421 = arith.addf %1355, %1420 : vector<16x128xf32>
      %1422 = vector.broadcast %329 : f32 to vector<16x128xf32>
      %1423 = arith.mulf %1406, %1422 : vector<16x128xf32>
      %1424 = arith.addf %1358, %1423 : vector<16x128xf32>
      %1425 = vector.broadcast %330 : f32 to vector<16x128xf32>
      %1426 = arith.mulf %1406, %1425 : vector<16x128xf32>
      %1427 = arith.addf %1361, %1426 : vector<16x128xf32>
      %1428 = vector.broadcast %331 : f32 to vector<16x128xf32>
      %1429 = arith.mulf %1406, %1428 : vector<16x128xf32>
      %1430 = arith.addf %1364, %1429 : vector<16x128xf32>
      %1431 = vector.broadcast %332 : f32 to vector<16x128xf32>
      %1432 = arith.mulf %1406, %1431 : vector<16x128xf32>
      %1433 = arith.addf %1367, %1432 : vector<16x128xf32>
      %1434 = vector.broadcast %333 : f32 to vector<16x128xf32>
      %1435 = arith.mulf %1406, %1434 : vector<16x128xf32>
      %1436 = arith.addf %1370, %1435 : vector<16x128xf32>
      %1437 = vector.broadcast %334 : f32 to vector<16x128xf32>
      %1438 = arith.mulf %1406, %1437 : vector<16x128xf32>
      %1439 = arith.addf %1373, %1438 : vector<16x128xf32>
      %1440 = vector.broadcast %335 : f32 to vector<16x128xf32>
      %1441 = arith.mulf %1406, %1440 : vector<16x128xf32>
      %1442 = arith.addf %1376, %1441 : vector<16x128xf32>
      %1443 = vector.broadcast %336 : f32 to vector<16x128xf32>
      %1444 = arith.mulf %1406, %1443 : vector<16x128xf32>
      %1445 = arith.addf %1379, %1444 : vector<16x128xf32>
      %1446 = vector.broadcast %337 : f32 to vector<16x128xf32>
      %1447 = arith.mulf %1406, %1446 : vector<16x128xf32>
      %1448 = arith.addf %1382, %1447 : vector<16x128xf32>
      %1449 = vector.broadcast %338 : f32 to vector<16x128xf32>
      %1450 = arith.mulf %1406, %1449 : vector<16x128xf32>
      %1451 = arith.addf %1385, %1450 : vector<16x128xf32>
      %1452 = vector.broadcast %339 : f32 to vector<16x128xf32>
      %1453 = arith.mulf %1406, %1452 : vector<16x128xf32>
      %1454 = arith.addf %1388, %1453 : vector<16x128xf32>
      %1455 = vector.broadcast %340 : f32 to vector<16x128xf32>
      %1456 = arith.mulf %1406, %1455 : vector<16x128xf32>
      %1457 = arith.addf %1391, %1456 : vector<16x128xf32>
      %1458 = vector.broadcast %341 : f32 to vector<16x128xf32>
      %1459 = arith.mulf %1406, %1458 : vector<16x128xf32>
      %1460 = arith.addf %1394, %1459 : vector<16x128xf32>
      %1461 = vector.broadcast %15 : f32 to vector<16x128xf32>
      %1462 = arith.mulf %484, %1461 : vector<16x128xf32>
      %1463 = vector.broadcast %33 : f32 to vector<16x128xf32>
      %1464 = arith.mulf %486, %1463 : vector<16x128xf32>
      %1465 = arith.addf %1462, %1464 : vector<16x128xf32>
      %1466 = vector.broadcast %51 : f32 to vector<16x128xf32>
      %1467 = arith.mulf %488, %1466 : vector<16x128xf32>
      %1468 = arith.addf %1465, %1467 : vector<16x128xf32>
      %1469 = vector.broadcast %69 : f32 to vector<16x128xf32>
      %1470 = arith.addf %1468, %1469 : vector<16x128xf32>
      %cst_893 = arith.constant 0.000000e+00 : f32
      %1471 = vector.broadcast %cst_893 : f32 to vector<16x128xf32>
      %1472 = arith.maximumf %1470, %1471 : vector<16x128xf32>
      %1473 = vector.broadcast %342 : f32 to vector<16x128xf32>
      %1474 = arith.mulf %1472, %1473 : vector<16x128xf32>
      %1475 = arith.addf %1409, %1474 : vector<16x128xf32>
      %1476 = vector.broadcast %343 : f32 to vector<16x128xf32>
      %1477 = arith.mulf %1472, %1476 : vector<16x128xf32>
      %1478 = arith.addf %1412, %1477 : vector<16x128xf32>
      %1479 = vector.broadcast %344 : f32 to vector<16x128xf32>
      %1480 = arith.mulf %1472, %1479 : vector<16x128xf32>
      %1481 = arith.addf %1415, %1480 : vector<16x128xf32>
      %1482 = vector.broadcast %345 : f32 to vector<16x128xf32>
      %1483 = arith.mulf %1472, %1482 : vector<16x128xf32>
      %1484 = arith.addf %1418, %1483 : vector<16x128xf32>
      %1485 = vector.broadcast %346 : f32 to vector<16x128xf32>
      %1486 = arith.mulf %1472, %1485 : vector<16x128xf32>
      %1487 = arith.addf %1421, %1486 : vector<16x128xf32>
      %1488 = vector.broadcast %347 : f32 to vector<16x128xf32>
      %1489 = arith.mulf %1472, %1488 : vector<16x128xf32>
      %1490 = arith.addf %1424, %1489 : vector<16x128xf32>
      %1491 = vector.broadcast %348 : f32 to vector<16x128xf32>
      %1492 = arith.mulf %1472, %1491 : vector<16x128xf32>
      %1493 = arith.addf %1427, %1492 : vector<16x128xf32>
      %1494 = vector.broadcast %349 : f32 to vector<16x128xf32>
      %1495 = arith.mulf %1472, %1494 : vector<16x128xf32>
      %1496 = arith.addf %1430, %1495 : vector<16x128xf32>
      %1497 = vector.broadcast %350 : f32 to vector<16x128xf32>
      %1498 = arith.mulf %1472, %1497 : vector<16x128xf32>
      %1499 = arith.addf %1433, %1498 : vector<16x128xf32>
      %1500 = vector.broadcast %351 : f32 to vector<16x128xf32>
      %1501 = arith.mulf %1472, %1500 : vector<16x128xf32>
      %1502 = arith.addf %1436, %1501 : vector<16x128xf32>
      %1503 = vector.broadcast %352 : f32 to vector<16x128xf32>
      %1504 = arith.mulf %1472, %1503 : vector<16x128xf32>
      %1505 = arith.addf %1439, %1504 : vector<16x128xf32>
      %1506 = vector.broadcast %353 : f32 to vector<16x128xf32>
      %1507 = arith.mulf %1472, %1506 : vector<16x128xf32>
      %1508 = arith.addf %1442, %1507 : vector<16x128xf32>
      %1509 = vector.broadcast %354 : f32 to vector<16x128xf32>
      %1510 = arith.mulf %1472, %1509 : vector<16x128xf32>
      %1511 = arith.addf %1445, %1510 : vector<16x128xf32>
      %1512 = vector.broadcast %355 : f32 to vector<16x128xf32>
      %1513 = arith.mulf %1472, %1512 : vector<16x128xf32>
      %1514 = arith.addf %1448, %1513 : vector<16x128xf32>
      %1515 = vector.broadcast %356 : f32 to vector<16x128xf32>
      %1516 = arith.mulf %1472, %1515 : vector<16x128xf32>
      %1517 = arith.addf %1451, %1516 : vector<16x128xf32>
      %1518 = vector.broadcast %357 : f32 to vector<16x128xf32>
      %1519 = arith.mulf %1472, %1518 : vector<16x128xf32>
      %1520 = arith.addf %1454, %1519 : vector<16x128xf32>
      %1521 = vector.broadcast %358 : f32 to vector<16x128xf32>
      %1522 = arith.mulf %1472, %1521 : vector<16x128xf32>
      %1523 = arith.addf %1457, %1522 : vector<16x128xf32>
      %1524 = vector.broadcast %359 : f32 to vector<16x128xf32>
      %1525 = arith.mulf %1472, %1524 : vector<16x128xf32>
      %1526 = arith.addf %1460, %1525 : vector<16x128xf32>
      %1527 = vector.broadcast %16 : f32 to vector<16x128xf32>
      %1528 = arith.mulf %484, %1527 : vector<16x128xf32>
      %1529 = vector.broadcast %34 : f32 to vector<16x128xf32>
      %1530 = arith.mulf %486, %1529 : vector<16x128xf32>
      %1531 = arith.addf %1528, %1530 : vector<16x128xf32>
      %1532 = vector.broadcast %52 : f32 to vector<16x128xf32>
      %1533 = arith.mulf %488, %1532 : vector<16x128xf32>
      %1534 = arith.addf %1531, %1533 : vector<16x128xf32>
      %1535 = vector.broadcast %70 : f32 to vector<16x128xf32>
      %1536 = arith.addf %1534, %1535 : vector<16x128xf32>
      %cst_894 = arith.constant 0.000000e+00 : f32
      %1537 = vector.broadcast %cst_894 : f32 to vector<16x128xf32>
      %1538 = arith.maximumf %1536, %1537 : vector<16x128xf32>
      %1539 = vector.broadcast %360 : f32 to vector<16x128xf32>
      %1540 = arith.mulf %1538, %1539 : vector<16x128xf32>
      %1541 = arith.addf %1475, %1540 : vector<16x128xf32>
      %1542 = vector.broadcast %361 : f32 to vector<16x128xf32>
      %1543 = arith.mulf %1538, %1542 : vector<16x128xf32>
      %1544 = arith.addf %1478, %1543 : vector<16x128xf32>
      %1545 = vector.broadcast %362 : f32 to vector<16x128xf32>
      %1546 = arith.mulf %1538, %1545 : vector<16x128xf32>
      %1547 = arith.addf %1481, %1546 : vector<16x128xf32>
      %1548 = vector.broadcast %363 : f32 to vector<16x128xf32>
      %1549 = arith.mulf %1538, %1548 : vector<16x128xf32>
      %1550 = arith.addf %1484, %1549 : vector<16x128xf32>
      %1551 = vector.broadcast %364 : f32 to vector<16x128xf32>
      %1552 = arith.mulf %1538, %1551 : vector<16x128xf32>
      %1553 = arith.addf %1487, %1552 : vector<16x128xf32>
      %1554 = vector.broadcast %365 : f32 to vector<16x128xf32>
      %1555 = arith.mulf %1538, %1554 : vector<16x128xf32>
      %1556 = arith.addf %1490, %1555 : vector<16x128xf32>
      %1557 = vector.broadcast %366 : f32 to vector<16x128xf32>
      %1558 = arith.mulf %1538, %1557 : vector<16x128xf32>
      %1559 = arith.addf %1493, %1558 : vector<16x128xf32>
      %1560 = vector.broadcast %367 : f32 to vector<16x128xf32>
      %1561 = arith.mulf %1538, %1560 : vector<16x128xf32>
      %1562 = arith.addf %1496, %1561 : vector<16x128xf32>
      %1563 = vector.broadcast %368 : f32 to vector<16x128xf32>
      %1564 = arith.mulf %1538, %1563 : vector<16x128xf32>
      %1565 = arith.addf %1499, %1564 : vector<16x128xf32>
      %1566 = vector.broadcast %369 : f32 to vector<16x128xf32>
      %1567 = arith.mulf %1538, %1566 : vector<16x128xf32>
      %1568 = arith.addf %1502, %1567 : vector<16x128xf32>
      %1569 = vector.broadcast %370 : f32 to vector<16x128xf32>
      %1570 = arith.mulf %1538, %1569 : vector<16x128xf32>
      %1571 = arith.addf %1505, %1570 : vector<16x128xf32>
      %1572 = vector.broadcast %371 : f32 to vector<16x128xf32>
      %1573 = arith.mulf %1538, %1572 : vector<16x128xf32>
      %1574 = arith.addf %1508, %1573 : vector<16x128xf32>
      %1575 = vector.broadcast %372 : f32 to vector<16x128xf32>
      %1576 = arith.mulf %1538, %1575 : vector<16x128xf32>
      %1577 = arith.addf %1511, %1576 : vector<16x128xf32>
      %1578 = vector.broadcast %373 : f32 to vector<16x128xf32>
      %1579 = arith.mulf %1538, %1578 : vector<16x128xf32>
      %1580 = arith.addf %1514, %1579 : vector<16x128xf32>
      %1581 = vector.broadcast %374 : f32 to vector<16x128xf32>
      %1582 = arith.mulf %1538, %1581 : vector<16x128xf32>
      %1583 = arith.addf %1517, %1582 : vector<16x128xf32>
      %1584 = vector.broadcast %375 : f32 to vector<16x128xf32>
      %1585 = arith.mulf %1538, %1584 : vector<16x128xf32>
      %1586 = arith.addf %1520, %1585 : vector<16x128xf32>
      %1587 = vector.broadcast %376 : f32 to vector<16x128xf32>
      %1588 = arith.mulf %1538, %1587 : vector<16x128xf32>
      %1589 = arith.addf %1523, %1588 : vector<16x128xf32>
      %1590 = vector.broadcast %377 : f32 to vector<16x128xf32>
      %1591 = arith.mulf %1538, %1590 : vector<16x128xf32>
      %1592 = arith.addf %1526, %1591 : vector<16x128xf32>
      %1593 = vector.broadcast %17 : f32 to vector<16x128xf32>
      %1594 = arith.mulf %484, %1593 : vector<16x128xf32>
      %1595 = vector.broadcast %35 : f32 to vector<16x128xf32>
      %1596 = arith.mulf %486, %1595 : vector<16x128xf32>
      %1597 = arith.addf %1594, %1596 : vector<16x128xf32>
      %1598 = vector.broadcast %53 : f32 to vector<16x128xf32>
      %1599 = arith.mulf %488, %1598 : vector<16x128xf32>
      %1600 = arith.addf %1597, %1599 : vector<16x128xf32>
      %1601 = vector.broadcast %71 : f32 to vector<16x128xf32>
      %1602 = arith.addf %1600, %1601 : vector<16x128xf32>
      %cst_895 = arith.constant 0.000000e+00 : f32
      %1603 = vector.broadcast %cst_895 : f32 to vector<16x128xf32>
      %1604 = arith.maximumf %1602, %1603 : vector<16x128xf32>
      %1605 = vector.broadcast %378 : f32 to vector<16x128xf32>
      %1606 = arith.mulf %1604, %1605 : vector<16x128xf32>
      %1607 = arith.addf %1541, %1606 : vector<16x128xf32>
      %1608 = vector.broadcast %379 : f32 to vector<16x128xf32>
      %1609 = arith.mulf %1604, %1608 : vector<16x128xf32>
      %1610 = arith.addf %1544, %1609 : vector<16x128xf32>
      %1611 = vector.broadcast %380 : f32 to vector<16x128xf32>
      %1612 = arith.mulf %1604, %1611 : vector<16x128xf32>
      %1613 = arith.addf %1547, %1612 : vector<16x128xf32>
      %1614 = vector.broadcast %381 : f32 to vector<16x128xf32>
      %1615 = arith.mulf %1604, %1614 : vector<16x128xf32>
      %1616 = arith.addf %1550, %1615 : vector<16x128xf32>
      %1617 = vector.broadcast %382 : f32 to vector<16x128xf32>
      %1618 = arith.mulf %1604, %1617 : vector<16x128xf32>
      %1619 = arith.addf %1553, %1618 : vector<16x128xf32>
      %1620 = vector.broadcast %383 : f32 to vector<16x128xf32>
      %1621 = arith.mulf %1604, %1620 : vector<16x128xf32>
      %1622 = arith.addf %1556, %1621 : vector<16x128xf32>
      %1623 = vector.broadcast %384 : f32 to vector<16x128xf32>
      %1624 = arith.mulf %1604, %1623 : vector<16x128xf32>
      %1625 = arith.addf %1559, %1624 : vector<16x128xf32>
      %1626 = vector.broadcast %385 : f32 to vector<16x128xf32>
      %1627 = arith.mulf %1604, %1626 : vector<16x128xf32>
      %1628 = arith.addf %1562, %1627 : vector<16x128xf32>
      %1629 = vector.broadcast %386 : f32 to vector<16x128xf32>
      %1630 = arith.mulf %1604, %1629 : vector<16x128xf32>
      %1631 = arith.addf %1565, %1630 : vector<16x128xf32>
      %1632 = vector.broadcast %387 : f32 to vector<16x128xf32>
      %1633 = arith.mulf %1604, %1632 : vector<16x128xf32>
      %1634 = arith.addf %1568, %1633 : vector<16x128xf32>
      %1635 = vector.broadcast %388 : f32 to vector<16x128xf32>
      %1636 = arith.mulf %1604, %1635 : vector<16x128xf32>
      %1637 = arith.addf %1571, %1636 : vector<16x128xf32>
      %1638 = vector.broadcast %389 : f32 to vector<16x128xf32>
      %1639 = arith.mulf %1604, %1638 : vector<16x128xf32>
      %1640 = arith.addf %1574, %1639 : vector<16x128xf32>
      %1641 = vector.broadcast %390 : f32 to vector<16x128xf32>
      %1642 = arith.mulf %1604, %1641 : vector<16x128xf32>
      %1643 = arith.addf %1577, %1642 : vector<16x128xf32>
      %1644 = vector.broadcast %391 : f32 to vector<16x128xf32>
      %1645 = arith.mulf %1604, %1644 : vector<16x128xf32>
      %1646 = arith.addf %1580, %1645 : vector<16x128xf32>
      %1647 = vector.broadcast %392 : f32 to vector<16x128xf32>
      %1648 = arith.mulf %1604, %1647 : vector<16x128xf32>
      %1649 = arith.addf %1583, %1648 : vector<16x128xf32>
      %1650 = vector.broadcast %393 : f32 to vector<16x128xf32>
      %1651 = arith.mulf %1604, %1650 : vector<16x128xf32>
      %1652 = arith.addf %1586, %1651 : vector<16x128xf32>
      %1653 = vector.broadcast %394 : f32 to vector<16x128xf32>
      %1654 = arith.mulf %1604, %1653 : vector<16x128xf32>
      %1655 = arith.addf %1589, %1654 : vector<16x128xf32>
      %1656 = vector.broadcast %395 : f32 to vector<16x128xf32>
      %1657 = arith.mulf %1604, %1656 : vector<16x128xf32>
      %1658 = arith.addf %1592, %1657 : vector<16x128xf32>
      %1659 = vector.broadcast %396 : f32 to vector<16x128xf32>
      %1660 = arith.addf %1607, %1659 : vector<16x128xf32>
      %cst_896 = arith.constant 0.000000e+00 : f32
      %1661 = vector.broadcast %cst_896 : f32 to vector<16x128xf32>
      %1662 = arith.maximumf %1660, %1661 : vector<16x128xf32>
      %1663 = vector.broadcast %414 : f32 to vector<16x128xf32>
      %1664 = arith.mulf %1662, %1663 : vector<16x128xf32>
      %1665 = vector.broadcast %397 : f32 to vector<16x128xf32>
      %1666 = arith.addf %1610, %1665 : vector<16x128xf32>
      %cst_897 = arith.constant 0.000000e+00 : f32
      %1667 = vector.broadcast %cst_897 : f32 to vector<16x128xf32>
      %1668 = arith.maximumf %1666, %1667 : vector<16x128xf32>
      %1669 = vector.broadcast %415 : f32 to vector<16x128xf32>
      %1670 = arith.mulf %1668, %1669 : vector<16x128xf32>
      %1671 = arith.addf %1664, %1670 : vector<16x128xf32>
      %1672 = vector.broadcast %398 : f32 to vector<16x128xf32>
      %1673 = arith.addf %1613, %1672 : vector<16x128xf32>
      %cst_898 = arith.constant 0.000000e+00 : f32
      %1674 = vector.broadcast %cst_898 : f32 to vector<16x128xf32>
      %1675 = arith.maximumf %1673, %1674 : vector<16x128xf32>
      %1676 = vector.broadcast %416 : f32 to vector<16x128xf32>
      %1677 = arith.mulf %1675, %1676 : vector<16x128xf32>
      %1678 = arith.addf %1671, %1677 : vector<16x128xf32>
      %1679 = vector.broadcast %399 : f32 to vector<16x128xf32>
      %1680 = arith.addf %1616, %1679 : vector<16x128xf32>
      %cst_899 = arith.constant 0.000000e+00 : f32
      %1681 = vector.broadcast %cst_899 : f32 to vector<16x128xf32>
      %1682 = arith.maximumf %1680, %1681 : vector<16x128xf32>
      %1683 = vector.broadcast %417 : f32 to vector<16x128xf32>
      %1684 = arith.mulf %1682, %1683 : vector<16x128xf32>
      %1685 = arith.addf %1678, %1684 : vector<16x128xf32>
      %1686 = vector.broadcast %400 : f32 to vector<16x128xf32>
      %1687 = arith.addf %1619, %1686 : vector<16x128xf32>
      %cst_900 = arith.constant 0.000000e+00 : f32
      %1688 = vector.broadcast %cst_900 : f32 to vector<16x128xf32>
      %1689 = arith.maximumf %1687, %1688 : vector<16x128xf32>
      %1690 = vector.broadcast %418 : f32 to vector<16x128xf32>
      %1691 = arith.mulf %1689, %1690 : vector<16x128xf32>
      %1692 = arith.addf %1685, %1691 : vector<16x128xf32>
      %1693 = vector.broadcast %401 : f32 to vector<16x128xf32>
      %1694 = arith.addf %1622, %1693 : vector<16x128xf32>
      %cst_901 = arith.constant 0.000000e+00 : f32
      %1695 = vector.broadcast %cst_901 : f32 to vector<16x128xf32>
      %1696 = arith.maximumf %1694, %1695 : vector<16x128xf32>
      %1697 = vector.broadcast %419 : f32 to vector<16x128xf32>
      %1698 = arith.mulf %1696, %1697 : vector<16x128xf32>
      %1699 = arith.addf %1692, %1698 : vector<16x128xf32>
      %1700 = vector.broadcast %402 : f32 to vector<16x128xf32>
      %1701 = arith.addf %1625, %1700 : vector<16x128xf32>
      %cst_902 = arith.constant 0.000000e+00 : f32
      %1702 = vector.broadcast %cst_902 : f32 to vector<16x128xf32>
      %1703 = arith.maximumf %1701, %1702 : vector<16x128xf32>
      %1704 = vector.broadcast %420 : f32 to vector<16x128xf32>
      %1705 = arith.mulf %1703, %1704 : vector<16x128xf32>
      %1706 = arith.addf %1699, %1705 : vector<16x128xf32>
      %1707 = vector.broadcast %403 : f32 to vector<16x128xf32>
      %1708 = arith.addf %1628, %1707 : vector<16x128xf32>
      %cst_903 = arith.constant 0.000000e+00 : f32
      %1709 = vector.broadcast %cst_903 : f32 to vector<16x128xf32>
      %1710 = arith.maximumf %1708, %1709 : vector<16x128xf32>
      %1711 = vector.broadcast %421 : f32 to vector<16x128xf32>
      %1712 = arith.mulf %1710, %1711 : vector<16x128xf32>
      %1713 = arith.addf %1706, %1712 : vector<16x128xf32>
      %1714 = vector.broadcast %404 : f32 to vector<16x128xf32>
      %1715 = arith.addf %1631, %1714 : vector<16x128xf32>
      %cst_904 = arith.constant 0.000000e+00 : f32
      %1716 = vector.broadcast %cst_904 : f32 to vector<16x128xf32>
      %1717 = arith.maximumf %1715, %1716 : vector<16x128xf32>
      %1718 = vector.broadcast %422 : f32 to vector<16x128xf32>
      %1719 = arith.mulf %1717, %1718 : vector<16x128xf32>
      %1720 = arith.addf %1713, %1719 : vector<16x128xf32>
      %1721 = vector.broadcast %405 : f32 to vector<16x128xf32>
      %1722 = arith.addf %1634, %1721 : vector<16x128xf32>
      %cst_905 = arith.constant 0.000000e+00 : f32
      %1723 = vector.broadcast %cst_905 : f32 to vector<16x128xf32>
      %1724 = arith.maximumf %1722, %1723 : vector<16x128xf32>
      %1725 = vector.broadcast %423 : f32 to vector<16x128xf32>
      %1726 = arith.mulf %1724, %1725 : vector<16x128xf32>
      %1727 = arith.addf %1720, %1726 : vector<16x128xf32>
      %1728 = vector.broadcast %406 : f32 to vector<16x128xf32>
      %1729 = arith.addf %1637, %1728 : vector<16x128xf32>
      %cst_906 = arith.constant 0.000000e+00 : f32
      %1730 = vector.broadcast %cst_906 : f32 to vector<16x128xf32>
      %1731 = arith.maximumf %1729, %1730 : vector<16x128xf32>
      %1732 = vector.broadcast %424 : f32 to vector<16x128xf32>
      %1733 = arith.mulf %1731, %1732 : vector<16x128xf32>
      %1734 = arith.addf %1727, %1733 : vector<16x128xf32>
      %1735 = vector.broadcast %407 : f32 to vector<16x128xf32>
      %1736 = arith.addf %1640, %1735 : vector<16x128xf32>
      %cst_907 = arith.constant 0.000000e+00 : f32
      %1737 = vector.broadcast %cst_907 : f32 to vector<16x128xf32>
      %1738 = arith.maximumf %1736, %1737 : vector<16x128xf32>
      %1739 = vector.broadcast %425 : f32 to vector<16x128xf32>
      %1740 = arith.mulf %1738, %1739 : vector<16x128xf32>
      %1741 = arith.addf %1734, %1740 : vector<16x128xf32>
      %1742 = vector.broadcast %408 : f32 to vector<16x128xf32>
      %1743 = arith.addf %1643, %1742 : vector<16x128xf32>
      %cst_908 = arith.constant 0.000000e+00 : f32
      %1744 = vector.broadcast %cst_908 : f32 to vector<16x128xf32>
      %1745 = arith.maximumf %1743, %1744 : vector<16x128xf32>
      %1746 = vector.broadcast %426 : f32 to vector<16x128xf32>
      %1747 = arith.mulf %1745, %1746 : vector<16x128xf32>
      %1748 = arith.addf %1741, %1747 : vector<16x128xf32>
      %1749 = vector.broadcast %409 : f32 to vector<16x128xf32>
      %1750 = arith.addf %1646, %1749 : vector<16x128xf32>
      %cst_909 = arith.constant 0.000000e+00 : f32
      %1751 = vector.broadcast %cst_909 : f32 to vector<16x128xf32>
      %1752 = arith.maximumf %1750, %1751 : vector<16x128xf32>
      %1753 = vector.broadcast %427 : f32 to vector<16x128xf32>
      %1754 = arith.mulf %1752, %1753 : vector<16x128xf32>
      %1755 = arith.addf %1748, %1754 : vector<16x128xf32>
      %1756 = vector.broadcast %410 : f32 to vector<16x128xf32>
      %1757 = arith.addf %1649, %1756 : vector<16x128xf32>
      %cst_910 = arith.constant 0.000000e+00 : f32
      %1758 = vector.broadcast %cst_910 : f32 to vector<16x128xf32>
      %1759 = arith.maximumf %1757, %1758 : vector<16x128xf32>
      %1760 = vector.broadcast %428 : f32 to vector<16x128xf32>
      %1761 = arith.mulf %1759, %1760 : vector<16x128xf32>
      %1762 = arith.addf %1755, %1761 : vector<16x128xf32>
      %1763 = vector.broadcast %411 : f32 to vector<16x128xf32>
      %1764 = arith.addf %1652, %1763 : vector<16x128xf32>
      %cst_911 = arith.constant 0.000000e+00 : f32
      %1765 = vector.broadcast %cst_911 : f32 to vector<16x128xf32>
      %1766 = arith.maximumf %1764, %1765 : vector<16x128xf32>
      %1767 = vector.broadcast %429 : f32 to vector<16x128xf32>
      %1768 = arith.mulf %1766, %1767 : vector<16x128xf32>
      %1769 = arith.addf %1762, %1768 : vector<16x128xf32>
      %1770 = vector.broadcast %412 : f32 to vector<16x128xf32>
      %1771 = arith.addf %1655, %1770 : vector<16x128xf32>
      %cst_912 = arith.constant 0.000000e+00 : f32
      %1772 = vector.broadcast %cst_912 : f32 to vector<16x128xf32>
      %1773 = arith.maximumf %1771, %1772 : vector<16x128xf32>
      %1774 = vector.broadcast %430 : f32 to vector<16x128xf32>
      %1775 = arith.mulf %1773, %1774 : vector<16x128xf32>
      %1776 = arith.addf %1769, %1775 : vector<16x128xf32>
      %1777 = vector.broadcast %413 : f32 to vector<16x128xf32>
      %1778 = arith.addf %1658, %1777 : vector<16x128xf32>
      %cst_913 = arith.constant 0.000000e+00 : f32
      %1779 = vector.broadcast %cst_913 : f32 to vector<16x128xf32>
      %1780 = arith.maximumf %1778, %1779 : vector<16x128xf32>
      %1781 = vector.broadcast %431 : f32 to vector<16x128xf32>
      %1782 = arith.mulf %1780, %1781 : vector<16x128xf32>
      %1783 = arith.addf %1776, %1782 : vector<16x128xf32>
      %1784 = vector.broadcast %432 : f32 to vector<16x128xf32>
      %1785 = arith.addf %1783, %1784 : vector<16x128xf32>
      %cst_914 = arith.constant 0.000000e+00 : f32
      %1786 = vector.broadcast %cst_914 : f32 to vector<16x128xf32>
      %1787 = arith.maximumf %1785, %1786 : vector<16x128xf32>
      %1788 = arith.index_cast %482 : i32 to index
      %c0_915 = arith.constant 0 : index
      %1789 = vector.load %arg17[%1788, %c0_915] : memref<512x128xf32, #tpu.memory_space<vmem>>, vector<16x128xf32>
      tpu.vector_store %arg17[%1788, %c0_915], %1787 {strides = array<i32>} : memref<512x128xf32, #tpu.memory_space<vmem>>, vector<16x128xf32>,
    }
    %c32_i32_848 = arith.constant 32 : i32
    %c0_849 = arith.constant 0 : index
    %c0_850 = arith.constant 0 : index
    %434 = vector.load %arg17[%c0_849, %c0_850] : memref<512x128xf32, #tpu.memory_space<vmem>>, vector<512x128xf32>
    %c0_851 = arith.constant 0 : index
    %c0_852 = arith.constant 0 : index
    %435 = vector.load %arg10[%c0_851, %c0_852] : memref<128x512xf32, #tpu.memory_space<vmem>>, vector<128x512xf32>
    %cst = arith.constant dense<0.000000e+00> : vector<512x512xf32>
    %436 = tpu.matmul %434, %435, %cst {dimension_numbers = #tpu.dot_dimension_numbers<[1], [0], [0], [1], [0, 0, 1, 1], [], []>} : vector<512x128xf32>, vector<128x512xf32>, vector<512x512xf32> -> vector<512x512xf32>
    %c0_853 = arith.constant 0 : index
    %c0_854 = arith.constant 0 : index
    %437 = vector.load %arg11[%c0_853, %c0_854] : memref<1x512xf32, #tpu.memory_space<vmem>>, vector<1x512xf32>
    %438 = vector.broadcast %437 : vector<1x512xf32> to vector<512x512xf32>
    %439 = arith.addf %436, %438 : vector<512x512xf32>
    %cst_855 = arith.constant 0.000000e+00 : f32
    %440 = vector.broadcast %cst_855 : f32 to vector<512x512xf32>
    %441 = arith.cmpf ogt, %439, %440 : vector<512x512xf32>
    %cst_856 = arith.constant 0.000000e+00 : f32
    %442 = vector.broadcast %cst_856 : f32 to vector<512x512xf32>
    %443 = arith.minimumf %439, %442 : vector<512x512xf32>
    %444 = math.exp %443 : vector<512x512xf32>
    %cst_857 = arith.constant 1.000000e+00 : f32
    %445 = vector.broadcast %cst_857 : f32 to vector<512x512xf32>
    %446 = arith.subf %444, %445 : vector<512x512xf32>
    %447 = arith.select %441, %439, %446 : vector<512x512xi1>, vector<512x512xf32>
    %c0_858 = arith.constant 0 : index
    %c0_859 = arith.constant 0 : index
    %448 = vector.load %arg12[%c0_858, %c0_859] : memref<512x128xf32, #tpu.memory_space<vmem>>, vector<512x128xf32>
    %cst_860 = arith.constant dense<0.000000e+00> : vector<512x128xf32>
    %449 = tpu.matmul %447, %448, %cst_860 {dimension_numbers = #tpu.dot_dimension_numbers<[1], [0], [0], [1], [0, 0, 1, 1], [], []>} : vector<512x512xf32>, vector<512x128xf32>, vector<512x128xf32> -> vector<512x128xf32>
    %c0_861 = arith.constant 0 : index
    %c0_862 = arith.constant 0 : index
    %450 = vector.load %arg13[%c0_861, %c0_862] : memref<1x128xf32, #tpu.memory_space<vmem>>, vector<1x128xf32>
    %451 = vector.broadcast %450 : vector<1x128xf32> to vector<512x128xf32>
    %452 = arith.addf %449, %451 : vector<512x128xf32>
    %453 = arith.addf %434, %452 : vector<512x128xf32>
    %cst_863 = arith.constant dense<0.000000e+00> : vector<512xf32>
    %454 = vector.multi_reduction <add>, %453, %cst_863 [1] : vector<512x128xf32> to vector<512xf32>
    %455 = vector.shape_cast %454 : vector<512xf32> to vector<512x1xf32>
    %cst_864 = arith.constant 1.280000e+02 : f32
    %456 = vector.broadcast %cst_864 : f32 to vector<512x1xf32>
    %457 = arith.divf %455, %456 : vector<512x1xf32>
    %458 = arith.mulf %453, %453 : vector<512x128xf32>
    %cst_865 = arith.constant dense<0.000000e+00> : vector<512xf32>
    %459 = vector.multi_reduction <add>, %458, %cst_865 [1] : vector<512x128xf32> to vector<512xf32>
    %460 = vector.shape_cast %459 : vector<512xf32> to vector<512x1xf32>
    %cst_866 = arith.constant 1.280000e+02 : f32
    %461 = vector.broadcast %cst_866 : f32 to vector<512x1xf32>
    %462 = arith.divf %460, %461 : vector<512x1xf32>
    %463 = arith.mulf %457, %457 : vector<512x1xf32>
    %464 = arith.subf %462, %463 : vector<512x1xf32>
    %cst_867 = arith.constant 0.000000e+00 : f32
    %465 = vector.broadcast %cst_867 : f32 to vector<512x1xf32>
    %466 = arith.maximumf %464, %465 : vector<512x1xf32>
    %467 = vector.broadcast %457 : vector<512x1xf32> to vector<512x128xf32>
    %468 = arith.subf %453, %467 : vector<512x128xf32>
    %cst_868 = arith.constant 9.99999974E-6 : f32
    %469 = vector.broadcast %cst_868 : f32 to vector<512x1xf32>
    %470 = arith.addf %466, %469 : vector<512x1xf32>
    %471 = math.rsqrt %470 : vector<512x1xf32>
    %472 = vector.broadcast %471 : vector<512x1xf32> to vector<512x128xf32>
    %473 = arith.mulf %468, %472 : vector<512x128xf32>
    %c0_869 = arith.constant 0 : index
    %c0_870 = arith.constant 0 : index
    %474 = vector.load %arg14[%c0_869, %c0_870] : memref<1x128xf32, #tpu.memory_space<vmem>>, vector<1x128xf32>
    %475 = vector.broadcast %474 : vector<1x128xf32> to vector<512x128xf32>
    %476 = arith.mulf %473, %475 : vector<512x128xf32>
    %c0_871 = arith.constant 0 : index
    %c0_872 = arith.constant 0 : index
    %477 = vector.load %arg15[%c0_871, %c0_872] : memref<1x128xf32, #tpu.memory_space<vmem>>, vector<1x128xf32>
    %478 = vector.broadcast %477 : vector<1x128xf32> to vector<512x128xf32>
    %479 = arith.addf %476, %478 : vector<512x128xf32>
    %c0_873 = arith.constant 0 : index
    %c0_874 = arith.constant 0 : index
    %480 = vector.load %arg16[%c0_873, %c0_874] : memref<512x128xf32, #tpu.memory_space<vmem>>, vector<512x128xf32>
    tpu.vector_store %arg16[%c0_873, %c0_874], %479 {strides = array<i32>} : memref<512x128xf32, #tpu.memory_space<vmem>>, vector<512x128xf32>,
    return
  }
  func.func @transform_0(%arg0: i32) -> (i32, i32) {
    %c0_i32 = arith.constant 0 : i32
    %c0_i32_0 = arith.constant 0 : i32
    return %arg0, %c0_i32 : i32, i32
  }
  func.func @transform_1(%arg0: i32) -> (i32, i32) {
    %c0_i32 = arith.constant 0 : i32
    %c0_i32_0 = arith.constant 0 : i32
    return %arg0, %c0_i32 : i32, i32
  }
  func.func @transform_2(%arg0: i32) -> (i32, i32) {
    %c0_i32 = arith.constant 0 : i32
    %c0_i32_0 = arith.constant 0 : i32
    return %arg0, %c0_i32 : i32, i32
  }
  func.func @transform_3(%arg0: i32) -> (i32, i32) {
    %c0_i32 = arith.constant 0 : i32
    %c0_i32_0 = arith.constant 0 : i32
    %c0_i32_1 = arith.constant 0 : i32
    return %c0_i32, %c0_i32_0 : i32, i32
  }
  func.func @transform_4(%arg0: i32) -> (i32, i32) {
    %c0_i32 = arith.constant 0 : i32
    %c0_i32_0 = arith.constant 0 : i32
    %c0_i32_1 = arith.constant 0 : i32
    return %c0_i32, %c0_i32_0 : i32, i32
  }
  func.func @transform_5(%arg0: i32) -> (i32, i32) {
    %c0_i32 = arith.constant 0 : i32
    %c0_i32_0 = arith.constant 0 : i32
    %c0_i32_1 = arith.constant 0 : i32
    return %c0_i32, %c0_i32_0 : i32, i32
  }
  func.func @transform_6(%arg0: i32) -> (i32, i32) {
    %c0_i32 = arith.constant 0 : i32
    %c0_i32_0 = arith.constant 0 : i32
    %c0_i32_1 = arith.constant 0 : i32
    return %c0_i32, %c0_i32_0 : i32, i32
  }
  func.func @transform_7(%arg0: i32) -> (i32, i32) {
    %c0_i32 = arith.constant 0 : i32
    %c0_i32_0 = arith.constant 0 : i32
    %c0_i32_1 = arith.constant 0 : i32
    return %c0_i32, %c0_i32_0 : i32, i32
  }
  func.func @transform_8(%arg0: i32) -> (i32, i32) {
    %c0_i32 = arith.constant 0 : i32
    %c0_i32_0 = arith.constant 0 : i32
    %c0_i32_1 = arith.constant 0 : i32
    return %c0_i32, %c0_i32_0 : i32, i32
  }
  func.func @transform_9(%arg0: i32) -> (i32, i32) {
    %c0_i32 = arith.constant 0 : i32
    %c0_i32_0 = arith.constant 0 : i32
    %c0_i32_1 = arith.constant 0 : i32
    return %c0_i32, %c0_i32_0 : i32, i32
  }
  func.func @transform_10(%arg0: i32) -> (i32, i32) {
    %c0_i32 = arith.constant 0 : i32
    %c0_i32_0 = arith.constant 0 : i32
    %c0_i32_1 = arith.constant 0 : i32
    return %c0_i32, %c0_i32_0 : i32, i32
  }
  func.func @transform_11(%arg0: i32) -> (i32, i32) {
    %c0_i32 = arith.constant 0 : i32
    %c0_i32_0 = arith.constant 0 : i32
    %c0_i32_1 = arith.constant 0 : i32
    return %c0_i32, %c0_i32_0 : i32, i32
  }
  func.func @transform_12(%arg0: i32) -> (i32, i32) {
    %c0_i32 = arith.constant 0 : i32
    %c0_i32_0 = arith.constant 0 : i32
    %c0_i32_1 = arith.constant 0 : i32
    return %c0_i32, %c0_i32_0 : i32, i32
  }
  func.func @transform_13(%arg0: i32) -> (i32, i32) {
    %c0_i32 = arith.constant 0 : i32
    %c0_i32_0 = arith.constant 0 : i32
    %c0_i32_1 = arith.constant 0 : i32
    return %c0_i32, %c0_i32_0 : i32, i32
  }
  func.func @transform_14(%arg0: i32) -> (i32, i32) {
    %c0_i32 = arith.constant 0 : i32
    %c0_i32_0 = arith.constant 0 : i32
    %c0_i32_1 = arith.constant 0 : i32
    return %c0_i32, %c0_i32_0 : i32, i32
  }
  func.func @transform_15(%arg0: i32) -> (i32, i32) {
    %c0_i32 = arith.constant 0 : i32
    %c0_i32_0 = arith.constant 0 : i32
    return %arg0, %c0_i32 : i32, i32
  }
}

</mosaic_0001>

<llo_original>
// kernel: tpu_custom_call.1
$region0: #{tpu_custom_call.1}
  #allocation0 [shape = 'u32[]', space=smem, size = 0x4, offset = 0x4, fixed_abs, tag = 'smem constant byte address 0x4 - core index']
  #allocation1 [shape = 'u32[144,128]{1,0:T(1,128)}', space=vmem, size = 0x12000, scoped, tag = 'internal scratch']
  #allocation2 [shape = 'f32[512,128]{1,0:T(8,128)}', space=vmem, size = 0x40000, scoped, tag = 'scratch operand']
  #allocation3 [shape = 'f32[1,1]{1,0:T(1,128)S(6)}', space=smem, size = 0x200, scoped, tag = 'scoped memory for tpu_custom_call.1']
  %s0 = inlined_call_operand.hbm [shape: f32[512,128], index: 0, kind: input, shape index: {}]
  %s1 = inlined_call_operand.hbm [shape: f32[512,128], index: 1, kind: input, shape index: {}]
  %s2 = inlined_call_operand.hbm [shape: f32[512,128], index: 2, kind: input, shape index: {}]
  %s3 = inlined_call_operand.vmem [shape: f32[3,18], index: 3, kind: input, shape index: {}]
  %s4 = inlined_call_operand.vmem [shape: f32[1,18], index: 4, kind: input, shape index: {}]
  %s5 = inlined_call_operand.hbm [shape: f32[18,18], index: 5, kind: input, shape index: {}]
  %s6 = inlined_call_operand.vmem [shape: f32[1,18], index: 6, kind: input, shape index: {}]
  %s7 = inlined_call_operand.vmem [shape: f32[1,18], index: 7, kind: input, shape index: {}]
  %s8 = inlined_call_operand.<no memory space> [shape: f32[1,1], index: 8, kind: input, shape index: {}]
  %s9 = inlined_call_operand.hbm [shape: f32[128,512], index: 9, kind: input, shape index: {}]
  %s10 = inlined_call_operand.vmem [shape: f32[1,512], index: 10, kind: input, shape index: {}]
  %s11 = inlined_call_operand.hbm [shape: f32[512,128], index: 11, kind: input, shape index: {}]
  %s12 = inlined_call_operand.vmem [shape: f32[1,128], index: 12, kind: input, shape index: {}]
  %s13 = inlined_call_operand.vmem [shape: f32[1,128], index: 13, kind: input, shape index: {}]
  %s14 = inlined_call_operand.vmem [shape: f32[1,128], index: 14, kind: input, shape index: {}]
  %s15 = inlined_call_operand.hbm [shape: f32[512,128], index: 15, kind: output, shape index: {}]
  %s16 = sld [smem:[#allocation0]]
  $region117: #{tpu_custom_call.1} parent=0
    _
  %s18 = ssub.s32 1, %s16
  %s19 = scalar_select 0, %s18, %s16
  %20 = sst [smem:[#allocation3]] %s8
  $region1: #{tpu_custom_call.1} parent=0
    #allocation4 [shape = 'u8[262144]{0}', space=vmem, size = 0x40000, scoped, tag = 'input window, operand 0, single buffered']
    #allocation5 [shape = 's32[1]{0}', space=sflag, size = 0x4, scoped, tag = 'scoped memory for tpu_custom_call.1']
    #allocation6 [shape = 's32[1]{0}', space=sflag, size = 0x4, scoped, tag = 'scoped memory for tpu_custom_call.1']
    #allocation7 [shape = 's32[1]{0}', space=sflag, size = 0x4, scoped, tag = 'scoped memory for tpu_custom_call.1']
    #allocation8 [shape = 's32[1]{0}', space=sflag, size = 0x4, scoped, tag = 'scoped memory for tpu_custom_call.1']
    #allocation9 [shape = 'u8[262144]{0}', space=vmem, size = 0x40000, scoped, tag = 'input window, operand 1, single buffered']
    #allocation10 [shape = 's32[1]{0}', space=sflag, size = 0x4, scoped, tag = 'scoped memory for tpu_custom_call.1']
    #allocation11 [shape = 'u8[262144]{0}', space=vmem, size = 0x40000, scoped, tag = 'input window, operand 2, single buffered']
    #allocation12 [shape = 'u8[2048]{0}', space=smem, size = 0x800, scoped, tag = 'input window, operand 3, single buffered']
    #allocation13 [shape = 'u8[512]{0}', space=smem, size = 0x200, scoped, tag = 'input window, operand 4, single buffered']
    #allocation14 [shape = 's32[1]{0}', space=sflag, size = 0x4, scoped, tag = 'scoped memory for tpu_custom_call.1']
    #allocation15 [shape = 'u8[12288]{0}', space=smem, size = 0x3000, scoped, tag = 'input window, operand 5, single buffered']
    #allocation16 [shape = 'u8[512]{0}', space=smem, size = 0x200, scoped, tag = 'input window, operand 6, single buffered']
    #allocation17 [shape = 'u8[512]{0}', space=smem, size = 0x200, scoped, tag = 'input window, operand 7, single buffered']
    #allocation18 [shape = 's32[1]{0}', space=sflag, size = 0x4, scoped, tag = 'scoped memory for tpu_custom_call.1']
    #allocation19 [shape = 'u8[262144]{0}', space=vmem, size = 0x40000, scoped, tag = 'input window, operand 9, single buffered']
    #allocation20 [shape = 's32[1]{0}', space=sflag, size = 0x4, scoped, tag = 'scoped memory for tpu_custom_call.1']
    #allocation21 [shape = 'u8[262144]{0}', space=vmem, size = 0x40000, scoped, tag = 'input window, operand 11, single buffered']
    #allocation22 [shape = 'u8[262144]{0}', space=vmem, size = 0x40000, scoped, tag = 'output window, operand 0, single buffered']
    %21 = vsyncpa [#allocation5], 0
    %22 = vsyncpa [#allocation10], 0
    %23 = vsyncpa [#allocation8], 0
    %24 = vsyncpa [#allocation14], 0
    %25 = vsyncpa [#allocation7], 0
    %26 = vsyncpa [#allocation18], 0
    %27 = vsyncpa [#allocation20], 0
    %28 = vsyncpa [#allocation6], 0
    // Predicated region
    $region2: #{tpu_custom_call.1} parent=1 // pred_check
      _
    $region3: #{tpu_custom_call.1} parent=1 // pred_check_branch
      %30 = sbr.rel (0) target = $region5
    $region4: #{tpu_custom_call.1} parent=1 // pred_region
      %s32 = ssub.s32 8192, 8192
      %33 = vsyncadd [#allocation5], %s32
      %s34 = sshll.u32 [#allocation4], 4
      %s35 = int_to_ptr.vmem [resolvable:$true] %s34
      %40 = dma.hbm_to_vmem [thread:$0]  %s0, 8192, %s35, [#allocation5], 128, 128, 8
    $region5: #{tpu_custom_call.1} parent=1 // pred_fallthru
      _
    // Predicated region
    $region6: #{tpu_custom_call.1} parent=1 // pred_check
      _
    $region7: #{tpu_custom_call.1} parent=1 // pred_check_branch
      %42 = sbr.rel (0) target = $region9
    $region8: #{tpu_custom_call.1} parent=1 // pred_region
      %s44 = ssub.s32 8192, 8192
      %45 = vsyncadd [#allocation10], %s44
      %s46 = sshll.u32 [#allocation9], 4
      %s47 = int_to_ptr.vmem [resolvable:$true] %s46
      %52 = dma.hbm_to_vmem [thread:$0]  %s1, 8192, %s47, [#allocation10], 128, 128, 8
    $region9: #{tpu_custom_call.1} parent=1 // pred_fallthru
      _
    // Predicated region
    $region10: #{tpu_custom_call.1} parent=1 // pred_check
      _
    $region11: #{tpu_custom_call.1} parent=1 // pred_check_branch
      %54 = sbr.rel (0) target = $region13
    $region12: #{tpu_custom_call.1} parent=1 // pred_region
      %s56 = ssub.s32 8192, 8192
      %57 = vsyncadd [#allocation10], %s56
      %s58 = sshll.u32 [#allocation11], 4
      %s59 = int_to_ptr.vmem [resolvable:$true] %s58
      %64 = dma.hbm_to_vmem [thread:$0]  %s2, 8192, %s59, [#allocation10], 128, 128, 8
    $region13: #{tpu_custom_call.1} parent=1 // pred_fallthru
      _
    // Predicated region
    $region14: #{tpu_custom_call.1} parent=1 // pred_check
      _
    $region15: #{tpu_custom_call.1} parent=1 // pred_check_branch
      %66 = sbr.rel (0) target = $region17
    $region16: #{tpu_custom_call.1} parent=1 // pred_region
      %s68 = ssub.s32 64, 64
      %69 = vsyncadd [#allocation8], %s68
      %s71 = sshll.u32 %s3, 4
      %s72 = int_to_ptr.vmem [resolvable:$true] %s71
      %74 = dma.vmem_to_smem %s72, 64, [#allocation12], [#allocation8]
    $region17: #{tpu_custom_call.1} parent=1 // pred_fallthru
      _
    // Predicated region
    $region18: #{tpu_custom_call.1} parent=1 // pred_check
      _
    $region19: #{tpu_custom_call.1} parent=1 // pred_check_branch
      %76 = sbr.rel (0) target = $region21
    $region20: #{tpu_custom_call.1} parent=1 // pred_region
      %s78 = ssub.s32 16, 16
      %79 = vsyncadd [#allocation14], %s78
      %s81 = sshll.u32 %s4, 4
      %s82 = int_to_ptr.vmem [resolvable:$true] %s81
      %84 = dma.vmem_to_smem %s82, 16, [#allocation13], [#allocation14]
    $region21: #{tpu_custom_call.1} parent=1 // pred_fallthru
      _
    // Predicated region
    $region22: #{tpu_custom_call.1} parent=1 // pred_check
      _
    $region23: #{tpu_custom_call.1} parent=1 // pred_check_branch
      %86 = sbr.rel (0) target = $region25
    $region24: #{tpu_custom_call.1} parent=1 // pred_region
      %s88 = ssub.s32 384, 384
      %89 = vsyncadd [#allocation7], %s88
      %94 = dma.hbm_to_smem %s5, 384, [#allocation15], [#allocation7], 128, 128, 8
    $region25: #{tpu_custom_call.1} parent=1 // pred_fallthru
      _
    // Predicated region
    $region26: #{tpu_custom_call.1} parent=1 // pred_check
      _
    $region27: #{tpu_custom_call.1} parent=1 // pred_check_branch
      %96 = sbr.rel (0) target = $region29
    $region28: #{tpu_custom_call.1} parent=1 // pred_region
      %s98 = ssub.s32 16, 16
      %99 = vsyncadd [#allocation14], %s98
      %s101 = sshll.u32 %s6, 4
      %s102 = int_to_ptr.vmem [resolvable:$true] %s101
      %104 = dma.vmem_to_smem %s102, 16, [#allocation16], [#allocation14]
    $region29: #{tpu_custom_call.1} parent=1 // pred_fallthru
      _
    // Predicated region
    $region30: #{tpu_custom_call.1} parent=1 // pred_check
      _
    $region31: #{tpu_custom_call.1} parent=1 // pred_check_branch
      %106 = sbr.rel (0) target = $region33
    $region32: #{tpu_custom_call.1} parent=1 // pred_region
      %s108 = ssub.s32 16, 16
      %109 = vsyncadd [#allocation18], %s108
      %s111 = sshll.u32 %s7, 4
      %s112 = int_to_ptr.vmem [resolvable:$true] %s111
      %114 = dma.vmem_to_smem %s112, 16, [#allocation17], [#allocation18]
    $region33: #{tpu_custom_call.1} parent=1 // pred_fallthru
      _
    // Predicated region
    $region34: #{tpu_custom_call.1} parent=1 // pred_check
      _
    $region35: #{tpu_custom_call.1} parent=1 // pred_check_branch
      %116 = sbr.rel (0) target = $region37
    $region36: #{tpu_custom_call.1} parent=1 // pred_region
      _
    $region37: #{tpu_custom_call.1} parent=1 // pred_fallthru
      _
    // Predicated region
    $region38: #{tpu_custom_call.1} parent=1 // pred_check
      _
    $region39: #{tpu_custom_call.1} parent=1 // pred_check_branch
      %118 = sbr.rel (0) target = $region41
    $region40: #{tpu_custom_call.1} parent=1 // pred_region
      %s120 = ssub.s32 8192, 8192
      %121 = vsyncadd [#allocation20], %s120
      %s122 = sshll.u32 [#allocation19], 4
      %s123 = int_to_ptr.vmem [resolvable:$true] %s122
      %128 = dma.hbm_to_vmem [thread:$0]  %s9, 8192, %s123, [#allocation20], 512, 512, 32
    $region41: #{tpu_custom_call.1} parent=1 // pred_fallthru
      _
    // Predicated region
    $region42: #{tpu_custom_call.1} parent=1 // pred_check
      _
    $region43: #{tpu_custom_call.1} parent=1 // pred_check_branch
      %130 = sbr.rel (0) target = $region45
    $region44: #{tpu_custom_call.1} parent=1 // pred_region
      _
    $region45: #{tpu_custom_call.1} parent=1 // pred_fallthru
      _
    // Predicated region
    $region46: #{tpu_custom_call.1} parent=1 // pred_check
      _
    $region47: #{tpu_custom_call.1} parent=1 // pred_check_branch
      %132 = sbr.rel (0) target = $region49
    $region48: #{tpu_custom_call.1} parent=1 // pred_region
      %s134 = ssub.s32 8192, 8192
      %135 = vsyncadd [#allocation20], %s134
      %s136 = sshll.u32 [#allocation21], 4
      %s137 = int_to_ptr.vmem [resolvable:$true] %s136
      %142 = dma.hbm_to_vmem [thread:$0]  %s11, 8192, %s137, [#allocation20], 128, 128, 8
    $region49: #{tpu_custom_call.1} parent=1 // pred_fallthru
      _
    // Predicated region
    $region50: #{tpu_custom_call.1} parent=1 // pred_check
      _
    $region51: #{tpu_custom_call.1} parent=1 // pred_check_branch
      %144 = sbr.rel (0) target = $region53
    $region52: #{tpu_custom_call.1} parent=1 // pred_region
      _
    $region53: #{tpu_custom_call.1} parent=1 // pred_fallthru
      _
    // Predicated region
    $region54: #{tpu_custom_call.1} parent=1 // pred_check
      _
    $region55: #{tpu_custom_call.1} parent=1 // pred_check_branch
      %146 = sbr.rel (0) target = $region57
    $region56: #{tpu_custom_call.1} parent=1 // pred_region
      _
    $region57: #{tpu_custom_call.1} parent=1 // pred_fallthru
      _
    // Predicated region
    $region58: #{tpu_custom_call.1} parent=1 // pred_check
      _
    $region59: #{tpu_custom_call.1} parent=1 // pred_check_branch
      %148 = sbr.rel (0) target = $region61
    $region60: #{tpu_custom_call.1} parent=1 // pred_region
      _
    $region61: #{tpu_custom_call.1} parent=1 // pred_fallthru
      _
    // Predicated region
    $region62: #{tpu_custom_call.1} parent=1 // pred_check
      _
    $region63: #{tpu_custom_call.1} parent=1 // pred_check_branch
      %150 = sbr.rel (0) target = $region65
    $region64: #{tpu_custom_call.1} parent=1 // pred_region
      %151 = dma.done [#allocation5], 8192
    $region65: #{tpu_custom_call.1} parent=1 // pred_fallthru
      _
    // Predicated region
    $region66: #{tpu_custom_call.1} parent=1 // pred_check
      _
    $region67: #{tpu_custom_call.1} parent=1 // pred_check_branch
      %153 = sbr.rel (0) target = $region69
    $region68: #{tpu_custom_call.1} parent=1 // pred_region
      %154 = dma.done [#allocation10], 8192
    $region69: #{tpu_custom_call.1} parent=1 // pred_fallthru
      _
    // Predicated region
    $region70: #{tpu_custom_call.1} parent=1 // pred_check
      _
    $region71: #{tpu_custom_call.1} parent=1 // pred_check_branch
      %156 = sbr.rel (0) target = $region73
    $region72: #{tpu_custom_call.1} parent=1 // pred_region
      %157 = dma.done [#allocation10], 8192
    $region73: #{tpu_custom_call.1} parent=1 // pred_fallthru
      _
    // Predicated region
    $region74: #{tpu_custom_call.1} parent=1 // pred_check
      _
    $region75: #{tpu_custom_call.1} parent=1 // pred_check_branch
      %159 = sbr.rel (0) target = $region77
    $region76: #{tpu_custom_call.1} parent=1 // pred_region
      %160 = dma.done [#allocation8], 64
    $region77: #{tpu_custom_call.1} parent=1 // pred_fallthru
      _
    // Predicated region
    $region78: #{tpu_custom_call.1} parent=1 // pred_check
      _
    $region79: #{tpu_custom_call.1} parent=1 // pred_check_branch
      %162 = sbr.rel (0) target = $region81
    $region80: #{tpu_custom_call.1} parent=1 // pred_region
      %163 = dma.done [#allocation14], 16
    $region81: #{tpu_custom_call.1} parent=1 // pred_fallthru
      _
    // Predicated region
    $region82: #{tpu_custom_call.1} parent=1 // pred_check
      _
    $region83: #{tpu_custom_call.1} parent=1 // pred_check_branch
      %165 = sbr.rel (0) target = $region85
    $region84: #{tpu_custom_call.1} parent=1 // pred_region
      %166 = dma.done [#allocation7], 384
    $region85: #{tpu_custom_call.1} parent=1 // pred_fallthru
      _
    // Predicated region
    $region86: #{tpu_custom_call.1} parent=1 // pred_check
      _
    $region87: #{tpu_custom_call.1} parent=1 // pred_check_branch
      %168 = sbr.rel (0) target = $region89
    $region88: #{tpu_custom_call.1} parent=1 // pred_region
      %169 = dma.done [#allocation14], 16
    $region89: #{tpu_custom_call.1} parent=1 // pred_fallthru
      _
    // Predicated region
    $region90: #{tpu_custom_call.1} parent=1 // pred_check
      _
    $region91: #{tpu_custom_call.1} parent=1 // pred_check_branch
      %171 = sbr.rel (0) target = $region93
    $region92: #{tpu_custom_call.1} parent=1 // pred_region
      %172 = dma.done [#allocation18], 16
    $region93: #{tpu_custom_call.1} parent=1 // pred_fallthru
      _
    // Predicated region
    $region94: #{tpu_custom_call.1} parent=1 // pred_check
      _
    $region95: #{tpu_custom_call.1} parent=1 // pred_check_branch
      %174 = sbr.rel (0) target = $region97
    $region96: #{tpu_custom_call.1} parent=1 // pred_region
      %175 = dma.done [#allocation20], 8192
    $region97: #{tpu_custom_call.1} parent=1 // pred_fallthru
      _
    // Predicated region
    $region98: #{tpu_custom_call.1} parent=1 // pred_check
      _
    $region99: #{tpu_custom_call.1} parent=1 // pred_check_branch
      %177 = sbr.rel (0) target = $region101
    $region100: #{tpu_custom_call.1} parent=1 // pred_region
      %178 = dma.done [#allocation20], 8192
    $region101: #{tpu_custom_call.1} parent=1 // pred_fallthru
      _
    %179 = sfence
    %s180 = sld [smem:[#allocation12]]
    %s181 = sld [smem:[#allocation12 + $0x1]]
    %s182 = sld [smem:[#allocation12 + $0x2]]
    %s183 = sld [smem:[#allocation12 + $0x3]]
    %s184 = sld [smem:[#allocation12 + $0x4]]
    %s185 = sld [smem:[#allocation12 + $0x5]]
    %s186 = sld [smem:[#allocation12 + $0x6]]
    %s187 = sld [smem:[#allocation12 + $0x7]]
    %s188 = sld [smem:[#allocation12 + $0x8]]
    %s189 = sld [smem:[#allocation12 + $0x9]]
    %s190 = sld [smem:[#allocation12 + $0xa]]
    %s191 = sld [smem:[#allocation12 + $0xb]]
    %s192 = sld [smem:[#allocation12 + $0xc]]
    %s193 = sld [smem:[#allocation12 + $0xd]]
    %s194 = sld [smem:[#allocation12 + $0xe]]
    %s195 = sld [smem:[#allocation12 + $0xf]]
    %s196 = sld [smem:[#allocation12 + $0x10]]
    %s197 = sld [smem:[#allocation12 + $0x11]]
    %s198 = sld [smem:[#allocation12 + $0x80]]
    %s199 = sld [smem:[#allocation12 + $0x81]]
    %s200 = sld [smem:[#allocation12 + $0x82]]
    %s201 = sld [smem:[#allocation12 + $0x83]]
    %s202 = sld [smem:[#allocation12 + $0x84]]
    %s203 = sld [smem:[#allocation12 + $0x85]]
    %s204 = sld [smem:[#allocation12 + $0x86]]
    %s205 = sld [smem:[#allocation12 + $0x87]]
    %s206 = sld [smem:[#allocation12 + $0x88]]
    %s207 = sld [smem:[#allocation12 + $0x89]]
    %s208 = sld [smem:[#allocation12 + $0x8a]]
    %s209 = sld [smem:[#allocation12 + $0x8b]]
    %s210 = sld [smem:[#allocation12 + $0x8c]]
    %s211 = sld [smem:[#allocation12 + $0x8d]]
    %s212 = sld [smem:[#allocation12 + $0x8e]]
    %s213 = sld [smem:[#allocation12 + $0x8f]]
    %s214 = sld [smem:[#allocation12 + $0x90]]
    %s215 = sld [smem:[#allocation12 + $0x91]]
    %s216 = sld [smem:[#allocation12 + $0x100]]
    %s217 = sld [smem:[#allocation12 + $0x101]]
    %s218 = sld [smem:[#allocation12 + $0x102]]
    %s219 = sld [smem:[#allocation12 + $0x103]]
    %s220 = sld [smem:[#allocation12 + $0x104]]
    %s221 = sld [smem:[#allocation12 + $0x105]]
    %s222 = sld [smem:[#allocation12 + $0x106]]
    %s223 = sld [smem:[#allocation12 + $0x107]]
    %s224 = sld [smem:[#allocation12 + $0x108]]
    %s225 = sld [smem:[#allocation12 + $0x109]]
    %s226 = sld [smem:[#allocation12 + $0x10a]]
    %s227 = sld [smem:[#allocation12 + $0x10b]]
    %s228 = sld [smem:[#allocation12 + $0x10c]]
    %s229 = sld [smem:[#allocation12 + $0x10d]]
    %s230 = sld [smem:[#allocation12 + $0x10e]]
    %s231 = sld [smem:[#allocation12 + $0x10f]]
    %s232 = sld [smem:[#allocation12 + $0x110]]
    %s233 = sld [smem:[#allocation12 + $0x111]]
    %s234 = sld [smem:[#allocation13]]
    %s235 = sld [smem:[#allocation13 + $0x1]]
    %s236 = sld [smem:[#allocation13 + $0x2]]
    %s237 = sld [smem:[#allocation13 + $0x3]]
    %s238 = sld [smem:[#allocation13 + $0x4]]
    %s239 = sld [smem:[#allocation13 + $0x5]]
    %s240 = sld [smem:[#allocation13 + $0x6]]
    %s241 = sld [smem:[#allocation13 + $0x7]]
    %s242 = sld [smem:[#allocation13 + $0x8]]
    %s243 = sld [smem:[#allocation13 + $0x9]]
    %s244 = sld [smem:[#allocation13 + $0xa]]
    %s245 = sld [smem:[#allocation13 + $0xb]]
    %s246 = sld [smem:[#allocation13 + $0xc]]
    %s247 = sld [smem:[#allocation13 + $0xd]]
    %s248 = sld [smem:[#allocation13 + $0xe]]
    %s249 = sld [smem:[#allocation13 + $0xf]]
    %s250 = sld [smem:[#allocation13 + $0x10]]
    %s251 = sld [smem:[#allocation13 + $0x11]]
    %s252 = sld [smem:[#allocation15]]
    %s253 = sld [smem:[#allocation15 + $0x1]]
    %s254 = sld [smem:[#allocation15 + $0x2]]
    %s255 = sld [smem:[#allocation15 + $0x3]]
    %s256 = sld [smem:[#allocation15 + $0x4]]
    %s257 = sld [smem:[#allocation15 + $0x5]]
    %s258 = sld [smem:[#allocation15 + $0x6]]
    %s259 = sld [smem:[#allocation15 + $0x7]]
    %s260 = sld [smem:[#allocation15 + $0x8]]
    %s261 = sld [smem:[#allocation15 + $0x9]]
    %s262 = sld [smem:[#allocation15 + $0xa]]
    %s263 = sld [smem:[#allocation15 + $0xb]]
    %s264 = sld [smem:[#allocation15 + $0xc]]
    %s265 = sld [smem:[#allocation15 + $0xd]]
    %s266 = sld [smem:[#allocation15 + $0xe]]
    %s267 = sld [smem:[#allocation15 + $0xf]]
    %s268 = sld [smem:[#allocation15 + $0x10]]
    %s269 = sld [smem:[#allocation15 + $0x11]]
    %s270 = sld [smem:[#allocation15 + $0x80]]
    %s271 = sld [smem:[#allocation15 + $0x81]]
    %s272 = sld [smem:[#allocation15 + $0x82]]
    %s273 = sld [smem:[#allocation15 + $0x83]]
    %s274 = sld [smem:[#allocation15 + $0x84]]
    %s275 = sld [smem:[#allocation15 + $0x85]]
    %s276 = sld [smem:[#allocation15 + $0x86]]
    %s277 = sld [smem:[#allocation15 + $0x87]]
    %s278 = sld [smem:[#allocation15 + $0x88]]
    %s279 = sld [smem:[#allocation15 + $0x89]]
    %s280 = sld [smem:[#allocation15 + $0x8a]]
    %s281 = sld [smem:[#allocation15 + $0x8b]]
    %s282 = sld [smem:[#allocation15 + $0x8c]]
    %s283 = sld [smem:[#allocation15 + $0x8d]]
    %s284 = sld [smem:[#allocation15 + $0x8e]]
    %s285 = sld [smem:[#allocation15 + $0x8f]]
    %s286 = sld [smem:[#allocation15 + $0x90]]
    %s287 = sld [smem:[#allocation15 + $0x91]]
    %s288 = sld [smem:[#allocation15 + $0x100]]
    %s289 = sld [smem:[#allocation15 + $0x101]]
    %s290 = sld [smem:[#allocation15 + $0x102]]
    %s291 = sld [smem:[#allocation15 + $0x103]]
    %s292 = sld [smem:[#allocation15 + $0x104]]
    %s293 = sld [smem:[#allocation15 + $0x105]]
    %s294 = sld [smem:[#allocation15 + $0x106]]
    %s295 = sld [smem:[#allocation15 + $0x107]]
    %s296 = sld [smem:[#allocation15 + $0x108]]
    %s297 = sld [smem:[#allocation15 + $0x109]]
    %s298 = sld [smem:[#allocation15 + $0x10a]]
    %s299 = sld [smem:[#allocation15 + $0x10b]]
    %s300 = sld [smem:[#allocation15 + $0x10c]]
    %s301 = sld [smem:[#allocation15 + $0x10d]]
    %s302 = sld [smem:[#allocation15 + $0x10e]]
    %s303 = sld [smem:[#allocation15 + $0x10f]]
    %s304 = sld [smem:[#allocation15 + $0x110]]
    %s305 = sld [smem:[#allocation15 + $0x111]]
    %s306 = sld [smem:[#allocation15 + $0x180]]
    %s307 = sld [smem:[#allocation15 + $0x181]]
    %s308 = sld [smem:[#allocation15 + $0x182]]
    %s309 = sld [smem:[#allocation15 + $0x183]]
    %s310 = sld [smem:[#allocation15 + $0x184]]
    %s311 = sld [smem:[#allocation15 + $0x185]]
    %s312 = sld [smem:[#allocation15 + $0x186]]
    %s313 = sld [smem:[#allocation15 + $0x187]]
    %s314 = sld [smem:[#allocation15 + $0x188]]
    %s315 = sld [smem:[#allocation15 + $0x189]]
    %s316 = sld [smem:[#allocation15 + $0x18a]]
    %s317 = sld [smem:[#allocation15 + $0x18b]]
    %s318 = sld [smem:[#allocation15 + $0x18c]]
    %s319 = sld [smem:[#allocation15 + $0x18d]]
    %s320 = sld [smem:[#allocation15 + $0x18e]]
    %s321 = sld [smem:[#allocation15 + $0x18f]]
    %s322 = sld [smem:[#allocation15 + $0x190]]
    %s323 = sld [smem:[#allocation15 + $0x191]]
    %s324 = sld [smem:[#allocation15 + $0x200]]
    %s325 = sld [smem:[#allocation15 + $0x201]]
    %s326 = sld [smem:[#allocation15 + $0x202]]
    %s327 = sld [smem:[#allocation15 + $0x203]]
    %s328 = sld [smem:[#allocation15 + $0x204]]
    %s329 = sld [smem:[#allocation15 + $0x205]]
    %s330 = sld [smem:[#allocation15 + $0x206]]
    %s331 = sld [smem:[#allocation15 + $0x207]]
    %s332 = sld [smem:[#allocation15 + $0x208]]
    %s333 = sld [smem:[#allocation15 + $0x209]]
    %s334 = sld [smem:[#allocation15 + $0x20a]]
    %s335 = sld [smem:[#allocation15 + $0x20b]]
    %s336 = sld [smem:[#allocation15 + $0x20c]]
    %s337 = sld [smem:[#allocation15 + $0x20d]]
    %s338 = sld [smem:[#allocation15 + $0x20e]]
    %s339 = sld [smem:[#allocation15 + $0x20f]]
    %s340 = sld [smem:[#allocation15 + $0x210]]
    %s341 = sld [smem:[#allocation15 + $0x211]]
    %s342 = sld [smem:[#allocation15 + $0x280]]
    %s343 = sld [smem:[#allocation15 + $0x281]]
    %s344 = sld [smem:[#allocation15 + $0x282]]
    %s345 = sld [smem:[#allocation15 + $0x283]]
    %s346 = sld [smem:[#allocation15 + $0x284]]
    %s347 = sld [smem:[#allocation15 + $0x285]]
    %s348 = sld [smem:[#allocation15 + $0x286]]
    %s349 = sld [smem:[#allocation15 + $0x287]]
    %s350 = sld [smem:[#allocation15 + $0x288]]
    %s351 = sld [smem:[#allocation15 + $0x289]]
    %s352 = sld [smem:[#allocation15 + $0x28a]]
    %s353 = sld [smem:[#allocation15 + $0x28b]]
    %s354 = sld [smem:[#allocation15 + $0x28c]]
    %s355 = sld [smem:[#allocation15 + $0x28d]]
    %s356 = sld [smem:[#allocation15 + $0x28e]]
    %s357 = sld [smem:[#allocation15 + $0x28f]]
    %s358 = sld [smem:[#allocation15 + $0x290]]
    %s359 = sld [smem:[#allocation15 + $0x291]]
    %s360 = sld [smem:[#allocation15 + $0x300]]
    %s361 = sld [smem:[#allocation15 + $0x301]]
    %s362 = sld [smem:[#allocation15 + $0x302]]
    %s363 = sld [smem:[#allocation15 + $0x303]]
    %s364 = sld [smem:[#allocation15 + $0x304]]
    %s365 = sld [smem:[#allocation15 + $0x305]]
    %s366 = sld [smem:[#allocation15 + $0x306]]
    %s367 = sld [smem:[#allocation15 + $0x307]]
    %s368 = sld [smem:[#allocation15 + $0x308]]
    %s369 = sld [smem:[#allocation15 + $0x309]]
    %s370 = sld [smem:[#allocation15 + $0x30a]]
    %s371 = sld [smem:[#allocation15 + $0x30b]]
    %s372 = sld [smem:[#allocation15 + $0x30c]]
    %s373 = sld [smem:[#allocation15 + $0x30d]]
    %s374 = sld [smem:[#allocation15 + $0x30e]]
    %s375 = sld [smem:[#allocation15 + $0x30f]]
    %s376 = sld [smem:[#allocation15 + $0x310]]
    %s377 = sld [smem:[#allocation15 + $0x311]]
    %s378 = sld [smem:[#allocation15 + $0x380]]
    %s379 = sld [smem:[#allocation15 + $0x381]]
    %s380 = sld [smem:[#allocation15 + $0x382]]
    %s381 = sld [smem:[#allocation15 + $0x383]]
    %s382 = sld [smem:[#allocation15 + $0x384]]
    %s383 = sld [smem:[#allocation15 + $0x385]]
    %s384 = sld [smem:[#allocation15 + $0x386]]
    %s385 = sld [smem:[#allocation15 + $0x387]]
    %s386 = sld [smem:[#allocation15 + $0x388]]
    %s387 = sld [smem:[#allocation15 + $0x389]]
    %s388 = sld [smem:[#allocation15 + $0x38a]]
    %s389 = sld [smem:[#allocation15 + $0x38b]]
    %s390 = sld [smem:[#allocation15 + $0x38c]]
    %s391 = sld [smem:[#allocation15 + $0x38d]]
    %s392 = sld [smem:[#allocation15 + $0x38e]]
    %s393 = sld [smem:[#allocation15 + $0x38f]]
    %s394 = sld [smem:[#allocation15 + $0x390]]
    %s395 = sld [smem:[#allocation15 + $0x391]]
    %s396 = sld [smem:[#allocation15 + $0x400]]
    %s397 = sld [smem:[#allocation15 + $0x401]]
    %s398 = sld [smem:[#allocation15 + $0x402]]
    %s399 = sld [smem:[#allocation15 + $0x403]]
    %s400 = sld [smem:[#allocation15 + $0x404]]
    %s401 = sld [smem:[#allocation15 + $0x405]]
    %s402 = sld [smem:[#allocation15 + $0x406]]
    %s403 = sld [smem:[#allocation15 + $0x407]]
    %s404 = sld [smem:[#allocation15 + $0x408]]
    %s405 = sld [smem:[#allocation15 + $0x409]]
    %s406 = sld [smem:[#allocation15 + $0x40a]]
    %s407 = sld [smem:[#allocation15 + $0x40b]]
    %s408 = sld [smem:[#allocation15 + $0x40c]]
    %s409 = sld [smem:[#allocation15 + $0x40d]]
    %s410 = sld [smem:[#allocation15 + $0x40e]]
    %s411 = sld [smem:[#allocation15 + $0x40f]]
    %s412 = sld [smem:[#allocation15 + $0x410]]
    %s413 = sld [smem:[#allocation15 + $0x411]]
    %s414 = sld [smem:[#allocation15 + $0x480]]
    %s415 = sld [smem:[#allocation15 + $0x481]]
    %s416 = sld [smem:[#allocation15 + $0x482]]
    %s417 = sld [smem:[#allocation15 + $0x483]]
    %s418 = sld [smem:[#allocation15 + $0x484]]
    %s419 = sld [smem:[#allocation15 + $0x485]]
    %s420 = sld [smem:[#allocation15 + $0x486]]
    %s421 = sld [smem:[#allocation15 + $0x487]]
    %s422 = sld [smem:[#allocation15 + $0x488]]
    %s423 = sld [smem:[#allocation15 + $0x489]]
    %s424 = sld [smem:[#allocation15 + $0x48a]]
    %s425 = sld [smem:[#allocation15 + $0x48b]]
    %s426 = sld [smem:[#allocation15 + $0x48c]]
    %s427 = sld [smem:[#allocation15 + $0x48d]]
    %s428 = sld [smem:[#allocation15 + $0x48e]]
    %s429 = sld [smem:[#allocation15 + $0x48f]]
    %s430 = sld [smem:[#allocation15 + $0x490]]
    %s431 = sld [smem:[#allocation15 + $0x491]]
    %s432 = sld [smem:[#allocation15 + $0x500]]
    %s433 = sld [smem:[#allocation15 + $0x501]]
    %s434 = sld [smem:[#allocation15 + $0x502]]
    %s435 = sld [smem:[#allocation15 + $0x503]]
    %s436 = sld [smem:[#allocation15 + $0x504]]
    %s437 = sld [smem:[#allocation15 + $0x505]]
    %s438 = sld [smem:[#allocation15 + $0x506]]
    %s439 = sld [smem:[#allocation15 + $0x507]]
    %s440 = sld [smem:[#allocation15 + $0x508]]
    %s441 = sld [smem:[#allocation15 + $0x509]]
    %s442 = sld [smem:[#allocation15 + $0x50a]]
    %s443 = sld [smem:[#allocation15 + $0x50b]]
    %s444 = sld [smem:[#allocation15 + $0x50c]]
    %s445 = sld [smem:[#allocation15 + $0x50d]]
    %s446 = sld [smem:[#allocation15 + $0x50e]]
    %s447 = sld [smem:[#allocation15 + $0x50f]]
    %s448 = sld [smem:[#allocation15 + $0x510]]
    %s449 = sld [smem:[#allocation15 + $0x511]]
    %s450 = sld [smem:[#allocation15 + $0x580]]
    %s451 = sld [smem:[#allocation15 + $0x581]]
    %s452 = sld [smem:[#allocation15 + $0x582]]
    %s453 = sld [smem:[#allocation15 + $0x583]]
    %s454 = sld [smem:[#allocation15 + $0x584]]
    %s455 = sld [smem:[#allocation15 + $0x585]]
    %s456 = sld [smem:[#allocation15 + $0x586]]
    %s457 = sld [smem:[#allocation15 + $0x587]]
    %s458 = sld [smem:[#allocation15 + $0x588]]
    %s459 = sld [smem:[#allocation15 + $0x589]]
    %s460 = sld [smem:[#allocation15 + $0x58a]]
    %s461 = sld [smem:[#allocation15 + $0x58b]]
    %s462 = sld [smem:[#allocation15 + $0x58c]]
    %s463 = sld [smem:[#allocation15 + $0x58d]]
    %s464 = sld [smem:[#allocation15 + $0x58e]]
    %s465 = sld [smem:[#allocation15 + $0x58f]]
    %s466 = sld [smem:[#allocation15 + $0x590]]
    %s467 = sld [smem:[#allocation15 + $0x591]]
    %s468 = sld [smem:[#allocation15 + $0x600]]
    %s469 = sld [smem:[#allocation15 + $0x601]]
    %s470 = sld [smem:[#allocation15 + $0x602]]
    %s471 = sld [smem:[#allocation15 + $0x603]]
    %s472 = sld [smem:[#allocation15 + $0x604]]
    %s473 = sld [smem:[#allocation15 + $0x605]]
    %s474 = sld [smem:[#allocation15 + $0x606]]
    %s475 = sld [smem:[#allocation15 + $0x607]]
    %s476 = sld [smem:[#allocation15 + $0x608]]
    %s477 = sld [smem:[#allocation15 + $0x609]]
    %s478 = sld [smem:[#allocation15 + $0x60a]]
    %s479 = sld [smem:[#allocation15 + $0x60b]]
    %s480 = sld [smem:[#allocation15 + $0x60c]]
    %s481 = sld [smem:[#allocation15 + $0x60d]]
    %s482 = sld [smem:[#allocation15 + $0x60e]]
    %s483 = sld [smem:[#allocation15 + $0x60f]]
    %s484 = sld [smem:[#allocation15 + $0x610]]
    %s485 = sld [smem:[#allocation15 + $0x611]]
    %s486 = sld [smem:[#allocation15 + $0x680]]
    %s487 = sld [smem:[#allocation15 + $0x681]]
    %s488 = sld [smem:[#allocation15 + $0x682]]
    %s489 = sld [smem:[#allocation15 + $0x683]]
    %s490 = sld [smem:[#allocation15 + $0x684]]
    %s491 = sld [smem:[#allocation15 + $0x685]]
    %s492 = sld [smem:[#allocation15 + $0x686]]
    %s493 = sld [smem:[#allocation15 + $0x687]]
    %s494 = sld [smem:[#allocation15 + $0x688]]
    %s495 = sld [smem:[#allocation15 + $0x689]]
    %s496 = sld [smem:[#allocation15 + $0x68a]]
    %s497 = sld [smem:[#allocation15 + $0x68b]]
    %s498 = sld [smem:[#allocation15 + $0x68c]]
    %s499 = sld [smem:[#allocation15 + $0x68d]]
    %s500 = sld [smem:[#allocation15 + $0x68e]]
    %s501 = sld [smem:[#allocation15 + $0x68f]]
    %s502 = sld [smem:[#allocation15 + $0x690]]
    %s503 = sld [smem:[#allocation15 + $0x691]]
    %s504 = sld [smem:[#allocation15 + $0x700]]
    %s505 = sld [smem:[#allocation15 + $0x701]]
    %s506 = sld [smem:[#allocation15 + $0x702]]
    %s507 = sld [smem:[#allocation15 + $0x703]]
    %s508 = sld [smem:[#allocation15 + $0x704]]
    %s509 = sld [smem:[#allocation15 + $0x705]]
    %s510 = sld [smem:[#allocation15 + $0x706]]
    %s511 = sld [smem:[#allocation15 + $0x707]]
    %s512 = sld [smem:[#allocation15 + $0x708]]
    %s513 = sld [smem:[#allocation15 + $0x709]]
    %s514 = sld [smem:[#allocation15 + $0x70a]]
    %s515 = sld [smem:[#allocation15 + $0x70b]]
    %s516 = sld [smem:[#allocation15 + $0x70c]]
    %s517 = sld [smem:[#allocation15 + $0x70d]]
    %s518 = sld [smem:[#allocation15 + $0x70e]]
    %s519 = sld [smem:[#allocation15 + $0x70f]]
    %s520 = sld [smem:[#allocation15 + $0x710]]
    %s521 = sld [smem:[#allocation15 + $0x711]]
    %s522 = sld [smem:[#allocation15 + $0x780]]
    %s523 = sld [smem:[#allocation15 + $0x781]]
    %s524 = sld [smem:[#allocation15 + $0x782]]
    %s525 = sld [smem:[#allocation15 + $0x783]]
    %s526 = sld [smem:[#allocation15 + $0x784]]
    %s527 = sld [smem:[#allocation15 + $0x785]]
    %s528 = sld [smem:[#allocation15 + $0x786]]
    %s529 = sld [smem:[#allocation15 + $0x787]]
    %s530 = sld [smem:[#allocation15 + $0x788]]
    %s531 = sld [smem:[#allocation15 + $0x789]]
    %s532 = sld [smem:[#allocation15 + $0x78a]]
    %s533 = sld [smem:[#allocation15 + $0x78b]]
    %s534 = sld [smem:[#allocation15 + $0x78c]]
    %s535 = sld [smem:[#allocation15 + $0x78d]]
    %s536 = sld [smem:[#allocation15 + $0x78e]]
    %s537 = sld [smem:[#allocation15 + $0x78f]]
    %s538 = sld [smem:[#allocation15 + $0x790]]
    %s539 = sld [smem:[#allocation15 + $0x791]]
    %s540 = sld [smem:[#allocation15 + $0x800]]
    %s541 = sld [smem:[#allocation15 + $0x801]]
    %s542 = sld [smem:[#allocation15 + $0x802]]
    %s543 = sld [smem:[#allocation15 + $0x803]]
    %s544 = sld [smem:[#allocation15 + $0x804]]
    %s545 = sld [smem:[#allocation15 + $0x805]]
    %s546 = sld [smem:[#allocation15 + $0x806]]
    %s547 = sld [smem:[#allocation15 + $0x807]]
    %s548 = sld [smem:[#allocation15 + $0x808]]
    %s549 = sld [smem:[#allocation15 + $0x809]]
    %s550 = sld [smem:[#allocation15 + $0x80a]]
    %s551 = sld [smem:[#allocation15 + $0x80b]]
    %s552 = sld [smem:[#allocation15 + $0x80c]]
    %s553 = sld [smem:[#allocation15 + $0x80d]]
    %s554 = sld [smem:[#allocation15 + $0x80e]]
    %s555 = sld [smem:[#allocation15 + $0x80f]]
    %s556 = sld [smem:[#allocation15 + $0x810]]
    %s557 = sld [smem:[#allocation15 + $0x811]]
    %s558 = sld [smem:[#allocation15 + $0x880]]
    %s559 = sld [smem:[#allocation15 + $0x881]]
    %s560 = sld [smem:[#allocation15 + $0x882]]
    %s561 = sld [smem:[#allocation15 + $0x883]]
    %s562 = sld [smem:[#allocation15 + $0x884]]
    %s563 = sld [smem:[#allocation15 + $0x885]]
    %s564 = sld [smem:[#allocation15 + $0x886]]
    %s565 = sld [smem:[#allocation15 + $0x887]]
    %s566 = sld [smem:[#allocation15 + $0x888]]
    %s567 = sld [smem:[#allocation15 + $0x889]]
    %s568 = sld [smem:[#allocation15 + $0x88a]]
    %s569 = sld [smem:[#allocation15 + $0x88b]]
    %s570 = sld [smem:[#allocation15 + $0x88c]]
    %s571 = sld [smem:[#allocation15 + $0x88d]]
    %s572 = sld [smem:[#allocation15 + $0x88e]]
    %s573 = sld [smem:[#allocation15 + $0x88f]]
    %s574 = sld [smem:[#allocation15 + $0x890]]
    %s575 = sld [smem:[#allocation15 + $0x891]]
    %s576 = sld [smem:[#allocation16]]
    %s577 = sld [smem:[#allocation16 + $0x1]]
    %s578 = sld [smem:[#allocation16 + $0x2]]
    %s579 = sld [smem:[#allocation16 + $0x3]]
    %s580 = sld [smem:[#allocation16 + $0x4]]
    %s581 = sld [smem:[#allocation16 + $0x5]]
    %s582 = sld [smem:[#allocation16 + $0x6]]
    %s583 = sld [smem:[#allocation16 + $0x7]]
    %s584 = sld [smem:[#allocation16 + $0x8]]
    %s585 = sld [smem:[#allocation16 + $0x9]]
    %s586 = sld [smem:[#allocation16 + $0xa]]
    %s587 = sld [smem:[#allocation16 + $0xb]]
    %s588 = sld [smem:[#allocation16 + $0xc]]
    %s589 = sld [smem:[#allocation16 + $0xd]]
    %s590 = sld [smem:[#allocation16 + $0xe]]
    %s591 = sld [smem:[#allocation16 + $0xf]]
    %s592 = sld [smem:[#allocation16 + $0x10]]
    %s593 = sld [smem:[#allocation16 + $0x11]]
    %s594 = sld [smem:[#allocation17]]
    %s595 = sld [smem:[#allocation17 + $0x1]]
    %s596 = sld [smem:[#allocation17 + $0x2]]
    %s597 = sld [smem:[#allocation17 + $0x3]]
    %s598 = sld [smem:[#allocation17 + $0x4]]
    %s599 = sld [smem:[#allocation17 + $0x5]]
    %s600 = sld [smem:[#allocation17 + $0x6]]
    %s601 = sld [smem:[#allocation17 + $0x7]]
    %s602 = sld [smem:[#allocation17 + $0x8]]
    %s603 = sld [smem:[#allocation17 + $0x9]]
    %s604 = sld [smem:[#allocation17 + $0xa]]
    %s605 = sld [smem:[#allocation17 + $0xb]]
    %s606 = sld [smem:[#allocation17 + $0xc]]
    %s607 = sld [smem:[#allocation17 + $0xd]]
    %s608 = sld [smem:[#allocation17 + $0xe]]
    %s609 = sld [smem:[#allocation17 + $0xf]]
    %s610 = sld [smem:[#allocation17 + $0x10]]
    %s611 = sld [smem:[#allocation17 + $0x11]]
    %s612 = sld [smem:[#allocation3]]
    loop: start=0, step=1, limit=32
    $region102: #{tpu_custom_call.1} parent=1 // loop_pre_header
      _
    $region103: #{tpu_custom_call.1} parent=1 // loop_header
      %s614 = sphi 0, %s618
      %p615 = scmp.ge.s32.totalorder %s614, 32
    $region104: #{tpu_custom_call.1} parent=1 // loop_header_branch
      %617 = sbr.rel (%p615) target = $region108
    $region105: #{tpu_custom_call.1} parent=1 // loop_body
      %s619 = smul.u32 %s614, 16
      %s620 = scalar_lea.vmem [#allocation4], %s619
      %v621 = vld [vmem:[%s620] sm:$0xff]
      %v622 = vld [vmem:[%s620 + $0x8] sm:$0xff]
      %s623 = scalar_lea.vmem [#allocation9], %s619
      %v624 = vld [vmem:[%s623] sm:$0xff]
      %v625 = vld [vmem:[%s623 + $0x8] sm:$0xff]
      %s626 = scalar_lea.vmem [#allocation11], %s619
      %v627 = vld [vmem:[%s626] sm:$0xff]
      %v628 = vld [vmem:[%s626 + $0x8] sm:$0xff]
      %v629 = vstv %s180
      %v630 = vmul.f32 %v621, %v629
      %v631 = vmul.f32 %v622, %v629
      %v632 = vstv %s198
      %v633 = vmul.f32 %v624, %v632
      %v634 = vmul.f32 %v625, %v632
      %v635 = vadd.f32 %v630, %v633
      %v636 = vadd.f32 %v631, %v634
      %v637 = vstv %s216
      %v638 = vmul.f32 %v627, %v637
      %v639 = vmul.f32 %v628, %v637
      %v640 = vadd.f32 %v635, %v638
      %v641 = vadd.f32 %v636, %v639
      %v642 = vstv %s234
      %v643 = vadd.f32 %v640, %v642
      %v644 = vadd.f32 %v641, %v642
      %v645 = vmax.f32 %v643, 0.0
      %v646 = vmax.f32 %v644, 0.0
      %v647 = vstv %s252
      %v648 = vmul.f32 %v645, %v647
      %v649 = vmul.f32 %v646, %v647
      %v650 = vstv %s253
      %v651 = vmul.f32 %v645, %v650
      %v652 = vmul.f32 %v646, %v650
      %v653 = vstv %s254
      %v654 = vmul.f32 %v645, %v653
      %v655 = vmul.f32 %v646, %v653
      %v656 = vstv %s255
      %v657 = vmul.f32 %v645, %v656
      %v658 = vmul.f32 %v646, %v656
      %v659 = vstv %s256
      %v660 = vmul.f32 %v645, %v659
      %v661 = vmul.f32 %v646, %v659
      %v662 = vstv %s257
      %v663 = vmul.f32 %v645, %v662
      %v664 = vmul.f32 %v646, %v662
      %v665 = vstv %s258
      %v666 = vmul.f32 %v645, %v665
      %v667 = vmul.f32 %v646, %v665
      %v668 = vstv %s259
      %v669 = vmul.f32 %v645, %v668
      %v670 = vmul.f32 %v646, %v668
      %v671 = vstv %s260
      %v672 = vmul.f32 %v645, %v671
      %v673 = vmul.f32 %v646, %v671
      %v674 = vstv %s261
      %v675 = vmul.f32 %v645, %v674
      %v676 = vmul.f32 %v646, %v674
      %v677 = vstv %s262
      %v678 = vmul.f32 %v645, %v677
      %v679 = vmul.f32 %v646, %v677
      %v680 = vstv %s263
      %v681 = vmul.f32 %v645, %v680
      %v682 = vmul.f32 %v646, %v680
      %v683 = vstv %s264
      %v684 = vmul.f32 %v645, %v683
      %v685 = vmul.f32 %v646, %v683
      %v686 = vstv %s265
      %v687 = vmul.f32 %v645, %v686
      %v688 = vmul.f32 %v646, %v686
      %v689 = vstv %s266
      %v690 = vmul.f32 %v645, %v689
      %v691 = vmul.f32 %v646, %v689
      %v692 = vstv %s267
      %v693 = vmul.f32 %v645, %v692
      %v694 = vmul.f32 %v646, %v692
      %v695 = vstv %s268
      %v696 = vmul.f32 %v645, %v695
      %v697 = vmul.f32 %v646, %v695
      %v698 = vstv %s269
      %v699 = vmul.f32 %v645, %v698
      %v700 = vmul.f32 %v646, %v698
      %v701 = vstv %s181
      %v702 = vmul.f32 %v621, %v701
      %v703 = vmul.f32 %v622, %v701
      %v704 = vstv %s199
      %v705 = vmul.f32 %v624, %v704
      %v706 = vmul.f32 %v625, %v704
      %v707 = vadd.f32 %v702, %v705
      %v708 = vadd.f32 %v703, %v706
      %v709 = vstv %s217
      %v710 = vmul.f32 %v627, %v709
      %v711 = vmul.f32 %v628, %v709
      %v712 = vadd.f32 %v707, %v710
      %v713 = vadd.f32 %v708, %v711
      %v714 = vstv %s235
      %v715 = vadd.f32 %v712, %v714
      %v716 = vadd.f32 %v713, %v714
      %v717 = vmax.f32 %v715, 0.0
      %v718 = vmax.f32 %v716, 0.0
      %v719 = vstv %s270
      %v720 = vmul.f32 %v717, %v719
      %v721 = vmul.f32 %v718, %v719
      %v722 = vadd.f32 %v648, %v720
      %v723 = vadd.f32 %v649, %v721
      %v724 = vstv %s271
      %v725 = vmul.f32 %v717, %v724
      %v726 = vmul.f32 %v718, %v724
      %v727 = vadd.f32 %v651, %v725
      %v728 = vadd.f32 %v652, %v726
      %v729 = vstv %s272
      %v730 = vmul.f32 %v717, %v729
      %v731 = vmul.f32 %v718, %v729
      %v732 = vadd.f32 %v654, %v730
      %v733 = vadd.f32 %v655, %v731
      %v734 = vstv %s273
      %v735 = vmul.f32 %v717, %v734
      %v736 = vmul.f32 %v718, %v734
      %v737 = vadd.f32 %v657, %v735
      %v738 = vadd.f32 %v658, %v736
      %v739 = vstv %s274
      %v740 = vmul.f32 %v717, %v739
      %v741 = vmul.f32 %v718, %v739
      %v742 = vadd.f32 %v660, %v740
      %v743 = vadd.f32 %v661, %v741
      %v744 = vstv %s275
      %v745 = vmul.f32 %v717, %v744
      %v746 = vmul.f32 %v718, %v744
      %v747 = vadd.f32 %v663, %v745
      %v748 = vadd.f32 %v664, %v746
      %v749 = vstv %s276
      %v750 = vmul.f32 %v717, %v749
      %v751 = vmul.f32 %v718, %v749
      %v752 = vadd.f32 %v666, %v750
      %v753 = vadd.f32 %v667, %v751
      %v754 = vstv %s277
      %v755 = vmul.f32 %v717, %v754
      %v756 = vmul.f32 %v718, %v754
      %v757 = vadd.f32 %v669, %v755
      %v758 = vadd.f32 %v670, %v756
      %v759 = vstv %s278
      %v760 = vmul.f32 %v717, %v759
      %v761 = vmul.f32 %v718, %v759
      %v762 = vadd.f32 %v672, %v760
      %v763 = vadd.f32 %v673, %v761
      %v764 = vstv %s279
      %v765 = vmul.f32 %v717, %v764
      %v766 = vmul.f32 %v718, %v764
      %v767 = vadd.f32 %v675, %v765
      %v768 = vadd.f32 %v676, %v766
      %v769 = vstv %s280
      %v770 = vmul.f32 %v717, %v769
      %v771 = vmul.f32 %v718, %v769
      %v772 = vadd.f32 %v678, %v770
      %v773 = vadd.f32 %v679, %v771
      %v774 = vstv %s281
      %v775 = vmul.f32 %v717, %v774
      %v776 = vmul.f32 %v718, %v774
      %v777 = vadd.f32 %v681, %v775
      %v778 = vadd.f32 %v682, %v776
      %v779 = vstv %s282
      %v780 = vmul.f32 %v717, %v779
      %v781 = vmul.f32 %v718, %v779
      %v782 = vadd.f32 %v684, %v780
      %v783 = vadd.f32 %v685, %v781
      %v784 = vstv %s283
      %v785 = vmul.f32 %v717, %v784
      %v786 = vmul.f32 %v718, %v784
      %v787 = vadd.f32 %v687, %v785
      %v788 = vadd.f32 %v688, %v786
      %v789 = vstv %s284
      %v790 = vmul.f32 %v717, %v789
      %v791 = vmul.f32 %v718, %v789
      %v792 = vadd.f32 %v690, %v790
      %v793 = vadd.f32 %v691, %v791
      %v794 = vstv %s285
      %v795 = vmul.f32 %v717, %v794
      %v796 = vmul.f32 %v718, %v794
      %v797 = vadd.f32 %v693, %v795
      %v798 = vadd.f32 %v694, %v796
      %v799 = vstv %s286
      %v800 = vmul.f32 %v717, %v799
      %v801 = vmul.f32 %v718, %v799
      %v802 = vadd.f32 %v696, %v800
      %v803 = vadd.f32 %v697, %v801
      %v804 = vstv %s287
      %v805 = vmul.f32 %v717, %v804
      %v806 = vmul.f32 %v718, %v804
      %v807 = vadd.f32 %v699, %v805
      %v808 = vadd.f32 %v700, %v806
      %v809 = vstv %s182
      %v810 = vmul.f32 %v621, %v809
      %v811 = vmul.f32 %v622, %v809
      %v812 = vstv %s200
      %v813 = vmul.f32 %v624, %v812
      %v814 = vmul.f32 %v625, %v812
      %v815 = vadd.f32 %v810, %v813
      %v816 = vadd.f32 %v811, %v814
      %v817 = vstv %s218
      %v818 = vmul.f32 %v627, %v817
      %v819 = vmul.f32 %v628, %v817
      %v820 = vadd.f32 %v815, %v818
      %v821 = vadd.f32 %v816, %v819
      %v822 = vstv %s236
      %v823 = vadd.f32 %v820, %v822
      %v824 = vadd.f32 %v821, %v822
      %v825 = vmax.f32 %v823, 0.0
      %v826 = vmax.f32 %v824, 0.0
      %v827 = vstv %s288
      %v828 = vmul.f32 %v825, %v827
      %v829 = vmul.f32 %v826, %v827
      %v830 = vadd.f32 %v722, %v828
      %v831 = vadd.f32 %v723, %v829
      %v832 = vstv %s289
      %v833 = vmul.f32 %v825, %v832
      %v834 = vmul.f32 %v826, %v832
      %v835 = vadd.f32 %v727, %v833
      %v836 = vadd.f32 %v728, %v834
      %v837 = vstv %s290
      %v838 = vmul.f32 %v825, %v837
      %v839 = vmul.f32 %v826, %v837
      %v840 = vadd.f32 %v732, %v838
      %v841 = vadd.f32 %v733, %v839
      %v842 = vstv %s291
      %v843 = vmul.f32 %v825, %v842
      %v844 = vmul.f32 %v826, %v842
      %v845 = vadd.f32 %v737, %v843
      %v846 = vadd.f32 %v738, %v844
      %v847 = vstv %s292
      %v848 = vmul.f32 %v825, %v847
      %v849 = vmul.f32 %v826, %v847
      %v850 = vadd.f32 %v742, %v848
      %v851 = vadd.f32 %v743, %v849
      %v852 = vstv %s293
      %v853 = vmul.f32 %v825, %v852
      %v854 = vmul.f32 %v826, %v852
      %v855 = vadd.f32 %v747, %v853
      %v856 = vadd.f32 %v748, %v854
      %v857 = vstv %s294
      %v858 = vmul.f32 %v825, %v857
      %v859 = vmul.f32 %v826, %v857
      %v860 = vadd.f32 %v752, %v858
      %v861 = vadd.f32 %v753, %v859
      %v862 = vstv %s295
      %v863 = vmul.f32 %v825, %v862
      %v864 = vmul.f32 %v826, %v862
      %v865 = vadd.f32 %v757, %v863
      %v866 = vadd.f32 %v758, %v864
      %v867 = vstv %s296
      %v868 = vmul.f32 %v825, %v867
      %v869 = vmul.f32 %v826, %v867
      %v870 = vadd.f32 %v762, %v868
      %v871 = vadd.f32 %v763, %v869
      %v872 = vstv %s297
      %v873 = vmul.f32 %v825, %v872
      %v874 = vmul.f32 %v826, %v872
      %v875 = vadd.f32 %v767, %v873
      %v876 = vadd.f32 %v768, %v874
      %v877 = vstv %s298
      %v878 = vmul.f32 %v825, %v877
      %v879 = vmul.f32 %v826, %v877
      %v880 = vadd.f32 %v772, %v878
      %v881 = vadd.f32 %v773, %v879
      %v882 = vstv %s299
      %v883 = vmul.f32 %v825, %v882
      %v884 = vmul.f32 %v826, %v882
      %v885 = vadd.f32 %v777, %v883
      %v886 = vadd.f32 %v778, %v884
      %v887 = vstv %s300
      %v888 = vmul.f32 %v825, %v887
      %v889 = vmul.f32 %v826, %v887
      %v890 = vadd.f32 %v782, %v888
      %v891 = vadd.f32 %v783, %v889
      %v892 = vstv %s301
      %v893 = vmul.f32 %v825, %v892
      %v894 = vmul.f32 %v826, %v892
      %v895 = vadd.f32 %v787, %v893
      %v896 = vadd.f32 %v788, %v894
      %v897 = vstv %s302
      %v898 = vmul.f32 %v825, %v897
      %v899 = vmul.f32 %v826, %v897
      %v900 = vadd.f32 %v792, %v898
      %v901 = vadd.f32 %v793, %v899
      %v902 = vstv %s303
      %v903 = vmul.f32 %v825, %v902
      %v904 = vmul.f32 %v826, %v902
      %v905 = vadd.f32 %v797, %v903
      %v906 = vadd.f32 %v798, %v904
      %v907 = vstv %s304
      %v908 = vmul.f32 %v825, %v907
      %v909 = vmul.f32 %v826, %v907
      %v910 = vadd.f32 %v802, %v908
      %v911 = vadd.f32 %v803, %v909
      %v912 = vstv %s305
      %v913 = vmul.f32 %v825, %v912
      %v914 = vmul.f32 %v826, %v912
      %v915 = vadd.f32 %v807, %v913
      %v916 = vadd.f32 %v808, %v914
      %v917 = vstv %s183
      %v918 = vmul.f32 %v621, %v917
      %v919 = vmul.f32 %v622, %v917
      %v920 = vstv %s201
      %v921 = vmul.f32 %v624, %v920
      %v922 = vmul.f32 %v625, %v920
      %v923 = vadd.f32 %v918, %v921
      %v924 = vadd.f32 %v919, %v922
      %v925 = vstv %s219
      %v926 = vmul.f32 %v627, %v925
      %v927 = vmul.f32 %v628, %v925
      %v928 = vadd.f32 %v923, %v926
      %v929 = vadd.f32 %v924, %v927
      %v930 = vstv %s237
      %v931 = vadd.f32 %v928, %v930
      %v932 = vadd.f32 %v929, %v930
      %v933 = vmax.f32 %v931, 0.0
      %v934 = vmax.f32 %v932, 0.0
      %v935 = vstv %s306
      %v936 = vmul.f32 %v933, %v935
      %v937 = vmul.f32 %v934, %v935
      %v938 = vadd.f32 %v830, %v936
      %v939 = vadd.f32 %v831, %v937
      %v940 = vstv %s307
      %v941 = vmul.f32 %v933, %v940
      %v942 = vmul.f32 %v934, %v940
      %v943 = vadd.f32 %v835, %v941
      %v944 = vadd.f32 %v836, %v942
      %v945 = vstv %s308
      %v946 = vmul.f32 %v933, %v945
      %v947 = vmul.f32 %v934, %v945
      %v948 = vadd.f32 %v840, %v946
      %v949 = vadd.f32 %v841, %v947
      %v950 = vstv %s309
      %v951 = vmul.f32 %v933, %v950
      %v952 = vmul.f32 %v934, %v950
      %v953 = vadd.f32 %v845, %v951
      %v954 = vadd.f32 %v846, %v952
      %v955 = vstv %s310
      %v956 = vmul.f32 %v933, %v955
      %v957 = vmul.f32 %v934, %v955
      %v958 = vadd.f32 %v850, %v956
      %v959 = vadd.f32 %v851, %v957
      %v960 = vstv %s311
      %v961 = vmul.f32 %v933, %v960
      %v962 = vmul.f32 %v934, %v960
      %v963 = vadd.f32 %v855, %v961
      %v964 = vadd.f32 %v856, %v962
      %v965 = vstv %s312
      %v966 = vmul.f32 %v933, %v965
      %v967 = vmul.f32 %v934, %v965
      %v968 = vadd.f32 %v860, %v966
      %v969 = vadd.f32 %v861, %v967
      %v970 = vstv %s313
      %v971 = vmul.f32 %v933, %v970
      %v972 = vmul.f32 %v934, %v970
      %v973 = vadd.f32 %v865, %v971
      %v974 = vadd.f32 %v866, %v972
      %v975 = vstv %s314
      %v976 = vmul.f32 %v933, %v975
      %v977 = vmul.f32 %v934, %v975
      %v978 = vadd.f32 %v870, %v976
      %v979 = vadd.f32 %v871, %v977
      %v980 = vstv %s315
      %v981 = vmul.f32 %v933, %v980
      %v982 = vmul.f32 %v934, %v980
      %v983 = vadd.f32 %v875, %v981
      %v984 = vadd.f32 %v876, %v982
      %v985 = vstv %s316
      %v986 = vmul.f32 %v933, %v985
      %v987 = vmul.f32 %v934, %v985
      %v988 = vadd.f32 %v880, %v986
      %v989 = vadd.f32 %v881, %v987
      %v990 = vstv %s317
      %v991 = vmul.f32 %v933, %v990
      %v992 = vmul.f32 %v934, %v990
      %v993 = vadd.f32 %v885, %v991
      %v994 = vadd.f32 %v886, %v992
      %v995 = vstv %s318
      %v996 = vmul.f32 %v933, %v995
      %v997 = vmul.f32 %v934, %v995
      %v998 = vadd.f32 %v890, %v996
      %v999 = vadd.f32 %v891, %v997
      %v1000 = vstv %s319
      %v1001 = vmul.f32 %v933, %v1000
      %v1002 = vmul.f32 %v934, %v1000
      %v1003 = vadd.f32 %v895, %v1001
      %v1004 = vadd.f32 %v896, %v1002
      %v1005 = vstv %s320
      %v1006 = vmul.f32 %v933, %v1005
      %v1007 = vmul.f32 %v934, %v1005
      %v1008 = vadd.f32 %v900, %v1006
      %v1009 = vadd.f32 %v901, %v1007
      %v1010 = vstv %s321
      %v1011 = vmul.f32 %v933, %v1010
      %v1012 = vmul.f32 %v934, %v1010
      %v1013 = vadd.f32 %v905, %v1011
      %v1014 = vadd.f32 %v906, %v1012
      %v1015 = vstv %s322
      %v1016 = vmul.f32 %v933, %v1015
      %v1017 = vmul.f32 %v934, %v1015
      %v1018 = vadd.f32 %v910, %v1016
      %v1019 = vadd.f32 %v911, %v1017
      %v1020 = vstv %s323
      %v1021 = vmul.f32 %v933, %v1020
      %v1022 = vmul.f32 %v934, %v1020
      %v1023 = vadd.f32 %v915, %v1021
      %v1024 = vadd.f32 %v916, %v1022
      %v1025 = vstv %s184
      %v1026 = vmul.f32 %v621, %v1025
      %v1027 = vmul.f32 %v622, %v1025
      %v1028 = vstv %s202
      %v1029 = vmul.f32 %v624, %v1028
      %v1030 = vmul.f32 %v625, %v1028
      %v1031 = vadd.f32 %v1026, %v1029
      %v1032 = vadd.f32 %v1027, %v1030
      %v1033 = vstv %s220
      %v1034 = vmul.f32 %v627, %v1033
      %v1035 = vmul.f32 %v628, %v1033
      %v1036 = vadd.f32 %v1031, %v1034
      %v1037 = vadd.f32 %v1032, %v1035
      %v1038 = vstv %s238
      %v1039 = vadd.f32 %v1036, %v1038
      %v1040 = vadd.f32 %v1037, %v1038
      %v1041 = vmax.f32 %v1039, 0.0
      %v1042 = vmax.f32 %v1040, 0.0
      %v1043 = vstv %s324
      %v1044 = vmul.f32 %v1041, %v1043
      %v1045 = vmul.f32 %v1042, %v1043
      %v1046 = vadd.f32 %v938, %v1044
      %v1047 = vadd.f32 %v939, %v1045
      %v1048 = vstv %s325
      %v1049 = vmul.f32 %v1041, %v1048
      %v1050 = vmul.f32 %v1042, %v1048
      %v1051 = vadd.f32 %v943, %v1049
      %v1052 = vadd.f32 %v944, %v1050
      %v1053 = vstv %s326
      %v1054 = vmul.f32 %v1041, %v1053
      %v1055 = vmul.f32 %v1042, %v1053
      %v1056 = vadd.f32 %v948, %v1054
      %v1057 = vadd.f32 %v949, %v1055
      %v1058 = vstv %s327
      %v1059 = vmul.f32 %v1041, %v1058
      %v1060 = vmul.f32 %v1042, %v1058
      %v1061 = vadd.f32 %v953, %v1059
      %v1062 = vadd.f32 %v954, %v1060
      %v1063 = vstv %s328
      %v1064 = vmul.f32 %v1041, %v1063
      %v1065 = vmul.f32 %v1042, %v1063
      %v1066 = vadd.f32 %v958, %v1064
      %v1067 = vadd.f32 %v959, %v1065
      %v1068 = vstv %s329
      %v1069 = vmul.f32 %v1041, %v1068
      %v1070 = vmul.f32 %v1042, %v1068
      %v1071 = vadd.f32 %v963, %v1069
      %v1072 = vadd.f32 %v964, %v1070
      %v1073 = vstv %s330
      %v1074 = vmul.f32 %v1041, %v1073
      %v1075 = vmul.f32 %v1042, %v1073
      %v1076 = vadd.f32 %v968, %v1074
      %v1077 = vadd.f32 %v969, %v1075
      %v1078 = vstv %s331
      %v1079 = vmul.f32 %v1041, %v1078
      %v1080 = vmul.f32 %v1042, %v1078
      %v1081 = vadd.f32 %v973, %v1079
      %v1082 = vadd.f32 %v974, %v1080
      %v1083 = vstv %s332
      %v1084 = vmul.f32 %v1041, %v1083
      %v1085 = vmul.f32 %v1042, %v1083
      %v1086 = vadd.f32 %v978, %v1084
      %v1087 = vadd.f32 %v979, %v1085
      %v1088 = vstv %s333
      %v1089 = vmul.f32 %v1041, %v1088
      %v1090 = vmul.f32 %v1042, %v1088
      %v1091 = vadd.f32 %v983, %v1089
      %v1092 = vadd.f32 %v984, %v1090
      %v1093 = vstv %s334
      %v1094 = vmul.f32 %v1041, %v1093
      %v1095 = vmul.f32 %v1042, %v1093
      %v1096 = vadd.f32 %v988, %v1094
      %v1097 = vadd.f32 %v989, %v1095
      %v1098 = vstv %s335
      %v1099 = vmul.f32 %v1041, %v1098
      %v1100 = vmul.f32 %v1042, %v1098
      %v1101 = vadd.f32 %v993, %v1099
      %v1102 = vadd.f32 %v994, %v1100
      %v1103 = vstv %s336
      %v1104 = vmul.f32 %v1041, %v1103
      %v1105 = vmul.f32 %v1042, %v1103
      %v1106 = vadd.f32 %v998, %v1104
      %v1107 = vadd.f32 %v999, %v1105
      %v1108 = vstv %s337
      %v1109 = vmul.f32 %v1041, %v1108
      %v1110 = vmul.f32 %v1042, %v1108
      %v1111 = vadd.f32 %v1003, %v1109
      %v1112 = vadd.f32 %v1004, %v1110
      %v1113 = vstv %s338
      %v1114 = vmul.f32 %v1041, %v1113
      %v1115 = vmul.f32 %v1042, %v1113
      %v1116 = vadd.f32 %v1008, %v1114
      %v1117 = vadd.f32 %v1009, %v1115
      %v1118 = vstv %s339
      %v1119 = vmul.f32 %v1041, %v1118
      %v1120 = vmul.f32 %v1042, %v1118
      %v1121 = vadd.f32 %v1013, %v1119
      %v1122 = vadd.f32 %v1014, %v1120
      %v1123 = vstv %s340
      %v1124 = vmul.f32 %v1041, %v1123
      %v1125 = vmul.f32 %v1042, %v1123
      %v1126 = vadd.f32 %v1018, %v1124
      %v1127 = vadd.f32 %v1019, %v1125
      %v1128 = vstv %s341
      %v1129 = vmul.f32 %v1041, %v1128
      %v1130 = vmul.f32 %v1042, %v1128
      %v1131 = vadd.f32 %v1023, %v1129
      %v1132 = vadd.f32 %v1024, %v1130
      %v1133 = vstv %s185
      %v1134 = vmul.f32 %v621, %v1133
      %v1135 = vmul.f32 %v622, %v1133
      %v1136 = vstv %s203
      %v1137 = vmul.f32 %v624, %v1136
      %v1138 = vmul.f32 %v625, %v1136
      %v1139 = vadd.f32 %v1134, %v1137
      %v1140 = vadd.f32 %v1135, %v1138
      %v1141 = vstv %s221
      %v1142 = vmul.f32 %v627, %v1141
      %v1143 = vmul.f32 %v628, %v1141
      %v1144 = vadd.f32 %v1139, %v1142
      %v1145 = vadd.f32 %v1140, %v1143
      %v1146 = vstv %s239
      %v1147 = vadd.f32 %v1144, %v1146
      %v1148 = vadd.f32 %v1145, %v1146
      %v1149 = vmax.f32 %v1147, 0.0
      %v1150 = vmax.f32 %v1148, 0.0
      %v1151 = vstv %s342
      %v1152 = vmul.f32 %v1149, %v1151
      %v1153 = vmul.f32 %v1150, %v1151
      %v1154 = vadd.f32 %v1046, %v1152
      %v1155 = vadd.f32 %v1047, %v1153
      %v1156 = vstv %s343
      %v1157 = vmul.f32 %v1149, %v1156
      %v1158 = vmul.f32 %v1150, %v1156
      %v1159 = vadd.f32 %v1051, %v1157
      %v1160 = vadd.f32 %v1052, %v1158
      %v1161 = vstv %s344
      %v1162 = vmul.f32 %v1149, %v1161
      %v1163 = vmul.f32 %v1150, %v1161
      %v1164 = vadd.f32 %v1056, %v1162
      %v1165 = vadd.f32 %v1057, %v1163
      %v1166 = vstv %s345
      %v1167 = vmul.f32 %v1149, %v1166
      %v1168 = vmul.f32 %v1150, %v1166
      %v1169 = vadd.f32 %v1061, %v1167
      %v1170 = vadd.f32 %v1062, %v1168
      %v1171 = vstv %s346
      %v1172 = vmul.f32 %v1149, %v1171
      %v1173 = vmul.f32 %v1150, %v1171
      %v1174 = vadd.f32 %v1066, %v1172
      %v1175 = vadd.f32 %v1067, %v1173
      %v1176 = vstv %s347
      %v1177 = vmul.f32 %v1149, %v1176
      %v1178 = vmul.f32 %v1150, %v1176
      %v1179 = vadd.f32 %v1071, %v1177
      %v1180 = vadd.f32 %v1072, %v1178
      %v1181 = vstv %s348
      %v1182 = vmul.f32 %v1149, %v1181
      %v1183 = vmul.f32 %v1150, %v1181
      %v1184 = vadd.f32 %v1076, %v1182
      %v1185 = vadd.f32 %v1077, %v1183
      %v1186 = vstv %s349
      %v1187 = vmul.f32 %v1149, %v1186
      %v1188 = vmul.f32 %v1150, %v1186
      %v1189 = vadd.f32 %v1081, %v1187
      %v1190 = vadd.f32 %v1082, %v1188
      %v1191 = vstv %s350
      %v1192 = vmul.f32 %v1149, %v1191
      %v1193 = vmul.f32 %v1150, %v1191
      %v1194 = vadd.f32 %v1086, %v1192
      %v1195 = vadd.f32 %v1087, %v1193
      %v1196 = vstv %s351
      %v1197 = vmul.f32 %v1149, %v1196
      %v1198 = vmul.f32 %v1150, %v1196
      %v1199 = vadd.f32 %v1091, %v1197
      %v1200 = vadd.f32 %v1092, %v1198
      %v1201 = vstv %s352
      %v1202 = vmul.f32 %v1149, %v1201
      %v1203 = vmul.f32 %v1150, %v1201
      %v1204 = vadd.f32 %v1096, %v1202
      %v1205 = vadd.f32 %v1097, %v1203
      %v1206 = vstv %s353
      %v1207 = vmul.f32 %v1149, %v1206
      %v1208 = vmul.f32 %v1150, %v1206
      %v1209 = vadd.f32 %v1101, %v1207
      %v1210 = vadd.f32 %v1102, %v1208
      %v1211 = vstv %s354
      %v1212 = vmul.f32 %v1149, %v1211
      %v1213 = vmul.f32 %v1150, %v1211
      %v1214 = vadd.f32 %v1106, %v1212
      %v1215 = vadd.f32 %v1107, %v1213
      %v1216 = vstv %s355
      %v1217 = vmul.f32 %v1149, %v1216
      %v1218 = vmul.f32 %v1150, %v1216
      %v1219 = vadd.f32 %v1111, %v1217
      %v1220 = vadd.f32 %v1112, %v1218
      %v1221 = vstv %s356
      %v1222 = vmul.f32 %v1149, %v1221
      %v1223 = vmul.f32 %v1150, %v1221
      %v1224 = vadd.f32 %v1116, %v1222
      %v1225 = vadd.f32 %v1117, %v1223
      %v1226 = vstv %s357
      %v1227 = vmul.f32 %v1149, %v1226
      %v1228 = vmul.f32 %v1150, %v1226
      %v1229 = vadd.f32 %v1121, %v1227
      %v1230 = vadd.f32 %v1122, %v1228
      %v1231 = vstv %s358
      %v1232 = vmul.f32 %v1149, %v1231
      %v1233 = vmul.f32 %v1150, %v1231
      %v1234 = vadd.f32 %v1126, %v1232
      %v1235 = vadd.f32 %v1127, %v1233
      %v1236 = vstv %s359
      %v1237 = vmul.f32 %v1149, %v1236
      %v1238 = vmul.f32 %v1150, %v1236
      %v1239 = vadd.f32 %v1131, %v1237
      %v1240 = vadd.f32 %v1132, %v1238
      %v1241 = vstv %s186
      %v1242 = vmul.f32 %v621, %v1241
      %v1243 = vmul.f32 %v622, %v1241
      %v1244 = vstv %s204
      %v1245 = vmul.f32 %v624, %v1244
      %v1246 = vmul.f32 %v625, %v1244
      %v1247 = vadd.f32 %v1242, %v1245
      %v1248 = vadd.f32 %v1243, %v1246
      %v1249 = vstv %s222
      %v1250 = vmul.f32 %v627, %v1249
      %v1251 = vmul.f32 %v628, %v1249
      %v1252 = vadd.f32 %v1247, %v1250
      %v1253 = vadd.f32 %v1248, %v1251
      %v1254 = vstv %s240
      %v1255 = vadd.f32 %v1252, %v1254
      %v1256 = vadd.f32 %v1253, %v1254
      %v1257 = vmax.f32 %v1255, 0.0
      %v1258 = vmax.f32 %v1256, 0.0
      %v1259 = vstv %s360
      %v1260 = vmul.f32 %v1257, %v1259
      %v1261 = vmul.f32 %v1258, %v1259
      %v1262 = vadd.f32 %v1154, %v1260
      %v1263 = vadd.f32 %v1155, %v1261
      %v1264 = vstv %s361
      %v1265 = vmul.f32 %v1257, %v1264
      %v1266 = vmul.f32 %v1258, %v1264
      %v1267 = vadd.f32 %v1159, %v1265
      %v1268 = vadd.f32 %v1160, %v1266
      %v1269 = vstv %s362
      %v1270 = vmul.f32 %v1257, %v1269
      %v1271 = vmul.f32 %v1258, %v1269
      %v1272 = vadd.f32 %v1164, %v1270
      %v1273 = vadd.f32 %v1165, %v1271
      %v1274 = vstv %s363
      %v1275 = vmul.f32 %v1257, %v1274
      %v1276 = vmul.f32 %v1258, %v1274
      %v1277 = vadd.f32 %v1169, %v1275
      %v1278 = vadd.f32 %v1170, %v1276
      %v1279 = vstv %s364
      %v1280 = vmul.f32 %v1257, %v1279
      %v1281 = vmul.f32 %v1258, %v1279
      %v1282 = vadd.f32 %v1174, %v1280
      %v1283 = vadd.f32 %v1175, %v1281
      %v1284 = vstv %s365
      %v1285 = vmul.f32 %v1257, %v1284
      %v1286 = vmul.f32 %v1258, %v1284
      %v1287 = vadd.f32 %v1179, %v1285
      %v1288 = vadd.f32 %v1180, %v1286
      %v1289 = vstv %s366
      %v1290 = vmul.f32 %v1257, %v1289
      %v1291 = vmul.f32 %v1258, %v1289
      %v1292 = vadd.f32 %v1184, %v1290
      %v1293 = vadd.f32 %v1185, %v1291
      %v1294 = vstv %s367
      %v1295 = vmul.f32 %v1257, %v1294
      %v1296 = vmul.f32 %v1258, %v1294
      %v1297 = vadd.f32 %v1189, %v1295
      %v1298 = vadd.f32 %v1190, %v1296
      %v1299 = vstv %s368
      %v1300 = vmul.f32 %v1257, %v1299
      %v1301 = vmul.f32 %v1258, %v1299
      %v1302 = vadd.f32 %v1194, %v1300
      %v1303 = vadd.f32 %v1195, %v1301
      %v1304 = vstv %s369
      %v1305 = vmul.f32 %v1257, %v1304
      %v1306 = vmul.f32 %v1258, %v1304
      %v1307 = vadd.f32 %v1199, %v1305
      %v1308 = vadd.f32 %v1200, %v1306
      %v1309 = vstv %s370
      %v1310 = vmul.f32 %v1257, %v1309
      %v1311 = vmul.f32 %v1258, %v1309
      %v1312 = vadd.f32 %v1204, %v1310
      %v1313 = vadd.f32 %v1205, %v1311
      %v1314 = vstv %s371
      %v1315 = vmul.f32 %v1257, %v1314
      %v1316 = vmul.f32 %v1258, %v1314
      %v1317 = vadd.f32 %v1209, %v1315
      %v1318 = vadd.f32 %v1210, %v1316
      %v1319 = vstv %s372
      %v1320 = vmul.f32 %v1257, %v1319
      %v1321 = vmul.f32 %v1258, %v1319
      %v1322 = vadd.f32 %v1214, %v1320
      %v1323 = vadd.f32 %v1215, %v1321
      %v1324 = vstv %s373
      %v1325 = vmul.f32 %v1257, %v1324
      %v1326 = vmul.f32 %v1258, %v1324
      %v1327 = vadd.f32 %v1219, %v1325
      %v1328 = vadd.f32 %v1220, %v1326
      %v1329 = vstv %s374
      %v1330 = vmul.f32 %v1257, %v1329
      %v1331 = vmul.f32 %v1258, %v1329
      %v1332 = vadd.f32 %v1224, %v1330
      %v1333 = vadd.f32 %v1225, %v1331
      %v1334 = vstv %s375
      %v1335 = vmul.f32 %v1257, %v1334
      %v1336 = vmul.f32 %v1258, %v1334
      %v1337 = vadd.f32 %v1229, %v1335
      %v1338 = vadd.f32 %v1230, %v1336
      %v1339 = vstv %s376
      %v1340 = vmul.f32 %v1257, %v1339
      %v1341 = vmul.f32 %v1258, %v1339
      %v1342 = vadd.f32 %v1234, %v1340
      %v1343 = vadd.f32 %v1235, %v1341
      %v1344 = vstv %s377
      %v1345 = vmul.f32 %v1257, %v1344
      %v1346 = vmul.f32 %v1258, %v1344
      %v1347 = vadd.f32 %v1239, %v1345
      %v1348 = vadd.f32 %v1240, %v1346
      %v1349 = vstv %s187
      %v1350 = vmul.f32 %v621, %v1349
      %v1351 = vmul.f32 %v622, %v1349
      %v1352 = vstv %s205
      %v1353 = vmul.f32 %v624, %v1352
      %v1354 = vmul.f32 %v625, %v1352
      %v1355 = vadd.f32 %v1350, %v1353
      %v1356 = vadd.f32 %v1351, %v1354
      %v1357 = vstv %s223
      %v1358 = vmul.f32 %v627, %v1357
      %v1359 = vmul.f32 %v628, %v1357
      %v1360 = vadd.f32 %v1355, %v1358
      %v1361 = vadd.f32 %v1356, %v1359
      %v1362 = vstv %s241
      %v1363 = vadd.f32 %v1360, %v1362
      %v1364 = vadd.f32 %v1361, %v1362
      %v1365 = vmax.f32 %v1363, 0.0
      %v1366 = vmax.f32 %v1364, 0.0
      %v1367 = vstv %s378
      %v1368 = vmul.f32 %v1365, %v1367
      %v1369 = vmul.f32 %v1366, %v1367
      %v1370 = vadd.f32 %v1262, %v1368
      %v1371 = vadd.f32 %v1263, %v1369
      %v1372 = vstv %s379
      %v1373 = vmul.f32 %v1365, %v1372
      %v1374 = vmul.f32 %v1366, %v1372
      %v1375 = vadd.f32 %v1267, %v1373
      %v1376 = vadd.f32 %v1268, %v1374
      %v1377 = vstv %s380
      %v1378 = vmul.f32 %v1365, %v1377
      %v1379 = vmul.f32 %v1366, %v1377
      %v1380 = vadd.f32 %v1272, %v1378
      %v1381 = vadd.f32 %v1273, %v1379
      %v1382 = vstv %s381
      %v1383 = vmul.f32 %v1365, %v1382
      %v1384 = vmul.f32 %v1366, %v1382
      %v1385 = vadd.f32 %v1277, %v1383
      %v1386 = vadd.f32 %v1278, %v1384
      %v1387 = vstv %s382
      %v1388 = vmul.f32 %v1365, %v1387
      %v1389 = vmul.f32 %v1366, %v1387
      %v1390 = vadd.f32 %v1282, %v1388
      %v1391 = vadd.f32 %v1283, %v1389
      %v1392 = vstv %s383
      %v1393 = vmul.f32 %v1365, %v1392
      %v1394 = vmul.f32 %v1366, %v1392
      %v1395 = vadd.f32 %v1287, %v1393
      %v1396 = vadd.f32 %v1288, %v1394
      %v1397 = vstv %s384
      %v1398 = vmul.f32 %v1365, %v1397
      %v1399 = vmul.f32 %v1366, %v1397
      %v1400 = vadd.f32 %v1292, %v1398
      %v1401 = vadd.f32 %v1293, %v1399
      %v1402 = vstv %s385
      %v1403 = vmul.f32 %v1365, %v1402
      %v1404 = vmul.f32 %v1366, %v1402
      %v1405 = vadd.f32 %v1297, %v1403
      %v1406 = vadd.f32 %v1298, %v1404
      %v1407 = vstv %s386
      %v1408 = vmul.f32 %v1365, %v1407
      %v1409 = vmul.f32 %v1366, %v1407
      %v1410 = vadd.f32 %v1302, %v1408
      %v1411 = vadd.f32 %v1303, %v1409
      %v1412 = vstv %s387
      %v1413 = vmul.f32 %v1365, %v1412
      %v1414 = vmul.f32 %v1366, %v1412
      %v1415 = vadd.f32 %v1307, %v1413
      %v1416 = vadd.f32 %v1308, %v1414
      %v1417 = vstv %s388
      %v1418 = vmul.f32 %v1365, %v1417
      %v1419 = vmul.f32 %v1366, %v1417
      %v1420 = vadd.f32 %v1312, %v1418
      %v1421 = vadd.f32 %v1313, %v1419
      %v1422 = vstv %s389
      %v1423 = vmul.f32 %v1365, %v1422
      %v1424 = vmul.f32 %v1366, %v1422
      %v1425 = vadd.f32 %v1317, %v1423
      %v1426 = vadd.f32 %v1318, %v1424
      %v1427 = vstv %s390
      %v1428 = vmul.f32 %v1365, %v1427
      %v1429 = vmul.f32 %v1366, %v1427
      %v1430 = vadd.f32 %v1322, %v1428
      %v1431 = vadd.f32 %v1323, %v1429
      %v1432 = vstv %s391
      %v1433 = vmul.f32 %v1365, %v1432
      %v1434 = vmul.f32 %v1366, %v1432
      %v1435 = vadd.f32 %v1327, %v1433
      %v1436 = vadd.f32 %v1328, %v1434
      %v1437 = vstv %s392
      %v1438 = vmul.f32 %v1365, %v1437
      %v1439 = vmul.f32 %v1366, %v1437
      %v1440 = vadd.f32 %v1332, %v1438
      %v1441 = vadd.f32 %v1333, %v1439
      %v1442 = vstv %s393
      %v1443 = vmul.f32 %v1365, %v1442
      %v1444 = vmul.f32 %v1366, %v1442
      %v1445 = vadd.f32 %v1337, %v1443
      %v1446 = vadd.f32 %v1338, %v1444
      %v1447 = vstv %s394
      %v1448 = vmul.f32 %v1365, %v1447
      %v1449 = vmul.f32 %v1366, %v1447
      %v1450 = vadd.f32 %v1342, %v1448
      %v1451 = vadd.f32 %v1343, %v1449
      %v1452 = vstv %s395
      %v1453 = vmul.f32 %v1365, %v1452
      %v1454 = vmul.f32 %v1366, %v1452
      %v1455 = vadd.f32 %v1347, %v1453
      %v1456 = vadd.f32 %v1348, %v1454
      %v1457 = vstv %s188
      %v1458 = vmul.f32 %v621, %v1457
      %v1459 = vmul.f32 %v622, %v1457
      %v1460 = vstv %s206
      %v1461 = vmul.f32 %v624, %v1460
      %v1462 = vmul.f32 %v625, %v1460
      %v1463 = vadd.f32 %v1458, %v1461
      %v1464 = vadd.f32 %v1459, %v1462
      %v1465 = vstv %s224
      %v1466 = vmul.f32 %v627, %v1465
      %v1467 = vmul.f32 %v628, %v1465
      %v1468 = vadd.f32 %v1463, %v1466
      %v1469 = vadd.f32 %v1464, %v1467
      %v1470 = vstv %s242
      %v1471 = vadd.f32 %v1468, %v1470
      %v1472 = vadd.f32 %v1469, %v1470
      %v1473 = vmax.f32 %v1471, 0.0
      %v1474 = vmax.f32 %v1472, 0.0
      %v1475 = vstv %s396
      %v1476 = vmul.f32 %v1473, %v1475
      %v1477 = vmul.f32 %v1474, %v1475
      %v1478 = vadd.f32 %v1370, %v1476
      %v1479 = vadd.f32 %v1371, %v1477
      %v1480 = vstv %s397
      %v1481 = vmul.f32 %v1473, %v1480
      %v1482 = vmul.f32 %v1474, %v1480
      %v1483 = vadd.f32 %v1375, %v1481
      %v1484 = vadd.f32 %v1376, %v1482
      %v1485 = vstv %s398
      %v1486 = vmul.f32 %v1473, %v1485
      %v1487 = vmul.f32 %v1474, %v1485
      %v1488 = vadd.f32 %v1380, %v1486
      %v1489 = vadd.f32 %v1381, %v1487
      %v1490 = vstv %s399
      %v1491 = vmul.f32 %v1473, %v1490
      %v1492 = vmul.f32 %v1474, %v1490
      %v1493 = vadd.f32 %v1385, %v1491
      %v1494 = vadd.f32 %v1386, %v1492
      %v1495 = vstv %s400
      %v1496 = vmul.f32 %v1473, %v1495
      %v1497 = vmul.f32 %v1474, %v1495
      %v1498 = vadd.f32 %v1390, %v1496
      %v1499 = vadd.f32 %v1391, %v1497
      %v1500 = vstv %s401
      %v1501 = vmul.f32 %v1473, %v1500
      %v1502 = vmul.f32 %v1474, %v1500
      %v1503 = vadd.f32 %v1395, %v1501
      %v1504 = vadd.f32 %v1396, %v1502
      %v1505 = vstv %s402
      %v1506 = vmul.f32 %v1473, %v1505
      %v1507 = vmul.f32 %v1474, %v1505
      %v1508 = vadd.f32 %v1400, %v1506
      %v1509 = vadd.f32 %v1401, %v1507
      %v1510 = vstv %s403
      %v1511 = vmul.f32 %v1473, %v1510
      %v1512 = vmul.f32 %v1474, %v1510
      %v1513 = vadd.f32 %v1405, %v1511
      %v1514 = vadd.f32 %v1406, %v1512
      %v1515 = vstv %s404
      %v1516 = vmul.f32 %v1473, %v1515
      %v1517 = vmul.f32 %v1474, %v1515
      %v1518 = vadd.f32 %v1410, %v1516
      %v1519 = vadd.f32 %v1411, %v1517
      %v1520 = vstv %s405
      %v1521 = vmul.f32 %v1473, %v1520
      %v1522 = vmul.f32 %v1474, %v1520
      %v1523 = vadd.f32 %v1415, %v1521
      %v1524 = vadd.f32 %v1416, %v1522
      %v1525 = vstv %s406
      %v1526 = vmul.f32 %v1473, %v1525
      %v1527 = vmul.f32 %v1474, %v1525
      %v1528 = vadd.f32 %v1420, %v1526
      %v1529 = vadd.f32 %v1421, %v1527
      %v1530 = vstv %s407
      %v1531 = vmul.f32 %v1473, %v1530
      %v1532 = vmul.f32 %v1474, %v1530
      %v1533 = vadd.f32 %v1425, %v1531
      %v1534 = vadd.f32 %v1426, %v1532
      %v1535 = vstv %s408
      %v1536 = vmul.f32 %v1473, %v1535
      %v1537 = vmul.f32 %v1474, %v1535
      %v1538 = vadd.f32 %v1430, %v1536
      %v1539 = vadd.f32 %v1431, %v1537
      %v1540 = vstv %s409
      %v1541 = vmul.f32 %v1473, %v1540
      %v1542 = vmul.f32 %v1474, %v1540
      %v1543 = vadd.f32 %v1435, %v1541
      %v1544 = vadd.f32 %v1436, %v1542
      %v1545 = vstv %s410
      %v1546 = vmul.f32 %v1473, %v1545
      %v1547 = vmul.f32 %v1474, %v1545
      %v1548 = vadd.f32 %v1440, %v1546
      %v1549 = vadd.f32 %v1441, %v1547
      %v1550 = vstv %s411
      %v1551 = vmul.f32 %v1473, %v1550
      %v1552 = vmul.f32 %v1474, %v1550
      %v1553 = vadd.f32 %v1445, %v1551
      %v1554 = vadd.f32 %v1446, %v1552
      %v1555 = vstv %s412
      %v1556 = vmul.f32 %v1473, %v1555
      %v1557 = vmul.f32 %v1474, %v1555
      %v1558 = vadd.f32 %v1450, %v1556
      %v1559 = vadd.f32 %v1451, %v1557
      %v1560 = vstv %s413
      %v1561 = vmul.f32 %v1473, %v1560
      %v1562 = vmul.f32 %v1474, %v1560
      %v1563 = vadd.f32 %v1455, %v1561
      %v1564 = vadd.f32 %v1456, %v1562
      %v1565 = vstv %s189
      %v1566 = vmul.f32 %v621, %v1565
      %v1567 = vmul.f32 %v622, %v1565
      %v1568 = vstv %s207
      %v1569 = vmul.f32 %v624, %v1568
      %v1570 = vmul.f32 %v625, %v1568
      %v1571 = vadd.f32 %v1566, %v1569
      %v1572 = vadd.f32 %v1567, %v1570
      %v1573 = vstv %s225
      %v1574 = vmul.f32 %v627, %v1573
      %v1575 = vmul.f32 %v628, %v1573
      %v1576 = vadd.f32 %v1571, %v1574
      %v1577 = vadd.f32 %v1572, %v1575
      %v1578 = vstv %s243
      %v1579 = vadd.f32 %v1576, %v1578
      %v1580 = vadd.f32 %v1577, %v1578
      %v1581 = vmax.f32 %v1579, 0.0
      %v1582 = vmax.f32 %v1580, 0.0
      %v1583 = vstv %s414
      %v1584 = vmul.f32 %v1581, %v1583
      %v1585 = vmul.f32 %v1582, %v1583
      %v1586 = vadd.f32 %v1478, %v1584
      %v1587 = vadd.f32 %v1479, %v1585
      %v1588 = vstv %s415
      %v1589 = vmul.f32 %v1581, %v1588
      %v1590 = vmul.f32 %v1582, %v1588
      %v1591 = vadd.f32 %v1483, %v1589
      %v1592 = vadd.f32 %v1484, %v1590
      %v1593 = vstv %s416
      %v1594 = vmul.f32 %v1581, %v1593
      %v1595 = vmul.f32 %v1582, %v1593
      %v1596 = vadd.f32 %v1488, %v1594
      %v1597 = vadd.f32 %v1489, %v1595
      %v1598 = vstv %s417
      %v1599 = vmul.f32 %v1581, %v1598
      %v1600 = vmul.f32 %v1582, %v1598
      %v1601 = vadd.f32 %v1493, %v1599
      %v1602 = vadd.f32 %v1494, %v1600
      %v1603 = vstv %s418
      %v1604 = vmul.f32 %v1581, %v1603
      %v1605 = vmul.f32 %v1582, %v1603
      %v1606 = vadd.f32 %v1498, %v1604
      %v1607 = vadd.f32 %v1499, %v1605
      %v1608 = vstv %s419
      %v1609 = vmul.f32 %v1581, %v1608
      %v1610 = vmul.f32 %v1582, %v1608
      %v1611 = vadd.f32 %v1503, %v1609
      %v1612 = vadd.f32 %v1504, %v1610
      %v1613 = vstv %s420
      %v1614 = vmul.f32 %v1581, %v1613
      %v1615 = vmul.f32 %v1582, %v1613
      %v1616 = vadd.f32 %v1508, %v1614
      %v1617 = vadd.f32 %v1509, %v1615
      %v1618 = vstv %s421
      %v1619 = vmul.f32 %v1581, %v1618
      %v1620 = vmul.f32 %v1582, %v1618
      %v1621 = vadd.f32 %v1513, %v1619
      %v1622 = vadd.f32 %v1514, %v1620
      %v1623 = vstv %s422
      %v1624 = vmul.f32 %v1581, %v1623
      %v1625 = vmul.f32 %v1582, %v1623
      %v1626 = vadd.f32 %v1518, %v1624
      %v1627 = vadd.f32 %v1519, %v1625
      %v1628 = vstv %s423
      %v1629 = vmul.f32 %v1581, %v1628
      %v1630 = vmul.f32 %v1582, %v1628
      %v1631 = vadd.f32 %v1523, %v1629
      %v1632 = vadd.f32 %v1524, %v1630
      %v1633 = vstv %s424
      %v1634 = vmul.f32 %v1581, %v1633
      %v1635 = vmul.f32 %v1582, %v1633
      %v1636 = vadd.f32 %v1528, %v1634
      %v1637 = vadd.f32 %v1529, %v1635
      %v1638 = vstv %s425
      %v1639 = vmul.f32 %v1581, %v1638
      %v1640 = vmul.f32 %v1582, %v1638
      %v1641 = vadd.f32 %v1533, %v1639
      %v1642 = vadd.f32 %v1534, %v1640
      %v1643 = vstv %s426
      %v1644 = vmul.f32 %v1581, %v1643
      %v1645 = vmul.f32 %v1582, %v1643
      %v1646 = vadd.f32 %v1538, %v1644
      %v1647 = vadd.f32 %v1539, %v1645
      %v1648 = vstv %s427
      %v1649 = vmul.f32 %v1581, %v1648
      %v1650 = vmul.f32 %v1582, %v1648
      %v1651 = vadd.f32 %v1543, %v1649
      %v1652 = vadd.f32 %v1544, %v1650
      %v1653 = vstv %s428
      %v1654 = vmul.f32 %v1581, %v1653
      %v1655 = vmul.f32 %v1582, %v1653
      %v1656 = vadd.f32 %v1548, %v1654
      %v1657 = vadd.f32 %v1549, %v1655
      %v1658 = vstv %s429
      %v1659 = vmul.f32 %v1581, %v1658
      %v1660 = vmul.f32 %v1582, %v1658
      %v1661 = vadd.f32 %v1553, %v1659
      %v1662 = vadd.f32 %v1554, %v1660
      %v1663 = vstv %s430
      %v1664 = vmul.f32 %v1581, %v1663
      %v1665 = vmul.f32 %v1582, %v1663
      %v1666 = vadd.f32 %v1558, %v1664
      %v1667 = vadd.f32 %v1559, %v1665
      %v1668 = vstv %s431
      %v1669 = vmul.f32 %v1581, %v1668
      %v1670 = vmul.f32 %v1582, %v1668
      %v1671 = vadd.f32 %v1563, %v1669
      %v1672 = vadd.f32 %v1564, %v1670
      %v1673 = vstv %s190
      %v1674 = vmul.f32 %v621, %v1673
      %v1675 = vmul.f32 %v622, %v1673
      %v1676 = vstv %s208
      %v1677 = vmul.f32 %v624, %v1676
      %v1678 = vmul.f32 %v625, %v1676
      %v1679 = vadd.f32 %v1674, %v1677
      %v1680 = vadd.f32 %v1675, %v1678
      %v1681 = vstv %s226
      %v1682 = vmul.f32 %v627, %v1681
      %v1683 = vmul.f32 %v628, %v1681
      %v1684 = vadd.f32 %v1679, %v1682
      %v1685 = vadd.f32 %v1680, %v1683
      %v1686 = vstv %s244
      %v1687 = vadd.f32 %v1684, %v1686
      %v1688 = vadd.f32 %v1685, %v1686
      %v1689 = vmax.f32 %v1687, 0.0
      %v1690 = vmax.f32 %v1688, 0.0
      %v1691 = vstv %s432
      %v1692 = vmul.f32 %v1689, %v1691
      %v1693 = vmul.f32 %v1690, %v1691
      %v1694 = vadd.f32 %v1586, %v1692
      %v1695 = vadd.f32 %v1587, %v1693
      %v1696 = vstv %s433
      %v1697 = vmul.f32 %v1689, %v1696
      %v1698 = vmul.f32 %v1690, %v1696
      %v1699 = vadd.f32 %v1591, %v1697
      %v1700 = vadd.f32 %v1592, %v1698
      %v1701 = vstv %s434
      %v1702 = vmul.f32 %v1689, %v1701
      %v1703 = vmul.f32 %v1690, %v1701
      %v1704 = vadd.f32 %v1596, %v1702
      %v1705 = vadd.f32 %v1597, %v1703
      %v1706 = vstv %s435
      %v1707 = vmul.f32 %v1689, %v1706
      %v1708 = vmul.f32 %v1690, %v1706
      %v1709 = vadd.f32 %v1601, %v1707
      %v1710 = vadd.f32 %v1602, %v1708
      %v1711 = vstv %s436
      %v1712 = vmul.f32 %v1689, %v1711
      %v1713 = vmul.f32 %v1690, %v1711
      %v1714 = vadd.f32 %v1606, %v1712
      %v1715 = vadd.f32 %v1607, %v1713
      %v1716 = vstv %s437
      %v1717 = vmul.f32 %v1689, %v1716
      %v1718 = vmul.f32 %v1690, %v1716
      %v1719 = vadd.f32 %v1611, %v1717
      %v1720 = vadd.f32 %v1612, %v1718
      %v1721 = vstv %s438
      %v1722 = vmul.f32 %v1689, %v1721
      %v1723 = vmul.f32 %v1690, %v1721
      %v1724 = vadd.f32 %v1616, %v1722
      %v1725 = vadd.f32 %v1617, %v1723
      %v1726 = vstv %s439
      %v1727 = vmul.f32 %v1689, %v1726
      %v1728 = vmul.f32 %v1690, %v1726
      %v1729 = vadd.f32 %v1621, %v1727
      %v1730 = vadd.f32 %v1622, %v1728
      %v1731 = vstv %s440
      %v1732 = vmul.f32 %v1689, %v1731
      %v1733 = vmul.f32 %v1690, %v1731
      %v1734 = vadd.f32 %v1626, %v1732
      %v1735 = vadd.f32 %v1627, %v1733
      %v1736 = vstv %s441
      %v1737 = vmul.f32 %v1689, %v1736
      %v1738 = vmul.f32 %v1690, %v1736
      %v1739 = vadd.f32 %v1631, %v1737
      %v1740 = vadd.f32 %v1632, %v1738
      %v1741 = vstv %s442
      %v1742 = vmul.f32 %v1689, %v1741
      %v1743 = vmul.f32 %v1690, %v1741
      %v1744 = vadd.f32 %v1636, %v1742
      %v1745 = vadd.f32 %v1637, %v1743
      %v1746 = vstv %s443
      %v1747 = vmul.f32 %v1689, %v1746
      %v1748 = vmul.f32 %v1690, %v1746
      %v1749 = vadd.f32 %v1641, %v1747
      %v1750 = vadd.f32 %v1642, %v1748
      %v1751 = vstv %s444
      %v1752 = vmul.f32 %v1689, %v1751
      %v1753 = vmul.f32 %v1690, %v1751
      %v1754 = vadd.f32 %v1646, %v1752
      %v1755 = vadd.f32 %v1647, %v1753
      %v1756 = vstv %s445
      %v1757 = vmul.f32 %v1689, %v1756
      %v1758 = vmul.f32 %v1690, %v1756
      %v1759 = vadd.f32 %v1651, %v1757
      %v1760 = vadd.f32 %v1652, %v1758
      %v1761 = vstv %s446
      %v1762 = vmul.f32 %v1689, %v1761
      %v1763 = vmul.f32 %v1690, %v1761
      %v1764 = vadd.f32 %v1656, %v1762
      %v1765 = vadd.f32 %v1657, %v1763
      %v1766 = vstv %s447
      %v1767 = vmul.f32 %v1689, %v1766
      %v1768 = vmul.f32 %v1690, %v1766
      %v1769 = vadd.f32 %v1661, %v1767
      %v1770 = vadd.f32 %v1662, %v1768
      %v1771 = vstv %s448
      %v1772 = vmul.f32 %v1689, %v1771
      %v1773 = vmul.f32 %v1690, %v1771
      %v1774 = vadd.f32 %v1666, %v1772
      %v1775 = vadd.f32 %v1667, %v1773
      %v1776 = vstv %s449
      %v1777 = vmul.f32 %v1689, %v1776
      %v1778 = vmul.f32 %v1690, %v1776
      %v1779 = vadd.f32 %v1671, %v1777
      %v1780 = vadd.f32 %v1672, %v1778
      %v1781 = vstv %s191
      %v1782 = vmul.f32 %v621, %v1781
      %v1783 = vmul.f32 %v622, %v1781
      %v1784 = vstv %s209
      %v1785 = vmul.f32 %v624, %v1784
      %v1786 = vmul.f32 %v625, %v1784
      %v1787 = vadd.f32 %v1782, %v1785
      %v1788 = vadd.f32 %v1783, %v1786
      %v1789 = vstv %s227
      %v1790 = vmul.f32 %v627, %v1789
      %v1791 = vmul.f32 %v628, %v1789
      %v1792 = vadd.f32 %v1787, %v1790
      %v1793 = vadd.f32 %v1788, %v1791
      %v1794 = vstv %s245
      %v1795 = vadd.f32 %v1792, %v1794
      %v1796 = vadd.f32 %v1793, %v1794
      %v1797 = vmax.f32 %v1795, 0.0
      %v1798 = vmax.f32 %v1796, 0.0
      %v1799 = vstv %s450
      %v1800 = vmul.f32 %v1797, %v1799
      %v1801 = vmul.f32 %v1798, %v1799
      %v1802 = vadd.f32 %v1694, %v1800
      %v1803 = vadd.f32 %v1695, %v1801
      %v1804 = vstv %s451
      %v1805 = vmul.f32 %v1797, %v1804
      %v1806 = vmul.f32 %v1798, %v1804
      %v1807 = vadd.f32 %v1699, %v1805
      %v1808 = vadd.f32 %v1700, %v1806
      %v1809 = vstv %s452
      %v1810 = vmul.f32 %v1797, %v1809
      %v1811 = vmul.f32 %v1798, %v1809
      %v1812 = vadd.f32 %v1704, %v1810
      %v1813 = vadd.f32 %v1705, %v1811
      %v1814 = vstv %s453
      %v1815 = vmul.f32 %v1797, %v1814
      %v1816 = vmul.f32 %v1798, %v1814
      %v1817 = vadd.f32 %v1709, %v1815
      %v1818 = vadd.f32 %v1710, %v1816
      %v1819 = vstv %s454
      %v1820 = vmul.f32 %v1797, %v1819
      %v1821 = vmul.f32 %v1798, %v1819
      %v1822 = vadd.f32 %v1714, %v1820
      %v1823 = vadd.f32 %v1715, %v1821
      %v1824 = vstv %s455
      %v1825 = vmul.f32 %v1797, %v1824
      %v1826 = vmul.f32 %v1798, %v1824
      %v1827 = vadd.f32 %v1719, %v1825
      %v1828 = vadd.f32 %v1720, %v1826
      %v1829 = vstv %s456
      %v1830 = vmul.f32 %v1797, %v1829
      %v1831 = vmul.f32 %v1798, %v1829
      %v1832 = vadd.f32 %v1724, %v1830
      %v1833 = vadd.f32 %v1725, %v1831
      %v1834 = vstv %s457
      %v1835 = vmul.f32 %v1797, %v1834
      %v1836 = vmul.f32 %v1798, %v1834
      %v1837 = vadd.f32 %v1729, %v1835
      %v1838 = vadd.f32 %v1730, %v1836
      %v1839 = vstv %s458
      %v1840 = vmul.f32 %v1797, %v1839
      %v1841 = vmul.f32 %v1798, %v1839
      %v1842 = vadd.f32 %v1734, %v1840
      %v1843 = vadd.f32 %v1735, %v1841
      %v1844 = vstv %s459
      %v1845 = vmul.f32 %v1797, %v1844
      %v1846 = vmul.f32 %v1798, %v1844
      %v1847 = vadd.f32 %v1739, %v1845
      %v1848 = vadd.f32 %v1740, %v1846
      %v1849 = vstv %s460
      %v1850 = vmul.f32 %v1797, %v1849
      %v1851 = vmul.f32 %v1798, %v1849
      %v1852 = vadd.f32 %v1744, %v1850
      %v1853 = vadd.f32 %v1745, %v1851
      %v1854 = vstv %s461
      %v1855 = vmul.f32 %v1797, %v1854
      %v1856 = vmul.f32 %v1798, %v1854
      %v1857 = vadd.f32 %v1749, %v1855
      %v1858 = vadd.f32 %v1750, %v1856
      %v1859 = vstv %s462
      %v1860 = vmul.f32 %v1797, %v1859
      %v1861 = vmul.f32 %v1798, %v1859
      %v1862 = vadd.f32 %v1754, %v1860
      %v1863 = vadd.f32 %v1755, %v1861
      %v1864 = vstv %s463
      %v1865 = vmul.f32 %v1797, %v1864
      %v1866 = vmul.f32 %v1798, %v1864
      %v1867 = vadd.f32 %v1759, %v1865
      %v1868 = vadd.f32 %v1760, %v1866
      %v1869 = vstv %s464
      %v1870 = vmul.f32 %v1797, %v1869
      %v1871 = vmul.f32 %v1798, %v1869
      %v1872 = vadd.f32 %v1764, %v1870
      %v1873 = vadd.f32 %v1765, %v1871
      %v1874 = vstv %s465
      %v1875 = vmul.f32 %v1797, %v1874
      %v1876 = vmul.f32 %v1798, %v1874
      %v1877 = vadd.f32 %v1769, %v1875
      %v1878 = vadd.f32 %v1770, %v1876
      %v1879 = vstv %s466
      %v1880 = vmul.f32 %v1797, %v1879
      %v1881 = vmul.f32 %v1798, %v1879
      %v1882 = vadd.f32 %v1774, %v1880
      %v1883 = vadd.f32 %v1775, %v1881
      %v1884 = vstv %s467
      %v1885 = vmul.f32 %v1797, %v1884
      %v1886 = vmul.f32 %v1798, %v1884
      %v1887 = vadd.f32 %v1779, %v1885
      %v1888 = vadd.f32 %v1780, %v1886
      %v1889 = vstv %s192
      %v1890 = vmul.f32 %v621, %v1889
      %v1891 = vmul.f32 %v622, %v1889
      %v1892 = vstv %s210
      %v1893 = vmul.f32 %v624, %v1892
      %v1894 = vmul.f32 %v625, %v1892
      %v1895 = vadd.f32 %v1890, %v1893
      %v1896 = vadd.f32 %v1891, %v1894
      %v1897 = vstv %s228
      %v1898 = vmul.f32 %v627, %v1897
      %v1899 = vmul.f32 %v628, %v1897
      %v1900 = vadd.f32 %v1895, %v1898
      %v1901 = vadd.f32 %v1896, %v1899
      %v1902 = vstv %s246
      %v1903 = vadd.f32 %v1900, %v1902
      %v1904 = vadd.f32 %v1901, %v1902
      %v1905 = vmax.f32 %v1903, 0.0
      %v1906 = vmax.f32 %v1904, 0.0
      %v1907 = vstv %s468
      %v1908 = vmul.f32 %v1905, %v1907
      %v1909 = vmul.f32 %v1906, %v1907
      %v1910 = vadd.f32 %v1802, %v1908
      %v1911 = vadd.f32 %v1803, %v1909
      %v1912 = vstv %s469
      %v1913 = vmul.f32 %v1905, %v1912
      %v1914 = vmul.f32 %v1906, %v1912
      %v1915 = vadd.f32 %v1807, %v1913
      %v1916 = vadd.f32 %v1808, %v1914
      %v1917 = vstv %s470
      %v1918 = vmul.f32 %v1905, %v1917
      %v1919 = vmul.f32 %v1906, %v1917
      %v1920 = vadd.f32 %v1812, %v1918
      %v1921 = vadd.f32 %v1813, %v1919
      %v1922 = vstv %s471
      %v1923 = vmul.f32 %v1905, %v1922
      %v1924 = vmul.f32 %v1906, %v1922
      %v1925 = vadd.f32 %v1817, %v1923
      %v1926 = vadd.f32 %v1818, %v1924
      %v1927 = vstv %s472
      %v1928 = vmul.f32 %v1905, %v1927
      %v1929 = vmul.f32 %v1906, %v1927
      %v1930 = vadd.f32 %v1822, %v1928
      %v1931 = vadd.f32 %v1823, %v1929
      %v1932 = vstv %s473
      %v1933 = vmul.f32 %v1905, %v1932
      %v1934 = vmul.f32 %v1906, %v1932
      %v1935 = vadd.f32 %v1827, %v1933
      %v1936 = vadd.f32 %v1828, %v1934
      %v1937 = vstv %s474
      %v1938 = vmul.f32 %v1905, %v1937
      %v1939 = vmul.f32 %v1906, %v1937
      %v1940 = vadd.f32 %v1832, %v1938
      %v1941 = vadd.f32 %v1833, %v1939
      %v1942 = vstv %s475
      %v1943 = vmul.f32 %v1905, %v1942
      %v1944 = vmul.f32 %v1906, %v1942
      %v1945 = vadd.f32 %v1837, %v1943
      %v1946 = vadd.f32 %v1838, %v1944
      %v1947 = vstv %s476
      %v1948 = vmul.f32 %v1905, %v1947
      %v1949 = vmul.f32 %v1906, %v1947
      %v1950 = vadd.f32 %v1842, %v1948
      %v1951 = vadd.f32 %v1843, %v1949
      %v1952 = vstv %s477
      %v1953 = vmul.f32 %v1905, %v1952
      %v1954 = vmul.f32 %v1906, %v1952
      %v1955 = vadd.f32 %v1847, %v1953
      %v1956 = vadd.f32 %v1848, %v1954
      %v1957 = vstv %s478
      %v1958 = vmul.f32 %v1905, %v1957
      %v1959 = vmul.f32 %v1906, %v1957
      %v1960 = vadd.f32 %v1852, %v1958
      %v1961 = vadd.f32 %v1853, %v1959
      %v1962 = vstv %s479
      %v1963 = vmul.f32 %v1905, %v1962
      %v1964 = vmul.f32 %v1906, %v1962
      %v1965 = vadd.f32 %v1857, %v1963
      %v1966 = vadd.f32 %v1858, %v1964
      %v1967 = vstv %s480
      %v1968 = vmul.f32 %v1905, %v1967
      %v1969 = vmul.f32 %v1906, %v1967
      %v1970 = vadd.f32 %v1862, %v1968
      %v1971 = vadd.f32 %v1863, %v1969
      %v1972 = vstv %s481
      %v1973 = vmul.f32 %v1905, %v1972
      %v1974 = vmul.f32 %v1906, %v1972
      %v1975 = vadd.f32 %v1867, %v1973
      %v1976 = vadd.f32 %v1868, %v1974
      %v1977 = vstv %s482
      %v1978 = vmul.f32 %v1905, %v1977
      %v1979 = vmul.f32 %v1906, %v1977
      %v1980 = vadd.f32 %v1872, %v1978
      %v1981 = vadd.f32 %v1873, %v1979
      %v1982 = vstv %s483
      %v1983 = vmul.f32 %v1905, %v1982
      %v1984 = vmul.f32 %v1906, %v1982
      %v1985 = vadd.f32 %v1877, %v1983
      %v1986 = vadd.f32 %v1878, %v1984
      %v1987 = vstv %s484
      %v1988 = vmul.f32 %v1905, %v1987
      %v1989 = vmul.f32 %v1906, %v1987
      %v1990 = vadd.f32 %v1882, %v1988
      %v1991 = vadd.f32 %v1883, %v1989
      %v1992 = vstv %s485
      %v1993 = vmul.f32 %v1905, %v1992
      %v1994 = vmul.f32 %v1906, %v1992
      %v1995 = vadd.f32 %v1887, %v1993
      %v1996 = vadd.f32 %v1888, %v1994
      %v1997 = vstv %s193
      %v1998 = vmul.f32 %v621, %v1997
      %v1999 = vmul.f32 %v622, %v1997
      %v2000 = vstv %s211
      %v2001 = vmul.f32 %v624, %v2000
      %v2002 = vmul.f32 %v625, %v2000
      %v2003 = vadd.f32 %v1998, %v2001
      %v2004 = vadd.f32 %v1999, %v2002
      %v2005 = vstv %s229
      %v2006 = vmul.f32 %v627, %v2005
      %v2007 = vmul.f32 %v628, %v2005
      %v2008 = vadd.f32 %v2003, %v2006
      %v2009 = vadd.f32 %v2004, %v2007
      %v2010 = vstv %s247
      %v2011 = vadd.f32 %v2008, %v2010
      %v2012 = vadd.f32 %v2009, %v2010
      %v2013 = vmax.f32 %v2011, 0.0
      %v2014 = vmax.f32 %v2012, 0.0
      %v2015 = vstv %s486
      %v2016 = vmul.f32 %v2013, %v2015
      %v2017 = vmul.f32 %v2014, %v2015
      %v2018 = vadd.f32 %v1910, %v2016
      %v2019 = vadd.f32 %v1911, %v2017
      %v2020 = vstv %s487
      %v2021 = vmul.f32 %v2013, %v2020
      %v2022 = vmul.f32 %v2014, %v2020
      %v2023 = vadd.f32 %v1915, %v2021
      %v2024 = vadd.f32 %v1916, %v2022
      %v2025 = vstv %s488
      %v2026 = vmul.f32 %v2013, %v2025
      %v2027 = vmul.f32 %v2014, %v2025
      %v2028 = vadd.f32 %v1920, %v2026
      %v2029 = vadd.f32 %v1921, %v2027
      %v2030 = vstv %s489
      %v2031 = vmul.f32 %v2013, %v2030
      %v2032 = vmul.f32 %v2014, %v2030
      %v2033 = vadd.f32 %v1925, %v2031
      %v2034 = vadd.f32 %v1926, %v2032
      %v2035 = vstv %s490
      %v2036 = vmul.f32 %v2013, %v2035
      %v2037 = vmul.f32 %v2014, %v2035
      %v2038 = vadd.f32 %v1930, %v2036
      %v2039 = vadd.f32 %v1931, %v2037
      %v2040 = vstv %s491
      %v2041 = vmul.f32 %v2013, %v2040
      %v2042 = vmul.f32 %v2014, %v2040
      %v2043 = vadd.f32 %v1935, %v2041
      %v2044 = vadd.f32 %v1936, %v2042
      %v2045 = vstv %s492
      %v2046 = vmul.f32 %v2013, %v2045
      %v2047 = vmul.f32 %v2014, %v2045
      %v2048 = vadd.f32 %v1940, %v2046
      %v2049 = vadd.f32 %v1941, %v2047
      %v2050 = vstv %s493
      %v2051 = vmul.f32 %v2013, %v2050
      %v2052 = vmul.f32 %v2014, %v2050
      %v2053 = vadd.f32 %v1945, %v2051
      %v2054 = vadd.f32 %v1946, %v2052
      %v2055 = vstv %s494
      %v2056 = vmul.f32 %v2013, %v2055
      %v2057 = vmul.f32 %v2014, %v2055
      %v2058 = vadd.f32 %v1950, %v2056
      %v2059 = vadd.f32 %v1951, %v2057
      %v2060 = vstv %s495
      %v2061 = vmul.f32 %v2013, %v2060
      %v2062 = vmul.f32 %v2014, %v2060
      %v2063 = vadd.f32 %v1955, %v2061
      %v2064 = vadd.f32 %v1956, %v2062
      %v2065 = vstv %s496
      %v2066 = vmul.f32 %v2013, %v2065
      %v2067 = vmul.f32 %v2014, %v2065
      %v2068 = vadd.f32 %v1960, %v2066
      %v2069 = vadd.f32 %v1961, %v2067
      %v2070 = vstv %s497
      %v2071 = vmul.f32 %v2013, %v2070
      %v2072 = vmul.f32 %v2014, %v2070
      %v2073 = vadd.f32 %v1965, %v2071
      %v2074 = vadd.f32 %v1966, %v2072
      %v2075 = vstv %s498
      %v2076 = vmul.f32 %v2013, %v2075
      %v2077 = vmul.f32 %v2014, %v2075
      %v2078 = vadd.f32 %v1970, %v2076
      %v2079 = vadd.f32 %v1971, %v2077
      %v2080 = vstv %s499
      %v2081 = vmul.f32 %v2013, %v2080
      %v2082 = vmul.f32 %v2014, %v2080
      %v2083 = vadd.f32 %v1975, %v2081
      %v2084 = vadd.f32 %v1976, %v2082
      %v2085 = vstv %s500
      %v2086 = vmul.f32 %v2013, %v2085
      %v2087 = vmul.f32 %v2014, %v2085
      %v2088 = vadd.f32 %v1980, %v2086
      %v2089 = vadd.f32 %v1981, %v2087
      %v2090 = vstv %s501
      %v2091 = vmul.f32 %v2013, %v2090
      %v2092 = vmul.f32 %v2014, %v2090
      %v2093 = vadd.f32 %v1985, %v2091
      %v2094 = vadd.f32 %v1986, %v2092
      %v2095 = vstv %s502
      %v2096 = vmul.f32 %v2013, %v2095
      %v2097 = vmul.f32 %v2014, %v2095
      %v2098 = vadd.f32 %v1990, %v2096
      %v2099 = vadd.f32 %v1991, %v2097
      %v2100 = vstv %s503
      %v2101 = vmul.f32 %v2013, %v2100
      %v2102 = vmul.f32 %v2014, %v2100
      %v2103 = vadd.f32 %v1995, %v2101
      %v2104 = vadd.f32 %v1996, %v2102
      %v2105 = vstv %s194
      %v2106 = vmul.f32 %v621, %v2105
      %v2107 = vmul.f32 %v622, %v2105
      %v2108 = vstv %s212
      %v2109 = vmul.f32 %v624, %v2108
      %v2110 = vmul.f32 %v625, %v2108
      %v2111 = vadd.f32 %v2106, %v2109
      %v2112 = vadd.f32 %v2107, %v2110
      %v2113 = vstv %s230
      %v2114 = vmul.f32 %v627, %v2113
      %v2115 = vmul.f32 %v628, %v2113
      %v2116 = vadd.f32 %v2111, %v2114
      %v2117 = vadd.f32 %v2112, %v2115
      %v2118 = vstv %s248
      %v2119 = vadd.f32 %v2116, %v2118
      %v2120 = vadd.f32 %v2117, %v2118
      %v2121 = vmax.f32 %v2119, 0.0
      %v2122 = vmax.f32 %v2120, 0.0
      %v2123 = vstv %s504
      %v2124 = vmul.f32 %v2121, %v2123
      %v2125 = vmul.f32 %v2122, %v2123
      %v2126 = vadd.f32 %v2018, %v2124
      %v2127 = vadd.f32 %v2019, %v2125
      %v2128 = vstv %s505
      %v2129 = vmul.f32 %v2121, %v2128
      %v2130 = vmul.f32 %v2122, %v2128
      %v2131 = vadd.f32 %v2023, %v2129
      %v2132 = vadd.f32 %v2024, %v2130
      %v2133 = vstv %s506
      %v2134 = vmul.f32 %v2121, %v2133
      %v2135 = vmul.f32 %v2122, %v2133
      %v2136 = vadd.f32 %v2028, %v2134
      %v2137 = vadd.f32 %v2029, %v2135
      %v2138 = vstv %s507
      %v2139 = vmul.f32 %v2121, %v2138
      %v2140 = vmul.f32 %v2122, %v2138
      %v2141 = vadd.f32 %v2033, %v2139
      %v2142 = vadd.f32 %v2034, %v2140
      %v2143 = vstv %s508
      %v2144 = vmul.f32 %v2121, %v2143
      %v2145 = vmul.f32 %v2122, %v2143
      %v2146 = vadd.f32 %v2038, %v2144
      %v2147 = vadd.f32 %v2039, %v2145
      %v2148 = vstv %s509
      %v2149 = vmul.f32 %v2121, %v2148
      %v2150 = vmul.f32 %v2122, %v2148
      %v2151 = vadd.f32 %v2043, %v2149
      %v2152 = vadd.f32 %v2044, %v2150
      %v2153 = vstv %s510
      %v2154 = vmul.f32 %v2121, %v2153
      %v2155 = vmul.f32 %v2122, %v2153
      %v2156 = vadd.f32 %v2048, %v2154
      %v2157 = vadd.f32 %v2049, %v2155
      %v2158 = vstv %s511
      %v2159 = vmul.f32 %v2121, %v2158
      %v2160 = vmul.f32 %v2122, %v2158
      %v2161 = vadd.f32 %v2053, %v2159
      %v2162 = vadd.f32 %v2054, %v2160
      %v2163 = vstv %s512
      %v2164 = vmul.f32 %v2121, %v2163
      %v2165 = vmul.f32 %v2122, %v2163
      %v2166 = vadd.f32 %v2058, %v2164
      %v2167 = vadd.f32 %v2059, %v2165
      %v2168 = vstv %s513
      %v2169 = vmul.f32 %v2121, %v2168
      %v2170 = vmul.f32 %v2122, %v2168
      %v2171 = vadd.f32 %v2063, %v2169
      %v2172 = vadd.f32 %v2064, %v2170
      %v2173 = vstv %s514
      %v2174 = vmul.f32 %v2121, %v2173
      %v2175 = vmul.f32 %v2122, %v2173
      %v2176 = vadd.f32 %v2068, %v2174
      %v2177 = vadd.f32 %v2069, %v2175
      %v2178 = vstv %s515
      %v2179 = vmul.f32 %v2121, %v2178
      %v2180 = vmul.f32 %v2122, %v2178
      %v2181 = vadd.f32 %v2073, %v2179
      %v2182 = vadd.f32 %v2074, %v2180
      %v2183 = vstv %s516
      %v2184 = vmul.f32 %v2121, %v2183
      %v2185 = vmul.f32 %v2122, %v2183
      %v2186 = vadd.f32 %v2078, %v2184
      %v2187 = vadd.f32 %v2079, %v2185
      %v2188 = vstv %s517
      %v2189 = vmul.f32 %v2121, %v2188
      %v2190 = vmul.f32 %v2122, %v2188
      %v2191 = vadd.f32 %v2083, %v2189
      %v2192 = vadd.f32 %v2084, %v2190
      %v2193 = vstv %s518
      %v2194 = vmul.f32 %v2121, %v2193
      %v2195 = vmul.f32 %v2122, %v2193
      %v2196 = vadd.f32 %v2088, %v2194
      %v2197 = vadd.f32 %v2089, %v2195
      %v2198 = vstv %s519
      %v2199 = vmul.f32 %v2121, %v2198
      %v2200 = vmul.f32 %v2122, %v2198
      %v2201 = vadd.f32 %v2093, %v2199
      %v2202 = vadd.f32 %v2094, %v2200
      %v2203 = vstv %s520
      %v2204 = vmul.f32 %v2121, %v2203
      %v2205 = vmul.f32 %v2122, %v2203
      %v2206 = vadd.f32 %v2098, %v2204
      %v2207 = vadd.f32 %v2099, %v2205
      %v2208 = vstv %s521
      %v2209 = vmul.f32 %v2121, %v2208
      %v2210 = vmul.f32 %v2122, %v2208
      %v2211 = vadd.f32 %v2103, %v2209
      %v2212 = vadd.f32 %v2104, %v2210
      %v2213 = vstv %s195
      %v2214 = vmul.f32 %v621, %v2213
      %v2215 = vmul.f32 %v622, %v2213
      %v2216 = vstv %s213
      %v2217 = vmul.f32 %v624, %v2216
      %v2218 = vmul.f32 %v625, %v2216
      %v2219 = vadd.f32 %v2214, %v2217
      %v2220 = vadd.f32 %v2215, %v2218
      %v2221 = vstv %s231
      %v2222 = vmul.f32 %v627, %v2221
      %v2223 = vmul.f32 %v628, %v2221
      %v2224 = vadd.f32 %v2219, %v2222
      %v2225 = vadd.f32 %v2220, %v2223
      %v2226 = vstv %s249
      %v2227 = vadd.f32 %v2224, %v2226
      %v2228 = vadd.f32 %v2225, %v2226
      %v2229 = vmax.f32 %v2227, 0.0
      %v2230 = vmax.f32 %v2228, 0.0
      %v2231 = vstv %s522
      %v2232 = vmul.f32 %v2229, %v2231
      %v2233 = vmul.f32 %v2230, %v2231
      %v2234 = vadd.f32 %v2126, %v2232
      %v2235 = vadd.f32 %v2127, %v2233
      %v2236 = vstv %s523
      %v2237 = vmul.f32 %v2229, %v2236
      %v2238 = vmul.f32 %v2230, %v2236
      %v2239 = vadd.f32 %v2131, %v2237
      %v2240 = vadd.f32 %v2132, %v2238
      %v2241 = vstv %s524
      %v2242 = vmul.f32 %v2229, %v2241
      %v2243 = vmul.f32 %v2230, %v2241
      %v2244 = vadd.f32 %v2136, %v2242
      %v2245 = vadd.f32 %v2137, %v2243
      %v2246 = vstv %s525
      %v2247 = vmul.f32 %v2229, %v2246
      %v2248 = vmul.f32 %v2230, %v2246
      %v2249 = vadd.f32 %v2141, %v2247
      %v2250 = vadd.f32 %v2142, %v2248
      %v2251 = vstv %s526
      %v2252 = vmul.f32 %v2229, %v2251
      %v2253 = vmul.f32 %v2230, %v2251
      %v2254 = vadd.f32 %v2146, %v2252
      %v2255 = vadd.f32 %v2147, %v2253
      %v2256 = vstv %s527
      %v2257 = vmul.f32 %v2229, %v2256
      %v2258 = vmul.f32 %v2230, %v2256
      %v2259 = vadd.f32 %v2151, %v2257
      %v2260 = vadd.f32 %v2152, %v2258
      %v2261 = vstv %s528
      %v2262 = vmul.f32 %v2229, %v2261
      %v2263 = vmul.f32 %v2230, %v2261
      %v2264 = vadd.f32 %v2156, %v2262
      %v2265 = vadd.f32 %v2157, %v2263
      %v2266 = vstv %s529
      %v2267 = vmul.f32 %v2229, %v2266
      %v2268 = vmul.f32 %v2230, %v2266
      %v2269 = vadd.f32 %v2161, %v2267
      %v2270 = vadd.f32 %v2162, %v2268
      %v2271 = vstv %s530
      %v2272 = vmul.f32 %v2229, %v2271
      %v2273 = vmul.f32 %v2230, %v2271
      %v2274 = vadd.f32 %v2166, %v2272
      %v2275 = vadd.f32 %v2167, %v2273
      %v2276 = vstv %s531
      %v2277 = vmul.f32 %v2229, %v2276
      %v2278 = vmul.f32 %v2230, %v2276
      %v2279 = vadd.f32 %v2171, %v2277
      %v2280 = vadd.f32 %v2172, %v2278
      %v2281 = vstv %s532
      %v2282 = vmul.f32 %v2229, %v2281
      %v2283 = vmul.f32 %v2230, %v2281
      %v2284 = vadd.f32 %v2176, %v2282
      %v2285 = vadd.f32 %v2177, %v2283
      %v2286 = vstv %s533
      %v2287 = vmul.f32 %v2229, %v2286
      %v2288 = vmul.f32 %v2230, %v2286
      %v2289 = vadd.f32 %v2181, %v2287
      %v2290 = vadd.f32 %v2182, %v2288
      %v2291 = vstv %s534
      %v2292 = vmul.f32 %v2229, %v2291
      %v2293 = vmul.f32 %v2230, %v2291
      %v2294 = vadd.f32 %v2186, %v2292
      %v2295 = vadd.f32 %v2187, %v2293
      %v2296 = vstv %s535
      %v2297 = vmul.f32 %v2229, %v2296
      %v2298 = vmul.f32 %v2230, %v2296
      %v2299 = vadd.f32 %v2191, %v2297
      %v2300 = vadd.f32 %v2192, %v2298
      %v2301 = vstv %s536
      %v2302 = vmul.f32 %v2229, %v2301
      %v2303 = vmul.f32 %v2230, %v2301
      %v2304 = vadd.f32 %v2196, %v2302
      %v2305 = vadd.f32 %v2197, %v2303
      %v2306 = vstv %s537
      %v2307 = vmul.f32 %v2229, %v2306
      %v2308 = vmul.f32 %v2230, %v2306
      %v2309 = vadd.f32 %v2201, %v2307
      %v2310 = vadd.f32 %v2202, %v2308
      %v2311 = vstv %s538
      %v2312 = vmul.f32 %v2229, %v2311
      %v2313 = vmul.f32 %v2230, %v2311
      %v2314 = vadd.f32 %v2206, %v2312
      %v2315 = vadd.f32 %v2207, %v2313
      %v2316 = vstv %s539
      %v2317 = vmul.f32 %v2229, %v2316
      %v2318 = vmul.f32 %v2230, %v2316
      %v2319 = vadd.f32 %v2211, %v2317
      %v2320 = vadd.f32 %v2212, %v2318
      %v2321 = vstv %s196
      %v2322 = vmul.f32 %v621, %v2321
      %v2323 = vmul.f32 %v622, %v2321
      %v2324 = vstv %s214
      %v2325 = vmul.f32 %v624, %v2324
      %v2326 = vmul.f32 %v625, %v2324
      %v2327 = vadd.f32 %v2322, %v2325
      %v2328 = vadd.f32 %v2323, %v2326
      %v2329 = vstv %s232
      %v2330 = vmul.f32 %v627, %v2329
      %v2331 = vmul.f32 %v628, %v2329
      %v2332 = vadd.f32 %v2327, %v2330
      %v2333 = vadd.f32 %v2328, %v2331
      %v2334 = vstv %s250
      %v2335 = vadd.f32 %v2332, %v2334
      %v2336 = vadd.f32 %v2333, %v2334
      %v2337 = vmax.f32 %v2335, 0.0
      %v2338 = vmax.f32 %v2336, 0.0
      %v2339 = vstv %s540
      %v2340 = vmul.f32 %v2337, %v2339
      %v2341 = vmul.f32 %v2338, %v2339
      %v2342 = vadd.f32 %v2234, %v2340
      %v2343 = vadd.f32 %v2235, %v2341
      %v2344 = vstv %s541
      %v2345 = vmul.f32 %v2337, %v2344
      %v2346 = vmul.f32 %v2338, %v2344
      %v2347 = vadd.f32 %v2239, %v2345
      %v2348 = vadd.f32 %v2240, %v2346
      %v2349 = vstv %s542
      %v2350 = vmul.f32 %v2337, %v2349
      %v2351 = vmul.f32 %v2338, %v2349
      %v2352 = vadd.f32 %v2244, %v2350
      %v2353 = vadd.f32 %v2245, %v2351
      %v2354 = vstv %s543
      %v2355 = vmul.f32 %v2337, %v2354
      %v2356 = vmul.f32 %v2338, %v2354
      %v2357 = vadd.f32 %v2249, %v2355
      %v2358 = vadd.f32 %v2250, %v2356
      %v2359 = vstv %s544
      %v2360 = vmul.f32 %v2337, %v2359
      %v2361 = vmul.f32 %v2338, %v2359
      %v2362 = vadd.f32 %v2254, %v2360
      %v2363 = vadd.f32 %v2255, %v2361
      %v2364 = vstv %s545
      %v2365 = vmul.f32 %v2337, %v2364
      %v2366 = vmul.f32 %v2338, %v2364
      %v2367 = vadd.f32 %v2259, %v2365
      %v2368 = vadd.f32 %v2260, %v2366
      %v2369 = vstv %s546
      %v2370 = vmul.f32 %v2337, %v2369
      %v2371 = vmul.f32 %v2338, %v2369
      %v2372 = vadd.f32 %v2264, %v2370
      %v2373 = vadd.f32 %v2265, %v2371
      %v2374 = vstv %s547
      %v2375 = vmul.f32 %v2337, %v2374
      %v2376 = vmul.f32 %v2338, %v2374
      %v2377 = vadd.f32 %v2269, %v2375
      %v2378 = vadd.f32 %v2270, %v2376
      %v2379 = vstv %s548
      %v2380 = vmul.f32 %v2337, %v2379
      %v2381 = vmul.f32 %v2338, %v2379
      %v2382 = vadd.f32 %v2274, %v2380
      %v2383 = vadd.f32 %v2275, %v2381
      %v2384 = vstv %s549
      %v2385 = vmul.f32 %v2337, %v2384
      %v2386 = vmul.f32 %v2338, %v2384
      %v2387 = vadd.f32 %v2279, %v2385
      %v2388 = vadd.f32 %v2280, %v2386
      %v2389 = vstv %s550
      %v2390 = vmul.f32 %v2337, %v2389
      %v2391 = vmul.f32 %v2338, %v2389
      %v2392 = vadd.f32 %v2284, %v2390
      %v2393 = vadd.f32 %v2285, %v2391
      %v2394 = vstv %s551
      %v2395 = vmul.f32 %v2337, %v2394
      %v2396 = vmul.f32 %v2338, %v2394
      %v2397 = vadd.f32 %v2289, %v2395
      %v2398 = vadd.f32 %v2290, %v2396
      %v2399 = vstv %s552
      %v2400 = vmul.f32 %v2337, %v2399
      %v2401 = vmul.f32 %v2338, %v2399
      %v2402 = vadd.f32 %v2294, %v2400
      %v2403 = vadd.f32 %v2295, %v2401
      %v2404 = vstv %s553
      %v2405 = vmul.f32 %v2337, %v2404
      %v2406 = vmul.f32 %v2338, %v2404
      %v2407 = vadd.f32 %v2299, %v2405
      %v2408 = vadd.f32 %v2300, %v2406
      %v2409 = vstv %s554
      %v2410 = vmul.f32 %v2337, %v2409
      %v2411 = vmul.f32 %v2338, %v2409
      %v2412 = vadd.f32 %v2304, %v2410
      %v2413 = vadd.f32 %v2305, %v2411
      %v2414 = vstv %s555
      %v2415 = vmul.f32 %v2337, %v2414
      %v2416 = vmul.f32 %v2338, %v2414
      %v2417 = vadd.f32 %v2309, %v2415
      %v2418 = vadd.f32 %v2310, %v2416
      %v2419 = vstv %s556
      %v2420 = vmul.f32 %v2337, %v2419
      %v2421 = vmul.f32 %v2338, %v2419
      %v2422 = vadd.f32 %v2314, %v2420
      %v2423 = vadd.f32 %v2315, %v2421
      %v2424 = vstv %s557
      %v2425 = vmul.f32 %v2337, %v2424
      %v2426 = vmul.f32 %v2338, %v2424
      %v2427 = vadd.f32 %v2319, %v2425
      %v2428 = vadd.f32 %v2320, %v2426
      %v2429 = vstv %s197
      %v2430 = vmul.f32 %v621, %v2429
      %v2431 = vmul.f32 %v622, %v2429
      %v2432 = vstv %s215
      %v2433 = vmul.f32 %v624, %v2432
      %v2434 = vmul.f32 %v625, %v2432
      %v2435 = vadd.f32 %v2430, %v2433
      %v2436 = vadd.f32 %v2431, %v2434
      %v2437 = vstv %s233
      %v2438 = vmul.f32 %v627, %v2437
      %v2439 = vmul.f32 %v628, %v2437
      %v2440 = vadd.f32 %v2435, %v2438
      %v2441 = vadd.f32 %v2436, %v2439
      %v2442 = vstv %s251
      %v2443 = vadd.f32 %v2440, %v2442
      %v2444 = vadd.f32 %v2441, %v2442
      %v2445 = vmax.f32 %v2443, 0.0
      %v2446 = vmax.f32 %v2444, 0.0
      %v2447 = vstv %s558
      %v2448 = vmul.f32 %v2445, %v2447
      %v2449 = vmul.f32 %v2446, %v2447
      %v2450 = vadd.f32 %v2342, %v2448
      %v2451 = vadd.f32 %v2343, %v2449
      %v2452 = vstv %s559
      %v2453 = vmul.f32 %v2445, %v2452
      %v2454 = vmul.f32 %v2446, %v2452
      %v2455 = vadd.f32 %v2347, %v2453
      %v2456 = vadd.f32 %v2348, %v2454
      %v2457 = vstv %s560
      %v2458 = vmul.f32 %v2445, %v2457
      %v2459 = vmul.f32 %v2446, %v2457
      %v2460 = vadd.f32 %v2352, %v2458
      %v2461 = vadd.f32 %v2353, %v2459
      %v2462 = vstv %s561
      %v2463 = vmul.f32 %v2445, %v2462
      %v2464 = vmul.f32 %v2446, %v2462
      %v2465 = vadd.f32 %v2357, %v2463
      %v2466 = vadd.f32 %v2358, %v2464
      %v2467 = vstv %s562
      %v2468 = vmul.f32 %v2445, %v2467
      %v2469 = vmul.f32 %v2446, %v2467
      %v2470 = vadd.f32 %v2362, %v2468
      %v2471 = vadd.f32 %v2363, %v2469
      %v2472 = vstv %s563
      %v2473 = vmul.f32 %v2445, %v2472
      %v2474 = vmul.f32 %v2446, %v2472
      %v2475 = vadd.f32 %v2367, %v2473
      %v2476 = vadd.f32 %v2368, %v2474
      %v2477 = vstv %s564
      %v2478 = vmul.f32 %v2445, %v2477
      %v2479 = vmul.f32 %v2446, %v2477
      %v2480 = vadd.f32 %v2372, %v2478
      %v2481 = vadd.f32 %v2373, %v2479
      %v2482 = vstv %s565
      %v2483 = vmul.f32 %v2445, %v2482
      %v2484 = vmul.f32 %v2446, %v2482
      %v2485 = vadd.f32 %v2377, %v2483
      %v2486 = vadd.f32 %v2378, %v2484
      %v2487 = vstv %s566
      %v2488 = vmul.f32 %v2445, %v2487
      %v2489 = vmul.f32 %v2446, %v2487
      %v2490 = vadd.f32 %v2382, %v2488
      %v2491 = vadd.f32 %v2383, %v2489
      %v2492 = vstv %s567
      %v2493 = vmul.f32 %v2445, %v2492
      %v2494 = vmul.f32 %v2446, %v2492
      %v2495 = vadd.f32 %v2387, %v2493
      %v2496 = vadd.f32 %v2388, %v2494
      %v2497 = vstv %s568
      %v2498 = vmul.f32 %v2445, %v2497
      %v2499 = vmul.f32 %v2446, %v2497
      %v2500 = vadd.f32 %v2392, %v2498
      %v2501 = vadd.f32 %v2393, %v2499
      %v2502 = vstv %s569
      %v2503 = vmul.f32 %v2445, %v2502
      %v2504 = vmul.f32 %v2446, %v2502
      %v2505 = vadd.f32 %v2397, %v2503
      %v2506 = vadd.f32 %v2398, %v2504
      %v2507 = vstv %s570
      %v2508 = vmul.f32 %v2445, %v2507
      %v2509 = vmul.f32 %v2446, %v2507
      %v2510 = vadd.f32 %v2402, %v2508
      %v2511 = vadd.f32 %v2403, %v2509
      %v2512 = vstv %s571
      %v2513 = vmul.f32 %v2445, %v2512
      %v2514 = vmul.f32 %v2446, %v2512
      %v2515 = vadd.f32 %v2407, %v2513
      %v2516 = vadd.f32 %v2408, %v2514
      %v2517 = vstv %s572
      %v2518 = vmul.f32 %v2445, %v2517
      %v2519 = vmul.f32 %v2446, %v2517
      %v2520 = vadd.f32 %v2412, %v2518
      %v2521 = vadd.f32 %v2413, %v2519
      %v2522 = vstv %s573
      %v2523 = vmul.f32 %v2445, %v2522
      %v2524 = vmul.f32 %v2446, %v2522
      %v2525 = vadd.f32 %v2417, %v2523
      %v2526 = vadd.f32 %v2418, %v2524
      %v2527 = vstv %s574
      %v2528 = vmul.f32 %v2445, %v2527
      %v2529 = vmul.f32 %v2446, %v2527
      %v2530 = vadd.f32 %v2422, %v2528
      %v2531 = vadd.f32 %v2423, %v2529
      %v2532 = vstv %s575
      %v2533 = vmul.f32 %v2445, %v2532
      %v2534 = vmul.f32 %v2446, %v2532
      %v2535 = vadd.f32 %v2427, %v2533
      %v2536 = vadd.f32 %v2428, %v2534
      %v2537 = vstv %s576
      %v2538 = vadd.f32 %v2450, %v2537
      %v2539 = vadd.f32 %v2451, %v2537
      %v2540 = vmax.f32 %v2538, 0.0
      %v2541 = vmax.f32 %v2539, 0.0
      %v2542 = vstv %s594
      %v2543 = vmul.f32 %v2540, %v2542
      %v2544 = vmul.f32 %v2541, %v2542
      %v2545 = vstv %s577
      %v2546 = vadd.f32 %v2455, %v2545
      %v2547 = vadd.f32 %v2456, %v2545
      %v2548 = vmax.f32 %v2546, 0.0
      %v2549 = vmax.f32 %v2547, 0.0
      %v2550 = vstv %s595
      %v2551 = vmul.f32 %v2548, %v2550
      %v2552 = vmul.f32 %v2549, %v2550
      %v2553 = vadd.f32 %v2543, %v2551
      %v2554 = vadd.f32 %v2544, %v2552
      %v2555 = vstv %s578
      %v2556 = vadd.f32 %v2460, %v2555
      %v2557 = vadd.f32 %v2461, %v2555
      %v2558 = vmax.f32 %v2556, 0.0
      %v2559 = vmax.f32 %v2557, 0.0
      %v2560 = vstv %s596
      %v2561 = vmul.f32 %v2558, %v2560
      %v2562 = vmul.f32 %v2559, %v2560
      %v2563 = vadd.f32 %v2553, %v2561
      %v2564 = vadd.f32 %v2554, %v2562
      %v2565 = vstv %s579
      %v2566 = vadd.f32 %v2465, %v2565
      %v2567 = vadd.f32 %v2466, %v2565
      %v2568 = vmax.f32 %v2566, 0.0
      %v2569 = vmax.f32 %v2567, 0.0
      %v2570 = vstv %s597
      %v2571 = vmul.f32 %v2568, %v2570
      %v2572 = vmul.f32 %v2569, %v2570
      %v2573 = vadd.f32 %v2563, %v2571
      %v2574 = vadd.f32 %v2564, %v2572
      %v2575 = vstv %s580
      %v2576 = vadd.f32 %v2470, %v2575
      %v2577 = vadd.f32 %v2471, %v2575
      %v2578 = vmax.f32 %v2576, 0.0
      %v2579 = vmax.f32 %v2577, 0.0
      %v2580 = vstv %s598
      %v2581 = vmul.f32 %v2578, %v2580
      %v2582 = vmul.f32 %v2579, %v2580
      %v2583 = vadd.f32 %v2573, %v2581
      %v2584 = vadd.f32 %v2574, %v2582
      %v2585 = vstv %s581
      %v2586 = vadd.f32 %v2475, %v2585
      %v2587 = vadd.f32 %v2476, %v2585
      %v2588 = vmax.f32 %v2586, 0.0
      %v2589 = vmax.f32 %v2587, 0.0
      %v2590 = vstv %s599
      %v2591 = vmul.f32 %v2588, %v2590
      %v2592 = vmul.f32 %v2589, %v2590
      %v2593 = vadd.f32 %v2583, %v2591
      %v2594 = vadd.f32 %v2584, %v2592
      %v2595 = vstv %s582
      %v2596 = vadd.f32 %v2480, %v2595
      %v2597 = vadd.f32 %v2481, %v2595
      %v2598 = vmax.f32 %v2596, 0.0
      %v2599 = vmax.f32 %v2597, 0.0
      %v2600 = vstv %s600
      %v2601 = vmul.f32 %v2598, %v2600
      %v2602 = vmul.f32 %v2599, %v2600
      %v2603 = vadd.f32 %v2593, %v2601
      %v2604 = vadd.f32 %v2594, %v2602
      %v2605 = vstv %s583
      %v2606 = vadd.f32 %v2485, %v2605
      %v2607 = vadd.f32 %v2486, %v2605
      %v2608 = vmax.f32 %v2606, 0.0
      %v2609 = vmax.f32 %v2607, 0.0
      %v2610 = vstv %s601
      %v2611 = vmul.f32 %v2608, %v2610
      %v2612 = vmul.f32 %v2609, %v2610
      %v2613 = vadd.f32 %v2603, %v2611
      %v2614 = vadd.f32 %v2604, %v2612
      %v2615 = vstv %s584
      %v2616 = vadd.f32 %v2490, %v2615
      %v2617 = vadd.f32 %v2491, %v2615
      %v2618 = vmax.f32 %v2616, 0.0
      %v2619 = vmax.f32 %v2617, 0.0
      %v2620 = vstv %s602
      %v2621 = vmul.f32 %v2618, %v2620
      %v2622 = vmul.f32 %v2619, %v2620
      %v2623 = vadd.f32 %v2613, %v2621
      %v2624 = vadd.f32 %v2614, %v2622
      %v2625 = vstv %s585
      %v2626 = vadd.f32 %v2495, %v2625
      %v2627 = vadd.f32 %v2496, %v2625
      %v2628 = vmax.f32 %v2626, 0.0
      %v2629 = vmax.f32 %v2627, 0.0
      %v2630 = vstv %s603
      %v2631 = vmul.f32 %v2628, %v2630
      %v2632 = vmul.f32 %v2629, %v2630
      %v2633 = vadd.f32 %v2623, %v2631
      %v2634 = vadd.f32 %v2624, %v2632
      %v2635 = vstv %s586
      %v2636 = vadd.f32 %v2500, %v2635
      %v2637 = vadd.f32 %v2501, %v2635
      %v2638 = vmax.f32 %v2636, 0.0
      %v2639 = vmax.f32 %v2637, 0.0
      %v2640 = vstv %s604
      %v2641 = vmul.f32 %v2638, %v2640
      %v2642 = vmul.f32 %v2639, %v2640
      %v2643 = vadd.f32 %v2633, %v2641
      %v2644 = vadd.f32 %v2634, %v2642
      %v2645 = vstv %s587
      %v2646 = vadd.f32 %v2505, %v2645
      %v2647 = vadd.f32 %v2506, %v2645
      %v2648 = vmax.f32 %v2646, 0.0
      %v2649 = vmax.f32 %v2647, 0.0
      %v2650 = vstv %s605
      %v2651 = vmul.f32 %v2648, %v2650
      %v2652 = vmul.f32 %v2649, %v2650
      %v2653 = vadd.f32 %v2643, %v2651
      %v2654 = vadd.f32 %v2644, %v2652
      %v2655 = vstv %s588
      %v2656 = vadd.f32 %v2510, %v2655
      %v2657 = vadd.f32 %v2511, %v2655
      %v2658 = vmax.f32 %v2656, 0.0
      %v2659 = vmax.f32 %v2657, 0.0
      %v2660 = vstv %s606
      %v2661 = vmul.f32 %v2658, %v2660
      %v2662 = vmul.f32 %v2659, %v2660
      %v2663 = vadd.f32 %v2653, %v2661
      %v2664 = vadd.f32 %v2654, %v2662
      %v2665 = vstv %s589
      %v2666 = vadd.f32 %v2515, %v2665
      %v2667 = vadd.f32 %v2516, %v2665
      %v2668 = vmax.f32 %v2666, 0.0
      %v2669 = vmax.f32 %v2667, 0.0
      %v2670 = vstv %s607
      %v2671 = vmul.f32 %v2668, %v2670
      %v2672 = vmul.f32 %v2669, %v2670
      %v2673 = vadd.f32 %v2663, %v2671
      %v2674 = vadd.f32 %v2664, %v2672
      %v2675 = vstv %s590
      %v2676 = vadd.f32 %v2520, %v2675
      %v2677 = vadd.f32 %v2521, %v2675
      %v2678 = vmax.f32 %v2676, 0.0
      %v2679 = vmax.f32 %v2677, 0.0
      %v2680 = vstv %s608
      %v2681 = vmul.f32 %v2678, %v2680
      %v2682 = vmul.f32 %v2679, %v2680
      %v2683 = vadd.f32 %v2673, %v2681
      %v2684 = vadd.f32 %v2674, %v2682
      %v2685 = vstv %s591
      %v2686 = vadd.f32 %v2525, %v2685
      %v2687 = vadd.f32 %v2526, %v2685
      %v2688 = vmax.f32 %v2686, 0.0
      %v2689 = vmax.f32 %v2687, 0.0
      %v2690 = vstv %s609
      %v2691 = vmul.f32 %v2688, %v2690
      %v2692 = vmul.f32 %v2689, %v2690
      %v2693 = vadd.f32 %v2683, %v2691
      %v2694 = vadd.f32 %v2684, %v2692
      %v2695 = vstv %s592
      %v2696 = vadd.f32 %v2530, %v2695
      %v2697 = vadd.f32 %v2531, %v2695
      %v2698 = vmax.f32 %v2696, 0.0
      %v2699 = vmax.f32 %v2697, 0.0
      %v2700 = vstv %s610
      %v2701 = vmul.f32 %v2698, %v2700
      %v2702 = vmul.f32 %v2699, %v2700
      %v2703 = vadd.f32 %v2693, %v2701
      %v2704 = vadd.f32 %v2694, %v2702
      %v2705 = vstv %s593
      %v2706 = vadd.f32 %v2535, %v2705
      %v2707 = vadd.f32 %v2536, %v2705
      %v2708 = vmax.f32 %v2706, 0.0
      %v2709 = vmax.f32 %v2707, 0.0
      %v2710 = vstv %s611
      %v2711 = vmul.f32 %v2708, %v2710
      %v2712 = vmul.f32 %v2709, %v2710
      %v2713 = vadd.f32 %v2703, %v2711
      %v2714 = vadd.f32 %v2704, %v2712
      %v2715 = vstv %s612
      %v2716 = vadd.f32 %v2713, %v2715
      %v2717 = vadd.f32 %v2714, %v2715
      %v2718 = vmax.f32 %v2716, 0.0
      %v2719 = vmax.f32 %v2717, 0.0
      %s2720 = scalar_lea.vmem [#allocation2], %s619
      %2721 = vst [vmem:[%s2720] sm:$0xff] %v2718
      %2722 = vst [vmem:[%s2720 + $0x8] sm:$0xff] %v2719
    $region106: #{tpu_custom_call.1} parent=1 // loop_footer
      %s618 = sadd.s32 1, %s614
    $region107: #{tpu_custom_call.1} parent=1 // loop_footer_branch
      %613 = sbr.rel target = $region103
    $region108: #{tpu_custom_call.1} parent=1 // loop_exit
      _
    %v2723 = vld [vmem:[#allocation2] sm:$0xff]
    %v2724 = vld [vmem:[#allocation2 + $0x8] sm:$0xff]
    %v2725 = vld [vmem:[#allocation2 + $0x10] sm:$0xff]
    %v2726 = vld [vmem:[#allocation2 + $0x18] sm:$0xff]
    %v2727 = vld [vmem:[#allocation2 + $0x20] sm:$0xff]
    %v2728 = vld [vmem:[#allocation2 + $0x28] sm:$0xff]
    %v2729 = vld [vmem:[#allocation2 + $0x30] sm:$0xff]
    %v2730 = vld [vmem:[#allocation2 + $0x38] sm:$0xff]
    %v2731 = vld [vmem:[#allocation2 + $0x40] sm:$0xff]
    %v2732 = vld [vmem:[#allocation2 + $0x48] sm:$0xff]
    %v2733 = vld [vmem:[#allocation2 + $0x50] sm:$0xff]
    %v2734 = vld [vmem:[#allocation2 + $0x58] sm:$0xff]
    %v2735 = vld [vmem:[#allocation2 + $0x60] sm:$0xff]
    %v2736 = vld [vmem:[#allocation2 + $0x68] sm:$0xff]
    %v2737 = vld [vmem:[#allocation2 + $0x70] sm:$0xff]
    %v2738 = vld [vmem:[#allocation2 + $0x78] sm:$0xff]
    %v2739 = vld [vmem:[#allocation2 + $0x80] sm:$0xff]
    %v2740 = vld [vmem:[#allocation2 + $0x88] sm:$0xff]
    %v2741 = vld [vmem:[#allocation2 + $0x90] sm:$0xff]
    %v2742 = vld [vmem:[#allocation2 + $0x98] sm:$0xff]
    %v2743 = vld [vmem:[#allocation2 + $0xa0] sm:$0xff]
    %v2744 = vld [vmem:[#allocation2 + $0xa8] sm:$0xff]
    %v2745 = vld [vmem:[#allocation2 + $0xb0] sm:$0xff]
    %v2746 = vld [vmem:[#allocation2 + $0xb8] sm:$0xff]
    %v2747 = vld [vmem:[#allocation2 + $0xc0] sm:$0xff]
    %v2748 = vld [vmem:[#allocation2 + $0xc8] sm:$0xff]
    %v2749 = vld [vmem:[#allocation2 + $0xd0] sm:$0xff]
    %v2750 = vld [vmem:[#allocation2 + $0xd8] sm:$0xff]
    %v2751 = vld [vmem:[#allocation2 + $0xe0] sm:$0xff]
    %v2752 = vld [vmem:[#allocation2 + $0xe8] sm:$0xff]
    %v2753 = vld [vmem:[#allocation2 + $0xf0] sm:$0xff]
    %v2754 = vld [vmem:[#allocation2 + $0xf8] sm:$0xff]
    %v2755 = vld [vmem:[#allocation2 + $0x100] sm:$0xff]
    %v2756 = vld [vmem:[#allocation2 + $0x108] sm:$0xff]
    %v2757 = vld [vmem:[#allocation2 + $0x110] sm:$0xff]
    %v2758 = vld [vmem:[#allocation2 + $0x118] sm:$0xff]
    %v2759 = vld [vmem:[#allocation2 + $0x120] sm:$0xff]
    %v2760 = vld [vmem:[#allocation2 + $0x128] sm:$0xff]
    %v2761 = vld [vmem:[#allocation2 + $0x130] sm:$0xff]
    %v2762 = vld [vmem:[#allocation2 + $0x138] sm:$0xff]
    %v2763 = vld [vmem:[#allocation2 + $0x140] sm:$0xff]
    %v2764 = vld [vmem:[#allocation2 + $0x148] sm:$0xff]
    %v2765 = vld [vmem:[#allocation2 + $0x150] sm:$0xff]
    %v2766 = vld [vmem:[#allocation2 + $0x158] sm:$0xff]
    %v2767 = vld [vmem:[#allocation2 + $0x160] sm:$0xff]
    %v2768 = vld [vmem:[#allocation2 + $0x168] sm:$0xff]
    %v2769 = vld [vmem:[#allocation2 + $0x170] sm:$0xff]
    %v2770 = vld [vmem:[#allocation2 + $0x178] sm:$0xff]
    %v2771 = vld [vmem:[#allocation2 + $0x180] sm:$0xff]
    %v2772 = vld [vmem:[#allocation2 + $0x188] sm:$0xff]
    %v2773 = vld [vmem:[#allocation2 + $0x190] sm:$0xff]
    %v2774 = vld [vmem:[#allocation2 + $0x198] sm:$0xff]
    %v2775 = vld [vmem:[#allocation2 + $0x1a0] sm:$0xff]
    %v2776 = vld [vmem:[#allocation2 + $0x1a8] sm:$0xff]
    %v2777 = vld [vmem:[#allocation2 + $0x1b0] sm:$0xff]
    %v2778 = vld [vmem:[#allocation2 + $0x1b8] sm:$0xff]
    %v2779 = vld [vmem:[#allocation2 + $0x1c0] sm:$0xff]
    %v2780 = vld [vmem:[#allocation2 + $0x1c8] sm:$0xff]
    %v2781 = vld [vmem:[#allocation2 + $0x1d0] sm:$0xff]
    %v2782 = vld [vmem:[#allocation2 + $0x1d8] sm:$0xff]
    %v2783 = vld [vmem:[#allocation2 + $0x1e0] sm:$0xff]
    %v2784 = vld [vmem:[#allocation2 + $0x1e8] sm:$0xff]
    %v2785 = vld [vmem:[#allocation2 + $0x1f0] sm:$0xff]
    %v2786 = vld [vmem:[#allocation2 + $0x1f8] sm:$0xff]
    %v2787 = vld [vmem:[#allocation19] sm:$0xff]
    %v2788 = vld [vmem:[#allocation19 + $0x8] sm:$0xff]
    %v2789 = vld [vmem:[#allocation19 + $0x10] sm:$0xff]
    %v2790 = vld [vmem:[#allocation19 + $0x18] sm:$0xff]
    %v2791 = vld [vmem:[#allocation19 + $0x20] sm:$0xff]
    %v2792 = vld [vmem:[#allocation19 + $0x28] sm:$0xff]
    %v2793 = vld [vmem:[#allocation19 + $0x30] sm:$0xff]
    %v2794 = vld [vmem:[#allocation19 + $0x38] sm:$0xff]
    %v2795 = vld [vmem:[#allocation19 + $0x40] sm:$0xff]
    %v2796 = vld [vmem:[#allocation19 + $0x48] sm:$0xff]
    %v2797 = vld [vmem:[#allocation19 + $0x50] sm:$0xff]
    %v2798 = vld [vmem:[#allocation19 + $0x58] sm:$0xff]
    %v2799 = vld [vmem:[#allocation19 + $0x60] sm:$0xff]
    %v2800 = vld [vmem:[#allocation19 + $0x68] sm:$0xff]
    %v2801 = vld [vmem:[#allocation19 + $0x70] sm:$0xff]
    %v2802 = vld [vmem:[#allocation19 + $0x78] sm:$0xff]
    %v2803 = vld [vmem:[#allocation19 + $0x80] sm:$0xff]
    %v2804 = vld [vmem:[#allocation19 + $0x88] sm:$0xff]
    %v2805 = vld [vmem:[#allocation19 + $0x90] sm:$0xff]
    %v2806 = vld [vmem:[#allocation19 + $0x98] sm:$0xff]
    %v2807 = vld [vmem:[#allocation19 + $0xa0] sm:$0xff]
    %v2808 = vld [vmem:[#allocation19 + $0xa8] sm:$0xff]
    %v2809 = vld [vmem:[#allocation19 + $0xb0] sm:$0xff]
    %v2810 = vld [vmem:[#allocation19 + $0xb8] sm:$0xff]
    %v2811 = vld [vmem:[#allocation19 + $0xc0] sm:$0xff]
    %v2812 = vld [vmem:[#allocation19 + $0xc8] sm:$0xff]
    %v2813 = vld [vmem:[#allocation19 + $0xd0] sm:$0xff]
    %v2814 = vld [vmem:[#allocation19 + $0xd8] sm:$0xff]
    %v2815 = vld [vmem:[#allocation19 + $0xe0] sm:$0xff]
    %v2816 = vld [vmem:[#allocation19 + $0xe8] sm:$0xff]
    %v2817 = vld [vmem:[#allocation19 + $0xf0] sm:$0xff]
    %v2818 = vld [vmem:[#allocation19 + $0xf8] sm:$0xff]
    %v2819 = vld [vmem:[#allocation19 + $0x100] sm:$0xff]
    %v2820 = vld [vmem:[#allocation19 + $0x108] sm:$0xff]
    %v2821 = vld [vmem:[#allocation19 + $0x110] sm:$0xff]
    %v2822 = vld [vmem:[#allocation19 + $0x118] sm:$0xff]
    %v2823 = vld [vmem:[#allocation19 + $0x120] sm:$0xff]
    %v2824 = vld [vmem:[#allocation19 + $0x128] sm:$0xff]
    %v2825 = vld [vmem:[#allocation19 + $0x130] sm:$0xff]
    %v2826 = vld [vmem:[#allocation19 + $0x138] sm:$0xff]
    %v2827 = vld [vmem:[#allocation19 + $0x140] sm:$0xff]
    %v2828 = vld [vmem:[#allocation19 + $0x148] sm:$0xff]
    %v2829 = vld [vmem:[#allocation19 + $0x150] sm:$0xff]
    %v2830 = vld [vmem:[#allocation19 + $0x158] sm:$0xff]
    %v2831 = vld [vmem:[#allocation19 + $0x160] sm:$0xff]
    %v2832 = vld [vmem:[#allocation19 + $0x168] sm:$0xff]
    %v2833 = vld [vmem:[#allocation19 + $0x170] sm:$0xff]
    %v2834 = vld [vmem:[#allocation19 + $0x178] sm:$0xff]
    %v2835 = vld [vmem:[#allocation19 + $0x180] sm:$0xff]
    %v2836 = vld [vmem:[#allocation19 + $0x188] sm:$0xff]
    %v2837 = vld [vmem:[#allocation19 + $0x190] sm:$0xff]
    %v2838 = vld [vmem:[#allocation19 + $0x198] sm:$0xff]
    %v2839 = vld [vmem:[#allocation19 + $0x1a0] sm:$0xff]
    %v2840 = vld [vmem:[#allocation19 + $0x1a8] sm:$0xff]
    %v2841 = vld [vmem:[#allocation19 + $0x1b0] sm:$0xff]
    %v2842 = vld [vmem:[#allocation19 + $0x1b8] sm:$0xff]
    %v2843 = vld [vmem:[#allocation19 + $0x1c0] sm:$0xff]
    %v2844 = vld [vmem:[#allocation19 + $0x1c8] sm:$0xff]
    %v2845 = vld [vmem:[#allocation19 + $0x1d0] sm:$0xff]
    %v2846 = vld [vmem:[#allocation19 + $0x1d8] sm:$0xff]
    %v2847 = vld [vmem:[#allocation19 + $0x1e0] sm:$0xff]
    %v2848 = vld [vmem:[#allocation19 + $0x1e8] sm:$0xff]
    %v2849 = vld [vmem:[#allocation19 + $0x1f0] sm:$0xff]
    %v2850 = vld [vmem:[#allocation19 + $0x1f8] sm:$0xff]
    %v2851 = vld [vmem:[%s10] sm:$0xf]
    %v2853 = vlaneseq
    %v2854 = vshrl.u32 %v2853, 7
    %v2855 = vsub.s32 0, %v2854
    %v2856 = vrot.slane %v2851, %v2855
    %v2857 = vlaneseq
    %v2858 = vshrl.u32 %v2857, 7
    %v2859 = vsub.s32 1, %v2858
    %v2860 = vrot.slane %v2851, %v2859
    %v2861 = vlaneseq
    %v2862 = vshrl.u32 %v2861, 7
    %v2863 = vsub.s32 2, %v2862
    %v2864 = vrot.slane %v2851, %v2863
    %v2865 = vlaneseq
    %v2866 = vshrl.u32 %v2865, 7
    %v2867 = vsub.s32 3, %v2866
    %v2868 = vrot.slane %v2851, %v2867
    %2873 = vmatprep.subr.mxu0 %v2788
    %2874 = vmatpush1.msra.mxu0 %v2787
    %2875 = vmatprep.subr.mxu0 %v2792
    %2876 = vmatpush1.msra.mxu0 %v2791
    %2877 = vmatprep.subr.mxu0 %v2796
    %2878 = vmatpush1.msra.mxu0 %v2795
    %2879 = vmatprep.subr.mxu0 %v2800
    %2880 = vmatpush1.msra.mxu0 %v2799
    %2881 = vmatprep.subr.mxu0 %v2804
    %2882 = vmatpush1.msra.mxu0 %v2803
    %2883 = vmatprep.subr.mxu0 %v2808
    %2884 = vmatpush1.msra.mxu0 %v2807
    %2885 = vmatprep.subr.mxu0 %v2812
    %2886 = vmatpush1.msra.mxu0 %v2811
    %2887 = vmatprep.subr.mxu0 %v2816
    %2888 = vmatpush1.msra.mxu0 %v2815
    %2889 = vmatprep.subr.mxu0 %v2820
    %2890 = vmatpush1.msra.mxu0 %v2819
    %2891 = vmatprep.subr.mxu0 %v2824
    %2892 = vmatpush1.msra.mxu0 %v2823
    %2893 = vmatprep.subr.mxu0 %v2828
    %2894 = vmatpush1.msra.mxu0 %v2827
    %2895 = vmatprep.subr.mxu0 %v2832
    %2896 = vmatpush1.msra.mxu0 %v2831
    %2897 = vmatprep.subr.mxu0 %v2836
    %2898 = vmatpush1.msra.mxu0 %v2835
    %2899 = vmatprep.subr.mxu0 %v2840
    %2900 = vmatpush1.msra.mxu0 %v2839
    %2901 = vmatprep.subr.mxu0 %v2844
    %2902 = vmatpush1.msra.mxu0 %v2843
    %2903 = vmatprep.subr.mxu0 %v2848
    %2904 = vmatpush1.msra.mxu0 %v2847
    %2905 = vmatprep.subr.mxu0 0.0
    %2906 = vmatpush1.msra.mxu0 0.0
    %2907 = vmatprep.subr.mxu0 0.0
    %2908 = vmatpush1.msra.mxu0 0.0
    %2909 = vmatprep.subr.mxu0 0.0
    %2910 = vmatpush1.msra.mxu0 0.0
    %2911 = vmatprep.subr.mxu0 0.0
    %2912 = vmatpush1.msra.mxu0 0.0
    %2913 = vmatprep.subr.mxu0 0.0
    %2914 = vmatpush1.msra.mxu0 0.0
    %2915 = vmatprep.subr.mxu0 0.0
    %2916 = vmatpush1.msra.mxu0 0.0
    %2917 = vmatprep.subr.mxu0 0.0
    %2918 = vmatpush1.msra.mxu0 0.0
    %2919 = vmatprep.subr.mxu0 0.0
    %2920 = vmatpush1.msra.mxu0 0.0
    %2921 = vmatprep.subr.mxu0 0.0
    %2922 = vmatpush1.msra.mxu0 0.0
    %2923 = vmatprep.subr.mxu0 0.0
    %2924 = vmatpush1.msra.mxu0 0.0
    %2925 = vmatprep.subr.mxu0 0.0
    %2926 = vmatpush1.msra.mxu0 0.0
    %2927 = vmatprep.subr.mxu0 0.0
    %2928 = vmatpush1.msra.mxu0 0.0
    %2929 = vmatprep.subr.mxu0 0.0
    %2930 = vmatpush1.msra.mxu0 0.0
    %2931 = vmatprep.subr.mxu0 0.0
    %2932 = vmatpush1.msra.mxu0 0.0
    %2933 = vmatprep.subr.mxu0 0.0
    %2934 = vmatpush1.msra.mxu0 0.0
    %2935 = vmatprep.subr.mxu0 0.0
    %2936 = vmatpush1.msra.mxu0 0.0
    %2937 = vmatprep.mubr.f32.mxu0 0.0
    %2938 = vmatmul.mubr.f32.gmra.mrb[0].mxu0 %v2723
    %v2939 = vpop.f32.mrb[0].mxu0
    %v2940 = vadd.f32 %v2856, %v2939
    %v2941 = vpop.f32.mrb[0].mxu0
    %v2942 = vadd.f32 %v2860, %v2941
    %2943 = vmatprep.mubr.f32.mxu0 0.0
    %2944 = vmatmul.mubr.f32.gmra.mrb[0].mxu0 %v2724
    %v2945 = vpop.f32.mrb[0].mxu0
    %v2946 = vadd.f32 %v2856, %v2945
    %v2947 = vpop.f32.mrb[0].mxu0
    %v2948 = vadd.f32 %v2860, %v2947
    %2949 = vmatprep.mubr.f32.mxu0 0.0
    %2950 = vmatmul.mubr.f32.gmra.mrb[0].mxu0 %v2725
    %v2951 = vpop.f32.mrb[0].mxu0
    %v2952 = vadd.f32 %v2856, %v2951
    %v2953 = vpop.f32.mrb[0].mxu0
    %v2954 = vadd.f32 %v2860, %v2953
    %2955 = vmatprep.mubr.f32.mxu0 0.0
    %2956 = vmatmul.mubr.f32.gmra.mrb[0].mxu0 %v2726
    %v2957 = vpop.f32.mrb[0].mxu0
    %v2958 = vadd.f32 %v2856, %v2957
    %v2959 = vpop.f32.mrb[0].mxu0
    %v2960 = vadd.f32 %v2860, %v2959
    %2961 = vmatprep.mubr.f32.mxu0 0.0
    %2962 = vmatmul.mubr.f32.gmra.mrb[0].mxu0 %v2727
    %v2963 = vpop.f32.mrb[0].mxu0
    %v2964 = vadd.f32 %v2856, %v2963
    %v2965 = vpop.f32.mrb[0].mxu0
    %v2966 = vadd.f32 %v2860, %v2965
    %2967 = vmatprep.mubr.f32.mxu0 0.0
    %2968 = vmatmul.mubr.f32.gmra.mrb[0].mxu0 %v2728
    %v2969 = vpop.f32.mrb[0].mxu0
    %v2970 = vadd.f32 %v2856, %v2969
    %v2971 = vpop.f32.mrb[0].mxu0
    %v2972 = vadd.f32 %v2860, %v2971
    %2973 = vmatprep.mubr.f32.mxu0 0.0
    %2974 = vmatmul.mubr.f32.gmra.mrb[0].mxu0 %v2729
    %v2975 = vpop.f32.mrb[0].mxu0
    %v2976 = vadd.f32 %v2856, %v2975
    %v2977 = vpop.f32.mrb[0].mxu0
    %v2978 = vadd.f32 %v2860, %v2977
    %2979 = vmatprep.mubr.f32.mxu0 0.0
    %2980 = vmatmul.mubr.f32.gmra.mrb[0].mxu0 %v2730
    %v2981 = vpop.f32.mrb[0].mxu0
    %v2982 = vadd.f32 %v2856, %v2981
    %v2983 = vpop.f32.mrb[0].mxu0
    %v2984 = vadd.f32 %v2860, %v2983
    %2985 = vmatprep.mubr.f32.mxu0 0.0
    %2986 = vmatmul.mubr.f32.gmra.mrb[0].mxu0 %v2731
    %v2987 = vpop.f32.mrb[0].mxu0
    %v2988 = vadd.f32 %v2856, %v2987
    %v2989 = vpop.f32.mrb[0].mxu0
    %v2990 = vadd.f32 %v2860, %v2989
    %2991 = vmatprep.mubr.f32.mxu0 0.0
    %2992 = vmatmul.mubr.f32.gmra.mrb[0].mxu0 %v2732
    %v2993 = vpop.f32.mrb[0].mxu0
    %v2994 = vadd.f32 %v2856, %v2993
    %v2995 = vpop.f32.mrb[0].mxu0
    %v2996 = vadd.f32 %v2860, %v2995
    %2997 = vmatprep.mubr.f32.mxu0 0.0
    %2998 = vmatmul.mubr.f32.gmra.mrb[0].mxu0 %v2733
    %v2999 = vpop.f32.mrb[0].mxu0
    %v3000 = vadd.f32 %v2856, %v2999
    %v3001 = vpop.f32.mrb[0].mxu0
    %v3002 = vadd.f32 %v2860, %v3001
    %3003 = vmatprep.mubr.f32.mxu0 0.0
    %3004 = vmatmul.mubr.f32.gmra.mrb[0].mxu0 %v2734
    %v3005 = vpop.f32.mrb[0].mxu0
    %v3006 = vadd.f32 %v2856, %v3005
    %v3007 = vpop.f32.mrb[0].mxu0
    %v3008 = vadd.f32 %v2860, %v3007
    %3009 = vmatprep.mubr.f32.mxu0 0.0
    %3010 = vmatmul.mubr.f32.gmra.mrb[0].mxu0 %v2735
    %v3011 = vpop.f32.mrb[0].mxu0
    %v3012 = vadd.f32 %v2856, %v3011
    %v3013 = vpop.f32.mrb[0].mxu0
    %v3014 = vadd.f32 %v2860, %v3013
    %3015 = vmatprep.mubr.f32.mxu0 0.0
    %3016 = vmatmul.mubr.f32.gmra.mrb[0].mxu0 %v2736
    %v3017 = vpop.f32.mrb[0].mxu0
    %v3018 = vadd.f32 %v2856, %v3017
    %v3019 = vpop.f32.mrb[0].mxu0
    %v3020 = vadd.f32 %v2860, %v3019
    %3021 = vmatprep.mubr.f32.mxu0 0.0
    %3022 = vmatmul.mubr.f32.gmra.mrb[0].mxu0 %v2737
    %v3023 = vpop.f32.mrb[0].mxu0
    %v3024 = vadd.f32 %v2856, %v3023
    %v3025 = vpop.f32.mrb[0].mxu0
    %v3026 = vadd.f32 %v2860, %v3025
    %3027 = vmatprep.mubr.f32.mxu0 0.0
    %3028 = vmatmul.mubr.f32.gmra.mrb[0].mxu0 %v2738
    %v3029 = vpop.f32.mrb[0].mxu0
    %v3030 = vadd.f32 %v2856, %v3029
    %v3031 = vpop.f32.mrb[0].mxu0
    %v3032 = vadd.f32 %v2860, %v3031
    %3033 = vmatprep.mubr.f32.mxu0 0.0
    %3034 = vmatmul.mubr.f32.gmra.mrb[0].mxu0 %v2739
    %v3035 = vpop.f32.mrb[0].mxu0
    %v3036 = vadd.f32 %v2856, %v3035
    %v3037 = vpop.f32.mrb[0].mxu0
    %v3038 = vadd.f32 %v2860, %v3037
    %3039 = vmatprep.mubr.f32.mxu0 0.0
    %3040 = vmatmul.mubr.f32.gmra.mrb[0].mxu0 %v2740
    %v3041 = vpop.f32.mrb[0].mxu0
    %v3042 = vadd.f32 %v2856, %v3041
    %v3043 = vpop.f32.mrb[0].mxu0
    %v3044 = vadd.f32 %v2860, %v3043
    %3045 = vmatprep.mubr.f32.mxu0 0.0
    %3046 = vmatmul.mubr.f32.gmra.mrb[0].mxu0 %v2741
    %v3047 = vpop.f32.mrb[0].mxu0
    %v3048 = vadd.f32 %v2856, %v3047
    %v3049 = vpop.f32.mrb[0].mxu0
    %v3050 = vadd.f32 %v2860, %v3049
    %3051 = vmatprep.mubr.f32.mxu0 0.0
    %3052 = vmatmul.mubr.f32.gmra.mrb[0].mxu0 %v2742
    %v3053 = vpop.f32.mrb[0].mxu0
    %v3054 = vadd.f32 %v2856, %v3053
    %v3055 = vpop.f32.mrb[0].mxu0
    %v3056 = vadd.f32 %v2860, %v3055
    %3057 = vmatprep.mubr.f32.mxu0 0.0
    %3058 = vmatmul.mubr.f32.gmra.mrb[0].mxu0 %v2743
    %v3059 = vpop.f32.mrb[0].mxu0
    %v3060 = vadd.f32 %v2856, %v3059
    %v3061 = vpop.f32.mrb[0].mxu0
    %v3062 = vadd.f32 %v2860, %v3061
    %3063 = vmatprep.mubr.f32.mxu0 0.0
    %3064 = vmatmul.mubr.f32.gmra.mrb[0].mxu0 %v2744
    %v3065 = vpop.f32.mrb[0].mxu0
    %v3066 = vadd.f32 %v2856, %v3065
    %v3067 = vpop.f32.mrb[0].mxu0
    %v3068 = vadd.f32 %v2860, %v3067
    %3069 = vmatprep.mubr.f32.mxu0 0.0
    %3070 = vmatmul.mubr.f32.gmra.mrb[0].mxu0 %v2745
    %v3071 = vpop.f32.mrb[0].mxu0
    %v3072 = vadd.f32 %v2856, %v3071
    %v3073 = vpop.f32.mrb[0].mxu0
    %v3074 = vadd.f32 %v2860, %v3073
    %3075 = vmatprep.mubr.f32.mxu0 0.0
    %3076 = vmatmul.mubr.f32.gmra.mrb[0].mxu0 %v2746
    %v3077 = vpop.f32.mrb[0].mxu0
    %v3078 = vadd.f32 %v2856, %v3077
    %v3079 = vpop.f32.mrb[0].mxu0
    %v3080 = vadd.f32 %v2860, %v3079
    %3081 = vmatprep.mubr.f32.mxu0 0.0
    %3082 = vmatmul.mubr.f32.gmra.mrb[0].mxu0 %v2747
    %v3083 = vpop.f32.mrb[0].mxu0
    %v3084 = vadd.f32 %v2856, %v3083
    %v3085 = vpop.f32.mrb[0].mxu0
    %v3086 = vadd.f32 %v2860, %v3085
    %3087 = vmatprep.mubr.f32.mxu0 0.0
    %3088 = vmatmul.mubr.f32.gmra.mrb[0].mxu0 %v2748
    %v3089 = vpop.f32.mrb[0].mxu0
    %v3090 = vadd.f32 %v2856, %v3089
    %v3091 = vpop.f32.mrb[0].mxu0
    %v3092 = vadd.f32 %v2860, %v3091
    %3093 = vmatprep.mubr.f32.mxu0 0.0
    %3094 = vmatmul.mubr.f32.gmra.mrb[0].mxu0 %v2749
    %v3095 = vpop.f32.mrb[0].mxu0
    %v3096 = vadd.f32 %v2856, %v3095
    %v3097 = vpop.f32.mrb[0].mxu0
    %v3098 = vadd.f32 %v2860, %v3097
    %3099 = vmatprep.mubr.f32.mxu0 0.0
    %3100 = vmatmul.mubr.f32.gmra.mrb[0].mxu0 %v2750
    %v3101 = vpop.f32.mrb[0].mxu0
    %v3102 = vadd.f32 %v2856, %v3101
    %v3103 = vpop.f32.mrb[0].mxu0
    %v3104 = vadd.f32 %v2860, %v3103
    %3105 = vmatprep.mubr.f32.mxu0 0.0
    %3106 = vmatmul.mubr.f32.gmra.mrb[0].mxu0 %v2751
    %v3107 = vpop.f32.mrb[0].mxu0
    %v3108 = vadd.f32 %v2856, %v3107
    %v3109 = vpop.f32.mrb[0].mxu0
    %v3110 = vadd.f32 %v2860, %v3109
    %3111 = vmatprep.mubr.f32.mxu0 0.0
    %3112 = vmatmul.mubr.f32.gmra.mrb[0].mxu0 %v2752
    %v3113 = vpop.f32.mrb[0].mxu0
    %v3114 = vadd.f32 %v2856, %v3113
    %v3115 = vpop.f32.mrb[0].mxu0
    %v3116 = vadd.f32 %v2860, %v3115
    %3117 = vmatprep.mubr.f32.mxu0 0.0
    %3118 = vmatmul.mubr.f32.gmra.mrb[0].mxu0 %v2753
    %v3119 = vpop.f32.mrb[0].mxu0
    %v3120 = vadd.f32 %v2856, %v3119
    %v3121 = vpop.f32.mrb[0].mxu0
    %v3122 = vadd.f32 %v2860, %v3121
    %3123 = vmatprep.mubr.f32.mxu0 0.0
    %3124 = vmatmul.mubr.f32.gmra.mrb[0].mxu0 %v2754
    %v3125 = vpop.f32.mrb[0].mxu0
    %v3126 = vadd.f32 %v2856, %v3125
    %v3127 = vpop.f32.mrb[0].mxu0
    %v3128 = vadd.f32 %v2860, %v3127
    %3129 = vmatprep.mubr.f32.mxu0 0.0
    %3130 = vmatmul.mubr.f32.gmra.mrb[0].mxu0 %v2755
    %v3131 = vpop.f32.mrb[0].mxu0
    %v3132 = vadd.f32 %v2856, %v3131
    %v3133 = vpop.f32.mrb[0].mxu0
    %v3134 = vadd.f32 %v2860, %v3133
    %3135 = vmatprep.mubr.f32.mxu0 0.0
    %3136 = vmatmul.mubr.f32.gmra.mrb[0].mxu0 %v2756
    %v3137 = vpop.f32.mrb[0].mxu0
    %v3138 = vadd.f32 %v2856, %v3137
    %v3139 = vpop.f32.mrb[0].mxu0
    %v3140 = vadd.f32 %v2860, %v3139
    %3141 = vmatprep.mubr.f32.mxu0 0.0
    %3142 = vmatmul.mubr.f32.gmra.mrb[0].mxu0 %v2757
    %v3143 = vpop.f32.mrb[0].mxu0
    %v3144 = vadd.f32 %v2856, %v3143
    %v3145 = vpop.f32.mrb[0].mxu0
    %v3146 = vadd.f32 %v2860, %v3145
    %3147 = vmatprep.mubr.f32.mxu0 0.0
    %3148 = vmatmul.mubr.f32.gmra.mrb[0].mxu0 %v2758
    %v3149 = vpop.f32.mrb[0].mxu0
    %v3150 = vadd.f32 %v2856, %v3149
    %v3151 = vpop.f32.mrb[0].mxu0
    %v3152 = vadd.f32 %v2860, %v3151
    %3153 = vmatprep.mubr.f32.mxu0 0.0
    %3154 = vmatmul.mubr.f32.gmra.mrb[0].mxu0 %v2759
    %v3155 = vpop.f32.mrb[0].mxu0
    %v3156 = vadd.f32 %v2856, %v3155
    %v3157 = vpop.f32.mrb[0].mxu0
    %v3158 = vadd.f32 %v2860, %v3157
    %3159 = vmatprep.mubr.f32.mxu0 0.0
    %3160 = vmatmul.mubr.f32.gmra.mrb[0].mxu0 %v2760
    %v3161 = vpop.f32.mrb[0].mxu0
    %v3162 = vadd.f32 %v2856, %v3161
    %v3163 = vpop.f32.mrb[0].mxu0
    %v3164 = vadd.f32 %v2860, %v3163
    %3165 = vmatprep.mubr.f32.mxu0 0.0
    %3166 = vmatmul.mubr.f32.gmra.mrb[0].mxu0 %v2761
    %v3167 = vpop.f32.mrb[0].mxu0
    %v3168 = vadd.f32 %v2856, %v3167
    %v3169 = vpop.f32.mrb[0].mxu0
    %v3170 = vadd.f32 %v2860, %v3169
    %3171 = vmatprep.mubr.f32.mxu0 0.0
    %3172 = vmatmul.mubr.f32.gmra.mrb[0].mxu0 %v2762
    %v3173 = vpop.f32.mrb[0].mxu0
    %v3174 = vadd.f32 %v2856, %v3173
    %v3175 = vpop.f32.mrb[0].mxu0
    %v3176 = vadd.f32 %v2860, %v3175
    %3177 = vmatprep.mubr.f32.mxu0 0.0
    %3178 = vmatmul.mubr.f32.gmra.mrb[0].mxu0 %v2763
    %v3179 = vpop.f32.mrb[0].mxu0
    %v3180 = vadd.f32 %v2856, %v3179
    %v3181 = vpop.f32.mrb[0].mxu0
    %v3182 = vadd.f32 %v2860, %v3181
    %3183 = vmatprep.mubr.f32.mxu0 0.0
    %3184 = vmatmul.mubr.f32.gmra.mrb[0].mxu0 %v2764
    %v3185 = vpop.f32.mrb[0].mxu0
    %v3186 = vadd.f32 %v2856, %v3185
    %v3187 = vpop.f32.mrb[0].mxu0
    %v3188 = vadd.f32 %v2860, %v3187
    %3189 = vmatprep.mubr.f32.mxu0 0.0
    %3190 = vmatmul.mubr.f32.gmra.mrb[0].mxu0 %v2765
    %v3191 = vpop.f32.mrb[0].mxu0
    %v3192 = vadd.f32 %v2856, %v3191
    %v3193 = vpop.f32.mrb[0].mxu0
    %v3194 = vadd.f32 %v2860, %v3193
    %3195 = vmatprep.mubr.f32.mxu0 0.0
    %3196 = vmatmul.mubr.f32.gmra.mrb[0].mxu0 %v2766
    %v3197 = vpop.f32.mrb[0].mxu0
    %v3198 = vadd.f32 %v2856, %v3197
    %v3199 = vpop.f32.mrb[0].mxu0
    %v3200 = vadd.f32 %v2860, %v3199
    %3201 = vmatprep.mubr.f32.mxu0 0.0
    %3202 = vmatmul.mubr.f32.gmra.mrb[0].mxu0 %v2767
    %v3203 = vpop.f32.mrb[0].mxu0
    %v3204 = vadd.f32 %v2856, %v3203
    %v3205 = vpop.f32.mrb[0].mxu0
    %v3206 = vadd.f32 %v2860, %v3205
    %3207 = vmatprep.mubr.f32.mxu0 0.0
    %3208 = vmatmul.mubr.f32.gmra.mrb[0].mxu0 %v2768
    %v3209 = vpop.f32.mrb[0].mxu0
    %v3210 = vadd.f32 %v2856, %v3209
    %v3211 = vpop.f32.mrb[0].mxu0
    %v3212 = vadd.f32 %v2860, %v3211
    %3213 = vmatprep.mubr.f32.mxu0 0.0
    %3214 = vmatmul.mubr.f32.gmra.mrb[0].mxu0 %v2769
    %v3215 = vpop.f32.mrb[0].mxu0
    %v3216 = vadd.f32 %v2856, %v3215
    %v3217 = vpop.f32.mrb[0].mxu0
    %v3218 = vadd.f32 %v2860, %v3217
    %3219 = vmatprep.mubr.f32.mxu0 0.0
    %3220 = vmatmul.mubr.f32.gmra.mrb[0].mxu0 %v2770
    %v3221 = vpop.f32.mrb[0].mxu0
    %v3222 = vadd.f32 %v2856, %v3221
    %v3223 = vpop.f32.mrb[0].mxu0
    %v3224 = vadd.f32 %v2860, %v3223
    %3225 = vmatprep.mubr.f32.mxu0 0.0
    %3226 = vmatmul.mubr.f32.gmra.mrb[0].mxu0 %v2771
    %v3227 = vpop.f32.mrb[0].mxu0
    %v3228 = vadd.f32 %v2856, %v3227
    %v3229 = vpop.f32.mrb[0].mxu0
    %v3230 = vadd.f32 %v2860, %v3229
    %3231 = vmatprep.mubr.f32.mxu0 0.0
    %3232 = vmatmul.mubr.f32.gmra.mrb[0].mxu0 %v2772
    %v3233 = vpop.f32.mrb[0].mxu0
    %v3234 = vadd.f32 %v2856, %v3233
    %v3235 = vpop.f32.mrb[0].mxu0
    %v3236 = vadd.f32 %v2860, %v3235
    %3237 = vmatprep.mubr.f32.mxu0 0.0
    %3238 = vmatmul.mubr.f32.gmra.mrb[0].mxu0 %v2773
    %v3239 = vpop.f32.mrb[0].mxu0
    %v3240 = vadd.f32 %v2856, %v3239
    %v3241 = vpop.f32.mrb[0].mxu0
    %v3242 = vadd.f32 %v2860, %v3241
    %3243 = vmatprep.mubr.f32.mxu0 0.0
    %3244 = vmatmul.mubr.f32.gmra.mrb[0].mxu0 %v2774
    %v3245 = vpop.f32.mrb[0].mxu0
    %v3246 = vadd.f32 %v2856, %v3245
    %v3247 = vpop.f32.mrb[0].mxu0
    %v3248 = vadd.f32 %v2860, %v3247
    %3249 = vmatprep.mubr.f32.mxu0 0.0
    %3250 = vmatmul.mubr.f32.gmra.mrb[0].mxu0 %v2775
    %v3251 = vpop.f32.mrb[0].mxu0
    %v3252 = vadd.f32 %v2856, %v3251
    %v3253 = vpop.f32.mrb[0].mxu0
    %v3254 = vadd.f32 %v2860, %v3253
    %3255 = vmatprep.mubr.f32.mxu0 0.0
    %3256 = vmatmul.mubr.f32.gmra.mrb[0].mxu0 %v2776
    %v3257 = vpop.f32.mrb[0].mxu0
    %v3258 = vadd.f32 %v2856, %v3257
    %v3259 = vpop.f32.mrb[0].mxu0
    %v3260 = vadd.f32 %v2860, %v3259
    %3261 = vmatprep.mubr.f32.mxu0 0.0
    %3262 = vmatmul.mubr.f32.gmra.mrb[0].mxu0 %v2777
    %v3263 = vpop.f32.mrb[0].mxu0
    %v3264 = vadd.f32 %v2856, %v3263
    %v3265 = vpop.f32.mrb[0].mxu0
    %v3266 = vadd.f32 %v2860, %v3265
    %3267 = vmatprep.mubr.f32.mxu0 0.0
    %3268 = vmatmul.mubr.f32.gmra.mrb[0].mxu0 %v2778
    %v3269 = vpop.f32.mrb[0].mxu0
    %v3270 = vadd.f32 %v2856, %v3269
    %v3271 = vpop.f32.mrb[0].mxu0
    %v3272 = vadd.f32 %v2860, %v3271
    %3273 = vmatprep.mubr.f32.mxu0 0.0
    %3274 = vmatmul.mubr.f32.gmra.mrb[0].mxu0 %v2779
    %v3275 = vpop.f32.mrb[0].mxu0
    %v3276 = vadd.f32 %v2856, %v3275
    %v3277 = vpop.f32.mrb[0].mxu0
    %v3278 = vadd.f32 %v2860, %v3277
    %3279 = vmatprep.mubr.f32.mxu0 0.0
    %3280 = vmatmul.mubr.f32.gmra.mrb[0].mxu0 %v2780
    %v3281 = vpop.f32.mrb[0].mxu0
    %v3282 = vadd.f32 %v2856, %v3281
    %v3283 = vpop.f32.mrb[0].mxu0
    %v3284 = vadd.f32 %v2860, %v3283
    %3285 = vmatprep.mubr.f32.mxu0 0.0
    %3286 = vmatmul.mubr.f32.gmra.mrb[0].mxu0 %v2781
    %v3287 = vpop.f32.mrb[0].mxu0
    %v3288 = vadd.f32 %v2856, %v3287
    %v3289 = vpop.f32.mrb[0].mxu0
    %v3290 = vadd.f32 %v2860, %v3289
    %3291 = vmatprep.mubr.f32.mxu0 0.0
    %3292 = vmatmul.mubr.f32.gmra.mrb[0].mxu0 %v2782
    %v3293 = vpop.f32.mrb[0].mxu0
    %v3294 = vadd.f32 %v2856, %v3293
    %v3295 = vpop.f32.mrb[0].mxu0
    %v3296 = vadd.f32 %v2860, %v3295
    %3297 = vmatprep.mubr.f32.mxu0 0.0
    %3298 = vmatmul.mubr.f32.gmra.mrb[0].mxu0 %v2783
    %v3299 = vpop.f32.mrb[0].mxu0
    %v3300 = vadd.f32 %v2856, %v3299
    %v3301 = vpop.f32.mrb[0].mxu0
    %v3302 = vadd.f32 %v2860, %v3301
    %3303 = vmatprep.mubr.f32.mxu0 0.0
    %3304 = vmatmul.mubr.f32.gmra.mrb[0].mxu0 %v2784
    %v3305 = vpop.f32.mrb[0].mxu0
    %v3306 = vadd.f32 %v2856, %v3305
    %v3307 = vpop.f32.mrb[0].mxu0
    %v3308 = vadd.f32 %v2860, %v3307
    %3309 = vmatprep.mubr.f32.mxu0 0.0
    %3310 = vmatmul.mubr.f32.gmra.mrb[0].mxu0 %v2785
    %v3311 = vpop.f32.mrb[0].mxu0
    %v3312 = vadd.f32 %v2856, %v3311
    %v3313 = vpop.f32.mrb[0].mxu0
    %v3314 = vadd.f32 %v2860, %v3313
    %3315 = vmatprep.mubr.f32.mxu0 0.0
    %3316 = vmatmul.mubr.f32.gmra.mrb[0].mxu0 %v2786
    %v3317 = vpop.f32.mrb[0].mxu0
    %v3318 = vadd.f32 %v2856, %v3317
    %v3319 = vpop.f32.mrb[0].mxu0
    %v3320 = vadd.f32 %v2860, %v3319
    %3321 = vdwg.mxu0
    %3322 = vmatprep.subr.mxu0 %v2790
    %3323 = vmatpush1.msra.mxu0 %v2789
    %3324 = vmatprep.subr.mxu0 %v2794
    %3325 = vmatpush1.msra.mxu0 %v2793
    %3326 = vmatprep.subr.mxu0 %v2798
    %3327 = vmatpush1.msra.mxu0 %v2797
    %3328 = vmatprep.subr.mxu0 %v2802
    %3329 = vmatpush1.msra.mxu0 %v2801
    %3330 = vmatprep.subr.mxu0 %v2806
    %3331 = vmatpush1.msra.mxu0 %v2805
    %3332 = vmatprep.subr.mxu0 %v2810
    %3333 = vmatpush1.msra.mxu0 %v2809
    %3334 = vmatprep.subr.mxu0 %v2814
    %3335 = vmatpush1.msra.mxu0 %v2813
    %3336 = vmatprep.subr.mxu0 %v2818
    %3337 = vmatpush1.msra.mxu0 %v2817
    %3338 = vmatprep.subr.mxu0 %v2822
    %3339 = vmatpush1.msra.mxu0 %v2821
    %3340 = vmatprep.subr.mxu0 %v2826
    %3341 = vmatpush1.msra.mxu0 %v2825
    %3342 = vmatprep.subr.mxu0 %v2830
    %3343 = vmatpush1.msra.mxu0 %v2829
    %3344 = vmatprep.subr.mxu0 %v2834
    %3345 = vmatpush1.msra.mxu0 %v2833
    %3346 = vmatprep.subr.mxu0 %v2838
    %3347 = vmatpush1.msra.mxu0 %v2837
    %3348 = vmatprep.subr.mxu0 %v2842
    %3349 = vmatpush1.msra.mxu0 %v2841
    %3350 = vmatprep.subr.mxu0 %v2846
    %3351 = vmatpush1.msra.mxu0 %v2845
    %3352 = vmatprep.subr.mxu0 %v2850
    %3353 = vmatpush1.msra.mxu0 %v2849
    %3354 = vmatprep.subr.mxu0 0.0
    %3355 = vmatpush1.msra.mxu0 0.0
    %3356 = vmatprep.subr.mxu0 0.0
    %3357 = vmatpush1.msra.mxu0 0.0
    %3358 = vmatprep.subr.mxu0 0.0
    %3359 = vmatpush1.msra.mxu0 0.0
    %3360 = vmatprep.subr.mxu0 0.0
    %3361 = vmatpush1.msra.mxu0 0.0
    %3362 = vmatprep.subr.mxu0 0.0
    %3363 = vmatpush1.msra.mxu0 0.0
    %3364 = vmatprep.subr.mxu0 0.0
    %3365 = vmatpush1.msra.mxu0 0.0
    %3366 = vmatprep.subr.mxu0 0.0
    %3367 = vmatpush1.msra.mxu0 0.0
    %3368 = vmatprep.subr.mxu0 0.0
    %3369 = vmatpush1.msra.mxu0 0.0
    %3370 = vmatprep.subr.mxu0 0.0
    %3371 = vmatpush1.msra.mxu0 0.0
    %3372 = vmatprep.subr.mxu0 0.0
    %3373 = vmatpush1.msra.mxu0 0.0
    %3374 = vmatprep.subr.mxu0 0.0
    %3375 = vmatpush1.msra.mxu0 0.0
    %3376 = vmatprep.subr.mxu0 0.0
    %3377 = vmatpush1.msra.mxu0 0.0
    %3378 = vmatprep.subr.mxu0 0.0
    %3379 = vmatpush1.msra.mxu0 0.0
    %3380 = vmatprep.subr.mxu0 0.0
    %3381 = vmatpush1.msra.mxu0 0.0
    %3382 = vmatprep.subr.mxu0 0.0
    %3383 = vmatpush1.msra.mxu0 0.0
    %3384 = vmatprep.subr.mxu0 0.0
    %3385 = vmatpush1.msra.mxu0 0.0
    %3386 = vmatprep.mubr.f32.mxu0 0.0
    %3387 = vmatmul.mubr.f32.gmra.mrb[0].mxu0 %v2723
    %v3388 = vpop.f32.mrb[0].mxu0
    %v3389 = vadd.f32 %v2864, %v3388
    %v3390 = vpop.f32.mrb[0].mxu0
    %v3391 = vadd.f32 %v2868, %v3390
    %3392 = vmatprep.mubr.f32.mxu0 0.0
    %3393 = vmatmul.mubr.f32.gmra.mrb[0].mxu0 %v2724
    %v3394 = vpop.f32.mrb[0].mxu0
    %v3395 = vadd.f32 %v2864, %v3394
    %v3396 = vpop.f32.mrb[0].mxu0
    %v3397 = vadd.f32 %v2868, %v3396
    %3398 = vmatprep.mubr.f32.mxu0 0.0
    %3399 = vmatmul.mubr.f32.gmra.mrb[0].mxu0 %v2725
    %v3400 = vpop.f32.mrb[0].mxu0
    %v3401 = vadd.f32 %v2864, %v3400
    %v3402 = vpop.f32.mrb[0].mxu0
    %v3403 = vadd.f32 %v2868, %v3402
    %3404 = vmatprep.mubr.f32.mxu0 0.0
    %3405 = vmatmul.mubr.f32.gmra.mrb[0].mxu0 %v2726
    %v3406 = vpop.f32.mrb[0].mxu0
    %v3407 = vadd.f32 %v2864, %v3406
    %v3408 = vpop.f32.mrb[0].mxu0
    %v3409 = vadd.f32 %v2868, %v3408
    %3410 = vmatprep.mubr.f32.mxu0 0.0
    %3411 = vmatmul.mubr.f32.gmra.mrb[0].mxu0 %v2727
    %v3412 = vpop.f32.mrb[0].mxu0
    %v3413 = vadd.f32 %v2864, %v3412
    %v3414 = vpop.f32.mrb[0].mxu0
    %v3415 = vadd.f32 %v2868, %v3414
    %3416 = vmatprep.mubr.f32.mxu0 0.0
    %3417 = vmatmul.mubr.f32.gmra.mrb[0].mxu0 %v2728
    %v3418 = vpop.f32.mrb[0].mxu0
    %v3419 = vadd.f32 %v2864, %v3418
    %v3420 = vpop.f32.mrb[0].mxu0
    %v3421 = vadd.f32 %v2868, %v3420
    %3422 = vmatprep.mubr.f32.mxu0 0.0
    %3423 = vmatmul.mubr.f32.gmra.mrb[0].mxu0 %v2729
    %v3424 = vpop.f32.mrb[0].mxu0
    %v3425 = vadd.f32 %v2864, %v3424
    %v3426 = vpop.f32.mrb[0].mxu0
    %v3427 = vadd.f32 %v2868, %v3426
    %3428 = vmatprep.mubr.f32.mxu0 0.0
    %3429 = vmatmul.mubr.f32.gmra.mrb[0].mxu0 %v2730
    %v3430 = vpop.f32.mrb[0].mxu0
    %v3431 = vadd.f32 %v2864, %v3430
    %v3432 = vpop.f32.mrb[0].mxu0
    %v3433 = vadd.f32 %v2868, %v3432
    %3434 = vmatprep.mubr.f32.mxu0 0.0
    %3435 = vmatmul.mubr.f32.gmra.mrb[0].mxu0 %v2731
    %v3436 = vpop.f32.mrb[0].mxu0
    %v3437 = vadd.f32 %v2864, %v3436
    %v3438 = vpop.f32.mrb[0].mxu0
    %v3439 = vadd.f32 %v2868, %v3438
    %3440 = vmatprep.mubr.f32.mxu0 0.0
    %3441 = vmatmul.mubr.f32.gmra.mrb[0].mxu0 %v2732
    %v3442 = vpop.f32.mrb[0].mxu0
    %v3443 = vadd.f32 %v2864, %v3442
    %v3444 = vpop.f32.mrb[0].mxu0
    %v3445 = vadd.f32 %v2868, %v3444
    %3446 = vmatprep.mubr.f32.mxu0 0.0
    %3447 = vmatmul.mubr.f32.gmra.mrb[0].mxu0 %v2733
    %v3448 = vpop.f32.mrb[0].mxu0
    %v3449 = vadd.f32 %v2864, %v3448
    %v3450 = vpop.f32.mrb[0].mxu0
    %v3451 = vadd.f32 %v2868, %v3450
    %3452 = vmatprep.mubr.f32.mxu0 0.0
    %3453 = vmatmul.mubr.f32.gmra.mrb[0].mxu0 %v2734
    %v3454 = vpop.f32.mrb[0].mxu0
    %v3455 = vadd.f32 %v2864, %v3454
    %v3456 = vpop.f32.mrb[0].mxu0
    %v3457 = vadd.f32 %v2868, %v3456
    %3458 = vmatprep.mubr.f32.mxu0 0.0
    %3459 = vmatmul.mubr.f32.gmra.mrb[0].mxu0 %v2735
    %v3460 = vpop.f32.mrb[0].mxu0
    %v3461 = vadd.f32 %v2864, %v3460
    %v3462 = vpop.f32.mrb[0].mxu0
    %v3463 = vadd.f32 %v2868, %v3462
    %3464 = vmatprep.mubr.f32.mxu0 0.0
    %3465 = vmatmul.mubr.f32.gmra.mrb[0].mxu0 %v2736
    %v3466 = vpop.f32.mrb[0].mxu0
    %v3467 = vadd.f32 %v2864, %v3466
    %v3468 = vpop.f32.mrb[0].mxu0
    %v3469 = vadd.f32 %v2868, %v3468
    %3470 = vmatprep.mubr.f32.mxu0 0.0
    %3471 = vmatmul.mubr.f32.gmra.mrb[0].mxu0 %v2737
    %v3472 = vpop.f32.mrb[0].mxu0
    %v3473 = vadd.f32 %v2864, %v3472
    %v3474 = vpop.f32.mrb[0].mxu0
    %v3475 = vadd.f32 %v2868, %v3474
    %3476 = vmatprep.mubr.f32.mxu0 0.0
    %3477 = vmatmul.mubr.f32.gmra.mrb[0].mxu0 %v2738
    %v3478 = vpop.f32.mrb[0].mxu0
    %v3479 = vadd.f32 %v2864, %v3478
    %v3480 = vpop.f32.mrb[0].mxu0
    %v3481 = vadd.f32 %v2868, %v3480
    %3482 = vmatprep.mubr.f32.mxu0 0.0
    %3483 = vmatmul.mubr.f32.gmra.mrb[0].mxu0 %v2739
    %v3484 = vpop.f32.mrb[0].mxu0
    %v3485 = vadd.f32 %v2864, %v3484
    %v3486 = vpop.f32.mrb[0].mxu0
    %v3487 = vadd.f32 %v2868, %v3486
    %3488 = vmatprep.mubr.f32.mxu0 0.0
    %3489 = vmatmul.mubr.f32.gmra.mrb[0].mxu0 %v2740
    %v3490 = vpop.f32.mrb[0].mxu0
    %v3491 = vadd.f32 %v2864, %v3490
    %v3492 = vpop.f32.mrb[0].mxu0
    %v3493 = vadd.f32 %v2868, %v3492
    %3494 = vmatprep.mubr.f32.mxu0 0.0
    %3495 = vmatmul.mubr.f32.gmra.mrb[0].mxu0 %v2741
    %v3496 = vpop.f32.mrb[0].mxu0
    %v3497 = vadd.f32 %v2864, %v3496
    %v3498 = vpop.f32.mrb[0].mxu0
    %v3499 = vadd.f32 %v2868, %v3498
    %3500 = vmatprep.mubr.f32.mxu0 0.0
    %3501 = vmatmul.mubr.f32.gmra.mrb[0].mxu0 %v2742
    %v3502 = vpop.f32.mrb[0].mxu0
    %v3503 = vadd.f32 %v2864, %v3502
    %v3504 = vpop.f32.mrb[0].mxu0
    %v3505 = vadd.f32 %v2868, %v3504
    %3506 = vmatprep.mubr.f32.mxu0 0.0
    %3507 = vmatmul.mubr.f32.gmra.mrb[0].mxu0 %v2743
    %v3508 = vpop.f32.mrb[0].mxu0
    %v3509 = vadd.f32 %v2864, %v3508
    %v3510 = vpop.f32.mrb[0].mxu0
    %v3511 = vadd.f32 %v2868, %v3510
    %3512 = vmatprep.mubr.f32.mxu0 0.0
    %3513 = vmatmul.mubr.f32.gmra.mrb[0].mxu0 %v2744
    %v3514 = vpop.f32.mrb[0].mxu0
    %v3515 = vadd.f32 %v2864, %v3514
    %v3516 = vpop.f32.mrb[0].mxu0
    %v3517 = vadd.f32 %v2868, %v3516
    %3518 = vmatprep.mubr.f32.mxu0 0.0
    %3519 = vmatmul.mubr.f32.gmra.mrb[0].mxu0 %v2745
    %v3520 = vpop.f32.mrb[0].mxu0
    %v3521 = vadd.f32 %v2864, %v3520
    %v3522 = vpop.f32.mrb[0].mxu0
    %v3523 = vadd.f32 %v2868, %v3522
    %3524 = vmatprep.mubr.f32.mxu0 0.0
    %3525 = vmatmul.mubr.f32.gmra.mrb[0].mxu0 %v2746
    %v3526 = vpop.f32.mrb[0].mxu0
    %v3527 = vadd.f32 %v2864, %v3526
    %v3528 = vpop.f32.mrb[0].mxu0
    %v3529 = vadd.f32 %v2868, %v3528
    %3530 = vmatprep.mubr.f32.mxu0 0.0
    %3531 = vmatmul.mubr.f32.gmra.mrb[0].mxu0 %v2747
    %v3532 = vpop.f32.mrb[0].mxu0
    %v3533 = vadd.f32 %v2864, %v3532
    %v3534 = vpop.f32.mrb[0].mxu0
    %v3535 = vadd.f32 %v2868, %v3534
    %3536 = vmatprep.mubr.f32.mxu0 0.0
    %3537 = vmatmul.mubr.f32.gmra.mrb[0].mxu0 %v2748
    %v3538 = vpop.f32.mrb[0].mxu0
    %v3539 = vadd.f32 %v2864, %v3538
    %v3540 = vpop.f32.mrb[0].mxu0
    %v3541 = vadd.f32 %v2868, %v3540
    %3542 = vmatprep.mubr.f32.mxu0 0.0
    %3543 = vmatmul.mubr.f32.gmra.mrb[0].mxu0 %v2749
    %v3544 = vpop.f32.mrb[0].mxu0
    %v3545 = vadd.f32 %v2864, %v3544
    %v3546 = vpop.f32.mrb[0].mxu0
    %v3547 = vadd.f32 %v2868, %v3546
    %3548 = vmatprep.mubr.f32.mxu0 0.0
    %3549 = vmatmul.mubr.f32.gmra.mrb[0].mxu0 %v2750
    %v3550 = vpop.f32.mrb[0].mxu0
    %v3551 = vadd.f32 %v2864, %v3550
    %v3552 = vpop.f32.mrb[0].mxu0
    %v3553 = vadd.f32 %v2868, %v3552
    %3554 = vmatprep.mubr.f32.mxu0 0.0
    %3555 = vmatmul.mubr.f32.gmra.mrb[0].mxu0 %v2751
    %v3556 = vpop.f32.mrb[0].mxu0
    %v3557 = vadd.f32 %v2864, %v3556
    %v3558 = vpop.f32.mrb[0].mxu0
    %v3559 = vadd.f32 %v2868, %v3558
    %3560 = vmatprep.mubr.f32.mxu0 0.0
    %3561 = vmatmul.mubr.f32.gmra.mrb[0].mxu0 %v2752
    %v3562 = vpop.f32.mrb[0].mxu0
    %v3563 = vadd.f32 %v2864, %v3562
    %v3564 = vpop.f32.mrb[0].mxu0
    %v3565 = vadd.f32 %v2868, %v3564
    %3566 = vmatprep.mubr.f32.mxu0 0.0
    %3567 = vmatmul.mubr.f32.gmra.mrb[0].mxu0 %v2753
    %v3568 = vpop.f32.mrb[0].mxu0
    %v3569 = vadd.f32 %v2864, %v3568
    %v3570 = vpop.f32.mrb[0].mxu0
    %v3571 = vadd.f32 %v2868, %v3570
    %3572 = vmatprep.mubr.f32.mxu0 0.0
    %3573 = vmatmul.mubr.f32.gmra.mrb[0].mxu0 %v2754
    %v3574 = vpop.f32.mrb[0].mxu0
    %v3575 = vadd.f32 %v2864, %v3574
    %v3576 = vpop.f32.mrb[0].mxu0
    %v3577 = vadd.f32 %v2868, %v3576
    %3578 = vmatprep.mubr.f32.mxu0 0.0
    %3579 = vmatmul.mubr.f32.gmra.mrb[0].mxu0 %v2755
    %v3580 = vpop.f32.mrb[0].mxu0
    %v3581 = vadd.f32 %v2864, %v3580
    %v3582 = vpop.f32.mrb[0].mxu0
    %v3583 = vadd.f32 %v2868, %v3582
    %3584 = vmatprep.mubr.f32.mxu0 0.0
    %3585 = vmatmul.mubr.f32.gmra.mrb[0].mxu0 %v2756
    %v3586 = vpop.f32.mrb[0].mxu0
    %v3587 = vadd.f32 %v2864, %v3586
    %v3588 = vpop.f32.mrb[0].mxu0
    %v3589 = vadd.f32 %v2868, %v3588
    %3590 = vmatprep.mubr.f32.mxu0 0.0
    %3591 = vmatmul.mubr.f32.gmra.mrb[0].mxu0 %v2757
    %v3592 = vpop.f32.mrb[0].mxu0
    %v3593 = vadd.f32 %v2864, %v3592
    %v3594 = vpop.f32.mrb[0].mxu0
    %v3595 = vadd.f32 %v2868, %v3594
    %3596 = vmatprep.mubr.f32.mxu0 0.0
    %3597 = vmatmul.mubr.f32.gmra.mrb[0].mxu0 %v2758
    %v3598 = vpop.f32.mrb[0].mxu0
    %v3599 = vadd.f32 %v2864, %v3598
    %v3600 = vpop.f32.mrb[0].mxu0
    %v3601 = vadd.f32 %v2868, %v3600
    %3602 = vmatprep.mubr.f32.mxu0 0.0
    %3603 = vmatmul.mubr.f32.gmra.mrb[0].mxu0 %v2759
    %v3604 = vpop.f32.mrb[0].mxu0
    %v3605 = vadd.f32 %v2864, %v3604
    %v3606 = vpop.f32.mrb[0].mxu0
    %v3607 = vadd.f32 %v2868, %v3606
    %3608 = vmatprep.mubr.f32.mxu0 0.0
    %3609 = vmatmul.mubr.f32.gmra.mrb[0].mxu0 %v2760
    %v3610 = vpop.f32.mrb[0].mxu0
    %v3611 = vadd.f32 %v2864, %v3610
    %v3612 = vpop.f32.mrb[0].mxu0
    %v3613 = vadd.f32 %v2868, %v3612
    %3614 = vmatprep.mubr.f32.mxu0 0.0
    %3615 = vmatmul.mubr.f32.gmra.mrb[0].mxu0 %v2761
    %v3616 = vpop.f32.mrb[0].mxu0
    %v3617 = vadd.f32 %v2864, %v3616
    %v3618 = vpop.f32.mrb[0].mxu0
    %v3619 = vadd.f32 %v2868, %v3618
    %3620 = vmatprep.mubr.f32.mxu0 0.0
    %3621 = vmatmul.mubr.f32.gmra.mrb[0].mxu0 %v2762
    %v3622 = vpop.f32.mrb[0].mxu0
    %v3623 = vadd.f32 %v2864, %v3622
    %v3624 = vpop.f32.mrb[0].mxu0
    %v3625 = vadd.f32 %v2868, %v3624
    %3626 = vmatprep.mubr.f32.mxu0 0.0
    %3627 = vmatmul.mubr.f32.gmra.mrb[0].mxu0 %v2763
    %v3628 = vpop.f32.mrb[0].mxu0
    %v3629 = vadd.f32 %v2864, %v3628
    %v3630 = vpop.f32.mrb[0].mxu0
    %v3631 = vadd.f32 %v2868, %v3630
    %3632 = vmatprep.mubr.f32.mxu0 0.0
    %3633 = vmatmul.mubr.f32.gmra.mrb[0].mxu0 %v2764
    %v3634 = vpop.f32.mrb[0].mxu0
    %v3635 = vadd.f32 %v2864, %v3634
    %v3636 = vpop.f32.mrb[0].mxu0
    %v3637 = vadd.f32 %v2868, %v3636
    %3638 = vmatprep.mubr.f32.mxu0 0.0
    %3639 = vmatmul.mubr.f32.gmra.mrb[0].mxu0 %v2765
    %v3640 = vpop.f32.mrb[0].mxu0
    %v3641 = vadd.f32 %v2864, %v3640
    %v3642 = vpop.f32.mrb[0].mxu0
    %v3643 = vadd.f32 %v2868, %v3642
    %3644 = vmatprep.mubr.f32.mxu0 0.0
    %3645 = vmatmul.mubr.f32.gmra.mrb[0].mxu0 %v2766
    %v3646 = vpop.f32.mrb[0].mxu0
    %v3647 = vadd.f32 %v2864, %v3646
    %v3648 = vpop.f32.mrb[0].mxu0
    %v3649 = vadd.f32 %v2868, %v3648
    %3650 = vmatprep.mubr.f32.mxu0 0.0
    %3651 = vmatmul.mubr.f32.gmra.mrb[0].mxu0 %v2767
    %v3652 = vpop.f32.mrb[0].mxu0
    %v3653 = vadd.f32 %v2864, %v3652
    %v3654 = vpop.f32.mrb[0].mxu0
    %v3655 = vadd.f32 %v2868, %v3654
    %3656 = vmatprep.mubr.f32.mxu0 0.0
    %3657 = vmatmul.mubr.f32.gmra.mrb[0].mxu0 %v2768
    %v3658 = vpop.f32.mrb[0].mxu0
    %v3659 = vadd.f32 %v2864, %v3658
    %v3660 = vpop.f32.mrb[0].mxu0
    %v3661 = vadd.f32 %v2868, %v3660
    %3662 = vmatprep.mubr.f32.mxu0 0.0
    %3663 = vmatmul.mubr.f32.gmra.mrb[0].mxu0 %v2769
    %v3664 = vpop.f32.mrb[0].mxu0
    %v3665 = vadd.f32 %v2864, %v3664
    %v3666 = vpop.f32.mrb[0].mxu0
    %v3667 = vadd.f32 %v2868, %v3666
    %3668 = vmatprep.mubr.f32.mxu0 0.0
    %3669 = vmatmul.mubr.f32.gmra.mrb[0].mxu0 %v2770
    %v3670 = vpop.f32.mrb[0].mxu0
    %v3671 = vadd.f32 %v2864, %v3670
    %v3672 = vpop.f32.mrb[0].mxu0
    %v3673 = vadd.f32 %v2868, %v3672
    %3674 = vmatprep.mubr.f32.mxu0 0.0
    %3675 = vmatmul.mubr.f32.gmra.mrb[0].mxu0 %v2771
    %v3676 = vpop.f32.mrb[0].mxu0
    %v3677 = vadd.f32 %v2864, %v3676
    %v3678 = vpop.f32.mrb[0].mxu0
    %v3679 = vadd.f32 %v2868, %v3678
    %3680 = vmatprep.mubr.f32.mxu0 0.0
    %3681 = vmatmul.mubr.f32.gmra.mrb[0].mxu0 %v2772
    %v3682 = vpop.f32.mrb[0].mxu0
    %v3683 = vadd.f32 %v2864, %v3682
    %v3684 = vpop.f32.mrb[0].mxu0
    %v3685 = vadd.f32 %v2868, %v3684
    %3686 = vmatprep.mubr.f32.mxu0 0.0
    %3687 = vmatmul.mubr.f32.gmra.mrb[0].mxu0 %v2773
    %v3688 = vpop.f32.mrb[0].mxu0
    %v3689 = vadd.f32 %v2864, %v3688
    %v3690 = vpop.f32.mrb[0].mxu0
    %v3691 = vadd.f32 %v2868, %v3690
    %3692 = vmatprep.mubr.f32.mxu0 0.0
    %3693 = vmatmul.mubr.f32.gmra.mrb[0].mxu0 %v2774
    %v3694 = vpop.f32.mrb[0].mxu0
    %v3695 = vadd.f32 %v2864, %v3694
    %v3696 = vpop.f32.mrb[0].mxu0
    %v3697 = vadd.f32 %v2868, %v3696
    %3698 = vmatprep.mubr.f32.mxu0 0.0
    %3699 = vmatmul.mubr.f32.gmra.mrb[0].mxu0 %v2775
    %v3700 = vpop.f32.mrb[0].mxu0
    %v3701 = vadd.f32 %v2864, %v3700
    %v3702 = vpop.f32.mrb[0].mxu0
    %v3703 = vadd.f32 %v2868, %v3702
    %3704 = vmatprep.mubr.f32.mxu0 0.0
    %3705 = vmatmul.mubr.f32.gmra.mrb[0].mxu0 %v2776
    %v3706 = vpop.f32.mrb[0].mxu0
    %v3707 = vadd.f32 %v2864, %v3706
    %v3708 = vpop.f32.mrb[0].mxu0
    %v3709 = vadd.f32 %v2868, %v3708
    %3710 = vmatprep.mubr.f32.mxu0 0.0
    %3711 = vmatmul.mubr.f32.gmra.mrb[0].mxu0 %v2777
    %v3712 = vpop.f32.mrb[0].mxu0
    %v3713 = vadd.f32 %v2864, %v3712
    %v3714 = vpop.f32.mrb[0].mxu0
    %v3715 = vadd.f32 %v2868, %v3714
    %3716 = vmatprep.mubr.f32.mxu0 0.0
    %3717 = vmatmul.mubr.f32.gmra.mrb[0].mxu0 %v2778
    %v3718 = vpop.f32.mrb[0].mxu0
    %v3719 = vadd.f32 %v2864, %v3718
    %v3720 = vpop.f32.mrb[0].mxu0
    %v3721 = vadd.f32 %v2868, %v3720
    %3722 = vmatprep.mubr.f32.mxu0 0.0
    %3723 = vmatmul.mubr.f32.gmra.mrb[0].mxu0 %v2779
    %v3724 = vpop.f32.mrb[0].mxu0
    %v3725 = vadd.f32 %v2864, %v3724
    %v3726 = vpop.f32.mrb[0].mxu0
    %v3727 = vadd.f32 %v2868, %v3726
    %3728 = vmatprep.mubr.f32.mxu0 0.0
    %3729 = vmatmul.mubr.f32.gmra.mrb[0].mxu0 %v2780
    %v3730 = vpop.f32.mrb[0].mxu0
    %v3731 = vadd.f32 %v2864, %v3730
    %v3732 = vpop.f32.mrb[0].mxu0
    %v3733 = vadd.f32 %v2868, %v3732
    %3734 = vmatprep.mubr.f32.mxu0 0.0
    %3735 = vmatmul.mubr.f32.gmra.mrb[0].mxu0 %v2781
    %v3736 = vpop.f32.mrb[0].mxu0
    %v3737 = vadd.f32 %v2864, %v3736
    %v3738 = vpop.f32.mrb[0].mxu0
    %v3739 = vadd.f32 %v2868, %v3738
    %3740 = vmatprep.mubr.f32.mxu0 0.0
    %3741 = vmatmul.mubr.f32.gmra.mrb[0].mxu0 %v2782
    %v3742 = vpop.f32.mrb[0].mxu0
    %v3743 = vadd.f32 %v2864, %v3742
    %v3744 = vpop.f32.mrb[0].mxu0
    %v3745 = vadd.f32 %v2868, %v3744
    %3746 = vmatprep.mubr.f32.mxu0 0.0
    %3747 = vmatmul.mubr.f32.gmra.mrb[0].mxu0 %v2783
    %v3748 = vpop.f32.mrb[0].mxu0
    %v3749 = vadd.f32 %v2864, %v3748
    %v3750 = vpop.f32.mrb[0].mxu0
    %v3751 = vadd.f32 %v2868, %v3750
    %3752 = vmatprep.mubr.f32.mxu0 0.0
    %3753 = vmatmul.mubr.f32.gmra.mrb[0].mxu0 %v2784
    %v3754 = vpop.f32.mrb[0].mxu0
    %v3755 = vadd.f32 %v2864, %v3754
    %v3756 = vpop.f32.mrb[0].mxu0
    %v3757 = vadd.f32 %v2868, %v3756
    %3758 = vmatprep.mubr.f32.mxu0 0.0
    %3759 = vmatmul.mubr.f32.gmra.mrb[0].mxu0 %v2785
    %v3760 = vpop.f32.mrb[0].mxu0
    %v3761 = vadd.f32 %v2864, %v3760
    %v3762 = vpop.f32.mrb[0].mxu0
    %v3763 = vadd.f32 %v2868, %v3762
    %3764 = vmatprep.mubr.f32.mxu0 0.0
    %3765 = vmatmul.mubr.f32.gmra.mrb[0].mxu0 %v2786
    %v3766 = vpop.f32.mrb[0].mxu0
    %v3767 = vadd.f32 %v2864, %v3766
    %v3768 = vpop.f32.mrb[0].mxu0
    %v3769 = vadd.f32 %v2868, %v3768
    %3770 = vdwg.mxu0
    %vm3771 = vcmp.gt.f32.partialorder %v2940, 0.0
    %vm3772 = vcmp.gt.f32.partialorder %v2942, 0.0
    %vm3773 = vcmp.gt.f32.partialorder %v3389, 0.0
    %vm3774 = vcmp.gt.f32.partialorder %v3391, 0.0
    %vm3775 = vcmp.gt.f32.partialorder %v2946, 0.0
    %vm3776 = vcmp.gt.f32.partialorder %v2948, 0.0
    %vm3777 = vcmp.gt.f32.partialorder %v3395, 0.0
    %vm3778 = vcmp.gt.f32.partialorder %v3397, 0.0
    %vm3779 = vcmp.gt.f32.partialorder %v2952, 0.0
    %vm3780 = vcmp.gt.f32.partialorder %v2954, 0.0
    %vm3781 = vcmp.gt.f32.partialorder %v3401, 0.0
    %vm3782 = vcmp.gt.f32.partialorder %v3403, 0.0
    %vm3783 = vcmp.gt.f32.partialorder %v2958, 0.0
    %vm3784 = vcmp.gt.f32.partialorder %v2960, 0.0
    %vm3785 = vcmp.gt.f32.partialorder %v3407, 0.0
    %vm3786 = vcmp.gt.f32.partialorder %v3409, 0.0
    %vm3787 = vcmp.gt.f32.partialorder %v2964, 0.0
    %vm3788 = vcmp.gt.f32.partialorder %v2966, 0.0
    %vm3789 = vcmp.gt.f32.partialorder %v3413, 0.0
    %vm3790 = vcmp.gt.f32.partialorder %v3415, 0.0
    %vm3791 = vcmp.gt.f32.partialorder %v2970, 0.0
    %vm3792 = vcmp.gt.f32.partialorder %v2972, 0.0
    %vm3793 = vcmp.gt.f32.partialorder %v3419, 0.0
    %vm3794 = vcmp.gt.f32.partialorder %v3421, 0.0
    %vm3795 = vcmp.gt.f32.partialorder %v2976, 0.0
    %vm3796 = vcmp.gt.f32.partialorder %v2978, 0.0
    %vm3797 = vcmp.gt.f32.partialorder %v3425, 0.0
    %vm3798 = vcmp.gt.f32.partialorder %v3427, 0.0
    %vm3799 = vcmp.gt.f32.partialorder %v2982, 0.0
    %vm3800 = vcmp.gt.f32.partialorder %v2984, 0.0
    %vm3801 = vcmp.gt.f32.partialorder %v3431, 0.0
    %vm3802 = vcmp.gt.f32.partialorder %v3433, 0.0
    %vm3803 = vcmp.gt.f32.partialorder %v2988, 0.0
    %vm3804 = vcmp.gt.f32.partialorder %v2990, 0.0
    %vm3805 = vcmp.gt.f32.partialorder %v3437, 0.0
    %vm3806 = vcmp.gt.f32.partialorder %v3439, 0.0
    %vm3807 = vcmp.gt.f32.partialorder %v2994, 0.0
    %vm3808 = vcmp.gt.f32.partialorder %v2996, 0.0
    %vm3809 = vcmp.gt.f32.partialorder %v3443, 0.0
    %vm3810 = vcmp.gt.f32.partialorder %v3445, 0.0
    %vm3811 = vcmp.gt.f32.partialorder %v3000, 0.0
    %vm3812 = vcmp.gt.f32.partialorder %v3002, 0.0
    %vm3813 = vcmp.gt.f32.partialorder %v3449, 0.0
    %vm3814 = vcmp.gt.f32.partialorder %v3451, 0.0
    %vm3815 = vcmp.gt.f32.partialorder %v3006, 0.0
    %vm3816 = vcmp.gt.f32.partialorder %v3008, 0.0
    %vm3817 = vcmp.gt.f32.partialorder %v3455, 0.0
    %vm3818 = vcmp.gt.f32.partialorder %v3457, 0.0
    %vm3819 = vcmp.gt.f32.partialorder %v3012, 0.0
    %vm3820 = vcmp.gt.f32.partialorder %v3014, 0.0
    %vm3821 = vcmp.gt.f32.partialorder %v3461, 0.0
    %vm3822 = vcmp.gt.f32.partialorder %v3463, 0.0
    %vm3823 = vcmp.gt.f32.partialorder %v3018, 0.0
    %vm3824 = vcmp.gt.f32.partialorder %v3020, 0.0
    %vm3825 = vcmp.gt.f32.partialorder %v3467, 0.0
    %vm3826 = vcmp.gt.f32.partialorder %v3469, 0.0
    %vm3827 = vcmp.gt.f32.partialorder %v3024, 0.0
    %vm3828 = vcmp.gt.f32.partialorder %v3026, 0.0
    %vm3829 = vcmp.gt.f32.partialorder %v3473, 0.0
    %vm3830 = vcmp.gt.f32.partialorder %v3475, 0.0
    %vm3831 = vcmp.gt.f32.partialorder %v3030, 0.0
    %vm3832 = vcmp.gt.f32.partialorder %v3032, 0.0
    %vm3833 = vcmp.gt.f32.partialorder %v3479, 0.0
    %vm3834 = vcmp.gt.f32.partialorder %v3481, 0.0
    %vm3835 = vcmp.gt.f32.partialorder %v3036, 0.0
    %vm3836 = vcmp.gt.f32.partialorder %v3038, 0.0
    %vm3837 = vcmp.gt.f32.partialorder %v3485, 0.0
    %vm3838 = vcmp.gt.f32.partialorder %v3487, 0.0
    %vm3839 = vcmp.gt.f32.partialorder %v3042, 0.0
    %vm3840 = vcmp.gt.f32.partialorder %v3044, 0.0
    %vm3841 = vcmp.gt.f32.partialorder %v3491, 0.0
    %vm3842 = vcmp.gt.f32.partialorder %v3493, 0.0
    %vm3843 = vcmp.gt.f32.partialorder %v3048, 0.0
    %vm3844 = vcmp.gt.f32.partialorder %v3050, 0.0
    %vm3845 = vcmp.gt.f32.partialorder %v3497, 0.0
    %vm3846 = vcmp.gt.f32.partialorder %v3499, 0.0
    %vm3847 = vcmp.gt.f32.partialorder %v3054, 0.0
    %vm3848 = vcmp.gt.f32.partialorder %v3056, 0.0
    %vm3849 = vcmp.gt.f32.partialorder %v3503, 0.0
    %vm3850 = vcmp.gt.f32.partialorder %v3505, 0.0
    %vm3851 = vcmp.gt.f32.partialorder %v3060, 0.0
    %vm3852 = vcmp.gt.f32.partialorder %v3062, 0.0
    %vm3853 = vcmp.gt.f32.partialorder %v3509, 0.0
    %vm3854 = vcmp.gt.f32.partialorder %v3511, 0.0
    %vm3855 = vcmp.gt.f32.partialorder %v3066, 0.0
    %vm3856 = vcmp.gt.f32.partialorder %v3068, 0.0
    %vm3857 = vcmp.gt.f32.partialorder %v3515, 0.0
    %vm3858 = vcmp.gt.f32.partialorder %v3517, 0.0
    %vm3859 = vcmp.gt.f32.partialorder %v3072, 0.0
    %vm3860 = vcmp.gt.f32.partialorder %v3074, 0.0
    %vm3861 = vcmp.gt.f32.partialorder %v3521, 0.0
    %vm3862 = vcmp.gt.f32.partialorder %v3523, 0.0
    %vm3863 = vcmp.gt.f32.partialorder %v3078, 0.0
    %vm3864 = vcmp.gt.f32.partialorder %v3080, 0.0
    %vm3865 = vcmp.gt.f32.partialorder %v3527, 0.0
    %vm3866 = vcmp.gt.f32.partialorder %v3529, 0.0
    %vm3867 = vcmp.gt.f32.partialorder %v3084, 0.0
    %vm3868 = vcmp.gt.f32.partialorder %v3086, 0.0
    %vm3869 = vcmp.gt.f32.partialorder %v3533, 0.0
    %vm3870 = vcmp.gt.f32.partialorder %v3535, 0.0
    %vm3871 = vcmp.gt.f32.partialorder %v3090, 0.0
    %vm3872 = vcmp.gt.f32.partialorder %v3092, 0.0
    %vm3873 = vcmp.gt.f32.partialorder %v3539, 0.0
    %vm3874 = vcmp.gt.f32.partialorder %v3541, 0.0
    %vm3875 = vcmp.gt.f32.partialorder %v3096, 0.0
    %vm3876 = vcmp.gt.f32.partialorder %v3098, 0.0
    %vm3877 = vcmp.gt.f32.partialorder %v3545, 0.0
    %vm3878 = vcmp.gt.f32.partialorder %v3547, 0.0
    %vm3879 = vcmp.gt.f32.partialorder %v3102, 0.0
    %vm3880 = vcmp.gt.f32.partialorder %v3104, 0.0
    %vm3881 = vcmp.gt.f32.partialorder %v3551, 0.0
    %vm3882 = vcmp.gt.f32.partialorder %v3553, 0.0
    %vm3883 = vcmp.gt.f32.partialorder %v3108, 0.0
    %vm3884 = vcmp.gt.f32.partialorder %v3110, 0.0
    %vm3885 = vcmp.gt.f32.partialorder %v3557, 0.0
    %vm3886 = vcmp.gt.f32.partialorder %v3559, 0.0
    %vm3887 = vcmp.gt.f32.partialorder %v3114, 0.0
    %vm3888 = vcmp.gt.f32.partialorder %v3116, 0.0
    %vm3889 = vcmp.gt.f32.partialorder %v3563, 0.0
    %vm3890 = vcmp.gt.f32.partialorder %v3565, 0.0
    %vm3891 = vcmp.gt.f32.partialorder %v3120, 0.0
    %vm3892 = vcmp.gt.f32.partialorder %v3122, 0.0
    %vm3893 = vcmp.gt.f32.partialorder %v3569, 0.0
    %vm3894 = vcmp.gt.f32.partialorder %v3571, 0.0
    %vm3895 = vcmp.gt.f32.partialorder %v3126, 0.0
    %vm3896 = vcmp.gt.f32.partialorder %v3128, 0.0
    %vm3897 = vcmp.gt.f32.partialorder %v3575, 0.0
    %vm3898 = vcmp.gt.f32.partialorder %v3577, 0.0
    %vm3899 = vcmp.gt.f32.partialorder %v3132, 0.0
    %vm3900 = vcmp.gt.f32.partialorder %v3134, 0.0
    %vm3901 = vcmp.gt.f32.partialorder %v3581, 0.0
    %vm3902 = vcmp.gt.f32.partialorder %v3583, 0.0
    %vm3903 = vcmp.gt.f32.partialorder %v3138, 0.0
    %vm3904 = vcmp.gt.f32.partialorder %v3140, 0.0
    %vm3905 = vcmp.gt.f32.partialorder %v3587, 0.0
    %vm3906 = vcmp.gt.f32.partialorder %v3589, 0.0
    %vm3907 = vcmp.gt.f32.partialorder %v3144, 0.0
    %vm3908 = vcmp.gt.f32.partialorder %v3146, 0.0
    %vm3909 = vcmp.gt.f32.partialorder %v3593, 0.0
    %vm3910 = vcmp.gt.f32.partialorder %v3595, 0.0
    %vm3911 = vcmp.gt.f32.partialorder %v3150, 0.0
    %vm3912 = vcmp.gt.f32.partialorder %v3152, 0.0
    %vm3913 = vcmp.gt.f32.partialorder %v3599, 0.0
    %vm3914 = vcmp.gt.f32.partialorder %v3601, 0.0
    %vm3915 = vcmp.gt.f32.partialorder %v3156, 0.0
    %vm3916 = vcmp.gt.f32.partialorder %v3158, 0.0
    %vm3917 = vcmp.gt.f32.partialorder %v3605, 0.0
    %vm3918 = vcmp.gt.f32.partialorder %v3607, 0.0
    %vm3919 = vcmp.gt.f32.partialorder %v3162, 0.0
    %vm3920 = vcmp.gt.f32.partialorder %v3164, 0.0
    %vm3921 = vcmp.gt.f32.partialorder %v3611, 0.0
    %vm3922 = vcmp.gt.f32.partialorder %v3613, 0.0
    %vm3923 = vcmp.gt.f32.partialorder %v3168, 0.0
    %vm3924 = vcmp.gt.f32.partialorder %v3170, 0.0
    %vm3925 = vcmp.gt.f32.partialorder %v3617, 0.0
    %vm3926 = vcmp.gt.f32.partialorder %v3619, 0.0
    %vm3927 = vcmp.gt.f32.partialorder %v3174, 0.0
    %vm3928 = vcmp.gt.f32.partialorder %v3176, 0.0
    %vm3929 = vcmp.gt.f32.partialorder %v3623, 0.0
    %vm3930 = vcmp.gt.f32.partialorder %v3625, 0.0
    %vm3931 = vcmp.gt.f32.partialorder %v3180, 0.0
    %vm3932 = vcmp.gt.f32.partialorder %v3182, 0.0
    %vm3933 = vcmp.gt.f32.partialorder %v3629, 0.0
    %vm3934 = vcmp.gt.f32.partialorder %v3631, 0.0
    %vm3935 = vcmp.gt.f32.partialorder %v3186, 0.0
    %vm3936 = vcmp.gt.f32.partialorder %v3188, 0.0
    %vm3937 = vcmp.gt.f32.partialorder %v3635, 0.0
    %vm3938 = vcmp.gt.f32.partialorder %v3637, 0.0
    %vm3939 = vcmp.gt.f32.partialorder %v3192, 0.0
    %vm3940 = vcmp.gt.f32.partialorder %v3194, 0.0
    %vm3941 = vcmp.gt.f32.partialorder %v3641, 0.0
    %vm3942 = vcmp.gt.f32.partialorder %v3643, 0.0
    %vm3943 = vcmp.gt.f32.partialorder %v3198, 0.0
    %vm3944 = vcmp.gt.f32.partialorder %v3200, 0.0
    %vm3945 = vcmp.gt.f32.partialorder %v3647, 0.0
    %vm3946 = vcmp.gt.f32.partialorder %v3649, 0.0
    %vm3947 = vcmp.gt.f32.partialorder %v3204, 0.0
    %vm3948 = vcmp.gt.f32.partialorder %v3206, 0.0
    %vm3949 = vcmp.gt.f32.partialorder %v3653, 0.0
    %vm3950 = vcmp.gt.f32.partialorder %v3655, 0.0
    %vm3951 = vcmp.gt.f32.partialorder %v3210, 0.0
    %vm3952 = vcmp.gt.f32.partialorder %v3212, 0.0
    %vm3953 = vcmp.gt.f32.partialorder %v3659, 0.0
    %vm3954 = vcmp.gt.f32.partialorder %v3661, 0.0
    %vm3955 = vcmp.gt.f32.partialorder %v3216, 0.0
    %vm3956 = vcmp.gt.f32.partialorder %v3218, 0.0
    %vm3957 = vcmp.gt.f32.partialorder %v3665, 0.0
    %vm3958 = vcmp.gt.f32.partialorder %v3667, 0.0
    %vm3959 = vcmp.gt.f32.partialorder %v3222, 0.0
    %vm3960 = vcmp.gt.f32.partialorder %v3224, 0.0
    %vm3961 = vcmp.gt.f32.partialorder %v3671, 0.0
    %vm3962 = vcmp.gt.f32.partialorder %v3673, 0.0
    %vm3963 = vcmp.gt.f32.partialorder %v3228, 0.0
    %vm3964 = vcmp.gt.f32.partialorder %v3230, 0.0
    %vm3965 = vcmp.gt.f32.partialorder %v3677, 0.0
    %vm3966 = vcmp.gt.f32.partialorder %v3679, 0.0
    %vm3967 = vcmp.gt.f32.partialorder %v3234, 0.0
    %vm3968 = vcmp.gt.f32.partialorder %v3236, 0.0
    %vm3969 = vcmp.gt.f32.partialorder %v3683, 0.0
    %vm3970 = vcmp.gt.f32.partialorder %v3685, 0.0
    %vm3971 = vcmp.gt.f32.partialorder %v3240, 0.0
    %vm3972 = vcmp.gt.f32.partialorder %v3242, 0.0
    %vm3973 = vcmp.gt.f32.partialorder %v3689, 0.0
    %vm3974 = vcmp.gt.f32.partialorder %v3691, 0.0
    %vm3975 = vcmp.gt.f32.partialorder %v3246, 0.0
    %vm3976 = vcmp.gt.f32.partialorder %v3248, 0.0
    %vm3977 = vcmp.gt.f32.partialorder %v3695, 0.0
    %vm3978 = vcmp.gt.f32.partialorder %v3697, 0.0
    %vm3979 = vcmp.gt.f32.partialorder %v3252, 0.0
    %vm3980 = vcmp.gt.f32.partialorder %v3254, 0.0
    %vm3981 = vcmp.gt.f32.partialorder %v3701, 0.0
    %vm3982 = vcmp.gt.f32.partialorder %v3703, 0.0
    %vm3983 = vcmp.gt.f32.partialorder %v3258, 0.0
    %vm3984 = vcmp.gt.f32.partialorder %v3260, 0.0
    %vm3985 = vcmp.gt.f32.partialorder %v3707, 0.0
    %vm3986 = vcmp.gt.f32.partialorder %v3709, 0.0
    %vm3987 = vcmp.gt.f32.partialorder %v3264, 0.0
    %vm3988 = vcmp.gt.f32.partialorder %v3266, 0.0
    %vm3989 = vcmp.gt.f32.partialorder %v3713, 0.0
    %vm3990 = vcmp.gt.f32.partialorder %v3715, 0.0
    %vm3991 = vcmp.gt.f32.partialorder %v3270, 0.0
    %vm3992 = vcmp.gt.f32.partialorder %v3272, 0.0
    %vm3993 = vcmp.gt.f32.partialorder %v3719, 0.0
    %vm3994 = vcmp.gt.f32.partialorder %v3721, 0.0
    %vm3995 = vcmp.gt.f32.partialorder %v3276, 0.0
    %vm3996 = vcmp.gt.f32.partialorder %v3278, 0.0
    %vm3997 = vcmp.gt.f32.partialorder %v3725, 0.0
    %vm3998 = vcmp.gt.f32.partialorder %v3727, 0.0
    %vm3999 = vcmp.gt.f32.partialorder %v3282, 0.0
    %vm4000 = vcmp.gt.f32.partialorder %v3284, 0.0
    %vm4001 = vcmp.gt.f32.partialorder %v3731, 0.0
    %vm4002 = vcmp.gt.f32.partialorder %v3733, 0.0
    %vm4003 = vcmp.gt.f32.partialorder %v3288, 0.0
    %vm4004 = vcmp.gt.f32.partialorder %v3290, 0.0
    %vm4005 = vcmp.gt.f32.partialorder %v3737, 0.0
    %vm4006 = vcmp.gt.f32.partialorder %v3739, 0.0
    %vm4007 = vcmp.gt.f32.partialorder %v3294, 0.0
    %vm4008 = vcmp.gt.f32.partialorder %v3296, 0.0
    %vm4009 = vcmp.gt.f32.partialorder %v3743, 0.0
    %vm4010 = vcmp.gt.f32.partialorder %v3745, 0.0
    %vm4011 = vcmp.gt.f32.partialorder %v3300, 0.0
    %vm4012 = vcmp.gt.f32.partialorder %v3302, 0.0
    %vm4013 = vcmp.gt.f32.partialorder %v3749, 0.0
    %vm4014 = vcmp.gt.f32.partialorder %v3751, 0.0
    %vm4015 = vcmp.gt.f32.partialorder %v3306, 0.0
    %vm4016 = vcmp.gt.f32.partialorder %v3308, 0.0
    %vm4017 = vcmp.gt.f32.partialorder %v3755, 0.0
    %vm4018 = vcmp.gt.f32.partialorder %v3757, 0.0
    %vm4019 = vcmp.gt.f32.partialorder %v3312, 0.0
    %vm4020 = vcmp.gt.f32.partialorder %v3314, 0.0
    %vm4021 = vcmp.gt.f32.partialorder %v3761, 0.0
    %vm4022 = vcmp.gt.f32.partialorder %v3763, 0.0
    %vm4023 = vcmp.gt.f32.partialorder %v3318, 0.0
    %vm4024 = vcmp.gt.f32.partialorder %v3320, 0.0
    %vm4025 = vcmp.gt.f32.partialorder %v3767, 0.0
    %vm4026 = vcmp.gt.f32.partialorder %v3769, 0.0
    %v4027 = vmin.f32 %v2940, 0.0
    %v4028 = vmin.f32 %v2942, 0.0
    %v4029 = vmin.f32 %v3389, 0.0
    %v4030 = vmin.f32 %v3391, 0.0
    %v4031 = vmin.f32 %v2946, 0.0
    %v4032 = vmin.f32 %v2948, 0.0
    %v4033 = vmin.f32 %v3395, 0.0
    %v4034 = vmin.f32 %v3397, 0.0
    %v4035 = vmin.f32 %v2952, 0.0
    %v4036 = vmin.f32 %v2954, 0.0
    %v4037 = vmin.f32 %v3401, 0.0
    %v4038 = vmin.f32 %v3403, 0.0
    %v4039 = vmin.f32 %v2958, 0.0
    %v4040 = vmin.f32 %v2960, 0.0
    %v4041 = vmin.f32 %v3407, 0.0
    %v4042 = vmin.f32 %v3409, 0.0
    %v4043 = vmin.f32 %v2964, 0.0
    %v4044 = vmin.f32 %v2966, 0.0
    %v4045 = vmin.f32 %v3413, 0.0
    %v4046 = vmin.f32 %v3415, 0.0
    %v4047 = vmin.f32 %v2970, 0.0
    %v4048 = vmin.f32 %v2972, 0.0
    %v4049 = vmin.f32 %v3419, 0.0
    %v4050 = vmin.f32 %v3421, 0.0
    %v4051 = vmin.f32 %v2976, 0.0
    %v4052 = vmin.f32 %v2978, 0.0
    %v4053 = vmin.f32 %v3425, 0.0
    %v4054 = vmin.f32 %v3427, 0.0
    %v4055 = vmin.f32 %v2982, 0.0
    %v4056 = vmin.f32 %v2984, 0.0
    %v4057 = vmin.f32 %v3431, 0.0
    %v4058 = vmin.f32 %v3433, 0.0
    %v4059 = vmin.f32 %v2988, 0.0
    %v4060 = vmin.f32 %v2990, 0.0
    %v4061 = vmin.f32 %v3437, 0.0
    %v4062 = vmin.f32 %v3439, 0.0
    %v4063 = vmin.f32 %v2994, 0.0
    %v4064 = vmin.f32 %v2996, 0.0
    %v4065 = vmin.f32 %v3443, 0.0
    %v4066 = vmin.f32 %v3445, 0.0
    %v4067 = vmin.f32 %v3000, 0.0
    %v4068 = vmin.f32 %v3002, 0.0
    %v4069 = vmin.f32 %v3449, 0.0
    %v4070 = vmin.f32 %v3451, 0.0
    %v4071 = vmin.f32 %v3006, 0.0
    %v4072 = vmin.f32 %v3008, 0.0
    %v4073 = vmin.f32 %v3455, 0.0
    %v4074 = vmin.f32 %v3457, 0.0
    %v4075 = vmin.f32 %v3012, 0.0
    %v4076 = vmin.f32 %v3014, 0.0
    %v4077 = vmin.f32 %v3461, 0.0
    %v4078 = vmin.f32 %v3463, 0.0
    %v4079 = vmin.f32 %v3018, 0.0
    %v4080 = vmin.f32 %v3020, 0.0
    %v4081 = vmin.f32 %v3467, 0.0
    %v4082 = vmin.f32 %v3469, 0.0
    %v4083 = vmin.f32 %v3024, 0.0
    %v4084 = vmin.f32 %v3026, 0.0
    %v4085 = vmin.f32 %v3473, 0.0
    %v4086 = vmin.f32 %v3475, 0.0
    %v4087 = vmin.f32 %v3030, 0.0
    %v4088 = vmin.f32 %v3032, 0.0
    %v4089 = vmin.f32 %v3479, 0.0
    %v4090 = vmin.f32 %v3481, 0.0
    %v4091 = vmin.f32 %v3036, 0.0
    %v4092 = vmin.f32 %v3038, 0.0
    %v4093 = vmin.f32 %v3485, 0.0
    %v4094 = vmin.f32 %v3487, 0.0
    %v4095 = vmin.f32 %v3042, 0.0
    %v4096 = vmin.f32 %v3044, 0.0
    %v4097 = vmin.f32 %v3491, 0.0
    %v4098 = vmin.f32 %v3493, 0.0
    %v4099 = vmin.f32 %v3048, 0.0
    %v4100 = vmin.f32 %v3050, 0.0
    %v4101 = vmin.f32 %v3497, 0.0
    %v4102 = vmin.f32 %v3499, 0.0
    %v4103 = vmin.f32 %v3054, 0.0
    %v4104 = vmin.f32 %v3056, 0.0
    %v4105 = vmin.f32 %v3503, 0.0
    %v4106 = vmin.f32 %v3505, 0.0
    %v4107 = vmin.f32 %v3060, 0.0
    %v4108 = vmin.f32 %v3062, 0.0
    %v4109 = vmin.f32 %v3509, 0.0
    %v4110 = vmin.f32 %v3511, 0.0
    %v4111 = vmin.f32 %v3066, 0.0
    %v4112 = vmin.f32 %v3068, 0.0
    %v4113 = vmin.f32 %v3515, 0.0
    %v4114 = vmin.f32 %v3517, 0.0
    %v4115 = vmin.f32 %v3072, 0.0
    %v4116 = vmin.f32 %v3074, 0.0
    %v4117 = vmin.f32 %v3521, 0.0
    %v4118 = vmin.f32 %v3523, 0.0
    %v4119 = vmin.f32 %v3078, 0.0
    %v4120 = vmin.f32 %v3080, 0.0
    %v4121 = vmin.f32 %v3527, 0.0
    %v4122 = vmin.f32 %v3529, 0.0
    %v4123 = vmin.f32 %v3084, 0.0
    %v4124 = vmin.f32 %v3086, 0.0
    %v4125 = vmin.f32 %v3533, 0.0
    %v4126 = vmin.f32 %v3535, 0.0
    %v4127 = vmin.f32 %v3090, 0.0
    %v4128 = vmin.f32 %v3092, 0.0
    %v4129 = vmin.f32 %v3539, 0.0
    %v4130 = vmin.f32 %v3541, 0.0
    %v4131 = vmin.f32 %v3096, 0.0
    %v4132 = vmin.f32 %v3098, 0.0
    %v4133 = vmin.f32 %v3545, 0.0
    %v4134 = vmin.f32 %v3547, 0.0
    %v4135 = vmin.f32 %v3102, 0.0
    %v4136 = vmin.f32 %v3104, 0.0
    %v4137 = vmin.f32 %v3551, 0.0
    %v4138 = vmin.f32 %v3553, 0.0
    %v4139 = vmin.f32 %v3108, 0.0
    %v4140 = vmin.f32 %v3110, 0.0
    %v4141 = vmin.f32 %v3557, 0.0
    %v4142 = vmin.f32 %v3559, 0.0
    %v4143 = vmin.f32 %v3114, 0.0
    %v4144 = vmin.f32 %v3116, 0.0
    %v4145 = vmin.f32 %v3563, 0.0
    %v4146 = vmin.f32 %v3565, 0.0
    %v4147 = vmin.f32 %v3120, 0.0
    %v4148 = vmin.f32 %v3122, 0.0
    %v4149 = vmin.f32 %v3569, 0.0
    %v4150 = vmin.f32 %v3571, 0.0
    %v4151 = vmin.f32 %v3126, 0.0
    %v4152 = vmin.f32 %v3128, 0.0
    %v4153 = vmin.f32 %v3575, 0.0
    %v4154 = vmin.f32 %v3577, 0.0
    %v4155 = vmin.f32 %v3132, 0.0
    %v4156 = vmin.f32 %v3134, 0.0
    %v4157 = vmin.f32 %v3581, 0.0
    %v4158 = vmin.f32 %v3583, 0.0
    %v4159 = vmin.f32 %v3138, 0.0
    %v4160 = vmin.f32 %v3140, 0.0
    %v4161 = vmin.f32 %v3587, 0.0
    %v4162 = vmin.f32 %v3589, 0.0
    %v4163 = vmin.f32 %v3144, 0.0
    %v4164 = vmin.f32 %v3146, 0.0
    %v4165 = vmin.f32 %v3593, 0.0
    %v4166 = vmin.f32 %v3595, 0.0
    %v4167 = vmin.f32 %v3150, 0.0
    %v4168 = vmin.f32 %v3152, 0.0
    %v4169 = vmin.f32 %v3599, 0.0
    %v4170 = vmin.f32 %v3601, 0.0
    %v4171 = vmin.f32 %v3156, 0.0
    %v4172 = vmin.f32 %v3158, 0.0
    %v4173 = vmin.f32 %v3605, 0.0
    %v4174 = vmin.f32 %v3607, 0.0
    %v4175 = vmin.f32 %v3162, 0.0
    %v4176 = vmin.f32 %v3164, 0.0
    %v4177 = vmin.f32 %v3611, 0.0
    %v4178 = vmin.f32 %v3613, 0.0
    %v4179 = vmin.f32 %v3168, 0.0
    %v4180 = vmin.f32 %v3170, 0.0
    %v4181 = vmin.f32 %v3617, 0.0
    %v4182 = vmin.f32 %v3619, 0.0
    %v4183 = vmin.f32 %v3174, 0.0
    %v4184 = vmin.f32 %v3176, 0.0
    %v4185 = vmin.f32 %v3623, 0.0
    %v4186 = vmin.f32 %v3625, 0.0
    %v4187 = vmin.f32 %v3180, 0.0
    %v4188 = vmin.f32 %v3182, 0.0
    %v4189 = vmin.f32 %v3629, 0.0
    %v4190 = vmin.f32 %v3631, 0.0
    %v4191 = vmin.f32 %v3186, 0.0
    %v4192 = vmin.f32 %v3188, 0.0
    %v4193 = vmin.f32 %v3635, 0.0
    %v4194 = vmin.f32 %v3637, 0.0
    %v4195 = vmin.f32 %v3192, 0.0
    %v4196 = vmin.f32 %v3194, 0.0
    %v4197 = vmin.f32 %v3641, 0.0
    %v4198 = vmin.f32 %v3643, 0.0
    %v4199 = vmin.f32 %v3198, 0.0
    %v4200 = vmin.f32 %v3200, 0.0
    %v4201 = vmin.f32 %v3647, 0.0
    %v4202 = vmin.f32 %v3649, 0.0
    %v4203 = vmin.f32 %v3204, 0.0
    %v4204 = vmin.f32 %v3206, 0.0
    %v4205 = vmin.f32 %v3653, 0.0
    %v4206 = vmin.f32 %v3655, 0.0
    %v4207 = vmin.f32 %v3210, 0.0
    %v4208 = vmin.f32 %v3212, 0.0
    %v4209 = vmin.f32 %v3659, 0.0
    %v4210 = vmin.f32 %v3661, 0.0
    %v4211 = vmin.f32 %v3216, 0.0
    %v4212 = vmin.f32 %v3218, 0.0
    %v4213 = vmin.f32 %v3665, 0.0
    %v4214 = vmin.f32 %v3667, 0.0
    %v4215 = vmin.f32 %v3222, 0.0
    %v4216 = vmin.f32 %v3224, 0.0
    %v4217 = vmin.f32 %v3671, 0.0
    %v4218 = vmin.f32 %v3673, 0.0
    %v4219 = vmin.f32 %v3228, 0.0
    %v4220 = vmin.f32 %v3230, 0.0
    %v4221 = vmin.f32 %v3677, 0.0
    %v4222 = vmin.f32 %v3679, 0.0
    %v4223 = vmin.f32 %v3234, 0.0
    %v4224 = vmin.f32 %v3236, 0.0
    %v4225 = vmin.f32 %v3683, 0.0
    %v4226 = vmin.f32 %v3685, 0.0
    %v4227 = vmin.f32 %v3240, 0.0
    %v4228 = vmin.f32 %v3242, 0.0
    %v4229 = vmin.f32 %v3689, 0.0
    %v4230 = vmin.f32 %v3691, 0.0
    %v4231 = vmin.f32 %v3246, 0.0
    %v4232 = vmin.f32 %v3248, 0.0
    %v4233 = vmin.f32 %v3695, 0.0
    %v4234 = vmin.f32 %v3697, 0.0
    %v4235 = vmin.f32 %v3252, 0.0
    %v4236 = vmin.f32 %v3254, 0.0
    %v4237 = vmin.f32 %v3701, 0.0
    %v4238 = vmin.f32 %v3703, 0.0
    %v4239 = vmin.f32 %v3258, 0.0
    %v4240 = vmin.f32 %v3260, 0.0
    %v4241 = vmin.f32 %v3707, 0.0
    %v4242 = vmin.f32 %v3709, 0.0
    %v4243 = vmin.f32 %v3264, 0.0
    %v4244 = vmin.f32 %v3266, 0.0
    %v4245 = vmin.f32 %v3713, 0.0
    %v4246 = vmin.f32 %v3715, 0.0
    %v4247 = vmin.f32 %v3270, 0.0
    %v4248 = vmin.f32 %v3272, 0.0
    %v4249 = vmin.f32 %v3719, 0.0
    %v4250 = vmin.f32 %v3721, 0.0
    %v4251 = vmin.f32 %v3276, 0.0
    %v4252 = vmin.f32 %v3278, 0.0
    %v4253 = vmin.f32 %v3725, 0.0
    %v4254 = vmin.f32 %v3727, 0.0
    %v4255 = vmin.f32 %v3282, 0.0
    %v4256 = vmin.f32 %v3284, 0.0
    %v4257 = vmin.f32 %v3731, 0.0
    %v4258 = vmin.f32 %v3733, 0.0
    %v4259 = vmin.f32 %v3288, 0.0
    %v4260 = vmin.f32 %v3290, 0.0
    %v4261 = vmin.f32 %v3737, 0.0
    %v4262 = vmin.f32 %v3739, 0.0
    %v4263 = vmin.f32 %v3294, 0.0
    %v4264 = vmin.f32 %v3296, 0.0
    %v4265 = vmin.f32 %v3743, 0.0
    %v4266 = vmin.f32 %v3745, 0.0
    %v4267 = vmin.f32 %v3300, 0.0
    %v4268 = vmin.f32 %v3302, 0.0
    %v4269 = vmin.f32 %v3749, 0.0
    %v4270 = vmin.f32 %v3751, 0.0
    %v4271 = vmin.f32 %v3306, 0.0
    %v4272 = vmin.f32 %v3308, 0.0
    %v4273 = vmin.f32 %v3755, 0.0
    %v4274 = vmin.f32 %v3757, 0.0
    %v4275 = vmin.f32 %v3312, 0.0
    %v4276 = vmin.f32 %v3314, 0.0
    %v4277 = vmin.f32 %v3761, 0.0
    %v4278 = vmin.f32 %v3763, 0.0
    %v4279 = vmin.f32 %v3318, 0.0
    %v4280 = vmin.f32 %v3320, 0.0
    %v4281 = vmin.f32 %v3767, 0.0
    %v4282 = vmin.f32 %v3769, 0.0
    %v4283 = vmul.f32 %v4027, 1.442695
    %v4284 = vpow.pop %v4283
    %v4285 = vmul.f32 %v4028, 1.442695
    %v4286 = vpow.pop %v4285
    %v4287 = vmul.f32 %v4029, 1.442695
    %v4288 = vpow.pop %v4287
    %v4289 = vmul.f32 %v4030, 1.442695
    %v4290 = vpow.pop %v4289
    %v4291 = vmul.f32 %v4031, 1.442695
    %v4292 = vpow.pop %v4291
    %v4293 = vmul.f32 %v4032, 1.442695
    %v4294 = vpow.pop %v4293
    %v4295 = vmul.f32 %v4033, 1.442695
    %v4296 = vpow.pop %v4295
    %v4297 = vmul.f32 %v4034, 1.442695
    %v4298 = vpow.pop %v4297
    %v4299 = vmul.f32 %v4035, 1.442695
    %v4300 = vpow.pop %v4299
    %v4301 = vmul.f32 %v4036, 1.442695
    %v4302 = vpow.pop %v4301
    %v4303 = vmul.f32 %v4037, 1.442695
    %v4304 = vpow.pop %v4303
    %v4305 = vmul.f32 %v4038, 1.442695
    %v4306 = vpow.pop %v4305
    %v4307 = vmul.f32 %v4039, 1.442695
    %v4308 = vpow.pop %v4307
    %v4309 = vmul.f32 %v4040, 1.442695
    %v4310 = vpow.pop %v4309
    %v4311 = vmul.f32 %v4041, 1.442695
    %v4312 = vpow.pop %v4311
    %v4313 = vmul.f32 %v4042, 1.442695
    %v4314 = vpow.pop %v4313
    %v4315 = vmul.f32 %v4043, 1.442695
    %v4316 = vpow.pop %v4315
    %v4317 = vmul.f32 %v4044, 1.442695
    %v4318 = vpow.pop %v4317
    %v4319 = vmul.f32 %v4045, 1.442695
    %v4320 = vpow.pop %v4319
    %v4321 = vmul.f32 %v4046, 1.442695
    %v4322 = vpow.pop %v4321
    %v4323 = vmul.f32 %v4047, 1.442695
    %v4324 = vpow.pop %v4323
    %v4325 = vmul.f32 %v4048, 1.442695
    %v4326 = vpow.pop %v4325
    %v4327 = vmul.f32 %v4049, 1.442695
    %v4328 = vpow.pop %v4327
    %v4329 = vmul.f32 %v4050, 1.442695
    %v4330 = vpow.pop %v4329
    %v4331 = vmul.f32 %v4051, 1.442695
    %v4332 = vpow.pop %v4331
    %v4333 = vmul.f32 %v4052, 1.442695
    %v4334 = vpow.pop %v4333
    %v4335 = vmul.f32 %v4053, 1.442695
    %v4336 = vpow.pop %v4335
    %v4337 = vmul.f32 %v4054, 1.442695
    %v4338 = vpow.pop %v4337
    %v4339 = vmul.f32 %v4055, 1.442695
    %v4340 = vpow.pop %v4339
    %v4341 = vmul.f32 %v4056, 1.442695
    %v4342 = vpow.pop %v4341
    %v4343 = vmul.f32 %v4057, 1.442695
    %v4344 = vpow.pop %v4343
    %v4345 = vmul.f32 %v4058, 1.442695
    %v4346 = vpow.pop %v4345
    %v4347 = vmul.f32 %v4059, 1.442695
    %v4348 = vpow.pop %v4347
    %v4349 = vmul.f32 %v4060, 1.442695
    %v4350 = vpow.pop %v4349
    %v4351 = vmul.f32 %v4061, 1.442695
    %v4352 = vpow.pop %v4351
    %v4353 = vmul.f32 %v4062, 1.442695
    %v4354 = vpow.pop %v4353
    %v4355 = vmul.f32 %v4063, 1.442695
    %v4356 = vpow.pop %v4355
    %v4357 = vmul.f32 %v4064, 1.442695
    %v4358 = vpow.pop %v4357
    %v4359 = vmul.f32 %v4065, 1.442695
    %v4360 = vpow.pop %v4359
    %v4361 = vmul.f32 %v4066, 1.442695
    %v4362 = vpow.pop %v4361
    %v4363 = vmul.f32 %v4067, 1.442695
    %v4364 = vpow.pop %v4363
    %v4365 = vmul.f32 %v4068, 1.442695
    %v4366 = vpow.pop %v4365
    %v4367 = vmul.f32 %v4069, 1.442695
    %v4368 = vpow.pop %v4367
    %v4369 = vmul.f32 %v4070, 1.442695
    %v4370 = vpow.pop %v4369
    %v4371 = vmul.f32 %v4071, 1.442695
    %v4372 = vpow.pop %v4371
    %v4373 = vmul.f32 %v4072, 1.442695
    %v4374 = vpow.pop %v4373
    %v4375 = vmul.f32 %v4073, 1.442695
    %v4376 = vpow.pop %v4375
    %v4377 = vmul.f32 %v4074, 1.442695
    %v4378 = vpow.pop %v4377
    %v4379 = vmul.f32 %v4075, 1.442695
    %v4380 = vpow.pop %v4379
    %v4381 = vmul.f32 %v4076, 1.442695
    %v4382 = vpow.pop %v4381
    %v4383 = vmul.f32 %v4077, 1.442695
    %v4384 = vpow.pop %v4383
    %v4385 = vmul.f32 %v4078, 1.442695
    %v4386 = vpow.pop %v4385
    %v4387 = vmul.f32 %v4079, 1.442695
    %v4388 = vpow.pop %v4387
    %v4389 = vmul.f32 %v4080, 1.442695
    %v4390 = vpow.pop %v4389
    %v4391 = vmul.f32 %v4081, 1.442695
    %v4392 = vpow.pop %v4391
    %v4393 = vmul.f32 %v4082, 1.442695
    %v4394 = vpow.pop %v4393
    %v4395 = vmul.f32 %v4083, 1.442695
    %v4396 = vpow.pop %v4395
    %v4397 = vmul.f32 %v4084, 1.442695
    %v4398 = vpow.pop %v4397
    %v4399 = vmul.f32 %v4085, 1.442695
    %v4400 = vpow.pop %v4399
    %v4401 = vmul.f32 %v4086, 1.442695
    %v4402 = vpow.pop %v4401
    %v4403 = vmul.f32 %v4087, 1.442695
    %v4404 = vpow.pop %v4403
    %v4405 = vmul.f32 %v4088, 1.442695
    %v4406 = vpow.pop %v4405
    %v4407 = vmul.f32 %v4089, 1.442695
    %v4408 = vpow.pop %v4407
    %v4409 = vmul.f32 %v4090, 1.442695
    %v4410 = vpow.pop %v4409
    %v4411 = vmul.f32 %v4091, 1.442695
    %v4412 = vpow.pop %v4411
    %v4413 = vmul.f32 %v4092, 1.442695
    %v4414 = vpow.pop %v4413
    %v4415 = vmul.f32 %v4093, 1.442695
    %v4416 = vpow.pop %v4415
    %v4417 = vmul.f32 %v4094, 1.442695
    %v4418 = vpow.pop %v4417
    %v4419 = vmul.f32 %v4095, 1.442695
    %v4420 = vpow.pop %v4419
    %v4421 = vmul.f32 %v4096, 1.442695
    %v4422 = vpow.pop %v4421
    %v4423 = vmul.f32 %v4097, 1.442695
    %v4424 = vpow.pop %v4423
    %v4425 = vmul.f32 %v4098, 1.442695
    %v4426 = vpow.pop %v4425
    %v4427 = vmul.f32 %v4099, 1.442695
    %v4428 = vpow.pop %v4427
    %v4429 = vmul.f32 %v4100, 1.442695
    %v4430 = vpow.pop %v4429
    %v4431 = vmul.f32 %v4101, 1.442695
    %v4432 = vpow.pop %v4431
    %v4433 = vmul.f32 %v4102, 1.442695
    %v4434 = vpow.pop %v4433
    %v4435 = vmul.f32 %v4103, 1.442695
    %v4436 = vpow.pop %v4435
    %v4437 = vmul.f32 %v4104, 1.442695
    %v4438 = vpow.pop %v4437
    %v4439 = vmul.f32 %v4105, 1.442695
    %v4440 = vpow.pop %v4439
    %v4441 = vmul.f32 %v4106, 1.442695
    %v4442 = vpow.pop %v4441
    %v4443 = vmul.f32 %v4107, 1.442695
    %v4444 = vpow.pop %v4443
    %v4445 = vmul.f32 %v4108, 1.442695
    %v4446 = vpow.pop %v4445
    %v4447 = vmul.f32 %v4109, 1.442695
    %v4448 = vpow.pop %v4447
    %v4449 = vmul.f32 %v4110, 1.442695
    %v4450 = vpow.pop %v4449
    %v4451 = vmul.f32 %v4111, 1.442695
    %v4452 = vpow.pop %v4451
    %v4453 = vmul.f32 %v4112, 1.442695
    %v4454 = vpow.pop %v4453
    %v4455 = vmul.f32 %v4113, 1.442695
    %v4456 = vpow.pop %v4455
    %v4457 = vmul.f32 %v4114, 1.442695
    %v4458 = vpow.pop %v4457
    %v4459 = vmul.f32 %v4115, 1.442695
    %v4460 = vpow.pop %v4459
    %v4461 = vmul.f32 %v4116, 1.442695
    %v4462 = vpow.pop %v4461
    %v4463 = vmul.f32 %v4117, 1.442695
    %v4464 = vpow.pop %v4463
    %v4465 = vmul.f32 %v4118, 1.442695
    %v4466 = vpow.pop %v4465
    %v4467 = vmul.f32 %v4119, 1.442695
    %v4468 = vpow.pop %v4467
    %v4469 = vmul.f32 %v4120, 1.442695
    %v4470 = vpow.pop %v4469
    %v4471 = vmul.f32 %v4121, 1.442695
    %v4472 = vpow.pop %v4471
    %v4473 = vmul.f32 %v4122, 1.442695
    %v4474 = vpow.pop %v4473
    %v4475 = vmul.f32 %v4123, 1.442695
    %v4476 = vpow.pop %v4475
    %v4477 = vmul.f32 %v4124, 1.442695
    %v4478 = vpow.pop %v4477
    %v4479 = vmul.f32 %v4125, 1.442695
    %v4480 = vpow.pop %v4479
    %v4481 = vmul.f32 %v4126, 1.442695
    %v4482 = vpow.pop %v4481
    %v4483 = vmul.f32 %v4127, 1.442695
    %v4484 = vpow.pop %v4483
    %v4485 = vmul.f32 %v4128, 1.442695
    %v4486 = vpow.pop %v4485
    %v4487 = vmul.f32 %v4129, 1.442695
    %v4488 = vpow.pop %v4487
    %v4489 = vmul.f32 %v4130, 1.442695
    %v4490 = vpow.pop %v4489
    %v4491 = vmul.f32 %v4131, 1.442695
    %v4492 = vpow.pop %v4491
    %v4493 = vmul.f32 %v4132, 1.442695
    %v4494 = vpow.pop %v4493
    %v4495 = vmul.f32 %v4133, 1.442695
    %v4496 = vpow.pop %v4495
    %v4497 = vmul.f32 %v4134, 1.442695
    %v4498 = vpow.pop %v4497
    %v4499 = vmul.f32 %v4135, 1.442695
    %v4500 = vpow.pop %v4499
    %v4501 = vmul.f32 %v4136, 1.442695
    %v4502 = vpow.pop %v4501
    %v4503 = vmul.f32 %v4137, 1.442695
    %v4504 = vpow.pop %v4503
    %v4505 = vmul.f32 %v4138, 1.442695
    %v4506 = vpow.pop %v4505
    %v4507 = vmul.f32 %v4139, 1.442695
    %v4508 = vpow.pop %v4507
    %v4509 = vmul.f32 %v4140, 1.442695
    %v4510 = vpow.pop %v4509
    %v4511 = vmul.f32 %v4141, 1.442695
    %v4512 = vpow.pop %v4511
    %v4513 = vmul.f32 %v4142, 1.442695
    %v4514 = vpow.pop %v4513
    %v4515 = vmul.f32 %v4143, 1.442695
    %v4516 = vpow.pop %v4515
    %v4517 = vmul.f32 %v4144, 1.442695
    %v4518 = vpow.pop %v4517
    %v4519 = vmul.f32 %v4145, 1.442695
    %v4520 = vpow.pop %v4519
    %v4521 = vmul.f32 %v4146, 1.442695
    %v4522 = vpow.pop %v4521
    %v4523 = vmul.f32 %v4147, 1.442695
    %v4524 = vpow.pop %v4523
    %v4525 = vmul.f32 %v4148, 1.442695
    %v4526 = vpow.pop %v4525
    %v4527 = vmul.f32 %v4149, 1.442695
    %v4528 = vpow.pop %v4527
    %v4529 = vmul.f32 %v4150, 1.442695
    %v4530 = vpow.pop %v4529
    %v4531 = vmul.f32 %v4151, 1.442695
    %v4532 = vpow.pop %v4531
    %v4533 = vmul.f32 %v4152, 1.442695
    %v4534 = vpow.pop %v4533
    %v4535 = vmul.f32 %v4153, 1.442695
    %v4536 = vpow.pop %v4535
    %v4537 = vmul.f32 %v4154, 1.442695
    %v4538 = vpow.pop %v4537
    %v4539 = vmul.f32 %v4155, 1.442695
    %v4540 = vpow.pop %v4539
    %v4541 = vmul.f32 %v4156, 1.442695
    %v4542 = vpow.pop %v4541
    %v4543 = vmul.f32 %v4157, 1.442695
    %v4544 = vpow.pop %v4543
    %v4545 = vmul.f32 %v4158, 1.442695
    %v4546 = vpow.pop %v4545
    %v4547 = vmul.f32 %v4159, 1.442695
    %v4548 = vpow.pop %v4547
    %v4549 = vmul.f32 %v4160, 1.442695
    %v4550 = vpow.pop %v4549
    %v4551 = vmul.f32 %v4161, 1.442695
    %v4552 = vpow.pop %v4551
    %v4553 = vmul.f32 %v4162, 1.442695
    %v4554 = vpow.pop %v4553
    %v4555 = vmul.f32 %v4163, 1.442695
    %v4556 = vpow.pop %v4555
    %v4557 = vmul.f32 %v4164, 1.442695
    %v4558 = vpow.pop %v4557
    %v4559 = vmul.f32 %v4165, 1.442695
    %v4560 = vpow.pop %v4559
    %v4561 = vmul.f32 %v4166, 1.442695
    %v4562 = vpow.pop %v4561
    %v4563 = vmul.f32 %v4167, 1.442695
    %v4564 = vpow.pop %v4563
    %v4565 = vmul.f32 %v4168, 1.442695
    %v4566 = vpow.pop %v4565
    %v4567 = vmul.f32 %v4169, 1.442695
    %v4568 = vpow.pop %v4567
    %v4569 = vmul.f32 %v4170, 1.442695
    %v4570 = vpow.pop %v4569
    %v4571 = vmul.f32 %v4171, 1.442695
    %v4572 = vpow.pop %v4571
    %v4573 = vmul.f32 %v4172, 1.442695
    %v4574 = vpow.pop %v4573
    %v4575 = vmul.f32 %v4173, 1.442695
    %v4576 = vpow.pop %v4575
    %v4577 = vmul.f32 %v4174, 1.442695
    %v4578 = vpow.pop %v4577
    %v4579 = vmul.f32 %v4175, 1.442695
    %v4580 = vpow.pop %v4579
    %v4581 = vmul.f32 %v4176, 1.442695
    %v4582 = vpow.pop %v4581
    %v4583 = vmul.f32 %v4177, 1.442695
    %v4584 = vpow.pop %v4583
    %v4585 = vmul.f32 %v4178, 1.442695
    %v4586 = vpow.pop %v4585
    %v4587 = vmul.f32 %v4179, 1.442695
    %v4588 = vpow.pop %v4587
    %v4589 = vmul.f32 %v4180, 1.442695
    %v4590 = vpow.pop %v4589
    %v4591 = vmul.f32 %v4181, 1.442695
    %v4592 = vpow.pop %v4591
    %v4593 = vmul.f32 %v4182, 1.442695
    %v4594 = vpow.pop %v4593
    %v4595 = vmul.f32 %v4183, 1.442695
    %v4596 = vpow.pop %v4595
    %v4597 = vmul.f32 %v4184, 1.442695
    %v4598 = vpow.pop %v4597
    %v4599 = vmul.f32 %v4185, 1.442695
    %v4600 = vpow.pop %v4599
    %v4601 = vmul.f32 %v4186, 1.442695
    %v4602 = vpow.pop %v4601
    %v4603 = vmul.f32 %v4187, 1.442695
    %v4604 = vpow.pop %v4603
    %v4605 = vmul.f32 %v4188, 1.442695
    %v4606 = vpow.pop %v4605
    %v4607 = vmul.f32 %v4189, 1.442695
    %v4608 = vpow.pop %v4607
    %v4609 = vmul.f32 %v4190, 1.442695
    %v4610 = vpow.pop %v4609
    %v4611 = vmul.f32 %v4191, 1.442695
    %v4612 = vpow.pop %v4611
    %v4613 = vmul.f32 %v4192, 1.442695
    %v4614 = vpow.pop %v4613
    %v4615 = vmul.f32 %v4193, 1.442695
    %v4616 = vpow.pop %v4615
    %v4617 = vmul.f32 %v4194, 1.442695
    %v4618 = vpow.pop %v4617
    %v4619 = vmul.f32 %v4195, 1.442695
    %v4620 = vpow.pop %v4619
    %v4621 = vmul.f32 %v4196, 1.442695
    %v4622 = vpow.pop %v4621
    %v4623 = vmul.f32 %v4197, 1.442695
    %v4624 = vpow.pop %v4623
    %v4625 = vmul.f32 %v4198, 1.442695
    %v4626 = vpow.pop %v4625
    %v4627 = vmul.f32 %v4199, 1.442695
    %v4628 = vpow.pop %v4627
    %v4629 = vmul.f32 %v4200, 1.442695
    %v4630 = vpow.pop %v4629
    %v4631 = vmul.f32 %v4201, 1.442695
    %v4632 = vpow.pop %v4631
    %v4633 = vmul.f32 %v4202, 1.442695
    %v4634 = vpow.pop %v4633
    %v4635 = vmul.f32 %v4203, 1.442695
    %v4636 = vpow.pop %v4635
    %v4637 = vmul.f32 %v4204, 1.442695
    %v4638 = vpow.pop %v4637
    %v4639 = vmul.f32 %v4205, 1.442695
    %v4640 = vpow.pop %v4639
    %v4641 = vmul.f32 %v4206, 1.442695
    %v4642 = vpow.pop %v4641
    %v4643 = vmul.f32 %v4207, 1.442695
    %v4644 = vpow.pop %v4643
    %v4645 = vmul.f32 %v4208, 1.442695
    %v4646 = vpow.pop %v4645
    %v4647 = vmul.f32 %v4209, 1.442695
    %v4648 = vpow.pop %v4647
    %v4649 = vmul.f32 %v4210, 1.442695
    %v4650 = vpow.pop %v4649
    %v4651 = vmul.f32 %v4211, 1.442695
    %v4652 = vpow.pop %v4651
    %v4653 = vmul.f32 %v4212, 1.442695
    %v4654 = vpow.pop %v4653
    %v4655 = vmul.f32 %v4213, 1.442695
    %v4656 = vpow.pop %v4655
    %v4657 = vmul.f32 %v4214, 1.442695
    %v4658 = vpow.pop %v4657
    %v4659 = vmul.f32 %v4215, 1.442695
    %v4660 = vpow.pop %v4659
    %v4661 = vmul.f32 %v4216, 1.442695
    %v4662 = vpow.pop %v4661
    %v4663 = vmul.f32 %v4217, 1.442695
    %v4664 = vpow.pop %v4663
    %v4665 = vmul.f32 %v4218, 1.442695
    %v4666 = vpow.pop %v4665
    %v4667 = vmul.f32 %v4219, 1.442695
    %v4668 = vpow.pop %v4667
    %v4669 = vmul.f32 %v4220, 1.442695
    %v4670 = vpow.pop %v4669
    %v4671 = vmul.f32 %v4221, 1.442695
    %v4672 = vpow.pop %v4671
    %v4673 = vmul.f32 %v4222, 1.442695
    %v4674 = vpow.pop %v4673
    %v4675 = vmul.f32 %v4223, 1.442695
    %v4676 = vpow.pop %v4675
    %v4677 = vmul.f32 %v4224, 1.442695
    %v4678 = vpow.pop %v4677
    %v4679 = vmul.f32 %v4225, 1.442695
    %v4680 = vpow.pop %v4679
    %v4681 = vmul.f32 %v4226, 1.442695
    %v4682 = vpow.pop %v4681
    %v4683 = vmul.f32 %v4227, 1.442695
    %v4684 = vpow.pop %v4683
    %v4685 = vmul.f32 %v4228, 1.442695
    %v4686 = vpow.pop %v4685
    %v4687 = vmul.f32 %v4229, 1.442695
    %v4688 = vpow.pop %v4687
    %v4689 = vmul.f32 %v4230, 1.442695
    %v4690 = vpow.pop %v4689
    %v4691 = vmul.f32 %v4231, 1.442695
    %v4692 = vpow.pop %v4691
    %v4693 = vmul.f32 %v4232, 1.442695
    %v4694 = vpow.pop %v4693
    %v4695 = vmul.f32 %v4233, 1.442695
    %v4696 = vpow.pop %v4695
    %v4697 = vmul.f32 %v4234, 1.442695
    %v4698 = vpow.pop %v4697
    %v4699 = vmul.f32 %v4235, 1.442695
    %v4700 = vpow.pop %v4699
    %v4701 = vmul.f32 %v4236, 1.442695
    %v4702 = vpow.pop %v4701
    %v4703 = vmul.f32 %v4237, 1.442695
    %v4704 = vpow.pop %v4703
    %v4705 = vmul.f32 %v4238, 1.442695
    %v4706 = vpow.pop %v4705
    %v4707 = vmul.f32 %v4239, 1.442695
    %v4708 = vpow.pop %v4707
    %v4709 = vmul.f32 %v4240, 1.442695
    %v4710 = vpow.pop %v4709
    %v4711 = vmul.f32 %v4241, 1.442695
    %v4712 = vpow.pop %v4711
    %v4713 = vmul.f32 %v4242, 1.442695
    %v4714 = vpow.pop %v4713
    %v4715 = vmul.f32 %v4243, 1.442695
    %v4716 = vpow.pop %v4715
    %v4717 = vmul.f32 %v4244, 1.442695
    %v4718 = vpow.pop %v4717
    %v4719 = vmul.f32 %v4245, 1.442695
    %v4720 = vpow.pop %v4719
    %v4721 = vmul.f32 %v4246, 1.442695
    %v4722 = vpow.pop %v4721
    %v4723 = vmul.f32 %v4247, 1.442695
    %v4724 = vpow.pop %v4723
    %v4725 = vmul.f32 %v4248, 1.442695
    %v4726 = vpow.pop %v4725
    %v4727 = vmul.f32 %v4249, 1.442695
    %v4728 = vpow.pop %v4727
    %v4729 = vmul.f32 %v4250, 1.442695
    %v4730 = vpow.pop %v4729
    %v4731 = vmul.f32 %v4251, 1.442695
    %v4732 = vpow.pop %v4731
    %v4733 = vmul.f32 %v4252, 1.442695
    %v4734 = vpow.pop %v4733
    %v4735 = vmul.f32 %v4253, 1.442695
    %v4736 = vpow.pop %v4735
    %v4737 = vmul.f32 %v4254, 1.442695
    %v4738 = vpow.pop %v4737
    %v4739 = vmul.f32 %v4255, 1.442695
    %v4740 = vpow.pop %v4739
    %v4741 = vmul.f32 %v4256, 1.442695
    %v4742 = vpow.pop %v4741
    %v4743 = vmul.f32 %v4257, 1.442695
    %v4744 = vpow.pop %v4743
    %v4745 = vmul.f32 %v4258, 1.442695
    %v4746 = vpow.pop %v4745
    %v4747 = vmul.f32 %v4259, 1.442695
    %v4748 = vpow.pop %v4747
    %v4749 = vmul.f32 %v4260, 1.442695
    %v4750 = vpow.pop %v4749
    %v4751 = vmul.f32 %v4261, 1.442695
    %v4752 = vpow.pop %v4751
    %v4753 = vmul.f32 %v4262, 1.442695
    %v4754 = vpow.pop %v4753
    %v4755 = vmul.f32 %v4263, 1.442695
    %v4756 = vpow.pop %v4755
    %v4757 = vmul.f32 %v4264, 1.442695
    %v4758 = vpow.pop %v4757
    %v4759 = vmul.f32 %v4265, 1.442695
    %v4760 = vpow.pop %v4759
    %v4761 = vmul.f32 %v4266, 1.442695
    %v4762 = vpow.pop %v4761
    %v4763 = vmul.f32 %v4267, 1.442695
    %v4764 = vpow.pop %v4763
    %v4765 = vmul.f32 %v4268, 1.442695
    %v4766 = vpow.pop %v4765
    %v4767 = vmul.f32 %v4269, 1.442695
    %v4768 = vpow.pop %v4767
    %v4769 = vmul.f32 %v4270, 1.442695
    %v4770 = vpow.pop %v4769
    %v4771 = vmul.f32 %v4271, 1.442695
    %v4772 = vpow.pop %v4771
    %v4773 = vmul.f32 %v4272, 1.442695
    %v4774 = vpow.pop %v4773
    %v4775 = vmul.f32 %v4273, 1.442695
    %v4776 = vpow.pop %v4775
    %v4777 = vmul.f32 %v4274, 1.442695
    %v4778 = vpow.pop %v4777
    %v4779 = vmul.f32 %v4275, 1.442695
    %v4780 = vpow.pop %v4779
    %v4781 = vmul.f32 %v4276, 1.442695
    %v4782 = vpow.pop %v4781
    %v4783 = vmul.f32 %v4277, 1.442695
    %v4784 = vpow.pop %v4783
    %v4785 = vmul.f32 %v4278, 1.442695
    %v4786 = vpow.pop %v4785
    %v4787 = vmul.f32 %v4279, 1.442695
    %v4788 = vpow.pop %v4787
    %v4789 = vmul.f32 %v4280, 1.442695
    %v4790 = vpow.pop %v4789
    %v4791 = vmul.f32 %v4281, 1.442695
    %v4792 = vpow.pop %v4791
    %v4793 = vmul.f32 %v4282, 1.442695
    %v4794 = vpow.pop %v4793
    %v4795 = vsub.f32 %v4284, 1.0
    %v4796 = vsub.f32 %v4286, 1.0
    %v4797 = vsub.f32 %v4288, 1.0
    %v4798 = vsub.f32 %v4290, 1.0
    %v4799 = vsub.f32 %v4292, 1.0
    %v4800 = vsub.f32 %v4294, 1.0
    %v4801 = vsub.f32 %v4296, 1.0
    %v4802 = vsub.f32 %v4298, 1.0
    %v4803 = vsub.f32 %v4300, 1.0
    %v4804 = vsub.f32 %v4302, 1.0
    %v4805 = vsub.f32 %v4304, 1.0
    %v4806 = vsub.f32 %v4306, 1.0
    %v4807 = vsub.f32 %v4308, 1.0
    %v4808 = vsub.f32 %v4310, 1.0
    %v4809 = vsub.f32 %v4312, 1.0
    %v4810 = vsub.f32 %v4314, 1.0
    %v4811 = vsub.f32 %v4316, 1.0
    %v4812 = vsub.f32 %v4318, 1.0
    %v4813 = vsub.f32 %v4320, 1.0
    %v4814 = vsub.f32 %v4322, 1.0
    %v4815 = vsub.f32 %v4324, 1.0
    %v4816 = vsub.f32 %v4326, 1.0
    %v4817 = vsub.f32 %v4328, 1.0
    %v4818 = vsub.f32 %v4330, 1.0
    %v4819 = vsub.f32 %v4332, 1.0
    %v4820 = vsub.f32 %v4334, 1.0
    %v4821 = vsub.f32 %v4336, 1.0
    %v4822 = vsub.f32 %v4338, 1.0
    %v4823 = vsub.f32 %v4340, 1.0
    %v4824 = vsub.f32 %v4342, 1.0
    %v4825 = vsub.f32 %v4344, 1.0
    %v4826 = vsub.f32 %v4346, 1.0
    %v4827 = vsub.f32 %v4348, 1.0
    %v4828 = vsub.f32 %v4350, 1.0
    %v4829 = vsub.f32 %v4352, 1.0
    %v4830 = vsub.f32 %v4354, 1.0
    %v4831 = vsub.f32 %v4356, 1.0
    %v4832 = vsub.f32 %v4358, 1.0
    %v4833 = vsub.f32 %v4360, 1.0
    %v4834 = vsub.f32 %v4362, 1.0
    %v4835 = vsub.f32 %v4364, 1.0
    %v4836 = vsub.f32 %v4366, 1.0
    %v4837 = vsub.f32 %v4368, 1.0
    %v4838 = vsub.f32 %v4370, 1.0
    %v4839 = vsub.f32 %v4372, 1.0
    %v4840 = vsub.f32 %v4374, 1.0
    %v4841 = vsub.f32 %v4376, 1.0
    %v4842 = vsub.f32 %v4378, 1.0
    %v4843 = vsub.f32 %v4380, 1.0
    %v4844 = vsub.f32 %v4382, 1.0
    %v4845 = vsub.f32 %v4384, 1.0
    %v4846 = vsub.f32 %v4386, 1.0
    %v4847 = vsub.f32 %v4388, 1.0
    %v4848 = vsub.f32 %v4390, 1.0
    %v4849 = vsub.f32 %v4392, 1.0
    %v4850 = vsub.f32 %v4394, 1.0
    %v4851 = vsub.f32 %v4396, 1.0
    %v4852 = vsub.f32 %v4398, 1.0
    %v4853 = vsub.f32 %v4400, 1.0
    %v4854 = vsub.f32 %v4402, 1.0
    %v4855 = vsub.f32 %v4404, 1.0
    %v4856 = vsub.f32 %v4406, 1.0
    %v4857 = vsub.f32 %v4408, 1.0
    %v4858 = vsub.f32 %v4410, 1.0
    %v4859 = vsub.f32 %v4412, 1.0
    %v4860 = vsub.f32 %v4414, 1.0
    %v4861 = vsub.f32 %v4416, 1.0
    %v4862 = vsub.f32 %v4418, 1.0
    %v4863 = vsub.f32 %v4420, 1.0
    %v4864 = vsub.f32 %v4422, 1.0
    %v4865 = vsub.f32 %v4424, 1.0
    %v4866 = vsub.f32 %v4426, 1.0
    %v4867 = vsub.f32 %v4428, 1.0
    %v4868 = vsub.f32 %v4430, 1.0
    %v4869 = vsub.f32 %v4432, 1.0
    %v4870 = vsub.f32 %v4434, 1.0
    %v4871 = vsub.f32 %v4436, 1.0
    %v4872 = vsub.f32 %v4438, 1.0
    %v4873 = vsub.f32 %v4440, 1.0
    %v4874 = vsub.f32 %v4442, 1.0
    %v4875 = vsub.f32 %v4444, 1.0
    %v4876 = vsub.f32 %v4446, 1.0
    %v4877 = vsub.f32 %v4448, 1.0
    %v4878 = vsub.f32 %v4450, 1.0
    %v4879 = vsub.f32 %v4452, 1.0
    %v4880 = vsub.f32 %v4454, 1.0
    %v4881 = vsub.f32 %v4456, 1.0
    %v4882 = vsub.f32 %v4458, 1.0
    %v4883 = vsub.f32 %v4460, 1.0
    %v4884 = vsub.f32 %v4462, 1.0
    %v4885 = vsub.f32 %v4464, 1.0
    %v4886 = vsub.f32 %v4466, 1.0
    %v4887 = vsub.f32 %v4468, 1.0
    %v4888 = vsub.f32 %v4470, 1.0
    %v4889 = vsub.f32 %v4472, 1.0
    %v4890 = vsub.f32 %v4474, 1.0
    %v4891 = vsub.f32 %v4476, 1.0
    %v4892 = vsub.f32 %v4478, 1.0
    %v4893 = vsub.f32 %v4480, 1.0
    %v4894 = vsub.f32 %v4482, 1.0
    %v4895 = vsub.f32 %v4484, 1.0
    %v4896 = vsub.f32 %v4486, 1.0
    %v4897 = vsub.f32 %v4488, 1.0
    %v4898 = vsub.f32 %v4490, 1.0
    %v4899 = vsub.f32 %v4492, 1.0
    %v4900 = vsub.f32 %v4494, 1.0
    %v4901 = vsub.f32 %v4496, 1.0
    %v4902 = vsub.f32 %v4498, 1.0
    %v4903 = vsub.f32 %v4500, 1.0
    %v4904 = vsub.f32 %v4502, 1.0
    %v4905 = vsub.f32 %v4504, 1.0
    %v4906 = vsub.f32 %v4506, 1.0
    %v4907 = vsub.f32 %v4508, 1.0
    %v4908 = vsub.f32 %v4510, 1.0
    %v4909 = vsub.f32 %v4512, 1.0
    %v4910 = vsub.f32 %v4514, 1.0
    %v4911 = vsub.f32 %v4516, 1.0
    %v4912 = vsub.f32 %v4518, 1.0
    %v4913 = vsub.f32 %v4520, 1.0
    %v4914 = vsub.f32 %v4522, 1.0
    %v4915 = vsub.f32 %v4524, 1.0
    %v4916 = vsub.f32 %v4526, 1.0
    %v4917 = vsub.f32 %v4528, 1.0
    %v4918 = vsub.f32 %v4530, 1.0
    %v4919 = vsub.f32 %v4532, 1.0
    %v4920 = vsub.f32 %v4534, 1.0
    %v4921 = vsub.f32 %v4536, 1.0
    %v4922 = vsub.f32 %v4538, 1.0
    %v4923 = vsub.f32 %v4540, 1.0
    %v4924 = vsub.f32 %v4542, 1.0
    %v4925 = vsub.f32 %v4544, 1.0
    %v4926 = vsub.f32 %v4546, 1.0
    %v4927 = vsub.f32 %v4548, 1.0
    %v4928 = vsub.f32 %v4550, 1.0
    %v4929 = vsub.f32 %v4552, 1.0
    %v4930 = vsub.f32 %v4554, 1.0
    %v4931 = vsub.f32 %v4556, 1.0
    %v4932 = vsub.f32 %v4558, 1.0
    %v4933 = vsub.f32 %v4560, 1.0
    %v4934 = vsub.f32 %v4562, 1.0
    %v4935 = vsub.f32 %v4564, 1.0
    %v4936 = vsub.f32 %v4566, 1.0
    %v4937 = vsub.f32 %v4568, 1.0
    %v4938 = vsub.f32 %v4570, 1.0
    %v4939 = vsub.f32 %v4572, 1.0
    %v4940 = vsub.f32 %v4574, 1.0
    %v4941 = vsub.f32 %v4576, 1.0
    %v4942 = vsub.f32 %v4578, 1.0
    %v4943 = vsub.f32 %v4580, 1.0
    %v4944 = vsub.f32 %v4582, 1.0
    %v4945 = vsub.f32 %v4584, 1.0
    %v4946 = vsub.f32 %v4586, 1.0
    %v4947 = vsub.f32 %v4588, 1.0
    %v4948 = vsub.f32 %v4590, 1.0
    %v4949 = vsub.f32 %v4592, 1.0
    %v4950 = vsub.f32 %v4594, 1.0
    %v4951 = vsub.f32 %v4596, 1.0
    %v4952 = vsub.f32 %v4598, 1.0
    %v4953 = vsub.f32 %v4600, 1.0
    %v4954 = vsub.f32 %v4602, 1.0
    %v4955 = vsub.f32 %v4604, 1.0
    %v4956 = vsub.f32 %v4606, 1.0
    %v4957 = vsub.f32 %v4608, 1.0
    %v4958 = vsub.f32 %v4610, 1.0
    %v4959 = vsub.f32 %v4612, 1.0
    %v4960 = vsub.f32 %v4614, 1.0
    %v4961 = vsub.f32 %v4616, 1.0
    %v4962 = vsub.f32 %v4618, 1.0
    %v4963 = vsub.f32 %v4620, 1.0
    %v4964 = vsub.f32 %v4622, 1.0
    %v4965 = vsub.f32 %v4624, 1.0
    %v4966 = vsub.f32 %v4626, 1.0
    %v4967 = vsub.f32 %v4628, 1.0
    %v4968 = vsub.f32 %v4630, 1.0
    %v4969 = vsub.f32 %v4632, 1.0
    %v4970 = vsub.f32 %v4634, 1.0
    %v4971 = vsub.f32 %v4636, 1.0
    %v4972 = vsub.f32 %v4638, 1.0
    %v4973 = vsub.f32 %v4640, 1.0
    %v4974 = vsub.f32 %v4642, 1.0
    %v4975 = vsub.f32 %v4644, 1.0
    %v4976 = vsub.f32 %v4646, 1.0
    %v4977 = vsub.f32 %v4648, 1.0
    %v4978 = vsub.f32 %v4650, 1.0
    %v4979 = vsub.f32 %v4652, 1.0
    %v4980 = vsub.f32 %v4654, 1.0
    %v4981 = vsub.f32 %v4656, 1.0
    %v4982 = vsub.f32 %v4658, 1.0
    %v4983 = vsub.f32 %v4660, 1.0
    %v4984 = vsub.f32 %v4662, 1.0
    %v4985 = vsub.f32 %v4664, 1.0
    %v4986 = vsub.f32 %v4666, 1.0
    %v4987 = vsub.f32 %v4668, 1.0
    %v4988 = vsub.f32 %v4670, 1.0
    %v4989 = vsub.f32 %v4672, 1.0
    %v4990 = vsub.f32 %v4674, 1.0
    %v4991 = vsub.f32 %v4676, 1.0
    %v4992 = vsub.f32 %v4678, 1.0
    %v4993 = vsub.f32 %v4680, 1.0
    %v4994 = vsub.f32 %v4682, 1.0
    %v4995 = vsub.f32 %v4684, 1.0
    %v4996 = vsub.f32 %v4686, 1.0
    %v4997 = vsub.f32 %v4688, 1.0
    %v4998 = vsub.f32 %v4690, 1.0
    %v4999 = vsub.f32 %v4692, 1.0
    %v5000 = vsub.f32 %v4694, 1.0
    %v5001 = vsub.f32 %v4696, 1.0
    %v5002 = vsub.f32 %v4698, 1.0
    %v5003 = vsub.f32 %v4700, 1.0
    %v5004 = vsub.f32 %v4702, 1.0
    %v5005 = vsub.f32 %v4704, 1.0
    %v5006 = vsub.f32 %v4706, 1.0
    %v5007 = vsub.f32 %v4708, 1.0
    %v5008 = vsub.f32 %v4710, 1.0
    %v5009 = vsub.f32 %v4712, 1.0
    %v5010 = vsub.f32 %v4714, 1.0
    %v5011 = vsub.f32 %v4716, 1.0
    %v5012 = vsub.f32 %v4718, 1.0
    %v5013 = vsub.f32 %v4720, 1.0
    %v5014 = vsub.f32 %v4722, 1.0
    %v5015 = vsub.f32 %v4724, 1.0
    %v5016 = vsub.f32 %v4726, 1.0
    %v5017 = vsub.f32 %v4728, 1.0
    %v5018 = vsub.f32 %v4730, 1.0
    %v5019 = vsub.f32 %v4732, 1.0
    %v5020 = vsub.f32 %v4734, 1.0
    %v5021 = vsub.f32 %v4736, 1.0
    %v5022 = vsub.f32 %v4738, 1.0
    %v5023 = vsub.f32 %v4740, 1.0
    %v5024 = vsub.f32 %v4742, 1.0
    %v5025 = vsub.f32 %v4744, 1.0
    %v5026 = vsub.f32 %v4746, 1.0
    %v5027 = vsub.f32 %v4748, 1.0
    %v5028 = vsub.f32 %v4750, 1.0
    %v5029 = vsub.f32 %v4752, 1.0
    %v5030 = vsub.f32 %v4754, 1.0
    %v5031 = vsub.f32 %v4756, 1.0
    %v5032 = vsub.f32 %v4758, 1.0
    %v5033 = vsub.f32 %v4760, 1.0
    %v5034 = vsub.f32 %v4762, 1.0
    %v5035 = vsub.f32 %v4764, 1.0
    %v5036 = vsub.f32 %v4766, 1.0
    %v5037 = vsub.f32 %v4768, 1.0
    %v5038 = vsub.f32 %v4770, 1.0
    %v5039 = vsub.f32 %v4772, 1.0
    %v5040 = vsub.f32 %v4774, 1.0
    %v5041 = vsub.f32 %v4776, 1.0
    %v5042 = vsub.f32 %v4778, 1.0
    %v5043 = vsub.f32 %v4780, 1.0
    %v5044 = vsub.f32 %v4782, 1.0
    %v5045 = vsub.f32 %v4784, 1.0
    %v5046 = vsub.f32 %v4786, 1.0
    %v5047 = vsub.f32 %v4788, 1.0
    %v5048 = vsub.f32 %v4790, 1.0
    %v5049 = vsub.f32 %v4792, 1.0
    %v5050 = vsub.f32 %v4794, 1.0
    %v5051 = vsel %vm3771, %v2940, %v4795
    %v5052 = vsel %vm3772, %v2942, %v4796
    %v5053 = vsel %vm3773, %v3389, %v4797
    %v5054 = vsel %vm3774, %v3391, %v4798
    %v5055 = vsel %vm3775, %v2946, %v4799
    %v5056 = vsel %vm3776, %v2948, %v4800
    %v5057 = vsel %vm3777, %v3395, %v4801
    %v5058 = vsel %vm3778, %v3397, %v4802
    %v5059 = vsel %vm3779, %v2952, %v4803
    %v5060 = vsel %vm3780, %v2954, %v4804
    %v5061 = vsel %vm3781, %v3401, %v4805
    %v5062 = vsel %vm3782, %v3403, %v4806
    %v5063 = vsel %vm3783, %v2958, %v4807
    %v5064 = vsel %vm3784, %v2960, %v4808
    %v5065 = vsel %vm3785, %v3407, %v4809
    %v5066 = vsel %vm3786, %v3409, %v4810
    %v5067 = vsel %vm3787, %v2964, %v4811
    %v5068 = vsel %vm3788, %v2966, %v4812
    %v5069 = vsel %vm3789, %v3413, %v4813
    %v5070 = vsel %vm3790, %v3415, %v4814
    %v5071 = vsel %vm3791, %v2970, %v4815
    %v5072 = vsel %vm3792, %v2972, %v4816
    %v5073 = vsel %vm3793, %v3419, %v4817
    %v5074 = vsel %vm3794, %v3421, %v4818
    %v5075 = vsel %vm3795, %v2976, %v4819
    %v5076 = vsel %vm3796, %v2978, %v4820
    %v5077 = vsel %vm3797, %v3425, %v4821
    %v5078 = vsel %vm3798, %v3427, %v4822
    %v5079 = vsel %vm3799, %v2982, %v4823
    %v5080 = vsel %vm3800, %v2984, %v4824
    %v5081 = vsel %vm3801, %v3431, %v4825
    %v5082 = vsel %vm3802, %v3433, %v4826
    %v5083 = vsel %vm3803, %v2988, %v4827
    %v5084 = vsel %vm3804, %v2990, %v4828
    %v5085 = vsel %vm3805, %v3437, %v4829
    %v5086 = vsel %vm3806, %v3439, %v4830
    %v5087 = vsel %vm3807, %v2994, %v4831
    %v5088 = vsel %vm3808, %v2996, %v4832
    %v5089 = vsel %vm3809, %v3443, %v4833
    %v5090 = vsel %vm3810, %v3445, %v4834
    %v5091 = vsel %vm3811, %v3000, %v4835
    %v5092 = vsel %vm3812, %v3002, %v4836
    %v5093 = vsel %vm3813, %v3449, %v4837
    %v5094 = vsel %vm3814, %v3451, %v4838
    %v5095 = vsel %vm3815, %v3006, %v4839
    %v5096 = vsel %vm3816, %v3008, %v4840
    %v5097 = vsel %vm3817, %v3455, %v4841
    %v5098 = vsel %vm3818, %v3457, %v4842
    %v5099 = vsel %vm3819, %v3012, %v4843
    %v5100 = vsel %vm3820, %v3014, %v4844
    %v5101 = vsel %vm3821, %v3461, %v4845
    %v5102 = vsel %vm3822, %v3463, %v4846
    %v5103 = vsel %vm3823, %v3018, %v4847
    %v5104 = vsel %vm3824, %v3020, %v4848
    %v5105 = vsel %vm3825, %v3467, %v4849
    %v5106 = vsel %vm3826, %v3469, %v4850
    %v5107 = vsel %vm3827, %v3024, %v4851
    %v5108 = vsel %vm3828, %v3026, %v4852
    %v5109 = vsel %vm3829, %v3473, %v4853
    %v5110 = vsel %vm3830, %v3475, %v4854
    %v5111 = vsel %vm3831, %v3030, %v4855
    %v5112 = vsel %vm3832, %v3032, %v4856
    %v5113 = vsel %vm3833, %v3479, %v4857
    %v5114 = vsel %vm3834, %v3481, %v4858
    %v5115 = vsel %vm3835, %v3036, %v4859
    %v5116 = vsel %vm3836, %v3038, %v4860
    %v5117 = vsel %vm3837, %v3485, %v4861
    %v5118 = vsel %vm3838, %v3487, %v4862
    %v5119 = vsel %vm3839, %v3042, %v4863
    %v5120 = vsel %vm3840, %v3044, %v4864
    %v5121 = vsel %vm3841, %v3491, %v4865
    %v5122 = vsel %vm3842, %v3493, %v4866
    %v5123 = vsel %vm3843, %v3048, %v4867
    %v5124 = vsel %vm3844, %v3050, %v4868
    %v5125 = vsel %vm3845, %v3497, %v4869
    %v5126 = vsel %vm3846, %v3499, %v4870
    %v5127 = vsel %vm3847, %v3054, %v4871
    %v5128 = vsel %vm3848, %v3056, %v4872
    %v5129 = vsel %vm3849, %v3503, %v4873
    %v5130 = vsel %vm3850, %v3505, %v4874
    %v5131 = vsel %vm3851, %v3060, %v4875
    %v5132 = vsel %vm3852, %v3062, %v4876
    %v5133 = vsel %vm3853, %v3509, %v4877
    %v5134 = vsel %vm3854, %v3511, %v4878
    %v5135 = vsel %vm3855, %v3066, %v4879
    %v5136 = vsel %vm3856, %v3068, %v4880
    %v5137 = vsel %vm3857, %v3515, %v4881
    %v5138 = vsel %vm3858, %v3517, %v4882
    %v5139 = vsel %vm3859, %v3072, %v4883
    %v5140 = vsel %vm3860, %v3074, %v4884
    %v5141 = vsel %vm3861, %v3521, %v4885
    %v5142 = vsel %vm3862, %v3523, %v4886
    %v5143 = vsel %vm3863, %v3078, %v4887
    %v5144 = vsel %vm3864, %v3080, %v4888
    %v5145 = vsel %vm3865, %v3527, %v4889
    %v5146 = vsel %vm3866, %v3529, %v4890
    %v5147 = vsel %vm3867, %v3084, %v4891
    %v5148 = vsel %vm3868, %v3086, %v4892
    %v5149 = vsel %vm3869, %v3533, %v4893
    %v5150 = vsel %vm3870, %v3535, %v4894
    %v5151 = vsel %vm3871, %v3090, %v4895
    %v5152 = vsel %vm3872, %v3092, %v4896
    %v5153 = vsel %vm3873, %v3539, %v4897
    %v5154 = vsel %vm3874, %v3541, %v4898
    %v5155 = vsel %vm3875, %v3096, %v4899
    %v5156 = vsel %vm3876, %v3098, %v4900
    %v5157 = vsel %vm3877, %v3545, %v4901
    %v5158 = vsel %vm3878, %v3547, %v4902
    %v5159 = vsel %vm3879, %v3102, %v4903
    %v5160 = vsel %vm3880, %v3104, %v4904
    %v5161 = vsel %vm3881, %v3551, %v4905
    %v5162 = vsel %vm3882, %v3553, %v4906
    %v5163 = vsel %vm3883, %v3108, %v4907
    %v5164 = vsel %vm3884, %v3110, %v4908
    %v5165 = vsel %vm3885, %v3557, %v4909
    %v5166 = vsel %vm3886, %v3559, %v4910
    %v5167 = vsel %vm3887, %v3114, %v4911
    %v5168 = vsel %vm3888, %v3116, %v4912
    %v5169 = vsel %vm3889, %v3563, %v4913
    %v5170 = vsel %vm3890, %v3565, %v4914
    %v5171 = vsel %vm3891, %v3120, %v4915
    %v5172 = vsel %vm3892, %v3122, %v4916
    %v5173 = vsel %vm3893, %v3569, %v4917
    %v5174 = vsel %vm3894, %v3571, %v4918
    %v5175 = vsel %vm3895, %v3126, %v4919
    %v5176 = vsel %vm3896, %v3128, %v4920
    %v5177 = vsel %vm3897, %v3575, %v4921
    %v5178 = vsel %vm3898, %v3577, %v4922
    %v5179 = vsel %vm3899, %v3132, %v4923
    %v5180 = vsel %vm3900, %v3134, %v4924
    %v5181 = vsel %vm3901, %v3581, %v4925
    %v5182 = vsel %vm3902, %v3583, %v4926
    %v5183 = vsel %vm3903, %v3138, %v4927
    %v5184 = vsel %vm3904, %v3140, %v4928
    %v5185 = vsel %vm3905, %v3587, %v4929
    %v5186 = vsel %vm3906, %v3589, %v4930
    %v5187 = vsel %vm3907, %v3144, %v4931
    %v5188 = vsel %vm3908, %v3146, %v4932
    %v5189 = vsel %vm3909, %v3593, %v4933
    %v5190 = vsel %vm3910, %v3595, %v4934
    %v5191 = vsel %vm3911, %v3150, %v4935
    %v5192 = vsel %vm3912, %v3152, %v4936
    %v5193 = vsel %vm3913, %v3599, %v4937
    %v5194 = vsel %vm3914, %v3601, %v4938
    %v5195 = vsel %vm3915, %v3156, %v4939
    %v5196 = vsel %vm3916, %v3158, %v4940
    %v5197 = vsel %vm3917, %v3605, %v4941
    %v5198 = vsel %vm3918, %v3607, %v4942
    %v5199 = vsel %vm3919, %v3162, %v4943
    %v5200 = vsel %vm3920, %v3164, %v4944
    %v5201 = vsel %vm3921, %v3611, %v4945
    %v5202 = vsel %vm3922, %v3613, %v4946
    %v5203 = vsel %vm3923, %v3168, %v4947
    %v5204 = vsel %vm3924, %v3170, %v4948
    %v5205 = vsel %vm3925, %v3617, %v4949
    %v5206 = vsel %vm3926, %v3619, %v4950
    %v5207 = vsel %vm3927, %v3174, %v4951
    %v5208 = vsel %vm3928, %v3176, %v4952
    %v5209 = vsel %vm3929, %v3623, %v4953
    %v5210 = vsel %vm3930, %v3625, %v4954
    %v5211 = vsel %vm3931, %v3180, %v4955
    %v5212 = vsel %vm3932, %v3182, %v4956
    %v5213 = vsel %vm3933, %v3629, %v4957
    %v5214 = vsel %vm3934, %v3631, %v4958
    %v5215 = vsel %vm3935, %v3186, %v4959
    %v5216 = vsel %vm3936, %v3188, %v4960
    %v5217 = vsel %vm3937, %v3635, %v4961
    %v5218 = vsel %vm3938, %v3637, %v4962
    %v5219 = vsel %vm3939, %v3192, %v4963
    %v5220 = vsel %vm3940, %v3194, %v4964
    %v5221 = vsel %vm3941, %v3641, %v4965
    %v5222 = vsel %vm3942, %v3643, %v4966
    %v5223 = vsel %vm3943, %v3198, %v4967
    %v5224 = vsel %vm3944, %v3200, %v4968
    %v5225 = vsel %vm3945, %v3647, %v4969
    %v5226 = vsel %vm3946, %v3649, %v4970
    %v5227 = vsel %vm3947, %v3204, %v4971
    %v5228 = vsel %vm3948, %v3206, %v4972
    %v5229 = vsel %vm3949, %v3653, %v4973
    %v5230 = vsel %vm3950, %v3655, %v4974
    %v5231 = vsel %vm3951, %v3210, %v4975
    %v5232 = vsel %vm3952, %v3212, %v4976
    %v5233 = vsel %vm3953, %v3659, %v4977
    %v5234 = vsel %vm3954, %v3661, %v4978
    %v5235 = vsel %vm3955, %v3216, %v4979
    %v5236 = vsel %vm3956, %v3218, %v4980
    %v5237 = vsel %vm3957, %v3665, %v4981
    %v5238 = vsel %vm3958, %v3667, %v4982
    %v5239 = vsel %vm3959, %v3222, %v4983
    %v5240 = vsel %vm3960, %v3224, %v4984
    %v5241 = vsel %vm3961, %v3671, %v4985
    %v5242 = vsel %vm3962, %v3673, %v4986
    %v5243 = vsel %vm3963, %v3228, %v4987
    %v5244 = vsel %vm3964, %v3230, %v4988
    %v5245 = vsel %vm3965, %v3677, %v4989
    %v5246 = vsel %vm3966, %v3679, %v4990
    %v5247 = vsel %vm3967, %v3234, %v4991
    %v5248 = vsel %vm3968, %v3236, %v4992
    %v5249 = vsel %vm3969, %v3683, %v4993
    %v5250 = vsel %vm3970, %v3685, %v4994
    %v5251 = vsel %vm3971, %v3240, %v4995
    %v5252 = vsel %vm3972, %v3242, %v4996
    %v5253 = vsel %vm3973, %v3689, %v4997
    %v5254 = vsel %vm3974, %v3691, %v4998
    %v5255 = vsel %vm3975, %v3246, %v4999
    %v5256 = vsel %vm3976, %v3248, %v5000
    %v5257 = vsel %vm3977, %v3695, %v5001
    %v5258 = vsel %vm3978, %v3697, %v5002
    %v5259 = vsel %vm3979, %v3252, %v5003
    %v5260 = vsel %vm3980, %v3254, %v5004
    %v5261 = vsel %vm3981, %v3701, %v5005
    %v5262 = vsel %vm3982, %v3703, %v5006
    %v5263 = vsel %vm3983, %v3258, %v5007
    %v5264 = vsel %vm3984, %v3260, %v5008
    %v5265 = vsel %vm3985, %v3707, %v5009
    %v5266 = vsel %vm3986, %v3709, %v5010
    %v5267 = vsel %vm3987, %v3264, %v5011
    %v5268 = vsel %vm3988, %v3266, %v5012
    %v5269 = vsel %vm3989, %v3713, %v5013
    %v5270 = vsel %vm3990, %v3715, %v5014
    %v5271 = vsel %vm3991, %v3270, %v5015
    %v5272 = vsel %vm3992, %v3272, %v5016
    %v5273 = vsel %vm3993, %v3719, %v5017
    %v5274 = vsel %vm3994, %v3721, %v5018
    %v5275 = vsel %vm3995, %v3276, %v5019
    %v5276 = vsel %vm3996, %v3278, %v5020
    %v5277 = vsel %vm3997, %v3725, %v5021
    %v5278 = vsel %vm3998, %v3727, %v5022
    %v5279 = vsel %vm3999, %v3282, %v5023
    %v5280 = vsel %vm4000, %v3284, %v5024
    %v5281 = vsel %vm4001, %v3731, %v5025
    %v5282 = vsel %vm4002, %v3733, %v5026
    %v5283 = vsel %vm4003, %v3288, %v5027
    %v5284 = vsel %vm4004, %v3290, %v5028
    %v5285 = vsel %vm4005, %v3737, %v5029
    %v5286 = vsel %vm4006, %v3739, %v5030
    %v5287 = vsel %vm4007, %v3294, %v5031
    %v5288 = vsel %vm4008, %v3296, %v5032
    %v5289 = vsel %vm4009, %v3743, %v5033
    %v5290 = vsel %vm4010, %v3745, %v5034
    %v5291 = vsel %vm4011, %v3300, %v5035
    %v5292 = vsel %vm4012, %v3302, %v5036
    %v5293 = vsel %vm4013, %v3749, %v5037
    %v5294 = vsel %vm4014, %v3751, %v5038
    %v5295 = vsel %vm4015, %v3306, %v5039
    %v5296 = vsel %vm4016, %v3308, %v5040
    %v5297 = vsel %vm4017, %v3755, %v5041
    %v5298 = vsel %vm4018, %v3757, %v5042
    %v5299 = vsel %vm4019, %v3312, %v5043
    %v5300 = vsel %vm4020, %v3314, %v5044
    %v5301 = vsel %vm4021, %v3761, %v5045
    %v5302 = vsel %vm4022, %v3763, %v5046
    %v5303 = vsel %vm4023, %v3318, %v5047
    %v5304 = vsel %vm4024, %v3320, %v5048
    %v5305 = vsel %vm4025, %v3767, %v5049
    %v5306 = vsel %vm4026, %v3769, %v5050
    %v5307 = vld [vmem:[#allocation21] sm:$0xff]
    %v5308 = vld [vmem:[#allocation21 + $0x8] sm:$0xff]
    %v5309 = vld [vmem:[#allocation21 + $0x10] sm:$0xff]
    %v5310 = vld [vmem:[#allocation21 + $0x18] sm:$0xff]
    %v5311 = vld [vmem:[#allocation21 + $0x20] sm:$0xff]
    %v5312 = vld [vmem:[#allocation21 + $0x28] sm:$0xff]
    %v5313 = vld [vmem:[#allocation21 + $0x30] sm:$0xff]
    %v5314 = vld [vmem:[#allocation21 + $0x38] sm:$0xff]
    %v5315 = vld [vmem:[#allocation21 + $0x40] sm:$0xff]
    %v5316 = vld [vmem:[#allocation21 + $0x48] sm:$0xff]
    %v5317 = vld [vmem:[#allocation21 + $0x50] sm:$0xff]
    %v5318 = vld [vmem:[#allocation21 + $0x58] sm:$0xff]
    %v5319 = vld [vmem:[#allocation21 + $0x60] sm:$0xff]
    %v5320 = vld [vmem:[#allocation21 + $0x68] sm:$0xff]
    %v5321 = vld [vmem:[#allocation21 + $0x70] sm:$0xff]
    %v5322 = vld [vmem:[#allocation21 + $0x78] sm:$0xff]
    %v5323 = vld [vmem:[#allocation21 + $0x80] sm:$0xff]
    %v5324 = vld [vmem:[#allocation21 + $0x88] sm:$0xff]
    %v5325 = vld [vmem:[#allocation21 + $0x90] sm:$0xff]
    %v5326 = vld [vmem:[#allocation21 + $0x98] sm:$0xff]
    %v5327 = vld [vmem:[#allocation21 + $0xa0] sm:$0xff]
    %v5328 = vld [vmem:[#allocation21 + $0xa8] sm:$0xff]
    %v5329 = vld [vmem:[#allocation21 + $0xb0] sm:$0xff]
    %v5330 = vld [vmem:[#allocation21 + $0xb8] sm:$0xff]
    %v5331 = vld [vmem:[#allocation21 + $0xc0] sm:$0xff]
    %v5332 = vld [vmem:[#allocation21 + $0xc8] sm:$0xff]
    %v5333 = vld [vmem:[#allocation21 + $0xd0] sm:$0xff]
    %v5334 = vld [vmem:[#allocation21 + $0xd8] sm:$0xff]
    %v5335 = vld [vmem:[#allocation21 + $0xe0] sm:$0xff]
    %v5336 = vld [vmem:[#allocation21 + $0xe8] sm:$0xff]
    %v5337 = vld [vmem:[#allocation21 + $0xf0] sm:$0xff]
    %v5338 = vld [vmem:[#allocation21 + $0xf8] sm:$0xff]
    %v5339 = vld [vmem:[#allocation21 + $0x100] sm:$0xff]
    %v5340 = vld [vmem:[#allocation21 + $0x108] sm:$0xff]
    %v5341 = vld [vmem:[#allocation21 + $0x110] sm:$0xff]
    %v5342 = vld [vmem:[#allocation21 + $0x118] sm:$0xff]
    %v5343 = vld [vmem:[#allocation21 + $0x120] sm:$0xff]
    %v5344 = vld [vmem:[#allocation21 + $0x128] sm:$0xff]
    %v5345 = vld [vmem:[#allocation21 + $0x130] sm:$0xff]
    %v5346 = vld [vmem:[#allocation21 + $0x138] sm:$0xff]
    %v5347 = vld [vmem:[#allocation21 + $0x140] sm:$0xff]
    %v5348 = vld [vmem:[#allocation21 + $0x148] sm:$0xff]
    %v5349 = vld [vmem:[#allocation21 + $0x150] sm:$0xff]
    %v5350 = vld [vmem:[#allocation21 + $0x158] sm:$0xff]
    %v5351 = vld [vmem:[#allocation21 + $0x160] sm:$0xff]
    %v5352 = vld [vmem:[#allocation21 + $0x168] sm:$0xff]
    %v5353 = vld [vmem:[#allocation21 + $0x170] sm:$0xff]
    %v5354 = vld [vmem:[#allocation21 + $0x178] sm:$0xff]
    %v5355 = vld [vmem:[#allocation21 + $0x180] sm:$0xff]
    %v5356 = vld [vmem:[#allocation21 + $0x188] sm:$0xff]
    %v5357 = vld [vmem:[#allocation21 + $0x190] sm:$0xff]
    %v5358 = vld [vmem:[#allocation21 + $0x198] sm:$0xff]
    %v5359 = vld [vmem:[#allocation21 + $0x1a0] sm:$0xff]
    %v5360 = vld [vmem:[#allocation21 + $0x1a8] sm:$0xff]
    %v5361 = vld [vmem:[#allocation21 + $0x1b0] sm:$0xff]
    %v5362 = vld [vmem:[#allocation21 + $0x1b8] sm:$0xff]
    %v5363 = vld [vmem:[#allocation21 + $0x1c0] sm:$0xff]
    %v5364 = vld [vmem:[#allocation21 + $0x1c8] sm:$0xff]
    %v5365 = vld [vmem:[#allocation21 + $0x1d0] sm:$0xff]
    %v5366 = vld [vmem:[#allocation21 + $0x1d8] sm:$0xff]
    %v5367 = vld [vmem:[#allocation21 + $0x1e0] sm:$0xff]
    %v5368 = vld [vmem:[#allocation21 + $0x1e8] sm:$0xff]
    %v5369 = vld [vmem:[#allocation21 + $0x1f0] sm:$0xff]
    %v5370 = vld [vmem:[#allocation21 + $0x1f8] sm:$0xff]
    %v5371 = vld [vmem:[%s12] sm:$0x1]
    %v5373 = vlaneseq
    %v5374 = vshrl.u32 %v5373, 7
    %v5375 = vsub.s32 0, %v5374
    %v5376 = vrot.slane %v5371, %v5375
    %5378 = vmatprep.subr.mxu0 0.0
    %5379 = vmatpush1.msra.mxu0 %v5307
    %5380 = vmatprep.subr.mxu0 0.0
    %5381 = vmatpush1.msra.mxu0 %v5308
    %5382 = vmatprep.subr.mxu0 0.0
    %5383 = vmatpush1.msra.mxu0 %v5309
    %5384 = vmatprep.subr.mxu0 0.0
    %5385 = vmatpush1.msra.mxu0 %v5310
    %5386 = vmatprep.subr.mxu0 0.0
    %5387 = vmatpush1.msra.mxu0 %v5311
    %5388 = vmatprep.subr.mxu0 0.0
    %5389 = vmatpush1.msra.mxu0 %v5312
    %5390 = vmatprep.subr.mxu0 0.0
    %5391 = vmatpush1.msra.mxu0 %v5313
    %5392 = vmatprep.subr.mxu0 0.0
    %5393 = vmatpush1.msra.mxu0 %v5314
    %5394 = vmatprep.subr.mxu0 0.0
    %5395 = vmatpush1.msra.mxu0 %v5315
    %5396 = vmatprep.subr.mxu0 0.0
    %5397 = vmatpush1.msra.mxu0 %v5316
    %5398 = vmatprep.subr.mxu0 0.0
    %5399 = vmatpush1.msra.mxu0 %v5317
    %5400 = vmatprep.subr.mxu0 0.0
    %5401 = vmatpush1.msra.mxu0 %v5318
    %5402 = vmatprep.subr.mxu0 0.0
    %5403 = vmatpush1.msra.mxu0 %v5319
    %5404 = vmatprep.subr.mxu0 0.0
    %5405 = vmatpush1.msra.mxu0 %v5320
    %5406 = vmatprep.subr.mxu0 0.0
    %5407 = vmatpush1.msra.mxu0 %v5321
    %5408 = vmatprep.subr.mxu0 0.0
    %5409 = vmatpush1.msra.mxu0 %v5322
    %5410 = vmatprep.subr.mxu0 0.0
    %5411 = vmatpush1.msra.mxu0 %v5323
    %5412 = vmatprep.subr.mxu0 0.0
    %5413 = vmatpush1.msra.mxu0 %v5324
    %5414 = vmatprep.subr.mxu0 0.0
    %5415 = vmatpush1.msra.mxu0 %v5325
    %5416 = vmatprep.subr.mxu0 0.0
    %5417 = vmatpush1.msra.mxu0 %v5326
    %5418 = vmatprep.subr.mxu0 0.0
    %5419 = vmatpush1.msra.mxu0 %v5327
    %5420 = vmatprep.subr.mxu0 0.0
    %5421 = vmatpush1.msra.mxu0 %v5328
    %5422 = vmatprep.subr.mxu0 0.0
    %5423 = vmatpush1.msra.mxu0 %v5329
    %5424 = vmatprep.subr.mxu0 0.0
    %5425 = vmatpush1.msra.mxu0 %v5330
    %5426 = vmatprep.subr.mxu0 0.0
    %5427 = vmatpush1.msra.mxu0 %v5331
    %5428 = vmatprep.subr.mxu0 0.0
    %5429 = vmatpush1.msra.mxu0 %v5332
    %5430 = vmatprep.subr.mxu0 0.0
    %5431 = vmatpush1.msra.mxu0 %v5333
    %5432 = vmatprep.subr.mxu0 0.0
    %5433 = vmatpush1.msra.mxu0 %v5334
    %5434 = vmatprep.subr.mxu0 0.0
    %5435 = vmatpush1.msra.mxu0 %v5335
    %5436 = vmatprep.subr.mxu0 0.0
    %5437 = vmatpush1.msra.mxu0 %v5336
    %5438 = vmatprep.subr.mxu0 0.0
    %5439 = vmatpush1.msra.mxu0 %v5337
    %5440 = vmatprep.subr.mxu0 0.0
    %5441 = vmatpush1.msra.mxu0 %v5338
    %5442 = vmatprep.mubr.f32.mxu0 %v5052
    %5443 = vmatmul.mubr.f32.gmra.mrb[0].mxu0 %v5051
    %v5444 = vpop.f32.mrb[0].mxu0
    %v5445 = vadd.f32 %v5376, %v5444
    %v5446 = vpop.f32.mrb[0].mxu0
    %5447 = vmatprep.mubr.f32.mxu0 %v5056
    %5448 = vmatmul.mubr.f32.gmra.mrb[0].mxu0 %v5055
    %v5449 = vpop.f32.mrb[0].mxu0
    %v5450 = vadd.f32 %v5376, %v5449
    %v5451 = vpop.f32.mrb[0].mxu0
    %5452 = vmatprep.mubr.f32.mxu0 %v5060
    %5453 = vmatmul.mubr.f32.gmra.mrb[0].mxu0 %v5059
    %v5454 = vpop.f32.mrb[0].mxu0
    %v5455 = vadd.f32 %v5376, %v5454
    %v5456 = vpop.f32.mrb[0].mxu0
    %5457 = vmatprep.mubr.f32.mxu0 %v5064
    %5458 = vmatmul.mubr.f32.gmra.mrb[0].mxu0 %v5063
    %v5459 = vpop.f32.mrb[0].mxu0
    %v5460 = vadd.f32 %v5376, %v5459
    %v5461 = vpop.f32.mrb[0].mxu0
    %5462 = vmatprep.mubr.f32.mxu0 %v5068
    %5463 = vmatmul.mubr.f32.gmra.mrb[0].mxu0 %v5067
    %v5464 = vpop.f32.mrb[0].mxu0
    %v5465 = vadd.f32 %v5376, %v5464
    %v5466 = vpop.f32.mrb[0].mxu0
    %5467 = vmatprep.mubr.f32.mxu0 %v5072
    %5468 = vmatmul.mubr.f32.gmra.mrb[0].mxu0 %v5071
    %v5469 = vpop.f32.mrb[0].mxu0
    %v5470 = vadd.f32 %v5376, %v5469
    %v5471 = vpop.f32.mrb[0].mxu0
    %5472 = vmatprep.mubr.f32.mxu0 %v5076
    %5473 = vmatmul.mubr.f32.gmra.mrb[0].mxu0 %v5075
    %v5474 = vpop.f32.mrb[0].mxu0
    %v5475 = vadd.f32 %v5376, %v5474
    %v5476 = vpop.f32.mrb[0].mxu0
    %5477 = vmatprep.mubr.f32.mxu0 %v5080
    %5478 = vmatmul.mubr.f32.gmra.mrb[0].mxu0 %v5079
    %v5479 = vpop.f32.mrb[0].mxu0
    %v5480 = vadd.f32 %v5376, %v5479
    %v5481 = vpop.f32.mrb[0].mxu0
    %5482 = vmatprep.mubr.f32.mxu0 %v5084
    %5483 = vmatmul.mubr.f32.gmra.mrb[0].mxu0 %v5083
    %v5484 = vpop.f32.mrb[0].mxu0
    %v5485 = vadd.f32 %v5376, %v5484
    %v5486 = vpop.f32.mrb[0].mxu0
    %5487 = vmatprep.mubr.f32.mxu0 %v5088
    %5488 = vmatmul.mubr.f32.gmra.mrb[0].mxu0 %v5087
    %v5489 = vpop.f32.mrb[0].mxu0
    %v5490 = vadd.f32 %v5376, %v5489
    %v5491 = vpop.f32.mrb[0].mxu0
    %5492 = vmatprep.mubr.f32.mxu0 %v5092
    %5493 = vmatmul.mubr.f32.gmra.mrb[0].mxu0 %v5091
    %v5494 = vpop.f32.mrb[0].mxu0
    %v5495 = vadd.f32 %v5376, %v5494
    %v5496 = vpop.f32.mrb[0].mxu0
    %5497 = vmatprep.mubr.f32.mxu0 %v5096
    %5498 = vmatmul.mubr.f32.gmra.mrb[0].mxu0 %v5095
    %v5499 = vpop.f32.mrb[0].mxu0
    %v5500 = vadd.f32 %v5376, %v5499
    %v5501 = vpop.f32.mrb[0].mxu0
    %5502 = vmatprep.mubr.f32.mxu0 %v5100
    %5503 = vmatmul.mubr.f32.gmra.mrb[0].mxu0 %v5099
    %v5504 = vpop.f32.mrb[0].mxu0
    %v5505 = vadd.f32 %v5376, %v5504
    %v5506 = vpop.f32.mrb[0].mxu0
    %5507 = vmatprep.mubr.f32.mxu0 %v5104
    %5508 = vmatmul.mubr.f32.gmra.mrb[0].mxu0 %v5103
    %v5509 = vpop.f32.mrb[0].mxu0
    %v5510 = vadd.f32 %v5376, %v5509
    %v5511 = vpop.f32.mrb[0].mxu0
    %5512 = vmatprep.mubr.f32.mxu0 %v5108
    %5513 = vmatmul.mubr.f32.gmra.mrb[0].mxu0 %v5107
    %v5514 = vpop.f32.mrb[0].mxu0
    %v5515 = vadd.f32 %v5376, %v5514
    %v5516 = vpop.f32.mrb[0].mxu0
    %5517 = vmatprep.mubr.f32.mxu0 %v5112
    %5518 = vmatmul.mubr.f32.gmra.mrb[0].mxu0 %v5111
    %v5519 = vpop.f32.mrb[0].mxu0
    %v5520 = vadd.f32 %v5376, %v5519
    %v5521 = vpop.f32.mrb[0].mxu0
    %5522 = vmatprep.mubr.f32.mxu0 %v5116
    %5523 = vmatmul.mubr.f32.gmra.mrb[0].mxu0 %v5115
    %v5524 = vpop.f32.mrb[0].mxu0
    %v5525 = vadd.f32 %v5376, %v5524
    %v5526 = vpop.f32.mrb[0].mxu0
    %5527 = vmatprep.mubr.f32.mxu0 %v5120
    %5528 = vmatmul.mubr.f32.gmra.mrb[0].mxu0 %v5119
    %v5529 = vpop.f32.mrb[0].mxu0
    %v5530 = vadd.f32 %v5376, %v5529
    %v5531 = vpop.f32.mrb[0].mxu0
    %5532 = vmatprep.mubr.f32.mxu0 %v5124
    %5533 = vmatmul.mubr.f32.gmra.mrb[0].mxu0 %v5123
    %v5534 = vpop.f32.mrb[0].mxu0
    %v5535 = vadd.f32 %v5376, %v5534
    %v5536 = vpop.f32.mrb[0].mxu0
    %5537 = vmatprep.mubr.f32.mxu0 %v5128
    %5538 = vmatmul.mubr.f32.gmra.mrb[0].mxu0 %v5127
    %v5539 = vpop.f32.mrb[0].mxu0
    %v5540 = vadd.f32 %v5376, %v5539
    %v5541 = vpop.f32.mrb[0].mxu0
    %5542 = vmatprep.mubr.f32.mxu0 %v5132
    %5543 = vmatmul.mubr.f32.gmra.mrb[0].mxu0 %v5131
    %v5544 = vpop.f32.mrb[0].mxu0
    %v5545 = vadd.f32 %v5376, %v5544
    %v5546 = vpop.f32.mrb[0].mxu0
    %5547 = vmatprep.mubr.f32.mxu0 %v5136
    %5548 = vmatmul.mubr.f32.gmra.mrb[0].mxu0 %v5135
    %v5549 = vpop.f32.mrb[0].mxu0
    %v5550 = vadd.f32 %v5376, %v5549
    %v5551 = vpop.f32.mrb[0].mxu0
    %5552 = vmatprep.mubr.f32.mxu0 %v5140
    %5553 = vmatmul.mubr.f32.gmra.mrb[0].mxu0 %v5139
    %v5554 = vpop.f32.mrb[0].mxu0
    %v5555 = vadd.f32 %v5376, %v5554
    %v5556 = vpop.f32.mrb[0].mxu0
    %5557 = vmatprep.mubr.f32.mxu0 %v5144
    %5558 = vmatmul.mubr.f32.gmra.mrb[0].mxu0 %v5143
    %v5559 = vpop.f32.mrb[0].mxu0
    %v5560 = vadd.f32 %v5376, %v5559
    %v5561 = vpop.f32.mrb[0].mxu0
    %5562 = vmatprep.mubr.f32.mxu0 %v5148
    %5563 = vmatmul.mubr.f32.gmra.mrb[0].mxu0 %v5147
    %v5564 = vpop.f32.mrb[0].mxu0
    %v5565 = vadd.f32 %v5376, %v5564
    %v5566 = vpop.f32.mrb[0].mxu0
    %5567 = vmatprep.mubr.f32.mxu0 %v5152
    %5568 = vmatmul.mubr.f32.gmra.mrb[0].mxu0 %v5151
    %v5569 = vpop.f32.mrb[0].mxu0
    %v5570 = vadd.f32 %v5376, %v5569
    %v5571 = vpop.f32.mrb[0].mxu0
    %5572 = vmatprep.mubr.f32.mxu0 %v5156
    %5573 = vmatmul.mubr.f32.gmra.mrb[0].mxu0 %v5155
    %v5574 = vpop.f32.mrb[0].mxu0
    %v5575 = vadd.f32 %v5376, %v5574
    %v5576 = vpop.f32.mrb[0].mxu0
    %5577 = vmatprep.mubr.f32.mxu0 %v5160
    %5578 = vmatmul.mubr.f32.gmra.mrb[0].mxu0 %v5159
    %v5579 = vpop.f32.mrb[0].mxu0
    %v5580 = vadd.f32 %v5376, %v5579
    %v5581 = vpop.f32.mrb[0].mxu0
    %5582 = vmatprep.mubr.f32.mxu0 %v5164
    %5583 = vmatmul.mubr.f32.gmra.mrb[0].mxu0 %v5163
    %v5584 = vpop.f32.mrb[0].mxu0
    %v5585 = vadd.f32 %v5376, %v5584
    %v5586 = vpop.f32.mrb[0].mxu0
    %5587 = vmatprep.mubr.f32.mxu0 %v5168
    %5588 = vmatmul.mubr.f32.gmra.mrb[0].mxu0 %v5167
    %v5589 = vpop.f32.mrb[0].mxu0
    %v5590 = vadd.f32 %v5376, %v5589
    %v5591 = vpop.f32.mrb[0].mxu0
    %5592 = vmatprep.mubr.f32.mxu0 %v5172
    %5593 = vmatmul.mubr.f32.gmra.mrb[0].mxu0 %v5171
    %v5594 = vpop.f32.mrb[0].mxu0
    %v5595 = vadd.f32 %v5376, %v5594
    %v5596 = vpop.f32.mrb[0].mxu0
    %5597 = vmatprep.mubr.f32.mxu0 %v5176
    %5598 = vmatmul.mubr.f32.gmra.mrb[0].mxu0 %v5175
    %v5599 = vpop.f32.mrb[0].mxu0
    %v5600 = vadd.f32 %v5376, %v5599
    %v5601 = vpop.f32.mrb[0].mxu0
    %5602 = vmatprep.mubr.f32.mxu0 %v5180
    %5603 = vmatmul.mubr.f32.gmra.mrb[0].mxu0 %v5179
    %v5604 = vpop.f32.mrb[0].mxu0
    %v5605 = vadd.f32 %v5376, %v5604
    %v5606 = vpop.f32.mrb[0].mxu0
    %5607 = vmatprep.mubr.f32.mxu0 %v5184
    %5608 = vmatmul.mubr.f32.gmra.mrb[0].mxu0 %v5183
    %v5609 = vpop.f32.mrb[0].mxu0
    %v5610 = vadd.f32 %v5376, %v5609
    %v5611 = vpop.f32.mrb[0].mxu0
    %5612 = vmatprep.mubr.f32.mxu0 %v5188
    %5613 = vmatmul.mubr.f32.gmra.mrb[0].mxu0 %v5187
    %v5614 = vpop.f32.mrb[0].mxu0
    %v5615 = vadd.f32 %v5376, %v5614
    %v5616 = vpop.f32.mrb[0].mxu0
    %5617 = vmatprep.mubr.f32.mxu0 %v5192
    %5618 = vmatmul.mubr.f32.gmra.mrb[0].mxu0 %v5191
    %v5619 = vpop.f32.mrb[0].mxu0
    %v5620 = vadd.f32 %v5376, %v5619
    %v5621 = vpop.f32.mrb[0].mxu0
    %5622 = vmatprep.mubr.f32.mxu0 %v5196
    %5623 = vmatmul.mubr.f32.gmra.mrb[0].mxu0 %v5195
    %v5624 = vpop.f32.mrb[0].mxu0
    %v5625 = vadd.f32 %v5376, %v5624
    %v5626 = vpop.f32.mrb[0].mxu0
    %5627 = vmatprep.mubr.f32.mxu0 %v5200
    %5628 = vmatmul.mubr.f32.gmra.mrb[0].mxu0 %v5199
    %v5629 = vpop.f32.mrb[0].mxu0
    %v5630 = vadd.f32 %v5376, %v5629
    %v5631 = vpop.f32.mrb[0].mxu0
    %5632 = vmatprep.mubr.f32.mxu0 %v5204
    %5633 = vmatmul.mubr.f32.gmra.mrb[0].mxu0 %v5203
    %v5634 = vpop.f32.mrb[0].mxu0
    %v5635 = vadd.f32 %v5376, %v5634
    %v5636 = vpop.f32.mrb[0].mxu0
    %5637 = vmatprep.mubr.f32.mxu0 %v5208
    %5638 = vmatmul.mubr.f32.gmra.mrb[0].mxu0 %v5207
    %v5639 = vpop.f32.mrb[0].mxu0
    %v5640 = vadd.f32 %v5376, %v5639
    %v5641 = vpop.f32.mrb[0].mxu0
    %5642 = vmatprep.mubr.f32.mxu0 %v5212
    %5643 = vmatmul.mubr.f32.gmra.mrb[0].mxu0 %v5211
    %v5644 = vpop.f32.mrb[0].mxu0
    %v5645 = vadd.f32 %v5376, %v5644
    %v5646 = vpop.f32.mrb[0].mxu0
    %5647 = vmatprep.mubr.f32.mxu0 %v5216
    %5648 = vmatmul.mubr.f32.gmra.mrb[0].mxu0 %v5215
    %v5649 = vpop.f32.mrb[0].mxu0
    %v5650 = vadd.f32 %v5376, %v5649
    %v5651 = vpop.f32.mrb[0].mxu0
    %5652 = vmatprep.mubr.f32.mxu0 %v5220
    %5653 = vmatmul.mubr.f32.gmra.mrb[0].mxu0 %v5219
    %v5654 = vpop.f32.mrb[0].mxu0
    %v5655 = vadd.f32 %v5376, %v5654
    %v5656 = vpop.f32.mrb[0].mxu0
    %5657 = vmatprep.mubr.f32.mxu0 %v5224
    %5658 = vmatmul.mubr.f32.gmra.mrb[0].mxu0 %v5223
    %v5659 = vpop.f32.mrb[0].mxu0
    %v5660 = vadd.f32 %v5376, %v5659
    %v5661 = vpop.f32.mrb[0].mxu0
    %5662 = vmatprep.mubr.f32.mxu0 %v5228
    %5663 = vmatmul.mubr.f32.gmra.mrb[0].mxu0 %v5227
    %v5664 = vpop.f32.mrb[0].mxu0
    %v5665 = vadd.f32 %v5376, %v5664
    %v5666 = vpop.f32.mrb[0].mxu0
    %5667 = vmatprep.mubr.f32.mxu0 %v5232
    %5668 = vmatmul.mubr.f32.gmra.mrb[0].mxu0 %v5231
    %v5669 = vpop.f32.mrb[0].mxu0
    %v5670 = vadd.f32 %v5376, %v5669
    %v5671 = vpop.f32.mrb[0].mxu0
    %5672 = vmatprep.mubr.f32.mxu0 %v5236
    %5673 = vmatmul.mubr.f32.gmra.mrb[0].mxu0 %v5235
    %v5674 = vpop.f32.mrb[0].mxu0
    %v5675 = vadd.f32 %v5376, %v5674
    %v5676 = vpop.f32.mrb[0].mxu0
    %5677 = vmatprep.mubr.f32.mxu0 %v5240
    %5678 = vmatmul.mubr.f32.gmra.mrb[0].mxu0 %v5239
    %v5679 = vpop.f32.mrb[0].mxu0
    %v5680 = vadd.f32 %v5376, %v5679
    %v5681 = vpop.f32.mrb[0].mxu0
    %5682 = vmatprep.mubr.f32.mxu0 %v5244
    %5683 = vmatmul.mubr.f32.gmra.mrb[0].mxu0 %v5243
    %v5684 = vpop.f32.mrb[0].mxu0
    %v5685 = vadd.f32 %v5376, %v5684
    %v5686 = vpop.f32.mrb[0].mxu0
    %5687 = vmatprep.mubr.f32.mxu0 %v5248
    %5688 = vmatmul.mubr.f32.gmra.mrb[0].mxu0 %v5247
    %v5689 = vpop.f32.mrb[0].mxu0
    %v5690 = vadd.f32 %v5376, %v5689
    %v5691 = vpop.f32.mrb[0].mxu0
    %5692 = vmatprep.mubr.f32.mxu0 %v5252
    %5693 = vmatmul.mubr.f32.gmra.mrb[0].mxu0 %v5251
    %v5694 = vpop.f32.mrb[0].mxu0
    %v5695 = vadd.f32 %v5376, %v5694
    %v5696 = vpop.f32.mrb[0].mxu0
    %5697 = vmatprep.mubr.f32.mxu0 %v5256
    %5698 = vmatmul.mubr.f32.gmra.mrb[0].mxu0 %v5255
    %v5699 = vpop.f32.mrb[0].mxu0
    %v5700 = vadd.f32 %v5376, %v5699
    %v5701 = vpop.f32.mrb[0].mxu0
    %5702 = vmatprep.mubr.f32.mxu0 %v5260
    %5703 = vmatmul.mubr.f32.gmra.mrb[0].mxu0 %v5259
    %v5704 = vpop.f32.mrb[0].mxu0
    %v5705 = vadd.f32 %v5376, %v5704
    %v5706 = vpop.f32.mrb[0].mxu0
    %5707 = vmatprep.mubr.f32.mxu0 %v5264
    %5708 = vmatmul.mubr.f32.gmra.mrb[0].mxu0 %v5263
    %v5709 = vpop.f32.mrb[0].mxu0
    %v5710 = vadd.f32 %v5376, %v5709
    %v5711 = vpop.f32.mrb[0].mxu0
    %5712 = vmatprep.mubr.f32.mxu0 %v5268
    %5713 = vmatmul.mubr.f32.gmra.mrb[0].mxu0 %v5267
    %v5714 = vpop.f32.mrb[0].mxu0
    %v5715 = vadd.f32 %v5376, %v5714
    %v5716 = vpop.f32.mrb[0].mxu0
    %5717 = vmatprep.mubr.f32.mxu0 %v5272
    %5718 = vmatmul.mubr.f32.gmra.mrb[0].mxu0 %v5271
    %v5719 = vpop.f32.mrb[0].mxu0
    %v5720 = vadd.f32 %v5376, %v5719
    %v5721 = vpop.f32.mrb[0].mxu0
    %5722 = vmatprep.mubr.f32.mxu0 %v5276
    %5723 = vmatmul.mubr.f32.gmra.mrb[0].mxu0 %v5275
    %v5724 = vpop.f32.mrb[0].mxu0
    %v5725 = vadd.f32 %v5376, %v5724
    %v5726 = vpop.f32.mrb[0].mxu0
    %5727 = vmatprep.mubr.f32.mxu0 %v5280
    %5728 = vmatmul.mubr.f32.gmra.mrb[0].mxu0 %v5279
    %v5729 = vpop.f32.mrb[0].mxu0
    %v5730 = vadd.f32 %v5376, %v5729
    %v5731 = vpop.f32.mrb[0].mxu0
    %5732 = vmatprep.mubr.f32.mxu0 %v5284
    %5733 = vmatmul.mubr.f32.gmra.mrb[0].mxu0 %v5283
    %v5734 = vpop.f32.mrb[0].mxu0
    %v5735 = vadd.f32 %v5376, %v5734
    %v5736 = vpop.f32.mrb[0].mxu0
    %5737 = vmatprep.mubr.f32.mxu0 %v5288
    %5738 = vmatmul.mubr.f32.gmra.mrb[0].mxu0 %v5287
    %v5739 = vpop.f32.mrb[0].mxu0
    %v5740 = vadd.f32 %v5376, %v5739
    %v5741 = vpop.f32.mrb[0].mxu0
    %5742 = vmatprep.mubr.f32.mxu0 %v5292
    %5743 = vmatmul.mubr.f32.gmra.mrb[0].mxu0 %v5291
    %v5744 = vpop.f32.mrb[0].mxu0
    %v5745 = vadd.f32 %v5376, %v5744
    %v5746 = vpop.f32.mrb[0].mxu0
    %5747 = vmatprep.mubr.f32.mxu0 %v5296
    %5748 = vmatmul.mubr.f32.gmra.mrb[0].mxu0 %v5295
    %v5749 = vpop.f32.mrb[0].mxu0
    %v5750 = vadd.f32 %v5376, %v5749
    %v5751 = vpop.f32.mrb[0].mxu0
    %5752 = vmatprep.mubr.f32.mxu0 %v5300
    %5753 = vmatmul.mubr.f32.gmra.mrb[0].mxu0 %v5299
    %v5754 = vpop.f32.mrb[0].mxu0
    %v5755 = vadd.f32 %v5376, %v5754
    %v5756 = vpop.f32.mrb[0].mxu0
    %5757 = vmatprep.mubr.f32.mxu0 %v5304
    %5758 = vmatmul.mubr.f32.gmra.mrb[0].mxu0 %v5303
    %v5759 = vpop.f32.mrb[0].mxu0
    %v5760 = vadd.f32 %v5376, %v5759
    %v5761 = vpop.f32.mrb[0].mxu0
    %5762 = vdwg.mxu0
    %5763 = vmatprep.subr.mxu0 0.0
    %5764 = vmatpush1.msra.mxu0 %v5339
    %5765 = vmatprep.subr.mxu0 0.0
    %5766 = vmatpush1.msra.mxu0 %v5340
    %5767 = vmatprep.subr.mxu0 0.0
    %5768 = vmatpush1.msra.mxu0 %v5341
    %5769 = vmatprep.subr.mxu0 0.0
    %5770 = vmatpush1.msra.mxu0 %v5342
    %5771 = vmatprep.subr.mxu0 0.0
    %5772 = vmatpush1.msra.mxu0 %v5343
    %5773 = vmatprep.subr.mxu0 0.0
    %5774 = vmatpush1.msra.mxu0 %v5344
    %5775 = vmatprep.subr.mxu0 0.0
    %5776 = vmatpush1.msra.mxu0 %v5345
    %5777 = vmatprep.subr.mxu0 0.0
    %5778 = vmatpush1.msra.mxu0 %v5346
    %5779 = vmatprep.subr.mxu0 0.0
    %5780 = vmatpush1.msra.mxu0 %v5347
    %5781 = vmatprep.subr.mxu0 0.0
    %5782 = vmatpush1.msra.mxu0 %v5348
    %5783 = vmatprep.subr.mxu0 0.0
    %5784 = vmatpush1.msra.mxu0 %v5349
    %5785 = vmatprep.subr.mxu0 0.0
    %5786 = vmatpush1.msra.mxu0 %v5350
    %5787 = vmatprep.subr.mxu0 0.0
    %5788 = vmatpush1.msra.mxu0 %v5351
    %5789 = vmatprep.subr.mxu0 0.0
    %5790 = vmatpush1.msra.mxu0 %v5352
    %5791 = vmatprep.subr.mxu0 0.0
    %5792 = vmatpush1.msra.mxu0 %v5353
    %5793 = vmatprep.subr.mxu0 0.0
    %5794 = vmatpush1.msra.mxu0 %v5354
    %5795 = vmatprep.subr.mxu0 0.0
    %5796 = vmatpush1.msra.mxu0 %v5355
    %5797 = vmatprep.subr.mxu0 0.0
    %5798 = vmatpush1.msra.mxu0 %v5356
    %5799 = vmatprep.subr.mxu0 0.0
    %5800 = vmatpush1.msra.mxu0 %v5357
    %5801 = vmatprep.subr.mxu0 0.0
    %5802 = vmatpush1.msra.mxu0 %v5358
    %5803 = vmatprep.subr.mxu0 0.0
    %5804 = vmatpush1.msra.mxu0 %v5359
    %5805 = vmatprep.subr.mxu0 0.0
    %5806 = vmatpush1.msra.mxu0 %v5360
    %5807 = vmatprep.subr.mxu0 0.0
    %5808 = vmatpush1.msra.mxu0 %v5361
    %5809 = vmatprep.subr.mxu0 0.0
    %5810 = vmatpush1.msra.mxu0 %v5362
    %5811 = vmatprep.subr.mxu0 0.0
    %5812 = vmatpush1.msra.mxu0 %v5363
    %5813 = vmatprep.subr.mxu0 0.0
    %5814 = vmatpush1.msra.mxu0 %v5364
    %5815 = vmatprep.subr.mxu0 0.0
    %5816 = vmatpush1.msra.mxu0 %v5365
    %5817 = vmatprep.subr.mxu0 0.0
    %5818 = vmatpush1.msra.mxu0 %v5366
    %5819 = vmatprep.subr.mxu0 0.0
    %5820 = vmatpush1.msra.mxu0 %v5367
    %5821 = vmatprep.subr.mxu0 0.0
    %5822 = vmatpush1.msra.mxu0 %v5368
    %5823 = vmatprep.subr.mxu0 0.0
    %5824 = vmatpush1.msra.mxu0 %v5369
    %5825 = vmatprep.subr.mxu0 0.0
    %5826 = vmatpush1.msra.mxu0 %v5370
    %5827 = vmatprep.mubr.f32.mxu0 %v5054
    %5828 = vmatmul.mubr.f32.gmra.mrb[0].mxu0 %v5053
    %v5829 = vpop.f32.mrb[0].mxu0
    %v5830 = vadd.f32 %v5445, %v5829
    %v5831 = vpop.f32.mrb[0].mxu0
    %5832 = vmatprep.mubr.f32.mxu0 %v5058
    %5833 = vmatmul.mubr.f32.gmra.mrb[0].mxu0 %v5057
    %v5834 = vpop.f32.mrb[0].mxu0
    %v5835 = vadd.f32 %v5450, %v5834
    %v5836 = vpop.f32.mrb[0].mxu0
    %5837 = vmatprep.mubr.f32.mxu0 %v5062
    %5838 = vmatmul.mubr.f32.gmra.mrb[0].mxu0 %v5061
    %v5839 = vpop.f32.mrb[0].mxu0
    %v5840 = vadd.f32 %v5455, %v5839
    %v5841 = vpop.f32.mrb[0].mxu0
    %5842 = vmatprep.mubr.f32.mxu0 %v5066
    %5843 = vmatmul.mubr.f32.gmra.mrb[0].mxu0 %v5065
    %v5844 = vpop.f32.mrb[0].mxu0
    %v5845 = vadd.f32 %v5460, %v5844
    %v5846 = vpop.f32.mrb[0].mxu0
    %5847 = vmatprep.mubr.f32.mxu0 %v5070
    %5848 = vmatmul.mubr.f32.gmra.mrb[0].mxu0 %v5069
    %v5849 = vpop.f32.mrb[0].mxu0
    %v5850 = vadd.f32 %v5465, %v5849
    %v5851 = vpop.f32.mrb[0].mxu0
    %5852 = vmatprep.mubr.f32.mxu0 %v5074
    %5853 = vmatmul.mubr.f32.gmra.mrb[0].mxu0 %v5073
    %v5854 = vpop.f32.mrb[0].mxu0
    %v5855 = vadd.f32 %v5470, %v5854
    %v5856 = vpop.f32.mrb[0].mxu0
    %5857 = vmatprep.mubr.f32.mxu0 %v5078
    %5858 = vmatmul.mubr.f32.gmra.mrb[0].mxu0 %v5077
    %v5859 = vpop.f32.mrb[0].mxu0
    %v5860 = vadd.f32 %v5475, %v5859
    %v5861 = vpop.f32.mrb[0].mxu0
    %5862 = vmatprep.mubr.f32.mxu0 %v5082
    %5863 = vmatmul.mubr.f32.gmra.mrb[0].mxu0 %v5081
    %v5864 = vpop.f32.mrb[0].mxu0
    %v5865 = vadd.f32 %v5480, %v5864
    %v5866 = vpop.f32.mrb[0].mxu0
    %5867 = vmatprep.mubr.f32.mxu0 %v5086
    %5868 = vmatmul.mubr.f32.gmra.mrb[0].mxu0 %v5085
    %v5869 = vpop.f32.mrb[0].mxu0
    %v5870 = vadd.f32 %v5485, %v5869
    %v5871 = vpop.f32.mrb[0].mxu0
    %5872 = vmatprep.mubr.f32.mxu0 %v5090
    %5873 = vmatmul.mubr.f32.gmra.mrb[0].mxu0 %v5089
    %v5874 = vpop.f32.mrb[0].mxu0
    %v5875 = vadd.f32 %v5490, %v5874
    %v5876 = vpop.f32.mrb[0].mxu0
    %5877 = vmatprep.mubr.f32.mxu0 %v5094
    %5878 = vmatmul.mubr.f32.gmra.mrb[0].mxu0 %v5093
    %v5879 = vpop.f32.mrb[0].mxu0
    %v5880 = vadd.f32 %v5495, %v5879
    %v5881 = vpop.f32.mrb[0].mxu0
    %5882 = vmatprep.mubr.f32.mxu0 %v5098
    %5883 = vmatmul.mubr.f32.gmra.mrb[0].mxu0 %v5097
    %v5884 = vpop.f32.mrb[0].mxu0
    %v5885 = vadd.f32 %v5500, %v5884
    %v5886 = vpop.f32.mrb[0].mxu0
    %5887 = vmatprep.mubr.f32.mxu0 %v5102
    %5888 = vmatmul.mubr.f32.gmra.mrb[0].mxu0 %v5101
    %v5889 = vpop.f32.mrb[0].mxu0
    %v5890 = vadd.f32 %v5505, %v5889
    %v5891 = vpop.f32.mrb[0].mxu0
    %5892 = vmatprep.mubr.f32.mxu0 %v5106
    %5893 = vmatmul.mubr.f32.gmra.mrb[0].mxu0 %v5105
    %v5894 = vpop.f32.mrb[0].mxu0
    %v5895 = vadd.f32 %v5510, %v5894
    %v5896 = vpop.f32.mrb[0].mxu0
    %5897 = vmatprep.mubr.f32.mxu0 %v5110
    %5898 = vmatmul.mubr.f32.gmra.mrb[0].mxu0 %v5109
    %v5899 = vpop.f32.mrb[0].mxu0
    %v5900 = vadd.f32 %v5515, %v5899
    %v5901 = vpop.f32.mrb[0].mxu0
    %5902 = vmatprep.mubr.f32.mxu0 %v5114
    %5903 = vmatmul.mubr.f32.gmra.mrb[0].mxu0 %v5113
    %v5904 = vpop.f32.mrb[0].mxu0
    %v5905 = vadd.f32 %v5520, %v5904
    %v5906 = vpop.f32.mrb[0].mxu0
    %5907 = vmatprep.mubr.f32.mxu0 %v5118
    %5908 = vmatmul.mubr.f32.gmra.mrb[0].mxu0 %v5117
    %v5909 = vpop.f32.mrb[0].mxu0
    %v5910 = vadd.f32 %v5525, %v5909
    %v5911 = vpop.f32.mrb[0].mxu0
    %5912 = vmatprep.mubr.f32.mxu0 %v5122
    %5913 = vmatmul.mubr.f32.gmra.mrb[0].mxu0 %v5121
    %v5914 = vpop.f32.mrb[0].mxu0
    %v5915 = vadd.f32 %v5530, %v5914
    %v5916 = vpop.f32.mrb[0].mxu0
    %5917 = vmatprep.mubr.f32.mxu0 %v5126
    %5918 = vmatmul.mubr.f32.gmra.mrb[0].mxu0 %v5125
    %v5919 = vpop.f32.mrb[0].mxu0
    %v5920 = vadd.f32 %v5535, %v5919
    %v5921 = vpop.f32.mrb[0].mxu0
    %5922 = vmatprep.mubr.f32.mxu0 %v5130
    %5923 = vmatmul.mubr.f32.gmra.mrb[0].mxu0 %v5129
    %v5924 = vpop.f32.mrb[0].mxu0
    %v5925 = vadd.f32 %v5540, %v5924
    %v5926 = vpop.f32.mrb[0].mxu0
    %5927 = vmatprep.mubr.f32.mxu0 %v5134
    %5928 = vmatmul.mubr.f32.gmra.mrb[0].mxu0 %v5133
    %v5929 = vpop.f32.mrb[0].mxu0
    %v5930 = vadd.f32 %v5545, %v5929
    %v5931 = vpop.f32.mrb[0].mxu0
    %5932 = vmatprep.mubr.f32.mxu0 %v5138
    %5933 = vmatmul.mubr.f32.gmra.mrb[0].mxu0 %v5137
    %v5934 = vpop.f32.mrb[0].mxu0
    %v5935 = vadd.f32 %v5550, %v5934
    %v5936 = vpop.f32.mrb[0].mxu0
    %5937 = vmatprep.mubr.f32.mxu0 %v5142
    %5938 = vmatmul.mubr.f32.gmra.mrb[0].mxu0 %v5141
    %v5939 = vpop.f32.mrb[0].mxu0
    %v5940 = vadd.f32 %v5555, %v5939
    %v5941 = vpop.f32.mrb[0].mxu0
    %5942 = vmatprep.mubr.f32.mxu0 %v5146
    %5943 = vmatmul.mubr.f32.gmra.mrb[0].mxu0 %v5145
    %v5944 = vpop.f32.mrb[0].mxu0
    %v5945 = vadd.f32 %v5560, %v5944
    %v5946 = vpop.f32.mrb[0].mxu0
    %5947 = vmatprep.mubr.f32.mxu0 %v5150
    %5948 = vmatmul.mubr.f32.gmra.mrb[0].mxu0 %v5149
    %v5949 = vpop.f32.mrb[0].mxu0
    %v5950 = vadd.f32 %v5565, %v5949
    %v5951 = vpop.f32.mrb[0].mxu0
    %5952 = vmatprep.mubr.f32.mxu0 %v5154
    %5953 = vmatmul.mubr.f32.gmra.mrb[0].mxu0 %v5153
    %v5954 = vpop.f32.mrb[0].mxu0
    %v5955 = vadd.f32 %v5570, %v5954
    %v5956 = vpop.f32.mrb[0].mxu0
    %5957 = vmatprep.mubr.f32.mxu0 %v5158
    %5958 = vmatmul.mubr.f32.gmra.mrb[0].mxu0 %v5157
    %v5959 = vpop.f32.mrb[0].mxu0
    %v5960 = vadd.f32 %v5575, %v5959
    %v5961 = vpop.f32.mrb[0].mxu0
    %5962 = vmatprep.mubr.f32.mxu0 %v5162
    %5963 = vmatmul.mubr.f32.gmra.mrb[0].mxu0 %v5161
    %v5964 = vpop.f32.mrb[0].mxu0
    %v5965 = vadd.f32 %v5580, %v5964
    %v5966 = vpop.f32.mrb[0].mxu0
    %5967 = vmatprep.mubr.f32.mxu0 %v5166
    %5968 = vmatmul.mubr.f32.gmra.mrb[0].mxu0 %v5165
    %v5969 = vpop.f32.mrb[0].mxu0
    %v5970 = vadd.f32 %v5585, %v5969
    %v5971 = vpop.f32.mrb[0].mxu0
    %5972 = vmatprep.mubr.f32.mxu0 %v5170
    %5973 = vmatmul.mubr.f32.gmra.mrb[0].mxu0 %v5169
    %v5974 = vpop.f32.mrb[0].mxu0
    %v5975 = vadd.f32 %v5590, %v5974
    %v5976 = vpop.f32.mrb[0].mxu0
    %5977 = vmatprep.mubr.f32.mxu0 %v5174
    %5978 = vmatmul.mubr.f32.gmra.mrb[0].mxu0 %v5173
    %v5979 = vpop.f32.mrb[0].mxu0
    %v5980 = vadd.f32 %v5595, %v5979
    %v5981 = vpop.f32.mrb[0].mxu0
    %5982 = vmatprep.mubr.f32.mxu0 %v5178
    %5983 = vmatmul.mubr.f32.gmra.mrb[0].mxu0 %v5177
    %v5984 = vpop.f32.mrb[0].mxu0
    %v5985 = vadd.f32 %v5600, %v5984
    %v5986 = vpop.f32.mrb[0].mxu0
    %5987 = vmatprep.mubr.f32.mxu0 %v5182
    %5988 = vmatmul.mubr.f32.gmra.mrb[0].mxu0 %v5181
    %v5989 = vpop.f32.mrb[0].mxu0
    %v5990 = vadd.f32 %v5605, %v5989
    %v5991 = vpop.f32.mrb[0].mxu0
    %5992 = vmatprep.mubr.f32.mxu0 %v5186
    %5993 = vmatmul.mubr.f32.gmra.mrb[0].mxu0 %v5185
    %v5994 = vpop.f32.mrb[0].mxu0
    %v5995 = vadd.f32 %v5610, %v5994
    %v5996 = vpop.f32.mrb[0].mxu0
    %5997 = vmatprep.mubr.f32.mxu0 %v5190
    %5998 = vmatmul.mubr.f32.gmra.mrb[0].mxu0 %v5189
    %v5999 = vpop.f32.mrb[0].mxu0
    %v6000 = vadd.f32 %v5615, %v5999
    %v6001 = vpop.f32.mrb[0].mxu0
    %6002 = vmatprep.mubr.f32.mxu0 %v5194
    %6003 = vmatmul.mubr.f32.gmra.mrb[0].mxu0 %v5193
    %v6004 = vpop.f32.mrb[0].mxu0
    %v6005 = vadd.f32 %v5620, %v6004
    %v6006 = vpop.f32.mrb[0].mxu0
    %6007 = vmatprep.mubr.f32.mxu0 %v5198
    %6008 = vmatmul.mubr.f32.gmra.mrb[0].mxu0 %v5197
    %v6009 = vpop.f32.mrb[0].mxu0
    %v6010 = vadd.f32 %v5625, %v6009
    %v6011 = vpop.f32.mrb[0].mxu0
    %6012 = vmatprep.mubr.f32.mxu0 %v5202
    %6013 = vmatmul.mubr.f32.gmra.mrb[0].mxu0 %v5201
    %v6014 = vpop.f32.mrb[0].mxu0
    %v6015 = vadd.f32 %v5630, %v6014
    %v6016 = vpop.f32.mrb[0].mxu0
    %6017 = vmatprep.mubr.f32.mxu0 %v5206
    %6018 = vmatmul.mubr.f32.gmra.mrb[0].mxu0 %v5205
    %v6019 = vpop.f32.mrb[0].mxu0
    %v6020 = vadd.f32 %v5635, %v6019
    %v6021 = vpop.f32.mrb[0].mxu0
    %6022 = vmatprep.mubr.f32.mxu0 %v5210
    %6023 = vmatmul.mubr.f32.gmra.mrb[0].mxu0 %v5209
    %v6024 = vpop.f32.mrb[0].mxu0
    %v6025 = vadd.f32 %v5640, %v6024
    %v6026 = vpop.f32.mrb[0].mxu0
    %6027 = vmatprep.mubr.f32.mxu0 %v5214
    %6028 = vmatmul.mubr.f32.gmra.mrb[0].mxu0 %v5213
    %v6029 = vpop.f32.mrb[0].mxu0
    %v6030 = vadd.f32 %v5645, %v6029
    %v6031 = vpop.f32.mrb[0].mxu0
    %6032 = vmatprep.mubr.f32.mxu0 %v5218
    %6033 = vmatmul.mubr.f32.gmra.mrb[0].mxu0 %v5217
    %v6034 = vpop.f32.mrb[0].mxu0
    %v6035 = vadd.f32 %v5650, %v6034
    %v6036 = vpop.f32.mrb[0].mxu0
    %6037 = vmatprep.mubr.f32.mxu0 %v5222
    %6038 = vmatmul.mubr.f32.gmra.mrb[0].mxu0 %v5221
    %v6039 = vpop.f32.mrb[0].mxu0
    %v6040 = vadd.f32 %v5655, %v6039
    %v6041 = vpop.f32.mrb[0].mxu0
    %6042 = vmatprep.mubr.f32.mxu0 %v5226
    %6043 = vmatmul.mubr.f32.gmra.mrb[0].mxu0 %v5225
    %v6044 = vpop.f32.mrb[0].mxu0
    %v6045 = vadd.f32 %v5660, %v6044
    %v6046 = vpop.f32.mrb[0].mxu0
    %6047 = vmatprep.mubr.f32.mxu0 %v5230
    %6048 = vmatmul.mubr.f32.gmra.mrb[0].mxu0 %v5229
    %v6049 = vpop.f32.mrb[0].mxu0
    %v6050 = vadd.f32 %v5665, %v6049
    %v6051 = vpop.f32.mrb[0].mxu0
    %6052 = vmatprep.mubr.f32.mxu0 %v5234
    %6053 = vmatmul.mubr.f32.gmra.mrb[0].mxu0 %v5233
    %v6054 = vpop.f32.mrb[0].mxu0
    %v6055 = vadd.f32 %v5670, %v6054
    %v6056 = vpop.f32.mrb[0].mxu0
    %6057 = vmatprep.mubr.f32.mxu0 %v5238
    %6058 = vmatmul.mubr.f32.gmra.mrb[0].mxu0 %v5237
    %v6059 = vpop.f32.mrb[0].mxu0
    %v6060 = vadd.f32 %v5675, %v6059
    %v6061 = vpop.f32.mrb[0].mxu0
    %6062 = vmatprep.mubr.f32.mxu0 %v5242
    %6063 = vmatmul.mubr.f32.gmra.mrb[0].mxu0 %v5241
    %v6064 = vpop.f32.mrb[0].mxu0
    %v6065 = vadd.f32 %v5680, %v6064
    %v6066 = vpop.f32.mrb[0].mxu0
    %6067 = vmatprep.mubr.f32.mxu0 %v5246
    %6068 = vmatmul.mubr.f32.gmra.mrb[0].mxu0 %v5245
    %v6069 = vpop.f32.mrb[0].mxu0
    %v6070 = vadd.f32 %v5685, %v6069
    %v6071 = vpop.f32.mrb[0].mxu0
    %6072 = vmatprep.mubr.f32.mxu0 %v5250
    %6073 = vmatmul.mubr.f32.gmra.mrb[0].mxu0 %v5249
    %v6074 = vpop.f32.mrb[0].mxu0
    %v6075 = vadd.f32 %v5690, %v6074
    %v6076 = vpop.f32.mrb[0].mxu0
    %6077 = vmatprep.mubr.f32.mxu0 %v5254
    %6078 = vmatmul.mubr.f32.gmra.mrb[0].mxu0 %v5253
    %v6079 = vpop.f32.mrb[0].mxu0
    %v6080 = vadd.f32 %v5695, %v6079
    %v6081 = vpop.f32.mrb[0].mxu0
    %6082 = vmatprep.mubr.f32.mxu0 %v5258
    %6083 = vmatmul.mubr.f32.gmra.mrb[0].mxu0 %v5257
    %v6084 = vpop.f32.mrb[0].mxu0
    %v6085 = vadd.f32 %v5700, %v6084
    %v6086 = vpop.f32.mrb[0].mxu0
    %6087 = vmatprep.mubr.f32.mxu0 %v5262
    %6088 = vmatmul.mubr.f32.gmra.mrb[0].mxu0 %v5261
    %v6089 = vpop.f32.mrb[0].mxu0
    %v6090 = vadd.f32 %v5705, %v6089
    %v6091 = vpop.f32.mrb[0].mxu0
    %6092 = vmatprep.mubr.f32.mxu0 %v5266
    %6093 = vmatmul.mubr.f32.gmra.mrb[0].mxu0 %v5265
    %v6094 = vpop.f32.mrb[0].mxu0
    %v6095 = vadd.f32 %v5710, %v6094
    %v6096 = vpop.f32.mrb[0].mxu0
    %6097 = vmatprep.mubr.f32.mxu0 %v5270
    %6098 = vmatmul.mubr.f32.gmra.mrb[0].mxu0 %v5269
    %v6099 = vpop.f32.mrb[0].mxu0
    %v6100 = vadd.f32 %v5715, %v6099
    %v6101 = vpop.f32.mrb[0].mxu0
    %6102 = vmatprep.mubr.f32.mxu0 %v5274
    %6103 = vmatmul.mubr.f32.gmra.mrb[0].mxu0 %v5273
    %v6104 = vpop.f32.mrb[0].mxu0
    %v6105 = vadd.f32 %v5720, %v6104
    %v6106 = vpop.f32.mrb[0].mxu0
    %6107 = vmatprep.mubr.f32.mxu0 %v5278
    %6108 = vmatmul.mubr.f32.gmra.mrb[0].mxu0 %v5277
    %v6109 = vpop.f32.mrb[0].mxu0
    %v6110 = vadd.f32 %v5725, %v6109
    %v6111 = vpop.f32.mrb[0].mxu0
    %6112 = vmatprep.mubr.f32.mxu0 %v5282
    %6113 = vmatmul.mubr.f32.gmra.mrb[0].mxu0 %v5281
    %v6114 = vpop.f32.mrb[0].mxu0
    %v6115 = vadd.f32 %v5730, %v6114
    %v6116 = vpop.f32.mrb[0].mxu0
    %6117 = vmatprep.mubr.f32.mxu0 %v5286
    %6118 = vmatmul.mubr.f32.gmra.mrb[0].mxu0 %v5285
    %v6119 = vpop.f32.mrb[0].mxu0
    %v6120 = vadd.f32 %v5735, %v6119
    %v6121 = vpop.f32.mrb[0].mxu0
    %6122 = vmatprep.mubr.f32.mxu0 %v5290
    %6123 = vmatmul.mubr.f32.gmra.mrb[0].mxu0 %v5289
    %v6124 = vpop.f32.mrb[0].mxu0
    %v6125 = vadd.f32 %v5740, %v6124
    %v6126 = vpop.f32.mrb[0].mxu0
    %6127 = vmatprep.mubr.f32.mxu0 %v5294
    %6128 = vmatmul.mubr.f32.gmra.mrb[0].mxu0 %v5293
    %v6129 = vpop.f32.mrb[0].mxu0
    %v6130 = vadd.f32 %v5745, %v6129
    %v6131 = vpop.f32.mrb[0].mxu0
    %6132 = vmatprep.mubr.f32.mxu0 %v5298
    %6133 = vmatmul.mubr.f32.gmra.mrb[0].mxu0 %v5297
    %v6134 = vpop.f32.mrb[0].mxu0
    %v6135 = vadd.f32 %v5750, %v6134
    %v6136 = vpop.f32.mrb[0].mxu0
    %6137 = vmatprep.mubr.f32.mxu0 %v5302
    %6138 = vmatmul.mubr.f32.gmra.mrb[0].mxu0 %v5301
    %v6139 = vpop.f32.mrb[0].mxu0
    %v6140 = vadd.f32 %v5755, %v6139
    %v6141 = vpop.f32.mrb[0].mxu0
    %6142 = vmatprep.mubr.f32.mxu0 %v5306
    %6143 = vmatmul.mubr.f32.gmra.mrb[0].mxu0 %v5305
    %v6144 = vpop.f32.mrb[0].mxu0
    %v6145 = vadd.f32 %v5760, %v6144
    %v6146 = vpop.f32.mrb[0].mxu0
    %6147 = vdwg.mxu0
    %v6148 = vadd.f32 %v2723, %v5830
    %v6149 = vadd.f32 %v2724, %v5835
    %v6150 = vadd.f32 %v2725, %v5840
    %v6151 = vadd.f32 %v2726, %v5845
    %v6152 = vadd.f32 %v2727, %v5850
    %v6153 = vadd.f32 %v2728, %v5855
    %v6154 = vadd.f32 %v2729, %v5860
    %v6155 = vadd.f32 %v2730, %v5865
    %v6156 = vadd.f32 %v2731, %v5870
    %v6157 = vadd.f32 %v2732, %v5875
    %v6158 = vadd.f32 %v2733, %v5880
    %v6159 = vadd.f32 %v2734, %v5885
    %v6160 = vadd.f32 %v2735, %v5890
    %v6161 = vadd.f32 %v2736, %v5895
    %v6162 = vadd.f32 %v2737, %v5900
    %v6163 = vadd.f32 %v2738, %v5905
    %v6164 = vadd.f32 %v2739, %v5910
    %v6165 = vadd.f32 %v2740, %v5915
    %v6166 = vadd.f32 %v2741, %v5920
    %v6167 = vadd.f32 %v2742, %v5925
    %v6168 = vadd.f32 %v2743, %v5930
    %v6169 = vadd.f32 %v2744, %v5935
    %v6170 = vadd.f32 %v2745, %v5940
    %v6171 = vadd.f32 %v2746, %v5945
    %v6172 = vadd.f32 %v2747, %v5950
    %v6173 = vadd.f32 %v2748, %v5955
    %v6174 = vadd.f32 %v2749, %v5960
    %v6175 = vadd.f32 %v2750, %v5965
    %v6176 = vadd.f32 %v2751, %v5970
    %v6177 = vadd.f32 %v2752, %v5975
    %v6178 = vadd.f32 %v2753, %v5980
    %v6179 = vadd.f32 %v2754, %v5985
    %v6180 = vadd.f32 %v2755, %v5990
    %v6181 = vadd.f32 %v2756, %v5995
    %v6182 = vadd.f32 %v2757, %v6000
    %v6183 = vadd.f32 %v2758, %v6005
    %v6184 = vadd.f32 %v2759, %v6010
    %v6185 = vadd.f32 %v2760, %v6015
    %v6186 = vadd.f32 %v2761, %v6020
    %v6187 = vadd.f32 %v2762, %v6025
    %v6188 = vadd.f32 %v2763, %v6030
    %v6189 = vadd.f32 %v2764, %v6035
    %v6190 = vadd.f32 %v2765, %v6040
    %v6191 = vadd.f32 %v2766, %v6045
    %v6192 = vadd.f32 %v2767, %v6050
    %v6193 = vadd.f32 %v2768, %v6055
    %v6194 = vadd.f32 %v2769, %v6060
    %v6195 = vadd.f32 %v2770, %v6065
    %v6196 = vadd.f32 %v2771, %v6070
    %v6197 = vadd.f32 %v2772, %v6075
    %v6198 = vadd.f32 %v2773, %v6080
    %v6199 = vadd.f32 %v2774, %v6085
    %v6200 = vadd.f32 %v2775, %v6090
    %v6201 = vadd.f32 %v2776, %v6095
    %v6202 = vadd.f32 %v2777, %v6100
    %v6203 = vadd.f32 %v2778, %v6105
    %v6204 = vadd.f32 %v2779, %v6110
    %v6205 = vadd.f32 %v2780, %v6115
    %v6206 = vadd.f32 %v2781, %v6120
    %v6207 = vadd.f32 %v2782, %v6125
    %v6208 = vadd.f32 %v2783, %v6130
    %v6209 = vadd.f32 %v2784, %v6135
    %v6210 = vadd.f32 %v2785, %v6140
    %v6211 = vadd.f32 %v2786, %v6145
    %6212 = vadd.xlane.f32.xlu0 %v6148
    %v6213 = vpop.xlane.xlu0 %6212
    %6214 = vadd.xlane.f32.xlu0 %v6149
    %v6215 = vpop.xlane.xlu0 %6214
    %6216 = vadd.xlane.f32.xlu0 %v6150
    %v6217 = vpop.xlane.xlu0 %6216
    %6218 = vadd.xlane.f32.xlu0 %v6151
    %v6219 = vpop.xlane.xlu0 %6218
    %6220 = vadd.xlane.f32.xlu0 %v6152
    %v6221 = vpop.xlane.xlu0 %6220
    %6222 = vadd.xlane.f32.xlu0 %v6153
    %v6223 = vpop.xlane.xlu0 %6222
    %6224 = vadd.xlane.f32.xlu0 %v6154
    %v6225 = vpop.xlane.xlu0 %6224
    %6226 = vadd.xlane.f32.xlu0 %v6155
    %v6227 = vpop.xlane.xlu0 %6226
    %6228 = vadd.xlane.f32.xlu0 %v6156
    %v6229 = vpop.xlane.xlu0 %6228
    %6230 = vadd.xlane.f32.xlu0 %v6157
    %v6231 = vpop.xlane.xlu0 %6230
    %6232 = vadd.xlane.f32.xlu0 %v6158
    %v6233 = vpop.xlane.xlu0 %6232
    %6234 = vadd.xlane.f32.xlu0 %v6159
    %v6235 = vpop.xlane.xlu0 %6234
    %6236 = vadd.xlane.f32.xlu0 %v6160
    %v6237 = vpop.xlane.xlu0 %6236
    %6238 = vadd.xlane.f32.xlu0 %v6161
    %v6239 = vpop.xlane.xlu0 %6238
    %6240 = vadd.xlane.f32.xlu0 %v6162
    %v6241 = vpop.xlane.xlu0 %6240
    %6242 = vadd.xlane.f32.xlu0 %v6163
    %v6243 = vpop.xlane.xlu0 %6242
    %6244 = vadd.xlane.f32.xlu0 %v6164
    %v6245 = vpop.xlane.xlu0 %6244
    %6246 = vadd.xlane.f32.xlu0 %v6165
    %v6247 = vpop.xlane.xlu0 %6246
    %6248 = vadd.xlane.f32.xlu0 %v6166
    %v6249 = vpop.xlane.xlu0 %6248
    %6250 = vadd.xlane.f32.xlu0 %v6167
    %v6251 = vpop.xlane.xlu0 %6250
    %6252 = vadd.xlane.f32.xlu0 %v6168
    %v6253 = vpop.xlane.xlu0 %6252
    %6254 = vadd.xlane.f32.xlu0 %v6169
    %v6255 = vpop.xlane.xlu0 %6254
    %6256 = vadd.xlane.f32.xlu0 %v6170
    %v6257 = vpop.xlane.xlu0 %6256
    %6258 = vadd.xlane.f32.xlu0 %v6171
    %v6259 = vpop.xlane.xlu0 %6258
    %6260 = vadd.xlane.f32.xlu0 %v6172
    %v6261 = vpop.xlane.xlu0 %6260
    %6262 = vadd.xlane.f32.xlu0 %v6173
    %v6263 = vpop.xlane.xlu0 %6262
    %6264 = vadd.xlane.f32.xlu0 %v6174
    %v6265 = vpop.xlane.xlu0 %6264
    %6266 = vadd.xlane.f32.xlu0 %v6175
    %v6267 = vpop.xlane.xlu0 %6266
    %6268 = vadd.xlane.f32.xlu0 %v6176
    %v6269 = vpop.xlane.xlu0 %6268
    %6270 = vadd.xlane.f32.xlu0 %v6177
    %v6271 = vpop.xlane.xlu0 %6270
    %6272 = vadd.xlane.f32.xlu0 %v6178
    %v6273 = vpop.xlane.xlu0 %6272
    %6274 = vadd.xlane.f32.xlu0 %v6179
    %v6275 = vpop.xlane.xlu0 %6274
    %6276 = vadd.xlane.f32.xlu0 %v6180
    %v6277 = vpop.xlane.xlu0 %6276
    %6278 = vadd.xlane.f32.xlu0 %v6181
    %v6279 = vpop.xlane.xlu0 %6278
    %6280 = vadd.xlane.f32.xlu0 %v6182
    %v6281 = vpop.xlane.xlu0 %6280
    %6282 = vadd.xlane.f32.xlu0 %v6183
    %v6283 = vpop.xlane.xlu0 %6282
    %6284 = vadd.xlane.f32.xlu0 %v6184
    %v6285 = vpop.xlane.xlu0 %6284
    %6286 = vadd.xlane.f32.xlu0 %v6185
    %v6287 = vpop.xlane.xlu0 %6286
    %6288 = vadd.xlane.f32.xlu0 %v6186
    %v6289 = vpop.xlane.xlu0 %6288
    %6290 = vadd.xlane.f32.xlu0 %v6187
    %v6291 = vpop.xlane.xlu0 %6290
    %6292 = vadd.xlane.f32.xlu0 %v6188
    %v6293 = vpop.xlane.xlu0 %6292
    %6294 = vadd.xlane.f32.xlu0 %v6189
    %v6295 = vpop.xlane.xlu0 %6294
    %6296 = vadd.xlane.f32.xlu0 %v6190
    %v6297 = vpop.xlane.xlu0 %6296
    %6298 = vadd.xlane.f32.xlu0 %v6191
    %v6299 = vpop.xlane.xlu0 %6298
    %6300 = vadd.xlane.f32.xlu0 %v6192
    %v6301 = vpop.xlane.xlu0 %6300
    %6302 = vadd.xlane.f32.xlu0 %v6193
    %v6303 = vpop.xlane.xlu0 %6302
    %6304 = vadd.xlane.f32.xlu0 %v6194
    %v6305 = vpop.xlane.xlu0 %6304
    %6306 = vadd.xlane.f32.xlu0 %v6195
    %v6307 = vpop.xlane.xlu0 %6306
    %6308 = vadd.xlane.f32.xlu0 %v6196
    %v6309 = vpop.xlane.xlu0 %6308
    %6310 = vadd.xlane.f32.xlu0 %v6197
    %v6311 = vpop.xlane.xlu0 %6310
    %6312 = vadd.xlane.f32.xlu0 %v6198
    %v6313 = vpop.xlane.xlu0 %6312
    %6314 = vadd.xlane.f32.xlu0 %v6199
    %v6315 = vpop.xlane.xlu0 %6314
    %6316 = vadd.xlane.f32.xlu0 %v6200
    %v6317 = vpop.xlane.xlu0 %6316
    %6318 = vadd.xlane.f32.xlu0 %v6201
    %v6319 = vpop.xlane.xlu0 %6318
    %6320 = vadd.xlane.f32.xlu0 %v6202
    %v6321 = vpop.xlane.xlu0 %6320
    %6322 = vadd.xlane.f32.xlu0 %v6203
    %v6323 = vpop.xlane.xlu0 %6322
    %6324 = vadd.xlane.f32.xlu0 %v6204
    %v6325 = vpop.xlane.xlu0 %6324
    %6326 = vadd.xlane.f32.xlu0 %v6205
    %v6327 = vpop.xlane.xlu0 %6326
    %6328 = vadd.xlane.f32.xlu0 %v6206
    %v6329 = vpop.xlane.xlu0 %6328
    %6330 = vadd.xlane.f32.xlu0 %v6207
    %v6331 = vpop.xlane.xlu0 %6330
    %6332 = vadd.xlane.f32.xlu0 %v6208
    %v6333 = vpop.xlane.xlu0 %6332
    %6334 = vadd.xlane.f32.xlu0 %v6209
    %v6335 = vpop.xlane.xlu0 %6334
    %6336 = vadd.xlane.f32.xlu0 %v6210
    %v6337 = vpop.xlane.xlu0 %6336
    %6338 = vadd.xlane.f32.xlu0 %v6211
    %v6339 = vpop.xlane.xlu0 %6338
    %v6340 = vrcp.pop 128.0
    %v6341 = vmul.f32 %v6213, %v6340
    %v6342 = vmul.f32 %v6215, %v6340
    %v6343 = vmul.f32 %v6217, %v6340
    %v6344 = vmul.f32 %v6219, %v6340
    %v6345 = vmul.f32 %v6221, %v6340
    %v6346 = vmul.f32 %v6223, %v6340
    %v6347 = vmul.f32 %v6225, %v6340
    %v6348 = vmul.f32 %v6227, %v6340
    %v6349 = vmul.f32 %v6229, %v6340
    %v6350 = vmul.f32 %v6231, %v6340
    %v6351 = vmul.f32 %v6233, %v6340
    %v6352 = vmul.f32 %v6235, %v6340
    %v6353 = vmul.f32 %v6237, %v6340
    %v6354 = vmul.f32 %v6239, %v6340
    %v6355 = vmul.f32 %v6241, %v6340
    %v6356 = vmul.f32 %v6243, %v6340
    %v6357 = vmul.f32 %v6245, %v6340
    %v6358 = vmul.f32 %v6247, %v6340
    %v6359 = vmul.f32 %v6249, %v6340
    %v6360 = vmul.f32 %v6251, %v6340
    %v6361 = vmul.f32 %v6253, %v6340
    %v6362 = vmul.f32 %v6255, %v6340
    %v6363 = vmul.f32 %v6257, %v6340
    %v6364 = vmul.f32 %v6259, %v6340
    %v6365 = vmul.f32 %v6261, %v6340
    %v6366 = vmul.f32 %v6263, %v6340
    %v6367 = vmul.f32 %v6265, %v6340
    %v6368 = vmul.f32 %v6267, %v6340
    %v6369 = vmul.f32 %v6269, %v6340
    %v6370 = vmul.f32 %v6271, %v6340
    %v6371 = vmul.f32 %v6273, %v6340
    %v6372 = vmul.f32 %v6275, %v6340
    %v6373 = vmul.f32 %v6277, %v6340
    %v6374 = vmul.f32 %v6279, %v6340
    %v6375 = vmul.f32 %v6281, %v6340
    %v6376 = vmul.f32 %v6283, %v6340
    %v6377 = vmul.f32 %v6285, %v6340
    %v6378 = vmul.f32 %v6287, %v6340
    %v6379 = vmul.f32 %v6289, %v6340
    %v6380 = vmul.f32 %v6291, %v6340
    %v6381 = vmul.f32 %v6293, %v6340
    %v6382 = vmul.f32 %v6295, %v6340
    %v6383 = vmul.f32 %v6297, %v6340
    %v6384 = vmul.f32 %v6299, %v6340
    %v6385 = vmul.f32 %v6301, %v6340
    %v6386 = vmul.f32 %v6303, %v6340
    %v6387 = vmul.f32 %v6305, %v6340
    %v6388 = vmul.f32 %v6307, %v6340
    %v6389 = vmul.f32 %v6309, %v6340
    %v6390 = vmul.f32 %v6311, %v6340
    %v6391 = vmul.f32 %v6313, %v6340
    %v6392 = vmul.f32 %v6315, %v6340
    %v6393 = vmul.f32 %v6317, %v6340
    %v6394 = vmul.f32 %v6319, %v6340
    %v6395 = vmul.f32 %v6321, %v6340
    %v6396 = vmul.f32 %v6323, %v6340
    %v6397 = vmul.f32 %v6325, %v6340
    %v6398 = vmul.f32 %v6327, %v6340
    %v6399 = vmul.f32 %v6329, %v6340
    %v6400 = vmul.f32 %v6331, %v6340
    %v6401 = vmul.f32 %v6333, %v6340
    %v6402 = vmul.f32 %v6335, %v6340
    %v6403 = vmul.f32 %v6337, %v6340
    %v6404 = vmul.f32 %v6339, %v6340
    %v6405 = vmul.f32 %v6148, %v6148
    %v6406 = vmul.f32 %v6149, %v6149
    %v6407 = vmul.f32 %v6150, %v6150
    %v6408 = vmul.f32 %v6151, %v6151
    %v6409 = vmul.f32 %v6152, %v6152
    %v6410 = vmul.f32 %v6153, %v6153
    %v6411 = vmul.f32 %v6154, %v6154
    %v6412 = vmul.f32 %v6155, %v6155
    %v6413 = vmul.f32 %v6156, %v6156
    %v6414 = vmul.f32 %v6157, %v6157
    %v6415 = vmul.f32 %v6158, %v6158
    %v6416 = vmul.f32 %v6159, %v6159
    %v6417 = vmul.f32 %v6160, %v6160
    %v6418 = vmul.f32 %v6161, %v6161
    %v6419 = vmul.f32 %v6162, %v6162
    %v6420 = vmul.f32 %v6163, %v6163
    %v6421 = vmul.f32 %v6164, %v6164
    %v6422 = vmul.f32 %v6165, %v6165
    %v6423 = vmul.f32 %v6166, %v6166
    %v6424 = vmul.f32 %v6167, %v6167
    %v6425 = vmul.f32 %v6168, %v6168
    %v6426 = vmul.f32 %v6169, %v6169
    %v6427 = vmul.f32 %v6170, %v6170
    %v6428 = vmul.f32 %v6171, %v6171
    %v6429 = vmul.f32 %v6172, %v6172
    %v6430 = vmul.f32 %v6173, %v6173
    %v6431 = vmul.f32 %v6174, %v6174
    %v6432 = vmul.f32 %v6175, %v6175
    %v6433 = vmul.f32 %v6176, %v6176
    %v6434 = vmul.f32 %v6177, %v6177
    %v6435 = vmul.f32 %v6178, %v6178
    %v6436 = vmul.f32 %v6179, %v6179
    %v6437 = vmul.f32 %v6180, %v6180
    %v6438 = vmul.f32 %v6181, %v6181
    %v6439 = vmul.f32 %v6182, %v6182
    %v6440 = vmul.f32 %v6183, %v6183
    %v6441 = vmul.f32 %v6184, %v6184
    %v6442 = vmul.f32 %v6185, %v6185
    %v6443 = vmul.f32 %v6186, %v6186
    %v6444 = vmul.f32 %v6187, %v6187
    %v6445 = vmul.f32 %v6188, %v6188
    %v6446 = vmul.f32 %v6189, %v6189
    %v6447 = vmul.f32 %v6190, %v6190
    %v6448 = vmul.f32 %v6191, %v6191
    %v6449 = vmul.f32 %v6192, %v6192
    %v6450 = vmul.f32 %v6193, %v6193
    %v6451 = vmul.f32 %v6194, %v6194
    %v6452 = vmul.f32 %v6195, %v6195
    %v6453 = vmul.f32 %v6196, %v6196
    %v6454 = vmul.f32 %v6197, %v6197
    %v6455 = vmul.f32 %v6198, %v6198
    %v6456 = vmul.f32 %v6199, %v6199
    %v6457 = vmul.f32 %v6200, %v6200
    %v6458 = vmul.f32 %v6201, %v6201
    %v6459 = vmul.f32 %v6202, %v6202
    %v6460 = vmul.f32 %v6203, %v6203
    %v6461 = vmul.f32 %v6204, %v6204
    %v6462 = vmul.f32 %v6205, %v6205
    %v6463 = vmul.f32 %v6206, %v6206
    %v6464 = vmul.f32 %v6207, %v6207
    %v6465 = vmul.f32 %v6208, %v6208
    %v6466 = vmul.f32 %v6209, %v6209
    %v6467 = vmul.f32 %v6210, %v6210
    %v6468 = vmul.f32 %v6211, %v6211
    %6469 = vadd.xlane.f32.xlu0 %v6405
    %v6470 = vpop.xlane.xlu0 %6469
    %6471 = vadd.xlane.f32.xlu0 %v6406
    %v6472 = vpop.xlane.xlu0 %6471
    %6473 = vadd.xlane.f32.xlu0 %v6407
    %v6474 = vpop.xlane.xlu0 %6473
    %6475 = vadd.xlane.f32.xlu0 %v6408
    %v6476 = vpop.xlane.xlu0 %6475
    %6477 = vadd.xlane.f32.xlu0 %v6409
    %v6478 = vpop.xlane.xlu0 %6477
    %6479 = vadd.xlane.f32.xlu0 %v6410
    %v6480 = vpop.xlane.xlu0 %6479
    %6481 = vadd.xlane.f32.xlu0 %v6411
    %v6482 = vpop.xlane.xlu0 %6481
    %6483 = vadd.xlane.f32.xlu0 %v6412
    %v6484 = vpop.xlane.xlu0 %6483
    %6485 = vadd.xlane.f32.xlu0 %v6413
    %v6486 = vpop.xlane.xlu0 %6485
    %6487 = vadd.xlane.f32.xlu0 %v6414
    %v6488 = vpop.xlane.xlu0 %6487
    %6489 = vadd.xlane.f32.xlu0 %v6415
    %v6490 = vpop.xlane.xlu0 %6489
    %6491 = vadd.xlane.f32.xlu0 %v6416
    %v6492 = vpop.xlane.xlu0 %6491
    %6493 = vadd.xlane.f32.xlu0 %v6417
    %v6494 = vpop.xlane.xlu0 %6493
    %6495 = vadd.xlane.f32.xlu0 %v6418
    %v6496 = vpop.xlane.xlu0 %6495
    %6497 = vadd.xlane.f32.xlu0 %v6419
    %v6498 = vpop.xlane.xlu0 %6497
    %6499 = vadd.xlane.f32.xlu0 %v6420
    %v6500 = vpop.xlane.xlu0 %6499
    %6501 = vadd.xlane.f32.xlu0 %v6421
    %v6502 = vpop.xlane.xlu0 %6501
    %6503 = vadd.xlane.f32.xlu0 %v6422
    %v6504 = vpop.xlane.xlu0 %6503
    %6505 = vadd.xlane.f32.xlu0 %v6423
    %v6506 = vpop.xlane.xlu0 %6505
    %6507 = vadd.xlane.f32.xlu0 %v6424
    %v6508 = vpop.xlane.xlu0 %6507
    %6509 = vadd.xlane.f32.xlu0 %v6425
    %v6510 = vpop.xlane.xlu0 %6509
    %6511 = vadd.xlane.f32.xlu0 %v6426
    %v6512 = vpop.xlane.xlu0 %6511
    %6513 = vadd.xlane.f32.xlu0 %v6427
    %v6514 = vpop.xlane.xlu0 %6513
    %6515 = vadd.xlane.f32.xlu0 %v6428
    %v6516 = vpop.xlane.xlu0 %6515
    %6517 = vadd.xlane.f32.xlu0 %v6429
    %v6518 = vpop.xlane.xlu0 %6517
    %6519 = vadd.xlane.f32.xlu0 %v6430
    %v6520 = vpop.xlane.xlu0 %6519
    %6521 = vadd.xlane.f32.xlu0 %v6431
    %v6522 = vpop.xlane.xlu0 %6521
    %6523 = vadd.xlane.f32.xlu0 %v6432
    %v6524 = vpop.xlane.xlu0 %6523
    %6525 = vadd.xlane.f32.xlu0 %v6433
    %v6526 = vpop.xlane.xlu0 %6525
    %6527 = vadd.xlane.f32.xlu0 %v6434
    %v6528 = vpop.xlane.xlu0 %6527
    %6529 = vadd.xlane.f32.xlu0 %v6435
    %v6530 = vpop.xlane.xlu0 %6529
    %6531 = vadd.xlane.f32.xlu0 %v6436
    %v6532 = vpop.xlane.xlu0 %6531
    %6533 = vadd.xlane.f32.xlu0 %v6437
    %v6534 = vpop.xlane.xlu0 %6533
    %6535 = vadd.xlane.f32.xlu0 %v6438
    %v6536 = vpop.xlane.xlu0 %6535
    %6537 = vadd.xlane.f32.xlu0 %v6439
    %v6538 = vpop.xlane.xlu0 %6537
    %6539 = vadd.xlane.f32.xlu0 %v6440
    %v6540 = vpop.xlane.xlu0 %6539
    %6541 = vadd.xlane.f32.xlu0 %v6441
    %v6542 = vpop.xlane.xlu0 %6541
    %6543 = vadd.xlane.f32.xlu0 %v6442
    %v6544 = vpop.xlane.xlu0 %6543
    %6545 = vadd.xlane.f32.xlu0 %v6443
    %v6546 = vpop.xlane.xlu0 %6545
    %6547 = vadd.xlane.f32.xlu0 %v6444
    %v6548 = vpop.xlane.xlu0 %6547
    %6549 = vadd.xlane.f32.xlu0 %v6445
    %v6550 = vpop.xlane.xlu0 %6549
    %6551 = vadd.xlane.f32.xlu0 %v6446
    %v6552 = vpop.xlane.xlu0 %6551
    %6553 = vadd.xlane.f32.xlu0 %v6447
    %v6554 = vpop.xlane.xlu0 %6553
    %6555 = vadd.xlane.f32.xlu0 %v6448
    %v6556 = vpop.xlane.xlu0 %6555
    %6557 = vadd.xlane.f32.xlu0 %v6449
    %v6558 = vpop.xlane.xlu0 %6557
    %6559 = vadd.xlane.f32.xlu0 %v6450
    %v6560 = vpop.xlane.xlu0 %6559
    %6561 = vadd.xlane.f32.xlu0 %v6451
    %v6562 = vpop.xlane.xlu0 %6561
    %6563 = vadd.xlane.f32.xlu0 %v6452
    %v6564 = vpop.xlane.xlu0 %6563
    %6565 = vadd.xlane.f32.xlu0 %v6453
    %v6566 = vpop.xlane.xlu0 %6565
    %6567 = vadd.xlane.f32.xlu0 %v6454
    %v6568 = vpop.xlane.xlu0 %6567
    %6569 = vadd.xlane.f32.xlu0 %v6455
    %v6570 = vpop.xlane.xlu0 %6569
    %6571 = vadd.xlane.f32.xlu0 %v6456
    %v6572 = vpop.xlane.xlu0 %6571
    %6573 = vadd.xlane.f32.xlu0 %v6457
    %v6574 = vpop.xlane.xlu0 %6573
    %6575 = vadd.xlane.f32.xlu0 %v6458
    %v6576 = vpop.xlane.xlu0 %6575
    %6577 = vadd.xlane.f32.xlu0 %v6459
    %v6578 = vpop.xlane.xlu0 %6577
    %6579 = vadd.xlane.f32.xlu0 %v6460
    %v6580 = vpop.xlane.xlu0 %6579
    %6581 = vadd.xlane.f32.xlu0 %v6461
    %v6582 = vpop.xlane.xlu0 %6581
    %6583 = vadd.xlane.f32.xlu0 %v6462
    %v6584 = vpop.xlane.xlu0 %6583
    %6585 = vadd.xlane.f32.xlu0 %v6463
    %v6586 = vpop.xlane.xlu0 %6585
    %6587 = vadd.xlane.f32.xlu0 %v6464
    %v6588 = vpop.xlane.xlu0 %6587
    %6589 = vadd.xlane.f32.xlu0 %v6465
    %v6590 = vpop.xlane.xlu0 %6589
    %6591 = vadd.xlane.f32.xlu0 %v6466
    %v6592 = vpop.xlane.xlu0 %6591
    %6593 = vadd.xlane.f32.xlu0 %v6467
    %v6594 = vpop.xlane.xlu0 %6593
    %6595 = vadd.xlane.f32.xlu0 %v6468
    %v6596 = vpop.xlane.xlu0 %6595
    %v6597 = vmul.f32 %v6470, %v6340
    %v6598 = vmul.f32 %v6472, %v6340
    %v6599 = vmul.f32 %v6474, %v6340
    %v6600 = vmul.f32 %v6476, %v6340
    %v6601 = vmul.f32 %v6478, %v6340
    %v6602 = vmul.f32 %v6480, %v6340
    %v6603 = vmul.f32 %v6482, %v6340
    %v6604 = vmul.f32 %v6484, %v6340
    %v6605 = vmul.f32 %v6486, %v6340
    %v6606 = vmul.f32 %v6488, %v6340
    %v6607 = vmul.f32 %v6490, %v6340
    %v6608 = vmul.f32 %v6492, %v6340
    %v6609 = vmul.f32 %v6494, %v6340
    %v6610 = vmul.f32 %v6496, %v6340
    %v6611 = vmul.f32 %v6498, %v6340
    %v6612 = vmul.f32 %v6500, %v6340
    %v6613 = vmul.f32 %v6502, %v6340
    %v6614 = vmul.f32 %v6504, %v6340
    %v6615 = vmul.f32 %v6506, %v6340
    %v6616 = vmul.f32 %v6508, %v6340
    %v6617 = vmul.f32 %v6510, %v6340
    %v6618 = vmul.f32 %v6512, %v6340
    %v6619 = vmul.f32 %v6514, %v6340
    %v6620 = vmul.f32 %v6516, %v6340
    %v6621 = vmul.f32 %v6518, %v6340
    %v6622 = vmul.f32 %v6520, %v6340
    %v6623 = vmul.f32 %v6522, %v6340
    %v6624 = vmul.f32 %v6524, %v6340
    %v6625 = vmul.f32 %v6526, %v6340
    %v6626 = vmul.f32 %v6528, %v6340
    %v6627 = vmul.f32 %v6530, %v6340
    %v6628 = vmul.f32 %v6532, %v6340
    %v6629 = vmul.f32 %v6534, %v6340
    %v6630 = vmul.f32 %v6536, %v6340
    %v6631 = vmul.f32 %v6538, %v6340
    %v6632 = vmul.f32 %v6540, %v6340
    %v6633 = vmul.f32 %v6542, %v6340
    %v6634 = vmul.f32 %v6544, %v6340
    %v6635 = vmul.f32 %v6546, %v6340
    %v6636 = vmul.f32 %v6548, %v6340
    %v6637 = vmul.f32 %v6550, %v6340
    %v6638 = vmul.f32 %v6552, %v6340
    %v6639 = vmul.f32 %v6554, %v6340
    %v6640 = vmul.f32 %v6556, %v6340
    %v6641 = vmul.f32 %v6558, %v6340
    %v6642 = vmul.f32 %v6560, %v6340
    %v6643 = vmul.f32 %v6562, %v6340
    %v6644 = vmul.f32 %v6564, %v6340
    %v6645 = vmul.f32 %v6566, %v6340
    %v6646 = vmul.f32 %v6568, %v6340
    %v6647 = vmul.f32 %v6570, %v6340
    %v6648 = vmul.f32 %v6572, %v6340
    %v6649 = vmul.f32 %v6574, %v6340
    %v6650 = vmul.f32 %v6576, %v6340
    %v6651 = vmul.f32 %v6578, %v6340
    %v6652 = vmul.f32 %v6580, %v6340
    %v6653 = vmul.f32 %v6582, %v6340
    %v6654 = vmul.f32 %v6584, %v6340
    %v6655 = vmul.f32 %v6586, %v6340
    %v6656 = vmul.f32 %v6588, %v6340
    %v6657 = vmul.f32 %v6590, %v6340
    %v6658 = vmul.f32 %v6592, %v6340
    %v6659 = vmul.f32 %v6594, %v6340
    %v6660 = vmul.f32 %v6596, %v6340
    %v6661 = vmul.f32 %v6341, %v6341
    %v6662 = vmul.f32 %v6342, %v6342
    %v6663 = vmul.f32 %v6343, %v6343
    %v6664 = vmul.f32 %v6344, %v6344
    %v6665 = vmul.f32 %v6345, %v6345
    %v6666 = vmul.f32 %v6346, %v6346
    %v6667 = vmul.f32 %v6347, %v6347
    %v6668 = vmul.f32 %v6348, %v6348
    %v6669 = vmul.f32 %v6349, %v6349
    %v6670 = vmul.f32 %v6350, %v6350
    %v6671 = vmul.f32 %v6351, %v6351
    %v6672 = vmul.f32 %v6352, %v6352
    %v6673 = vmul.f32 %v6353, %v6353
    %v6674 = vmul.f32 %v6354, %v6354
    %v6675 = vmul.f32 %v6355, %v6355
    %v6676 = vmul.f32 %v6356, %v6356
    %v6677 = vmul.f32 %v6357, %v6357
    %v6678 = vmul.f32 %v6358, %v6358
    %v6679 = vmul.f32 %v6359, %v6359
    %v6680 = vmul.f32 %v6360, %v6360
    %v6681 = vmul.f32 %v6361, %v6361
    %v6682 = vmul.f32 %v6362, %v6362
    %v6683 = vmul.f32 %v6363, %v6363
    %v6684 = vmul.f32 %v6364, %v6364
    %v6685 = vmul.f32 %v6365, %v6365
    %v6686 = vmul.f32 %v6366, %v6366
    %v6687 = vmul.f32 %v6367, %v6367
    %v6688 = vmul.f32 %v6368, %v6368
    %v6689 = vmul.f32 %v6369, %v6369
    %v6690 = vmul.f32 %v6370, %v6370
    %v6691 = vmul.f32 %v6371, %v6371
    %v6692 = vmul.f32 %v6372, %v6372
    %v6693 = vmul.f32 %v6373, %v6373
    %v6694 = vmul.f32 %v6374, %v6374
    %v6695 = vmul.f32 %v6375, %v6375
    %v6696 = vmul.f32 %v6376, %v6376
    %v6697 = vmul.f32 %v6377, %v6377
    %v6698 = vmul.f32 %v6378, %v6378
    %v6699 = vmul.f32 %v6379, %v6379
    %v6700 = vmul.f32 %v6380, %v6380
    %v6701 = vmul.f32 %v6381, %v6381
    %v6702 = vmul.f32 %v6382, %v6382
    %v6703 = vmul.f32 %v6383, %v6383
    %v6704 = vmul.f32 %v6384, %v6384
    %v6705 = vmul.f32 %v6385, %v6385
    %v6706 = vmul.f32 %v6386, %v6386
    %v6707 = vmul.f32 %v6387, %v6387
    %v6708 = vmul.f32 %v6388, %v6388
    %v6709 = vmul.f32 %v6389, %v6389
    %v6710 = vmul.f32 %v6390, %v6390
    %v6711 = vmul.f32 %v6391, %v6391
    %v6712 = vmul.f32 %v6392, %v6392
    %v6713 = vmul.f32 %v6393, %v6393
    %v6714 = vmul.f32 %v6394, %v6394
    %v6715 = vmul.f32 %v6395, %v6395
    %v6716 = vmul.f32 %v6396, %v6396
    %v6717 = vmul.f32 %v6397, %v6397
    %v6718 = vmul.f32 %v6398, %v6398
    %v6719 = vmul.f32 %v6399, %v6399
    %v6720 = vmul.f32 %v6400, %v6400
    %v6721 = vmul.f32 %v6401, %v6401
    %v6722 = vmul.f32 %v6402, %v6402
    %v6723 = vmul.f32 %v6403, %v6403
    %v6724 = vmul.f32 %v6404, %v6404
    %v6725 = vsub.f32 %v6597, %v6661
    %v6726 = vsub.f32 %v6598, %v6662
    %v6727 = vsub.f32 %v6599, %v6663
    %v6728 = vsub.f32 %v6600, %v6664
    %v6729 = vsub.f32 %v6601, %v6665
    %v6730 = vsub.f32 %v6602, %v6666
    %v6731 = vsub.f32 %v6603, %v6667
    %v6732 = vsub.f32 %v6604, %v6668
    %v6733 = vsub.f32 %v6605, %v6669
    %v6734 = vsub.f32 %v6606, %v6670
    %v6735 = vsub.f32 %v6607, %v6671
    %v6736 = vsub.f32 %v6608, %v6672
    %v6737 = vsub.f32 %v6609, %v6673
    %v6738 = vsub.f32 %v6610, %v6674
    %v6739 = vsub.f32 %v6611, %v6675
    %v6740 = vsub.f32 %v6612, %v6676
    %v6741 = vsub.f32 %v6613, %v6677
    %v6742 = vsub.f32 %v6614, %v6678
    %v6743 = vsub.f32 %v6615, %v6679
    %v6744 = vsub.f32 %v6616, %v6680
    %v6745 = vsub.f32 %v6617, %v6681
    %v6746 = vsub.f32 %v6618, %v6682
    %v6747 = vsub.f32 %v6619, %v6683
    %v6748 = vsub.f32 %v6620, %v6684
    %v6749 = vsub.f32 %v6621, %v6685
    %v6750 = vsub.f32 %v6622, %v6686
    %v6751 = vsub.f32 %v6623, %v6687
    %v6752 = vsub.f32 %v6624, %v6688
    %v6753 = vsub.f32 %v6625, %v6689
    %v6754 = vsub.f32 %v6626, %v6690
    %v6755 = vsub.f32 %v6627, %v6691
    %v6756 = vsub.f32 %v6628, %v6692
    %v6757 = vsub.f32 %v6629, %v6693
    %v6758 = vsub.f32 %v6630, %v6694
    %v6759 = vsub.f32 %v6631, %v6695
    %v6760 = vsub.f32 %v6632, %v6696
    %v6761 = vsub.f32 %v6633, %v6697
    %v6762 = vsub.f32 %v6634, %v6698
    %v6763 = vsub.f32 %v6635, %v6699
    %v6764 = vsub.f32 %v6636, %v6700
    %v6765 = vsub.f32 %v6637, %v6701
    %v6766 = vsub.f32 %v6638, %v6702
    %v6767 = vsub.f32 %v6639, %v6703
    %v6768 = vsub.f32 %v6640, %v6704
    %v6769 = vsub.f32 %v6641, %v6705
    %v6770 = vsub.f32 %v6642, %v6706
    %v6771 = vsub.f32 %v6643, %v6707
    %v6772 = vsub.f32 %v6644, %v6708
    %v6773 = vsub.f32 %v6645, %v6709
    %v6774 = vsub.f32 %v6646, %v6710
    %v6775 = vsub.f32 %v6647, %v6711
    %v6776 = vsub.f32 %v6648, %v6712
    %v6777 = vsub.f32 %v6649, %v6713
    %v6778 = vsub.f32 %v6650, %v6714
    %v6779 = vsub.f32 %v6651, %v6715
    %v6780 = vsub.f32 %v6652, %v6716
    %v6781 = vsub.f32 %v6653, %v6717
    %v6782 = vsub.f32 %v6654, %v6718
    %v6783 = vsub.f32 %v6655, %v6719
    %v6784 = vsub.f32 %v6656, %v6720
    %v6785 = vsub.f32 %v6657, %v6721
    %v6786 = vsub.f32 %v6658, %v6722
    %v6787 = vsub.f32 %v6659, %v6723
    %v6788 = vsub.f32 %v6660, %v6724
    %v6789 = vmax.f32 %v6725, 0.0
    %v6790 = vmax.f32 %v6726, 0.0
    %v6791 = vmax.f32 %v6727, 0.0
    %v6792 = vmax.f32 %v6728, 0.0
    %v6793 = vmax.f32 %v6729, 0.0
    %v6794 = vmax.f32 %v6730, 0.0
    %v6795 = vmax.f32 %v6731, 0.0
    %v6796 = vmax.f32 %v6732, 0.0
    %v6797 = vmax.f32 %v6733, 0.0
    %v6798 = vmax.f32 %v6734, 0.0
    %v6799 = vmax.f32 %v6735, 0.0
    %v6800 = vmax.f32 %v6736, 0.0
    %v6801 = vmax.f32 %v6737, 0.0
    %v6802 = vmax.f32 %v6738, 0.0
    %v6803 = vmax.f32 %v6739, 0.0
    %v6804 = vmax.f32 %v6740, 0.0
    %v6805 = vmax.f32 %v6741, 0.0
    %v6806 = vmax.f32 %v6742, 0.0
    %v6807 = vmax.f32 %v6743, 0.0
    %v6808 = vmax.f32 %v6744, 0.0
    %v6809 = vmax.f32 %v6745, 0.0
    %v6810 = vmax.f32 %v6746, 0.0
    %v6811 = vmax.f32 %v6747, 0.0
    %v6812 = vmax.f32 %v6748, 0.0
    %v6813 = vmax.f32 %v6749, 0.0
    %v6814 = vmax.f32 %v6750, 0.0
    %v6815 = vmax.f32 %v6751, 0.0
    %v6816 = vmax.f32 %v6752, 0.0
    %v6817 = vmax.f32 %v6753, 0.0
    %v6818 = vmax.f32 %v6754, 0.0
    %v6819 = vmax.f32 %v6755, 0.0
    %v6820 = vmax.f32 %v6756, 0.0
    %v6821 = vmax.f32 %v6757, 0.0
    %v6822 = vmax.f32 %v6758, 0.0
    %v6823 = vmax.f32 %v6759, 0.0
    %v6824 = vmax.f32 %v6760, 0.0
    %v6825 = vmax.f32 %v6761, 0.0
    %v6826 = vmax.f32 %v6762, 0.0
    %v6827 = vmax.f32 %v6763, 0.0
    %v6828 = vmax.f32 %v6764, 0.0
    %v6829 = vmax.f32 %v6765, 0.0
    %v6830 = vmax.f32 %v6766, 0.0
    %v6831 = vmax.f32 %v6767, 0.0
    %v6832 = vmax.f32 %v6768, 0.0
    %v6833 = vmax.f32 %v6769, 0.0
    %v6834 = vmax.f32 %v6770, 0.0
    %v6835 = vmax.f32 %v6771, 0.0
    %v6836 = vmax.f32 %v6772, 0.0
    %v6837 = vmax.f32 %v6773, 0.0
    %v6838 = vmax.f32 %v6774, 0.0
    %v6839 = vmax.f32 %v6775, 0.0
    %v6840 = vmax.f32 %v6776, 0.0
    %v6841 = vmax.f32 %v6777, 0.0
    %v6842 = vmax.f32 %v6778, 0.0
    %v6843 = vmax.f32 %v6779, 0.0
    %v6844 = vmax.f32 %v6780, 0.0
    %v6845 = vmax.f32 %v6781, 0.0
    %v6846 = vmax.f32 %v6782, 0.0
    %v6847 = vmax.f32 %v6783, 0.0
    %v6848 = vmax.f32 %v6784, 0.0
    %v6849 = vmax.f32 %v6785, 0.0
    %v6850 = vmax.f32 %v6786, 0.0
    %v6851 = vmax.f32 %v6787, 0.0
    %v6852 = vmax.f32 %v6788, 0.0
    %v6853 = vsub.f32 %v6148, %v6341
    %v6854 = vsub.f32 %v6149, %v6342
    %v6855 = vsub.f32 %v6150, %v6343
    %v6856 = vsub.f32 %v6151, %v6344
    %v6857 = vsub.f32 %v6152, %v6345
    %v6858 = vsub.f32 %v6153, %v6346
    %v6859 = vsub.f32 %v6154, %v6347
    %v6860 = vsub.f32 %v6155, %v6348
    %v6861 = vsub.f32 %v6156, %v6349
    %v6862 = vsub.f32 %v6157, %v6350
    %v6863 = vsub.f32 %v6158, %v6351
    %v6864 = vsub.f32 %v6159, %v6352
    %v6865 = vsub.f32 %v6160, %v6353
    %v6866 = vsub.f32 %v6161, %v6354
    %v6867 = vsub.f32 %v6162, %v6355
    %v6868 = vsub.f32 %v6163, %v6356
    %v6869 = vsub.f32 %v6164, %v6357
    %v6870 = vsub.f32 %v6165, %v6358
    %v6871 = vsub.f32 %v6166, %v6359
    %v6872 = vsub.f32 %v6167, %v6360
    %v6873 = vsub.f32 %v6168, %v6361
    %v6874 = vsub.f32 %v6169, %v6362
    %v6875 = vsub.f32 %v6170, %v6363
    %v6876 = vsub.f32 %v6171, %v6364
    %v6877 = vsub.f32 %v6172, %v6365
    %v6878 = vsub.f32 %v6173, %v6366
    %v6879 = vsub.f32 %v6174, %v6367
    %v6880 = vsub.f32 %v6175, %v6368
    %v6881 = vsub.f32 %v6176, %v6369
    %v6882 = vsub.f32 %v6177, %v6370
    %v6883 = vsub.f32 %v6178, %v6371
    %v6884 = vsub.f32 %v6179, %v6372
    %v6885 = vsub.f32 %v6180, %v6373
    %v6886 = vsub.f32 %v6181, %v6374
    %v6887 = vsub.f32 %v6182, %v6375
    %v6888 = vsub.f32 %v6183, %v6376
    %v6889 = vsub.f32 %v6184, %v6377
    %v6890 = vsub.f32 %v6185, %v6378
    %v6891 = vsub.f32 %v6186, %v6379
    %v6892 = vsub.f32 %v6187, %v6380
    %v6893 = vsub.f32 %v6188, %v6381
    %v6894 = vsub.f32 %v6189, %v6382
    %v6895 = vsub.f32 %v6190, %v6383
    %v6896 = vsub.f32 %v6191, %v6384
    %v6897 = vsub.f32 %v6192, %v6385
    %v6898 = vsub.f32 %v6193, %v6386
    %v6899 = vsub.f32 %v6194, %v6387
    %v6900 = vsub.f32 %v6195, %v6388
    %v6901 = vsub.f32 %v6196, %v6389
    %v6902 = vsub.f32 %v6197, %v6390
    %v6903 = vsub.f32 %v6198, %v6391
    %v6904 = vsub.f32 %v6199, %v6392
    %v6905 = vsub.f32 %v6200, %v6393
    %v6906 = vsub.f32 %v6201, %v6394
    %v6907 = vsub.f32 %v6202, %v6395
    %v6908 = vsub.f32 %v6203, %v6396
    %v6909 = vsub.f32 %v6204, %v6397
    %v6910 = vsub.f32 %v6205, %v6398
    %v6911 = vsub.f32 %v6206, %v6399
    %v6912 = vsub.f32 %v6207, %v6400
    %v6913 = vsub.f32 %v6208, %v6401
    %v6914 = vsub.f32 %v6209, %v6402
    %v6915 = vsub.f32 %v6210, %v6403
    %v6916 = vsub.f32 %v6211, %v6404
    %v6917 = vadd.f32 %v6789, 1e-05
    %v6918 = vadd.f32 %v6790, 1e-05
    %v6919 = vadd.f32 %v6791, 1e-05
    %v6920 = vadd.f32 %v6792, 1e-05
    %v6921 = vadd.f32 %v6793, 1e-05
    %v6922 = vadd.f32 %v6794, 1e-05
    %v6923 = vadd.f32 %v6795, 1e-05
    %v6924 = vadd.f32 %v6796, 1e-05
    %v6925 = vadd.f32 %v6797, 1e-05
    %v6926 = vadd.f32 %v6798, 1e-05
    %v6927 = vadd.f32 %v6799, 1e-05
    %v6928 = vadd.f32 %v6800, 1e-05
    %v6929 = vadd.f32 %v6801, 1e-05
    %v6930 = vadd.f32 %v6802, 1e-05
    %v6931 = vadd.f32 %v6803, 1e-05
    %v6932 = vadd.f32 %v6804, 1e-05
    %v6933 = vadd.f32 %v6805, 1e-05
    %v6934 = vadd.f32 %v6806, 1e-05
    %v6935 = vadd.f32 %v6807, 1e-05
    %v6936 = vadd.f32 %v6808, 1e-05
    %v6937 = vadd.f32 %v6809, 1e-05
    %v6938 = vadd.f32 %v6810, 1e-05
    %v6939 = vadd.f32 %v6811, 1e-05
    %v6940 = vadd.f32 %v6812, 1e-05
    %v6941 = vadd.f32 %v6813, 1e-05
    %v6942 = vadd.f32 %v6814, 1e-05
    %v6943 = vadd.f32 %v6815, 1e-05
    %v6944 = vadd.f32 %v6816, 1e-05
    %v6945 = vadd.f32 %v6817, 1e-05
    %v6946 = vadd.f32 %v6818, 1e-05
    %v6947 = vadd.f32 %v6819, 1e-05
    %v6948 = vadd.f32 %v6820, 1e-05
    %v6949 = vadd.f32 %v6821, 1e-05
    %v6950 = vadd.f32 %v6822, 1e-05
    %v6951 = vadd.f32 %v6823, 1e-05
    %v6952 = vadd.f32 %v6824, 1e-05
    %v6953 = vadd.f32 %v6825, 1e-05
    %v6954 = vadd.f32 %v6826, 1e-05
    %v6955 = vadd.f32 %v6827, 1e-05
    %v6956 = vadd.f32 %v6828, 1e-05
    %v6957 = vadd.f32 %v6829, 1e-05
    %v6958 = vadd.f32 %v6830, 1e-05
    %v6959 = vadd.f32 %v6831, 1e-05
    %v6960 = vadd.f32 %v6832, 1e-05
    %v6961 = vadd.f32 %v6833, 1e-05
    %v6962 = vadd.f32 %v6834, 1e-05
    %v6963 = vadd.f32 %v6835, 1e-05
    %v6964 = vadd.f32 %v6836, 1e-05
    %v6965 = vadd.f32 %v6837, 1e-05
    %v6966 = vadd.f32 %v6838, 1e-05
    %v6967 = vadd.f32 %v6839, 1e-05
    %v6968 = vadd.f32 %v6840, 1e-05
    %v6969 = vadd.f32 %v6841, 1e-05
    %v6970 = vadd.f32 %v6842, 1e-05
    %v6971 = vadd.f32 %v6843, 1e-05
    %v6972 = vadd.f32 %v6844, 1e-05
    %v6973 = vadd.f32 %v6845, 1e-05
    %v6974 = vadd.f32 %v6846, 1e-05
    %v6975 = vadd.f32 %v6847, 1e-05
    %v6976 = vadd.f32 %v6848, 1e-05
    %v6977 = vadd.f32 %v6849, 1e-05
    %v6978 = vadd.f32 %v6850, 1e-05
    %v6979 = vadd.f32 %v6851, 1e-05
    %v6980 = vadd.f32 %v6852, 1e-05
    %v6981 = vrsqrt.pop %v6917
    %v6982 = vrsqrt.pop %v6918
    %v6983 = vrsqrt.pop %v6919
    %v6984 = vrsqrt.pop %v6920
    %v6985 = vrsqrt.pop %v6921
    %v6986 = vrsqrt.pop %v6922
    %v6987 = vrsqrt.pop %v6923
    %v6988 = vrsqrt.pop %v6924
    %v6989 = vrsqrt.pop %v6925
    %v6990 = vrsqrt.pop %v6926
    %v6991 = vrsqrt.pop %v6927
    %v6992 = vrsqrt.pop %v6928
    %v6993 = vrsqrt.pop %v6929
    %v6994 = vrsqrt.pop %v6930
    %v6995 = vrsqrt.pop %v6931
    %v6996 = vrsqrt.pop %v6932
    %v6997 = vrsqrt.pop %v6933
    %v6998 = vrsqrt.pop %v6934
    %v6999 = vrsqrt.pop %v6935
    %v7000 = vrsqrt.pop %v6936
    %v7001 = vrsqrt.pop %v6937
    %v7002 = vrsqrt.pop %v6938
    %v7003 = vrsqrt.pop %v6939
    %v7004 = vrsqrt.pop %v6940
    %v7005 = vrsqrt.pop %v6941
    %v7006 = vrsqrt.pop %v6942
    %v7007 = vrsqrt.pop %v6943
    %v7008 = vrsqrt.pop %v6944
    %v7009 = vrsqrt.pop %v6945
    %v7010 = vrsqrt.pop %v6946
    %v7011 = vrsqrt.pop %v6947
    %v7012 = vrsqrt.pop %v6948
    %v7013 = vrsqrt.pop %v6949
    %v7014 = vrsqrt.pop %v6950
    %v7015 = vrsqrt.pop %v6951
    %v7016 = vrsqrt.pop %v6952
    %v7017 = vrsqrt.pop %v6953
    %v7018 = vrsqrt.pop %v6954
    %v7019 = vrsqrt.pop %v6955
    %v7020 = vrsqrt.pop %v6956
    %v7021 = vrsqrt.pop %v6957
    %v7022 = vrsqrt.pop %v6958
    %v7023 = vrsqrt.pop %v6959
    %v7024 = vrsqrt.pop %v6960
    %v7025 = vrsqrt.pop %v6961
    %v7026 = vrsqrt.pop %v6962
    %v7027 = vrsqrt.pop %v6963
    %v7028 = vrsqrt.pop %v6964
    %v7029 = vrsqrt.pop %v6965
    %v7030 = vrsqrt.pop %v6966
    %v7031 = vrsqrt.pop %v6967
    %v7032 = vrsqrt.pop %v6968
    %v7033 = vrsqrt.pop %v6969
    %v7034 = vrsqrt.pop %v6970
    %v7035 = vrsqrt.pop %v6971
    %v7036 = vrsqrt.pop %v6972
    %v7037 = vrsqrt.pop %v6973
    %v7038 = vrsqrt.pop %v6974
    %v7039 = vrsqrt.pop %v6975
    %v7040 = vrsqrt.pop %v6976
    %v7041 = vrsqrt.pop %v6977
    %v7042 = vrsqrt.pop %v6978
    %v7043 = vrsqrt.pop %v6979
    %v7044 = vrsqrt.pop %v6980
    %v7045 = vmul.f32 %v6853, %v6981
    %v7046 = vmul.f32 %v6854, %v6982
    %v7047 = vmul.f32 %v6855, %v6983
    %v7048 = vmul.f32 %v6856, %v6984
    %v7049 = vmul.f32 %v6857, %v6985
    %v7050 = vmul.f32 %v6858, %v6986
    %v7051 = vmul.f32 %v6859, %v6987
    %v7052 = vmul.f32 %v6860, %v6988
    %v7053 = vmul.f32 %v6861, %v6989
    %v7054 = vmul.f32 %v6862, %v6990
    %v7055 = vmul.f32 %v6863, %v6991
    %v7056 = vmul.f32 %v6864, %v6992
    %v7057 = vmul.f32 %v6865, %v6993
    %v7058 = vmul.f32 %v6866, %v6994
    %v7059 = vmul.f32 %v6867, %v6995
    %v7060 = vmul.f32 %v6868, %v6996
    %v7061 = vmul.f32 %v6869, %v6997
    %v7062 = vmul.f32 %v6870, %v6998
    %v7063 = vmul.f32 %v6871, %v6999
    %v7064 = vmul.f32 %v6872, %v7000
    %v7065 = vmul.f32 %v6873, %v7001
    %v7066 = vmul.f32 %v6874, %v7002
    %v7067 = vmul.f32 %v6875, %v7003
    %v7068 = vmul.f32 %v6876, %v7004
    %v7069 = vmul.f32 %v6877, %v7005
    %v7070 = vmul.f32 %v6878, %v7006
    %v7071 = vmul.f32 %v6879, %v7007
    %v7072 = vmul.f32 %v6880, %v7008
    %v7073 = vmul.f32 %v6881, %v7009
    %v7074 = vmul.f32 %v6882, %v7010
    %v7075 = vmul.f32 %v6883, %v7011
    %v7076 = vmul.f32 %v6884, %v7012
    %v7077 = vmul.f32 %v6885, %v7013
    %v7078 = vmul.f32 %v6886, %v7014
    %v7079 = vmul.f32 %v6887, %v7015
    %v7080 = vmul.f32 %v6888, %v7016
    %v7081 = vmul.f32 %v6889, %v7017
    %v7082 = vmul.f32 %v6890, %v7018
    %v7083 = vmul.f32 %v6891, %v7019
    %v7084 = vmul.f32 %v6892, %v7020
    %v7085 = vmul.f32 %v6893, %v7021
    %v7086 = vmul.f32 %v6894, %v7022
    %v7087 = vmul.f32 %v6895, %v7023
    %v7088 = vmul.f32 %v6896, %v7024
    %v7089 = vmul.f32 %v6897, %v7025
    %v7090 = vmul.f32 %v6898, %v7026
    %v7091 = vmul.f32 %v6899, %v7027
    %v7092 = vmul.f32 %v6900, %v7028
    %v7093 = vmul.f32 %v6901, %v7029
    %v7094 = vmul.f32 %v6902, %v7030
    %v7095 = vmul.f32 %v6903, %v7031
    %v7096 = vmul.f32 %v6904, %v7032
    %v7097 = vmul.f32 %v6905, %v7033
    %v7098 = vmul.f32 %v6906, %v7034
    %v7099 = vmul.f32 %v6907, %v7035
    %v7100 = vmul.f32 %v6908, %v7036
    %v7101 = vmul.f32 %v6909, %v7037
    %v7102 = vmul.f32 %v6910, %v7038
    %v7103 = vmul.f32 %v6911, %v7039
    %v7104 = vmul.f32 %v6912, %v7040
    %v7105 = vmul.f32 %v6913, %v7041
    %v7106 = vmul.f32 %v6914, %v7042
    %v7107 = vmul.f32 %v6915, %v7043
    %v7108 = vmul.f32 %v6916, %v7044
    %v7109 = vld [vmem:[%s13] sm:$0x1]
    %v7111 = vlaneseq
    %v7112 = vshrl.u32 %v7111, 7
    %v7113 = vsub.s32 0, %v7112
    %v7114 = vrot.slane %v7109, %v7113
    %v7116 = vmul.f32 %v7045, %v7114
    %v7117 = vmul.f32 %v7046, %v7114
    %v7118 = vmul.f32 %v7047, %v7114
    %v7119 = vmul.f32 %v7048, %v7114
    %v7120 = vmul.f32 %v7049, %v7114
    %v7121 = vmul.f32 %v7050, %v7114
    %v7122 = vmul.f32 %v7051, %v7114
    %v7123 = vmul.f32 %v7052, %v7114
    %v7124 = vmul.f32 %v7053, %v7114
    %v7125 = vmul.f32 %v7054, %v7114
    %v7126 = vmul.f32 %v7055, %v7114
    %v7127 = vmul.f32 %v7056, %v7114
    %v7128 = vmul.f32 %v7057, %v7114
    %v7129 = vmul.f32 %v7058, %v7114
    %v7130 = vmul.f32 %v7059, %v7114
    %v7131 = vmul.f32 %v7060, %v7114
    %v7132 = vmul.f32 %v7061, %v7114
    %v7133 = vmul.f32 %v7062, %v7114
    %v7134 = vmul.f32 %v7063, %v7114
    %v7135 = vmul.f32 %v7064, %v7114
    %v7136 = vmul.f32 %v7065, %v7114
    %v7137 = vmul.f32 %v7066, %v7114
    %v7138 = vmul.f32 %v7067, %v7114
    %v7139 = vmul.f32 %v7068, %v7114
    %v7140 = vmul.f32 %v7069, %v7114
    %v7141 = vmul.f32 %v7070, %v7114
    %v7142 = vmul.f32 %v7071, %v7114
    %v7143 = vmul.f32 %v7072, %v7114
    %v7144 = vmul.f32 %v7073, %v7114
    %v7145 = vmul.f32 %v7074, %v7114
    %v7146 = vmul.f32 %v7075, %v7114
    %v7147 = vmul.f32 %v7076, %v7114
    %v7148 = vmul.f32 %v7077, %v7114
    %v7149 = vmul.f32 %v7078, %v7114
    %v7150 = vmul.f32 %v7079, %v7114
    %v7151 = vmul.f32 %v7080, %v7114
    %v7152 = vmul.f32 %v7081, %v7114
    %v7153 = vmul.f32 %v7082, %v7114
    %v7154 = vmul.f32 %v7083, %v7114
    %v7155 = vmul.f32 %v7084, %v7114
    %v7156 = vmul.f32 %v7085, %v7114
    %v7157 = vmul.f32 %v7086, %v7114
    %v7158 = vmul.f32 %v7087, %v7114
    %v7159 = vmul.f32 %v7088, %v7114
    %v7160 = vmul.f32 %v7089, %v7114
    %v7161 = vmul.f32 %v7090, %v7114
    %v7162 = vmul.f32 %v7091, %v7114
    %v7163 = vmul.f32 %v7092, %v7114
    %v7164 = vmul.f32 %v7093, %v7114
    %v7165 = vmul.f32 %v7094, %v7114
    %v7166 = vmul.f32 %v7095, %v7114
    %v7167 = vmul.f32 %v7096, %v7114
    %v7168 = vmul.f32 %v7097, %v7114
    %v7169 = vmul.f32 %v7098, %v7114
    %v7170 = vmul.f32 %v7099, %v7114
    %v7171 = vmul.f32 %v7100, %v7114
    %v7172 = vmul.f32 %v7101, %v7114
    %v7173 = vmul.f32 %v7102, %v7114
    %v7174 = vmul.f32 %v7103, %v7114
    %v7175 = vmul.f32 %v7104, %v7114
    %v7176 = vmul.f32 %v7105, %v7114
    %v7177 = vmul.f32 %v7106, %v7114
    %v7178 = vmul.f32 %v7107, %v7114
    %v7179 = vmul.f32 %v7108, %v7114
    %v7180 = vld [vmem:[%s14] sm:$0x1]
    %v7182 = vlaneseq
    %v7183 = vshrl.u32 %v7182, 7
    %v7184 = vsub.s32 0, %v7183
    %v7185 = vrot.slane %v7180, %v7184
    %v7187 = vadd.f32 %v7116, %v7185
    %v7188 = vadd.f32 %v7117, %v7185
    %v7189 = vadd.f32 %v7118, %v7185
    %v7190 = vadd.f32 %v7119, %v7185
    %v7191 = vadd.f32 %v7120, %v7185
    %v7192 = vadd.f32 %v7121, %v7185
    %v7193 = vadd.f32 %v7122, %v7185
    %v7194 = vadd.f32 %v7123, %v7185
    %v7195 = vadd.f32 %v7124, %v7185
    %v7196 = vadd.f32 %v7125, %v7185
    %v7197 = vadd.f32 %v7126, %v7185
    %v7198 = vadd.f32 %v7127, %v7185
    %v7199 = vadd.f32 %v7128, %v7185
    %v7200 = vadd.f32 %v7129, %v7185
    %v7201 = vadd.f32 %v7130, %v7185
    %v7202 = vadd.f32 %v7131, %v7185
    %v7203 = vadd.f32 %v7132, %v7185
    %v7204 = vadd.f32 %v7133, %v7185
    %v7205 = vadd.f32 %v7134, %v7185
    %v7206 = vadd.f32 %v7135, %v7185
    %v7207 = vadd.f32 %v7136, %v7185
    %v7208 = vadd.f32 %v7137, %v7185
    %v7209 = vadd.f32 %v7138, %v7185
    %v7210 = vadd.f32 %v7139, %v7185
    %v7211 = vadd.f32 %v7140, %v7185
    %v7212 = vadd.f32 %v7141, %v7185
    %v7213 = vadd.f32 %v7142, %v7185
    %v7214 = vadd.f32 %v7143, %v7185
    %v7215 = vadd.f32 %v7144, %v7185
    %v7216 = vadd.f32 %v7145, %v7185
    %v7217 = vadd.f32 %v7146, %v7185
    %v7218 = vadd.f32 %v7147, %v7185
    %v7219 = vadd.f32 %v7148, %v7185
    %v7220 = vadd.f32 %v7149, %v7185
    %v7221 = vadd.f32 %v7150, %v7185
    %v7222 = vadd.f32 %v7151, %v7185
    %v7223 = vadd.f32 %v7152, %v7185
    %v7224 = vadd.f32 %v7153, %v7185
    %v7225 = vadd.f32 %v7154, %v7185
    %v7226 = vadd.f32 %v7155, %v7185
    %v7227 = vadd.f32 %v7156, %v7185
    %v7228 = vadd.f32 %v7157, %v7185
    %v7229 = vadd.f32 %v7158, %v7185
    %v7230 = vadd.f32 %v7159, %v7185
    %v7231 = vadd.f32 %v7160, %v7185
    %v7232 = vadd.f32 %v7161, %v7185
    %v7233 = vadd.f32 %v7162, %v7185
    %v7234 = vadd.f32 %v7163, %v7185
    %v7235 = vadd.f32 %v7164, %v7185
    %v7236 = vadd.f32 %v7165, %v7185
    %v7237 = vadd.f32 %v7166, %v7185
    %v7238 = vadd.f32 %v7167, %v7185
    %v7239 = vadd.f32 %v7168, %v7185
    %v7240 = vadd.f32 %v7169, %v7185
    %v7241 = vadd.f32 %v7170, %v7185
    %v7242 = vadd.f32 %v7171, %v7185
    %v7243 = vadd.f32 %v7172, %v7185
    %v7244 = vadd.f32 %v7173, %v7185
    %v7245 = vadd.f32 %v7174, %v7185
    %v7246 = vadd.f32 %v7175, %v7185
    %v7247 = vadd.f32 %v7176, %v7185
    %v7248 = vadd.f32 %v7177, %v7185
    %v7249 = vadd.f32 %v7178, %v7185
    %v7250 = vadd.f32 %v7179, %v7185
    %7251 = vst [vmem:[#allocation22] sm:$0xff] %v7187
    %7252 = vst [vmem:[#allocation22 + $0x8] sm:$0xff] %v7188
    %7253 = vst [vmem:[#allocation22 + $0x10] sm:$0xff] %v7189
    %7254 = vst [vmem:[#allocation22 + $0x18] sm:$0xff] %v7190
    %7255 = vst [vmem:[#allocation22 + $0x20] sm:$0xff] %v7191
    %7256 = vst [vmem:[#allocation22 + $0x28] sm:$0xff] %v7192
    %7257 = vst [vmem:[#allocation22 + $0x30] sm:$0xff] %v7193
    %7258 = vst [vmem:[#allocation22 + $0x38] sm:$0xff] %v7194
    %7259 = vst [vmem:[#allocation22 + $0x40] sm:$0xff] %v7195
    %7260 = vst [vmem:[#allocation22 + $0x48] sm:$0xff] %v7196
    %7261 = vst [vmem:[#allocation22 + $0x50] sm:$0xff] %v7197
    %7262 = vst [vmem:[#allocation22 + $0x58] sm:$0xff] %v7198
    %7263 = vst [vmem:[#allocation22 + $0x60] sm:$0xff] %v7199
    %7264 = vst [vmem:[#allocation22 + $0x68] sm:$0xff] %v7200
    %7265 = vst [vmem:[#allocation22 + $0x70] sm:$0xff] %v7201
    %7266 = vst [vmem:[#allocation22 + $0x78] sm:$0xff] %v7202
    %7267 = vst [vmem:[#allocation22 + $0x80] sm:$0xff] %v7203
    %7268 = vst [vmem:[#allocation22 + $0x88] sm:$0xff] %v7204
    %7269 = vst [vmem:[#allocation22 + $0x90] sm:$0xff] %v7205
    %7270 = vst [vmem:[#allocation22 + $0x98] sm:$0xff] %v7206
    %7271 = vst [vmem:[#allocation22 + $0xa0] sm:$0xff] %v7207
    %7272 = vst [vmem:[#allocation22 + $0xa8] sm:$0xff] %v7208
    %7273 = vst [vmem:[#allocation22 + $0xb0] sm:$0xff] %v7209
    %7274 = vst [vmem:[#allocation22 + $0xb8] sm:$0xff] %v7210
    %7275 = vst [vmem:[#allocation22 + $0xc0] sm:$0xff] %v7211
    %7276 = vst [vmem:[#allocation22 + $0xc8] sm:$0xff] %v7212
    %7277 = vst [vmem:[#allocation22 + $0xd0] sm:$0xff] %v7213
    %7278 = vst [vmem:[#allocation22 + $0xd8] sm:$0xff] %v7214
    %7279 = vst [vmem:[#allocation22 + $0xe0] sm:$0xff] %v7215
    %7280 = vst [vmem:[#allocation22 + $0xe8] sm:$0xff] %v7216
    %7281 = vst [vmem:[#allocation22 + $0xf0] sm:$0xff] %v7217
    %7282 = vst [vmem:[#allocation22 + $0xf8] sm:$0xff] %v7218
    %7283 = vst [vmem:[#allocation22 + $0x100] sm:$0xff] %v7219
    %7284 = vst [vmem:[#allocation22 + $0x108] sm:$0xff] %v7220
    %7285 = vst [vmem:[#allocation22 + $0x110] sm:$0xff] %v7221
    %7286 = vst [vmem:[#allocation22 + $0x118] sm:$0xff] %v7222
    %7287 = vst [vmem:[#allocation22 + $0x120] sm:$0xff] %v7223
    %7288 = vst [vmem:[#allocation22 + $0x128] sm:$0xff] %v7224
    %7289 = vst [vmem:[#allocation22 + $0x130] sm:$0xff] %v7225
    %7290 = vst [vmem:[#allocation22 + $0x138] sm:$0xff] %v7226
    %7291 = vst [vmem:[#allocation22 + $0x140] sm:$0xff] %v7227
    %7292 = vst [vmem:[#allocation22 + $0x148] sm:$0xff] %v7228
    %7293 = vst [vmem:[#allocation22 + $0x150] sm:$0xff] %v7229
    %7294 = vst [vmem:[#allocation22 + $0x158] sm:$0xff] %v7230
    %7295 = vst [vmem:[#allocation22 + $0x160] sm:$0xff] %v7231
    %7296 = vst [vmem:[#allocation22 + $0x168] sm:$0xff] %v7232
    %7297 = vst [vmem:[#allocation22 + $0x170] sm:$0xff] %v7233
    %7298 = vst [vmem:[#allocation22 + $0x178] sm:$0xff] %v7234
    %7299 = vst [vmem:[#allocation22 + $0x180] sm:$0xff] %v7235
    %7300 = vst [vmem:[#allocation22 + $0x188] sm:$0xff] %v7236
    %7301 = vst [vmem:[#allocation22 + $0x190] sm:$0xff] %v7237
    %7302 = vst [vmem:[#allocation22 + $0x198] sm:$0xff] %v7238
    %7303 = vst [vmem:[#allocation22 + $0x1a0] sm:$0xff] %v7239
    %7304 = vst [vmem:[#allocation22 + $0x1a8] sm:$0xff] %v7240
    %7305 = vst [vmem:[#allocation22 + $0x1b0] sm:$0xff] %v7241
    %7306 = vst [vmem:[#allocation22 + $0x1b8] sm:$0xff] %v7242
    %7307 = vst [vmem:[#allocation22 + $0x1c0] sm:$0xff] %v7243
    %7308 = vst [vmem:[#allocation22 + $0x1c8] sm:$0xff] %v7244
    %7309 = vst [vmem:[#allocation22 + $0x1d0] sm:$0xff] %v7245
    %7310 = vst [vmem:[#allocation22 + $0x1d8] sm:$0xff] %v7246
    %7311 = vst [vmem:[#allocation22 + $0x1e0] sm:$0xff] %v7247
    %7312 = vst [vmem:[#allocation22 + $0x1e8] sm:$0xff] %v7248
    %7313 = vst [vmem:[#allocation22 + $0x1f0] sm:$0xff] %v7249
    %7314 = vst [vmem:[#allocation22 + $0x1f8] sm:$0xff] %v7250
    // Predicated region
    $region109: #{tpu_custom_call.1} parent=1 // pred_check
      _
    $region110: #{tpu_custom_call.1} parent=1 // pred_check_branch
      %7316 = sbr.rel (0) target = $region112
    $region111: #{tpu_custom_call.1} parent=1 // pred_region
      %s7318 = ssub.s32 8192, 8192
      %7319 = vsyncadd [#allocation6], %s7318
      %s7320 = sshll.u32 [#allocation22], 4
      %s7321 = int_to_ptr.vmem [resolvable:$true] %s7320
      %7326 = dma.vmem_to_hbm [thread:$0]  %s7321, 8192, %s15, [#allocation6], 128, 128, 8
    $region112: #{tpu_custom_call.1} parent=1 // pred_fallthru
      _
    // Predicated region
    $region113: #{tpu_custom_call.1} parent=1 // pred_check
      _
    $region114: #{tpu_custom_call.1} parent=1 // pred_check_branch
      %7328 = sbr.rel (0) target = $region116
    $region115: #{tpu_custom_call.1} parent=1 // pred_region
      %7329 = dma.done [#allocation6], 8192
    $region116: #{tpu_custom_call.1} parent=1 // pred_fallthru
      _
    %7330 = vsyncpa [#allocation5], 1
    %7331 = vsyncpa [#allocation10], 1
    %7332 = vsyncpa [#allocation20], 1
    %7333 = vsyncpa [#allocation6], 1
    %7334 = vsyncpa [#allocation7], 1
    %7335 = vsyncpa [#allocation8], 1
    %7336 = vsyncpa [#allocation14], 1
    %7337 = vsyncpa [#allocation18], 1

</llo_original>
